<compile_context>
chip_gen: v6e
topology: v6e:2x2x1
jax: 0.10.0
libtpu: 0.0.40
codegen_flags: <defaults>
</compile_context>

<pallas_src>
import numpy as np
import jax
import jax.numpy as jnp
from jax.experimental import pallas as pl
from jax.experimental.pallas import tpu as pltpu


NUM_LABELS = 133
HIDDEN = 500
HIDDEN_PAD = 512     # 500 -> lane multiple
OUT_PAD = 256        # 133 -> lane multiple

# (H_in, W_in, Cin, Cout) for the three conv layers (32x32 RGB input implied by
# linear_input_dims = 64 * 4 * 4 and three /2 pools).
LAYERS = (
    (32, 32, 3, 16),
    (16, 16, 16, 32),
    (8, 8, 32, 64),
)


# ----------------------------------------------------------------------------
# Offline constant builders (numpy / trace-time; baked into the jit as constants)
# ----------------------------------------------------------------------------
def _banded_conv_weight(w_oihw, W):
    """Torch-layout conv weight (Cout, Cin, 3, 3) -> (3, W*Cin, W*Cout) bf16.

    For activation rows laid out as cols = x*Cin + ci, the conv output row y is
        out[y, x2*Cout + co] = sum_ky  act[y + ky - 1] @ banded[ky]
    (the 3 kx taps + x zero-padding are folded into the band structure)."""
    cout, cin, _, _ = w_oihw.shape
    x = np.arange(W)[:, None]
    x2 = np.arange(W)[None, :]
    kx = x - x2 + 1                                        # (W, W)
    valid = ((kx >= 0) & (kx <= 2)).astype(np.float32)
    kxc = np.clip(kx, 0, 2)
    wt = jnp.transpose(w_oihw, (2, 3, 1, 0))               # (ky, kx, Cin, Cout)
    banded = wt[:, kxc] * jnp.asarray(valid)[None, :, :, None, None]
    banded = jnp.transpose(banded, (0, 1, 3, 2, 4))        # (ky, x, ci, x2, co)
    return banded.reshape(3, W * cin, W * cout).astype(jnp.bfloat16)


def _block_shift(bt, H, s):
    """(bt*H, bt*H) 0/1 matrix: row (b, y) selects row (b, y+s) (zero at edges)."""
    m = np.zeros((H, H), np.float32)
    for y in range(H):
        if 0 <= y + s < H:
            m[y, y + s] = 1.0
    return np.kron(np.eye(bt, dtype=np.float32), m)


def _row_pool(bt, H, parity):
    """(bt*H//2, bt*H) 0/1 matrix: pooled row (b, i) selects row (b, 2i+parity)."""
    m = np.zeros((H // 2, H), np.float32)
    for i in range(H // 2):
        m[i, 2 * i + parity] = 1.0
    return np.kron(np.eye(bt, dtype=np.float32), m)


def _col_pool(W, cout, parity):
    """(W*Cout, (W//2)*Cout) 0/1 matrix: pooled col (j, c) selects col (2j+parity, c)."""
    m = np.zeros((W * cout, (W // 2) * cout), np.float32)
    eye = np.eye(cout, dtype=np.float32)
    for j in range(W // 2):
        x = 2 * j + parity
        m[x * cout:(x + 1) * cout, j * cout:(j + 1) * cout] = eye
    return m


def _fc_row_select(bt):
    """(4, bt, 4*bt) 0/1: sel[h][b] picks row (b, h) of the (bt*4, 256) feature map."""
    s = np.zeros((4, bt, 4 * bt), np.float32)
    for h in range(4):
        for b in range(bt):
            s[h, b, 4 * b + h] = 1.0
    return s


def _pick_batch_tile(batch):
    # Keep >= 2 grid steps whenever possible so the "parallel" grid axis can be
    # sharded across both v7x TensorCores; cap bt at 8 (plenty of M per matmul).
    for bt in (8, 4, 2, 1):
        if batch % bt == 0 and batch // bt >= 2:
            return bt
    return batch


# ----------------------------------------------------------------------------
# The single fused kernel: 3x (conv+ReLU+pool) + fc1 + ReLU + fc2, per batch tile
# ----------------------------------------------------------------------------
def _mm(a, b):
    return jnp.dot(a, b, preferred_element_type=jnp.float32)


def fused_net_kernel(
    x_ref,                                                   # (bt, 32, 96) bf16
    bw1_ref, cb1_ref, rs1_ref, rp1_ref, cp1_ref,
    bw2_ref, cb2_ref, rs2_ref, rp2_ref, cp2_ref,
    bw3_ref, cb3_ref, rs3_ref, rp3_ref, cp3_ref,
    sel_ref, fw1_ref, fb1_ref, fw2_ref, fb2_ref,
    o_ref,                                                   # (1, bt, 256) f32
):
    bt = x_ref.shape[0]
    bf16 = jnp.bfloat16

    def conv_relu_pool(act, bw_ref, cb_ref, rs_ref, rp_ref, cp_ref):
        # act: (bt*H, W*Cin) bf16, rows = (image, y), cols = (x, ci)
        prev = _mm(rs_ref[0], act).astype(bf16)              # row y-1 (0 at top edge)
        nxt = _mm(rs_ref[1], act).astype(bf16)               # row y+1 (0 at bottom edge)
        conv = _mm(prev, bw_ref[0]) + _mm(act, bw_ref[1]) + _mm(nxt, bw_ref[2])
        a = jnp.maximum(conv + cb_ref[...], 0.0).astype(bf16)          # bias + ReLU
        # 2x2 max-pool: even/odd row select, then even/odd x-block select (0/1 matmuls)
        rmax = jnp.maximum(_mm(rp_ref[0], a), _mm(rp_ref[1], a)).astype(bf16)
        pooled = jnp.maximum(_mm(rmax, cp_ref[0]), _mm(rmax, cp_ref[1]))
        return pooled.astype(bf16)                           # (bt*H/2, (W/2)*Cout)

    act = x_ref[...].reshape(bt * 32, 32 * 3)                # (bt*32, 96)
    act = conv_relu_pool(act, bw1_ref, cb1_ref, rs1_ref, rp1_ref, cp1_ref)  # (bt*16, 256)
    act = conv_relu_pool(act, bw2_ref, cb2_ref, rs2_ref, rp2_ref, cp2_ref)  # (bt*8,  256)
    act = conv_relu_pool(act, bw3_ref, cb3_ref, rs3_ref, rp3_ref, cp3_ref)  # (bt*4,  256)

    # TODO(synk): nn.Dropout(0.25) is identity here (eval/inference semantics).

    # fc1: hidden[b] = sum_h  feat_row(b, h) @ fw1[h]   (fw1 rows in (h, w, c) order)
    acc = jnp.zeros((bt, HIDDEN_PAD), jnp.float32)
    for h in range(4):
        rows_h = _mm(sel_ref[h], act).astype(bf16)           # (bt, 256)
        acc = acc + _mm(rows_h, fw1_ref[h])                  # (bt, 512) f32
    hid = jnp.maximum(acc + fb1_ref[...], 0.0).astype(bf16)
    logits = _mm(hid, fw2_ref[...]) + fb2_ref[...]           # (bt, 256) f32
    o_ref[...] = logits.reshape(1, bt, OUT_PAD)


# ----------------------------------------------------------------------------
# Wrapper
# ----------------------------------------------------------------------------
def net_forward(x_nchw, kp):
    batch = x_nchw.shape[0]
    bt = _pick_batch_tile(batch)
    grid = batch // bt
    bf16 = jnp.bfloat16

    # NCHW -> NHWC -> (B, 32, W*Cin) row-major (x, ci) lanes; single bf16 cast.
    x = jnp.transpose(x_nchw, (0, 2, 3, 1)).reshape(batch, 32, 32 * 3).astype(bf16)

    # bt-dependent 0/1 structural matrices (trace-time numpy -> jit constants).
    rs, rp = {}, {}
    for i, (H, _, _, _) in enumerate(LAYERS, start=1):
        rs[i] = jnp.asarray(np.stack([_block_shift(bt, H, -1),
                                      _block_shift(bt, H, +1)]), bf16)
        rp[i] = jnp.asarray(np.stack([_row_pool(bt, H, 0),
                                      _row_pool(bt, H, 1)]), bf16)
    sel = jnp.asarray(_fc_row_select(bt), bf16)

    # Weights/constants use full-array blocks with constant index maps: fetched
    # into VMEM once and kept resident across the (sequential-per-core) grid
    # (Pallas skips the copy when the block index does not change).
    def full(arr):
        n = arr.ndim
        return pl.BlockSpec(arr.shape, lambda i, _n=n: (0,) * _n)

    operands = [
        x,
        kp["bw1"], kp["cb1"], rs[1], rp[1], kp["cp1"],
        kp["bw2"], kp["cb2"], rs[2], rp[2], kp["cp2"],
        kp["bw3"], kp["cb3"], rs[3], rp[3], kp["cp3"],
        sel, kp["fw1"], kp["fb1"], kp["fw2"], kp["fb2"],
    ]
    in_specs = [pl.BlockSpec((bt, 32, 32 * 3), lambda i: (i, 0, 0))]
    in_specs += [full(a) for a in operands[1:]]

    out = pl.pallas_call(
        fused_net_kernel,
        out_shape=jax.ShapeDtypeStruct((grid, bt, OUT_PAD), jnp.float32),
        grid_spec=pltpu.PrefetchScalarGridSpec(
            num_scalar_prefetch=0,
            grid=(grid,),
            in_specs=in_specs,
            out_specs=pl.BlockSpec((1, bt, OUT_PAD), lambda i: (i, 0, 0)),
        ),
        compiler_params=pltpu.CompilerParams(
            dimension_semantics=("parallel",),
            vmem_limit_bytes=48 * 1024 * 1024,
        ),
    )(*operands)
    return out.reshape(batch, OUT_PAD)[:, :NUM_LABELS]       # (B, 133) f32


# ----------------------------------------------------------------------------
# Parameter init (torch-like layouts) + conversion to kernel layouts
# ----------------------------------------------------------------------------
def init_raw_params(key):
    """PyTorch-default-like uniform(-1/sqrt(fan_in), +1/sqrt(fan_in)) init.

    conv weights are torch layout (Cout, Cin, 3, 3); fc1 weight is stored as
    (1024, 500) with the input dim already in (h, w, c) order (see header note)."""
    ks = jax.random.split(key, 10)

    def u(k, shape, fan_in):
        s = 1.0 / float(np.sqrt(fan_in))
        return jax.random.uniform(k, shape, jnp.float32, -s, s)

    raw = {}
    kidx = 0
    for i, (_, _, cin, cout) in enumerate(LAYERS, start=1):
        raw[f"c{i}w"] = u(ks[kidx], (cout, cin, 3, 3), cin * 9); kidx += 1
        raw[f"c{i}b"] = u(ks[kidx], (cout,), cin * 9); kidx += 1
    raw["f1w"] = u(ks[6], (1024, HIDDEN), 1024)
    raw["f1b"] = u(ks[7], (HIDDEN,), 1024)
    raw["f2w"] = u(ks[8], (HIDDEN, NUM_LABELS), HIDDEN)
    raw["f2b"] = u(ks[9], (NUM_LABELS,), HIDDEN)
    return raw


def prepare_params(raw):
    """Raw params -> banded / tiled / zero-padded kernel operands."""
    f32, bf16 = jnp.float32, jnp.bfloat16
    p = {}
    for i, (_, W, _, cout) in enumerate(LAYERS, start=1):
        p[f"bw{i}"] = _banded_conv_weight(raw[f"c{i}w"], W)                    # (3, W*Cin, W*Cout)
        p[f"cb{i}"] = jnp.tile(raw[f"c{i}b"].astype(f32), W)[None, :]          # (1, W*Cout)
        p[f"cp{i}"] = jnp.asarray(np.stack([_col_pool(W, cout, 0),
                                            _col_pool(W, cout, 1)]), bf16)
    fw1 = jnp.zeros((1024, HIDDEN_PAD), f32).at[:, :HIDDEN].set(raw["f1w"])
    p["fw1"] = fw1.reshape(4, 256, HIDDEN_PAD).astype(bf16)                    # h-major split
    p["fb1"] = jnp.zeros((1, HIDDEN_PAD), f32).at[:, :HIDDEN].set(raw["f1b"])
    fw2 = jnp.zeros((HIDDEN_PAD, OUT_PAD), f32).at[:HIDDEN, :NUM_LABELS].set(raw["f2w"])
    p["fw2"] = fw2.astype(bf16)
    p["fb2"] = jnp.zeros((1, OUT_PAD), f32).at[:, :NUM_LABELS].set(raw["f2b"])
    return p


# ----------------------------------------------------------------------------
# Pure-JAX reference with the same bf16 cast points (for a tolerance check)
# ----------------------------------------------------------------------------
def net_reference(x_nchw, raw):
    f32, bf16 = jnp.float32, jnp.bfloat16
    x = jnp.transpose(x_nchw, (0, 2, 3, 1)).astype(bf16)      # NHWC
    for i in range(1, 4):
        w = raw[f"c{i}w"].astype(bf16)                        # (Cout, Cin, 3, 3)
        y = jax.lax.conv_general_dilated(
            x, jnp.transpose(w, (2, 3, 1, 0)),                # HWIO
            window_strides=(1, 1), padding=((1, 1), (1, 1)),
            dimension_numbers=("NHWC", "HWIO", "NHWC"),
            preferred_element_type=f32)
        y = jnp.maximum(y + raw[f"c{i}b"][None, None, None, :], 0.0).astype(bf16)
        b_, hh, ww, cc = y.shape
        x = y.reshape(b_, hh // 2, 2, ww // 2, 2, cc).max(axis=(2, 4))
    feat = x.reshape(x.shape[0], -1)                          # (B, 1024), (h, w, c) order
    hid = jnp.dot(feat, raw["f1w"].astype(bf16), preferred_element_type=f32) + raw["f1b"]
    hid = jnp.maximum(hid, 0.0).astype(bf16)
    return jnp.dot(hid, raw["f2w"].astype(bf16), preferred_element_type=f32) + raw["f2b"]


if __name__ == "__main__":
    key = jax.random.PRNGKey(0)
    k_x, k_p = jax.random.split(key)
    B = 2
    x = jax.random.normal(k_x, (B, 3, 32, 32), jnp.float32)

    raw = init_raw_params(k_p)
    kparams = prepare_params(raw)

    fwd = jax.jit(net_forward)
    out = jax.block_until_ready(fwd(x, kparams))
    assert out.shape == (B, NUM_LABELS) and out.dtype == jnp.float32

    ref = jax.block_until_ready(net_reference(x, raw))
    err = float(jnp.max(jnp.abs(out - ref)) / (jnp.max(jnp.abs(ref)) + 1e-6))
    assert err < 5e-2, f"kernel/reference mismatch: normalized max err {err:.4f}"
    print("KERNEL_OK")
</pallas_src>

<mosaic_0001>
module attributes {stable_mosaic.version = 11 : i64} {
  func.func @fused_net_kernel(%arg0: i32, %arg1: memref<1x32x96xbf16, #tpu.memory_space<vmem>>, %arg2: memref<3x96x512xbf16, #tpu.memory_space<vmem>>, %arg3: memref<1x512xf32, #tpu.memory_space<vmem>>, %arg4: memref<2x32x32xbf16, #tpu.memory_space<vmem>>, %arg5: memref<2x16x32xbf16, #tpu.memory_space<vmem>>, %arg6: memref<2x512x256xbf16, #tpu.memory_space<vmem>>, %arg7: memref<3x256x512xbf16, #tpu.memory_space<vmem>>, %arg8: memref<1x512xf32, #tpu.memory_space<vmem>>, %arg9: memref<2x16x16xbf16, #tpu.memory_space<vmem>>, %arg10: memref<2x8x16xbf16, #tpu.memory_space<vmem>>, %arg11: memref<2x512x256xbf16, #tpu.memory_space<vmem>>, %arg12: memref<3x256x512xbf16, #tpu.memory_space<vmem>>, %arg13: memref<1x512xf32, #tpu.memory_space<vmem>>, %arg14: memref<2x8x8xbf16, #tpu.memory_space<vmem>>, %arg15: memref<2x4x8xbf16, #tpu.memory_space<vmem>>, %arg16: memref<2x512x256xbf16, #tpu.memory_space<vmem>>, %arg17: memref<4x1x4xbf16, #tpu.memory_space<vmem>>, %arg18: memref<4x256x512xbf16, #tpu.memory_space<vmem>>, %arg19: memref<1x512xf32, #tpu.memory_space<vmem>>, %arg20: memref<512x256xbf16, #tpu.memory_space<vmem>>, %arg21: memref<1x256xf32, #tpu.memory_space<vmem>>, %arg22: memref<1x1x256xf32, #tpu.memory_space<vmem>>) attributes {dimension_semantics = [#tpu.dimension_semantics<parallel>], iteration_bounds = array<i64: 2>, scalar_prefetch = 0 : i64, scratch_operands = 0 : i64, tpu.core_type = #tpu.core_type<tc>, window_params = [{transform_indices = @transform_0, window_bounds = array<i64: 1, 32, 96>}, {pipeline_mode = #tpu.pipeline_mode<synchronous>, transform_indices = @transform_1, window_bounds = array<i64: 3, 96, 512>}, {pipeline_mode = #tpu.pipeline_mode<synchronous>, transform_indices = @transform_2, window_bounds = array<i64: 1, 512>}, {pipeline_mode = #tpu.pipeline_mode<synchronous>, transform_indices = @transform_3, window_bounds = array<i64: 2, 32, 32>}, {pipeline_mode = #tpu.pipeline_mode<synchronous>, transform_indices = @transform_4, window_bounds = array<i64: 2, 16, 32>}, {pipeline_mode = #tpu.pipeline_mode<synchronous>, transform_indices = @transform_5, window_bounds = array<i64: 2, 512, 256>}, {pipeline_mode = #tpu.pipeline_mode<synchronous>, transform_indices = @transform_6, window_bounds = array<i64: 3, 256, 512>}, {pipeline_mode = #tpu.pipeline_mode<synchronous>, transform_indices = @transform_7, window_bounds = array<i64: 1, 512>}, {pipeline_mode = #tpu.pipeline_mode<synchronous>, transform_indices = @transform_8, window_bounds = array<i64: 2, 16, 16>}, {pipeline_mode = #tpu.pipeline_mode<synchronous>, transform_indices = @transform_9, window_bounds = array<i64: 2, 8, 16>}, {pipeline_mode = #tpu.pipeline_mode<synchronous>, transform_indices = @transform_10, window_bounds = array<i64: 2, 512, 256>}, {pipeline_mode = #tpu.pipeline_mode<synchronous>, transform_indices = @transform_11, window_bounds = array<i64: 3, 256, 512>}, {pipeline_mode = #tpu.pipeline_mode<synchronous>, transform_indices = @transform_12, window_bounds = array<i64: 1, 512>}, {pipeline_mode = #tpu.pipeline_mode<synchronous>, transform_indices = @transform_13, window_bounds = array<i64: 2, 8, 8>}, {pipeline_mode = #tpu.pipeline_mode<synchronous>, transform_indices = @transform_14, window_bounds = array<i64: 2, 4, 8>}, {pipeline_mode = #tpu.pipeline_mode<synchronous>, transform_indices = @transform_15, window_bounds = array<i64: 2, 512, 256>}, {pipeline_mode = #tpu.pipeline_mode<synchronous>, transform_indices = @transform_16, window_bounds = array<i64: 4, 1, 4>}, {pipeline_mode = #tpu.pipeline_mode<synchronous>, transform_indices = @transform_17, window_bounds = array<i64: 4, 256, 512>}, {pipeline_mode = #tpu.pipeline_mode<synchronous>, transform_indices = @transform_18, window_bounds = array<i64: 1, 512>}, {pipeline_mode = #tpu.pipeline_mode<synchronous>, transform_indices = @transform_19, window_bounds = array<i64: 512, 256>}, {pipeline_mode = #tpu.pipeline_mode<synchronous>, transform_indices = @transform_20, window_bounds = array<i64: 1, 256>}, {transform_indices = @transform_21, window_bounds = array<i64: 1, 1, 256>}]} {
    %c0 = arith.constant 0 : index
    %c0_0 = arith.constant 0 : index
    %c0_1 = arith.constant 0 : index
    %0 = vector.load %arg1[%c0, %c0_0, %c0_1] : memref<1x32x96xbf16, #tpu.memory_space<vmem>>, vector<1x32x96xbf16>
    %1 = vector.shape_cast %0 : vector<1x32x96xbf16> to vector<32x96xbf16>
    %c0_2 = arith.constant 0 : index
    %c0_3 = arith.constant 0 : index
    %c0_4 = arith.constant 0 : index
    %2 = vector.load %arg4[%c0_2, %c0_3, %c0_4] : memref<2x32x32xbf16, #tpu.memory_space<vmem>>, vector<1x32x32xbf16>
    %3 = vector.shape_cast %2 : vector<1x32x32xbf16> to vector<32x32xbf16>
    %cst = arith.constant dense<0.000000e+00> : vector<32x96xf32>
    %4 = tpu.matmul %3, %1, %cst {dimension_numbers = #tpu.dot_dimension_numbers<[1], [0], [0], [1], [0, 0, 1, 1], [], []>} : vector<32x32xbf16>, vector<32x96xbf16>, vector<32x96xf32> -> vector<32x96xf32>
    %5 = arith.truncf %4 : vector<32x96xf32> to vector<32x96xbf16>
    %c1 = arith.constant 1 : index
    %c0_5 = arith.constant 0 : index
    %c0_6 = arith.constant 0 : index
    %6 = vector.load %arg4[%c1, %c0_5, %c0_6] : memref<2x32x32xbf16, #tpu.memory_space<vmem>>, vector<1x32x32xbf16>
    %7 = vector.shape_cast %6 : vector<1x32x32xbf16> to vector<32x32xbf16>
    %cst_7 = arith.constant dense<0.000000e+00> : vector<32x96xf32>
    %8 = tpu.matmul %7, %1, %cst_7 {dimension_numbers = #tpu.dot_dimension_numbers<[1], [0], [0], [1], [0, 0, 1, 1], [], []>} : vector<32x32xbf16>, vector<32x96xbf16>, vector<32x96xf32> -> vector<32x96xf32>
    %9 = arith.truncf %8 : vector<32x96xf32> to vector<32x96xbf16>
    %c0_8 = arith.constant 0 : index
    %c0_9 = arith.constant 0 : index
    %c0_10 = arith.constant 0 : index
    %10 = vector.load %arg2[%c0_8, %c0_9, %c0_10] : memref<3x96x512xbf16, #tpu.memory_space<vmem>>, vector<1x96x512xbf16>
    %11 = vector.shape_cast %10 : vector<1x96x512xbf16> to vector<96x512xbf16>
    %cst_11 = arith.constant dense<0.000000e+00> : vector<32x512xf32>
    %12 = tpu.matmul %5, %11, %cst_11 {dimension_numbers = #tpu.dot_dimension_numbers<[1], [0], [0], [1], [0, 0, 1, 1], [], []>} : vector<32x96xbf16>, vector<96x512xbf16>, vector<32x512xf32> -> vector<32x512xf32>
    %c1_12 = arith.constant 1 : index
    %c0_13 = arith.constant 0 : index
    %c0_14 = arith.constant 0 : index
    %13 = vector.load %arg2[%c1_12, %c0_13, %c0_14] : memref<3x96x512xbf16, #tpu.memory_space<vmem>>, vector<1x96x512xbf16>
    %14 = vector.shape_cast %13 : vector<1x96x512xbf16> to vector<96x512xbf16>
    %cst_15 = arith.constant dense<0.000000e+00> : vector<32x512xf32>
    %15 = tpu.matmul %1, %14, %cst_15 {dimension_numbers = #tpu.dot_dimension_numbers<[1], [0], [0], [1], [0, 0, 1, 1], [], []>} : vector<32x96xbf16>, vector<96x512xbf16>, vector<32x512xf32> -> vector<32x512xf32>
    %16 = arith.addf %12, %15 : vector<32x512xf32>
    %c2 = arith.constant 2 : index
    %c0_16 = arith.constant 0 : index
    %c0_17 = arith.constant 0 : index
    %17 = vector.load %arg2[%c2, %c0_16, %c0_17] : memref<3x96x512xbf16, #tpu.memory_space<vmem>>, vector<1x96x512xbf16>
    %18 = vector.shape_cast %17 : vector<1x96x512xbf16> to vector<96x512xbf16>
    %cst_18 = arith.constant dense<0.000000e+00> : vector<32x512xf32>
    %19 = tpu.matmul %9, %18, %cst_18 {dimension_numbers = #tpu.dot_dimension_numbers<[1], [0], [0], [1], [0, 0, 1, 1], [], []>} : vector<32x96xbf16>, vector<96x512xbf16>, vector<32x512xf32> -> vector<32x512xf32>
    %20 = arith.addf %16, %19 : vector<32x512xf32>
    %c0_19 = arith.constant 0 : index
    %c0_20 = arith.constant 0 : index
    %21 = vector.load %arg3[%c0_19, %c0_20] : memref<1x512xf32, #tpu.memory_space<vmem>>, vector<1x512xf32>
    %22 = vector.broadcast %21 : vector<1x512xf32> to vector<32x512xf32>
    %23 = arith.addf %20, %22 : vector<32x512xf32>
    %cst_21 = arith.constant 0.000000e+00 : f32
    %24 = vector.broadcast %cst_21 : f32 to vector<32x512xf32>
    %25 = arith.maximumf %23, %24 : vector<32x512xf32>
    %26 = arith.truncf %25 : vector<32x512xf32> to vector<32x512xbf16>
    %c0_22 = arith.constant 0 : index
    %c0_23 = arith.constant 0 : index
    %c0_24 = arith.constant 0 : index
    %27 = vector.load %arg5[%c0_22, %c0_23, %c0_24] : memref<2x16x32xbf16, #tpu.memory_space<vmem>>, vector<1x16x32xbf16>
    %28 = vector.shape_cast %27 : vector<1x16x32xbf16> to vector<16x32xbf16>
    %cst_25 = arith.constant dense<0.000000e+00> : vector<16x512xf32>
    %29 = tpu.matmul %28, %26, %cst_25 {dimension_numbers = #tpu.dot_dimension_numbers<[1], [0], [0], [1], [0, 0, 1, 1], [], []>} : vector<16x32xbf16>, vector<32x512xbf16>, vector<16x512xf32> -> vector<16x512xf32>
    %c1_26 = arith.constant 1 : index
    %c0_27 = arith.constant 0 : index
    %c0_28 = arith.constant 0 : index
    %30 = vector.load %arg5[%c1_26, %c0_27, %c0_28] : memref<2x16x32xbf16, #tpu.memory_space<vmem>>, vector<1x16x32xbf16>
    %31 = vector.shape_cast %30 : vector<1x16x32xbf16> to vector<16x32xbf16>
    %cst_29 = arith.constant dense<0.000000e+00> : vector<16x512xf32>
    %32 = tpu.matmul %31, %26, %cst_29 {dimension_numbers = #tpu.dot_dimension_numbers<[1], [0], [0], [1], [0, 0, 1, 1], [], []>} : vector<16x32xbf16>, vector<32x512xbf16>, vector<16x512xf32> -> vector<16x512xf32>
    %33 = arith.maximumf %29, %32 : vector<16x512xf32>
    %34 = arith.truncf %33 : vector<16x512xf32> to vector<16x512xbf16>
    %c0_30 = arith.constant 0 : index
    %c0_31 = arith.constant 0 : index
    %c0_32 = arith.constant 0 : index
    %35 = vector.load %arg6[%c0_30, %c0_31, %c0_32] : memref<2x512x256xbf16, #tpu.memory_space<vmem>>, vector<1x512x256xbf16>
    %36 = vector.shape_cast %35 : vector<1x512x256xbf16> to vector<512x256xbf16>
    %cst_33 = arith.constant dense<0.000000e+00> : vector<16x256xf32>
    %37 = tpu.matmul %34, %36, %cst_33 {dimension_numbers = #tpu.dot_dimension_numbers<[1], [0], [0], [1], [0, 0, 1, 1], [], []>} : vector<16x512xbf16>, vector<512x256xbf16>, vector<16x256xf32> -> vector<16x256xf32>
    %c1_34 = arith.constant 1 : index
    %c0_35 = arith.constant 0 : index
    %c0_36 = arith.constant 0 : index
    %38 = vector.load %arg6[%c1_34, %c0_35, %c0_36] : memref<2x512x256xbf16, #tpu.memory_space<vmem>>, vector<1x512x256xbf16>
    %39 = vector.shape_cast %38 : vector<1x512x256xbf16> to vector<512x256xbf16>
    %cst_37 = arith.constant dense<0.000000e+00> : vector<16x256xf32>
    %40 = tpu.matmul %34, %39, %cst_37 {dimension_numbers = #tpu.dot_dimension_numbers<[1], [0], [0], [1], [0, 0, 1, 1], [], []>} : vector<16x512xbf16>, vector<512x256xbf16>, vector<16x256xf32> -> vector<16x256xf32>
    %41 = arith.maximumf %37, %40 : vector<16x256xf32>
    %42 = arith.truncf %41 : vector<16x256xf32> to vector<16x256xbf16>
    %c0_38 = arith.constant 0 : index
    %c0_39 = arith.constant 0 : index
    %c0_40 = arith.constant 0 : index
    %43 = vector.load %arg9[%c0_38, %c0_39, %c0_40] : memref<2x16x16xbf16, #tpu.memory_space<vmem>>, vector<1x16x16xbf16>
    %44 = vector.shape_cast %43 : vector<1x16x16xbf16> to vector<16x16xbf16>
    %cst_41 = arith.constant dense<0.000000e+00> : vector<16x256xf32>
    %45 = tpu.matmul %44, %42, %cst_41 {dimension_numbers = #tpu.dot_dimension_numbers<[1], [0], [0], [1], [0, 0, 1, 1], [], []>} : vector<16x16xbf16>, vector<16x256xbf16>, vector<16x256xf32> -> vector<16x256xf32>
    %46 = arith.truncf %45 : vector<16x256xf32> to vector<16x256xbf16>
    %c1_42 = arith.constant 1 : index
    %c0_43 = arith.constant 0 : index
    %c0_44 = arith.constant 0 : index
    %47 = vector.load %arg9[%c1_42, %c0_43, %c0_44] : memref<2x16x16xbf16, #tpu.memory_space<vmem>>, vector<1x16x16xbf16>
    %48 = vector.shape_cast %47 : vector<1x16x16xbf16> to vector<16x16xbf16>
    %cst_45 = arith.constant dense<0.000000e+00> : vector<16x256xf32>
    %49 = tpu.matmul %48, %42, %cst_45 {dimension_numbers = #tpu.dot_dimension_numbers<[1], [0], [0], [1], [0, 0, 1, 1], [], []>} : vector<16x16xbf16>, vector<16x256xbf16>, vector<16x256xf32> -> vector<16x256xf32>
    %50 = arith.truncf %49 : vector<16x256xf32> to vector<16x256xbf16>
    %c0_46 = arith.constant 0 : index
    %c0_47 = arith.constant 0 : index
    %c0_48 = arith.constant 0 : index
    %51 = vector.load %arg7[%c0_46, %c0_47, %c0_48] : memref<3x256x512xbf16, #tpu.memory_space<vmem>>, vector<1x256x512xbf16>
    %52 = vector.shape_cast %51 : vector<1x256x512xbf16> to vector<256x512xbf16>
    %cst_49 = arith.constant dense<0.000000e+00> : vector<16x512xf32>
    %53 = tpu.matmul %46, %52, %cst_49 {dimension_numbers = #tpu.dot_dimension_numbers<[1], [0], [0], [1], [0, 0, 1, 1], [], []>} : vector<16x256xbf16>, vector<256x512xbf16>, vector<16x512xf32> -> vector<16x512xf32>
    %c1_50 = arith.constant 1 : index
    %c0_51 = arith.constant 0 : index
    %c0_52 = arith.constant 0 : index
    %54 = vector.load %arg7[%c1_50, %c0_51, %c0_52] : memref<3x256x512xbf16, #tpu.memory_space<vmem>>, vector<1x256x512xbf16>
    %55 = vector.shape_cast %54 : vector<1x256x512xbf16> to vector<256x512xbf16>
    %cst_53 = arith.constant dense<0.000000e+00> : vector<16x512xf32>
    %56 = tpu.matmul %42, %55, %cst_53 {dimension_numbers = #tpu.dot_dimension_numbers<[1], [0], [0], [1], [0, 0, 1, 1], [], []>} : vector<16x256xbf16>, vector<256x512xbf16>, vector<16x512xf32> -> vector<16x512xf32>
    %57 = arith.addf %53, %56 : vector<16x512xf32>
    %c2_54 = arith.constant 2 : index
    %c0_55 = arith.constant 0 : index
    %c0_56 = arith.constant 0 : index
    %58 = vector.load %arg7[%c2_54, %c0_55, %c0_56] : memref<3x256x512xbf16, #tpu.memory_space<vmem>>, vector<1x256x512xbf16>
    %59 = vector.shape_cast %58 : vector<1x256x512xbf16> to vector<256x512xbf16>
    %cst_57 = arith.constant dense<0.000000e+00> : vector<16x512xf32>
    %60 = tpu.matmul %50, %59, %cst_57 {dimension_numbers = #tpu.dot_dimension_numbers<[1], [0], [0], [1], [0, 0, 1, 1], [], []>} : vector<16x256xbf16>, vector<256x512xbf16>, vector<16x512xf32> -> vector<16x512xf32>
    %61 = arith.addf %57, %60 : vector<16x512xf32>
    %c0_58 = arith.constant 0 : index
    %c0_59 = arith.constant 0 : index
    %62 = vector.load %arg8[%c0_58, %c0_59] : memref<1x512xf32, #tpu.memory_space<vmem>>, vector<1x512xf32>
    %63 = vector.broadcast %62 : vector<1x512xf32> to vector<16x512xf32>
    %64 = arith.addf %61, %63 : vector<16x512xf32>
    %cst_60 = arith.constant 0.000000e+00 : f32
    %65 = vector.broadcast %cst_60 : f32 to vector<16x512xf32>
    %66 = arith.maximumf %64, %65 : vector<16x512xf32>
    %67 = arith.truncf %66 : vector<16x512xf32> to vector<16x512xbf16>
    %c0_61 = arith.constant 0 : index
    %c0_62 = arith.constant 0 : index
    %c0_63 = arith.constant 0 : index
    %68 = vector.load %arg10[%c0_61, %c0_62, %c0_63] : memref<2x8x16xbf16, #tpu.memory_space<vmem>>, vector<1x8x16xbf16>
    %69 = vector.shape_cast %68 : vector<1x8x16xbf16> to vector<8x16xbf16>
    %cst_64 = arith.constant dense<0.000000e+00> : vector<8x512xf32>
    %70 = tpu.matmul %69, %67, %cst_64 {dimension_numbers = #tpu.dot_dimension_numbers<[1], [0], [0], [1], [0, 0, 1, 1], [], []>} : vector<8x16xbf16>, vector<16x512xbf16>, vector<8x512xf32> -> vector<8x512xf32>
    %c1_65 = arith.constant 1 : index
    %c0_66 = arith.constant 0 : index
    %c0_67 = arith.constant 0 : index
    %71 = vector.load %arg10[%c1_65, %c0_66, %c0_67] : memref<2x8x16xbf16, #tpu.memory_space<vmem>>, vector<1x8x16xbf16>
    %72 = vector.shape_cast %71 : vector<1x8x16xbf16> to vector<8x16xbf16>
    %cst_68 = arith.constant dense<0.000000e+00> : vector<8x512xf32>
    %73 = tpu.matmul %72, %67, %cst_68 {dimension_numbers = #tpu.dot_dimension_numbers<[1], [0], [0], [1], [0, 0, 1, 1], [], []>} : vector<8x16xbf16>, vector<16x512xbf16>, vector<8x512xf32> -> vector<8x512xf32>
    %74 = arith.maximumf %70, %73 : vector<8x512xf32>
    %75 = arith.truncf %74 : vector<8x512xf32> to vector<8x512xbf16>
    %c0_69 = arith.constant 0 : index
    %c0_70 = arith.constant 0 : index
    %c0_71 = arith.constant 0 : index
    %76 = vector.load %arg11[%c0_69, %c0_70, %c0_71] : memref<2x512x256xbf16, #tpu.memory_space<vmem>>, vector<1x512x256xbf16>
    %77 = vector.shape_cast %76 : vector<1x512x256xbf16> to vector<512x256xbf16>
    %cst_72 = arith.constant dense<0.000000e+00> : vector<8x256xf32>
    %78 = tpu.matmul %75, %77, %cst_72 {dimension_numbers = #tpu.dot_dimension_numbers<[1], [0], [0], [1], [0, 0, 1, 1], [], []>} : vector<8x512xbf16>, vector<512x256xbf16>, vector<8x256xf32> -> vector<8x256xf32>
    %c1_73 = arith.constant 1 : index
    %c0_74 = arith.constant 0 : index
    %c0_75 = arith.constant 0 : index
    %79 = vector.load %arg11[%c1_73, %c0_74, %c0_75] : memref<2x512x256xbf16, #tpu.memory_space<vmem>>, vector<1x512x256xbf16>
    %80 = vector.shape_cast %79 : vector<1x512x256xbf16> to vector<512x256xbf16>
    %cst_76 = arith.constant dense<0.000000e+00> : vector<8x256xf32>
    %81 = tpu.matmul %75, %80, %cst_76 {dimension_numbers = #tpu.dot_dimension_numbers<[1], [0], [0], [1], [0, 0, 1, 1], [], []>} : vector<8x512xbf16>, vector<512x256xbf16>, vector<8x256xf32> -> vector<8x256xf32>
    %82 = arith.maximumf %78, %81 : vector<8x256xf32>
    %83 = arith.truncf %82 : vector<8x256xf32> to vector<8x256xbf16>
    %c0_77 = arith.constant 0 : index
    %c0_78 = arith.constant 0 : index
    %c0_79 = arith.constant 0 : index
    %84 = vector.load %arg14[%c0_77, %c0_78, %c0_79] : memref<2x8x8xbf16, #tpu.memory_space<vmem>>, vector<1x8x8xbf16>
    %85 = vector.shape_cast %84 : vector<1x8x8xbf16> to vector<8x8xbf16>
    %cst_80 = arith.constant dense<0.000000e+00> : vector<8x256xf32>
    %86 = tpu.matmul %85, %83, %cst_80 {dimension_numbers = #tpu.dot_dimension_numbers<[1], [0], [0], [1], [0, 0, 1, 1], [], []>} : vector<8x8xbf16>, vector<8x256xbf16>, vector<8x256xf32> -> vector<8x256xf32>
    %87 = arith.truncf %86 : vector<8x256xf32> to vector<8x256xbf16>
    %c1_81 = arith.constant 1 : index
    %c0_82 = arith.constant 0 : index
    %c0_83 = arith.constant 0 : index
    %88 = vector.load %arg14[%c1_81, %c0_82, %c0_83] : memref<2x8x8xbf16, #tpu.memory_space<vmem>>, vector<1x8x8xbf16>
    %89 = vector.shape_cast %88 : vector<1x8x8xbf16> to vector<8x8xbf16>
    %cst_84 = arith.constant dense<0.000000e+00> : vector<8x256xf32>
    %90 = tpu.matmul %89, %83, %cst_84 {dimension_numbers = #tpu.dot_dimension_numbers<[1], [0], [0], [1], [0, 0, 1, 1], [], []>} : vector<8x8xbf16>, vector<8x256xbf16>, vector<8x256xf32> -> vector<8x256xf32>
    %91 = arith.truncf %90 : vector<8x256xf32> to vector<8x256xbf16>
    %c0_85 = arith.constant 0 : index
    %c0_86 = arith.constant 0 : index
    %c0_87 = arith.constant 0 : index
    %92 = vector.load %arg12[%c0_85, %c0_86, %c0_87] : memref<3x256x512xbf16, #tpu.memory_space<vmem>>, vector<1x256x512xbf16>
    %93 = vector.shape_cast %92 : vector<1x256x512xbf16> to vector<256x512xbf16>
    %cst_88 = arith.constant dense<0.000000e+00> : vector<8x512xf32>
    %94 = tpu.matmul %87, %93, %cst_88 {dimension_numbers = #tpu.dot_dimension_numbers<[1], [0], [0], [1], [0, 0, 1, 1], [], []>} : vector<8x256xbf16>, vector<256x512xbf16>, vector<8x512xf32> -> vector<8x512xf32>
    %c1_89 = arith.constant 1 : index
    %c0_90 = arith.constant 0 : index
    %c0_91 = arith.constant 0 : index
    %95 = vector.load %arg12[%c1_89, %c0_90, %c0_91] : memref<3x256x512xbf16, #tpu.memory_space<vmem>>, vector<1x256x512xbf16>
    %96 = vector.shape_cast %95 : vector<1x256x512xbf16> to vector<256x512xbf16>
    %cst_92 = arith.constant dense<0.000000e+00> : vector<8x512xf32>
    %97 = tpu.matmul %83, %96, %cst_92 {dimension_numbers = #tpu.dot_dimension_numbers<[1], [0], [0], [1], [0, 0, 1, 1], [], []>} : vector<8x256xbf16>, vector<256x512xbf16>, vector<8x512xf32> -> vector<8x512xf32>
    %98 = arith.addf %94, %97 : vector<8x512xf32>
    %c2_93 = arith.constant 2 : index
    %c0_94 = arith.constant 0 : index
    %c0_95 = arith.constant 0 : index
    %99 = vector.load %arg12[%c2_93, %c0_94, %c0_95] : memref<3x256x512xbf16, #tpu.memory_space<vmem>>, vector<1x256x512xbf16>
    %100 = vector.shape_cast %99 : vector<1x256x512xbf16> to vector<256x512xbf16>
    %cst_96 = arith.constant dense<0.000000e+00> : vector<8x512xf32>
    %101 = tpu.matmul %91, %100, %cst_96 {dimension_numbers = #tpu.dot_dimension_numbers<[1], [0], [0], [1], [0, 0, 1, 1], [], []>} : vector<8x256xbf16>, vector<256x512xbf16>, vector<8x512xf32> -> vector<8x512xf32>
    %102 = arith.addf %98, %101 : vector<8x512xf32>
    %c0_97 = arith.constant 0 : index
    %c0_98 = arith.constant 0 : index
    %103 = vector.load %arg13[%c0_97, %c0_98] : memref<1x512xf32, #tpu.memory_space<vmem>>, vector<1x512xf32>
    %104 = vector.broadcast %103 : vector<1x512xf32> to vector<8x512xf32>
    %105 = arith.addf %102, %104 : vector<8x512xf32>
    %cst_99 = arith.constant 0.000000e+00 : f32
    %106 = vector.broadcast %cst_99 : f32 to vector<8x512xf32>
    %107 = arith.maximumf %105, %106 : vector<8x512xf32>
    %108 = arith.truncf %107 : vector<8x512xf32> to vector<8x512xbf16>
    %c0_100 = arith.constant 0 : index
    %c0_101 = arith.constant 0 : index
    %c0_102 = arith.constant 0 : index
    %109 = vector.load %arg15[%c0_100, %c0_101, %c0_102] : memref<2x4x8xbf16, #tpu.memory_space<vmem>>, vector<1x4x8xbf16>
    %110 = vector.shape_cast %109 : vector<1x4x8xbf16> to vector<4x8xbf16>
    %cst_103 = arith.constant dense<0.000000e+00> : vector<4x512xf32>
    %111 = tpu.matmul %110, %108, %cst_103 {dimension_numbers = #tpu.dot_dimension_numbers<[1], [0], [0], [1], [0, 0, 1, 1], [], []>} : vector<4x8xbf16>, vector<8x512xbf16>, vector<4x512xf32> -> vector<4x512xf32>
    %c1_104 = arith.constant 1 : index
    %c0_105 = arith.constant 0 : index
    %c0_106 = arith.constant 0 : index
    %112 = vector.load %arg15[%c1_104, %c0_105, %c0_106] : memref<2x4x8xbf16, #tpu.memory_space<vmem>>, vector<1x4x8xbf16>
    %113 = vector.shape_cast %112 : vector<1x4x8xbf16> to vector<4x8xbf16>
    %cst_107 = arith.constant dense<0.000000e+00> : vector<4x512xf32>
    %114 = tpu.matmul %113, %108, %cst_107 {dimension_numbers = #tpu.dot_dimension_numbers<[1], [0], [0], [1], [0, 0, 1, 1], [], []>} : vector<4x8xbf16>, vector<8x512xbf16>, vector<4x512xf32> -> vector<4x512xf32>
    %115 = arith.maximumf %111, %114 : vector<4x512xf32>
    %116 = arith.truncf %115 : vector<4x512xf32> to vector<4x512xbf16>
    %c0_108 = arith.constant 0 : index
    %c0_109 = arith.constant 0 : index
    %c0_110 = arith.constant 0 : index
    %117 = vector.load %arg16[%c0_108, %c0_109, %c0_110] : memref<2x512x256xbf16, #tpu.memory_space<vmem>>, vector<1x512x256xbf16>
    %118 = vector.shape_cast %117 : vector<1x512x256xbf16> to vector<512x256xbf16>
    %cst_111 = arith.constant dense<0.000000e+00> : vector<4x256xf32>
    %119 = tpu.matmul %116, %118, %cst_111 {dimension_numbers = #tpu.dot_dimension_numbers<[1], [0], [0], [1], [0, 0, 1, 1], [], []>} : vector<4x512xbf16>, vector<512x256xbf16>, vector<4x256xf32> -> vector<4x256xf32>
    %c1_112 = arith.constant 1 : index
    %c0_113 = arith.constant 0 : index
    %c0_114 = arith.constant 0 : index
    %120 = vector.load %arg16[%c1_112, %c0_113, %c0_114] : memref<2x512x256xbf16, #tpu.memory_space<vmem>>, vector<1x512x256xbf16>
    %121 = vector.shape_cast %120 : vector<1x512x256xbf16> to vector<512x256xbf16>
    %cst_115 = arith.constant dense<0.000000e+00> : vector<4x256xf32>
    %122 = tpu.matmul %116, %121, %cst_115 {dimension_numbers = #tpu.dot_dimension_numbers<[1], [0], [0], [1], [0, 0, 1, 1], [], []>} : vector<4x512xbf16>, vector<512x256xbf16>, vector<4x256xf32> -> vector<4x256xf32>
    %123 = arith.maximumf %119, %122 : vector<4x256xf32>
    %124 = arith.truncf %123 : vector<4x256xf32> to vector<4x256xbf16>
    %cst_116 = arith.constant 0.000000e+00 : f32
    %125 = vector.broadcast %cst_116 : f32 to vector<1x512xf32>
    %c0_117 = arith.constant 0 : index
    %c0_118 = arith.constant 0 : index
    %c0_119 = arith.constant 0 : index
    %126 = vector.load %arg17[%c0_117, %c0_118, %c0_119] : memref<4x1x4xbf16, #tpu.memory_space<vmem>>, vector<1x1x4xbf16>
    %127 = vector.shape_cast %126 : vector<1x1x4xbf16> to vector<1x4xbf16>
    %cst_120 = arith.constant dense<0.000000e+00> : vector<1x256xf32>
    %128 = tpu.matmul %127, %124, %cst_120 {dimension_numbers = #tpu.dot_dimension_numbers<[1], [0], [0], [1], [0, 0, 1, 1], [], []>} : vector<1x4xbf16>, vector<4x256xbf16>, vector<1x256xf32> -> vector<1x256xf32>
    %129 = arith.truncf %128 : vector<1x256xf32> to vector<1x256xbf16>
    %c0_121 = arith.constant 0 : index
    %c0_122 = arith.constant 0 : index
    %c0_123 = arith.constant 0 : index
    %130 = vector.load %arg18[%c0_121, %c0_122, %c0_123] : memref<4x256x512xbf16, #tpu.memory_space<vmem>>, vector<1x256x512xbf16>
    %131 = vector.shape_cast %130 : vector<1x256x512xbf16> to vector<256x512xbf16>
    %cst_124 = arith.constant dense<0.000000e+00> : vector<1x512xf32>
    %132 = tpu.matmul %129, %131, %cst_124 {dimension_numbers = #tpu.dot_dimension_numbers<[1], [0], [0], [1], [0, 0, 1, 1], [], []>} : vector<1x256xbf16>, vector<256x512xbf16>, vector<1x512xf32> -> vector<1x512xf32>
    %133 = arith.addf %125, %132 : vector<1x512xf32>
    %c1_125 = arith.constant 1 : index
    %c0_126 = arith.constant 0 : index
    %c0_127 = arith.constant 0 : index
    %134 = vector.load %arg17[%c1_125, %c0_126, %c0_127] : memref<4x1x4xbf16, #tpu.memory_space<vmem>>, vector<1x1x4xbf16>
    %135 = vector.shape_cast %134 : vector<1x1x4xbf16> to vector<1x4xbf16>
    %cst_128 = arith.constant dense<0.000000e+00> : vector<1x256xf32>
    %136 = tpu.matmul %135, %124, %cst_128 {dimension_numbers = #tpu.dot_dimension_numbers<[1], [0], [0], [1], [0, 0, 1, 1], [], []>} : vector<1x4xbf16>, vector<4x256xbf16>, vector<1x256xf32> -> vector<1x256xf32>
    %137 = arith.truncf %136 : vector<1x256xf32> to vector<1x256xbf16>
    %c1_129 = arith.constant 1 : index
    %c0_130 = arith.constant 0 : index
    %c0_131 = arith.constant 0 : index
    %138 = vector.load %arg18[%c1_129, %c0_130, %c0_131] : memref<4x256x512xbf16, #tpu.memory_space<vmem>>, vector<1x256x512xbf16>
    %139 = vector.shape_cast %138 : vector<1x256x512xbf16> to vector<256x512xbf16>
    %cst_132 = arith.constant dense<0.000000e+00> : vector<1x512xf32>
    %140 = tpu.matmul %137, %139, %cst_132 {dimension_numbers = #tpu.dot_dimension_numbers<[1], [0], [0], [1], [0, 0, 1, 1], [], []>} : vector<1x256xbf16>, vector<256x512xbf16>, vector<1x512xf32> -> vector<1x512xf32>
    %141 = arith.addf %133, %140 : vector<1x512xf32>
    %c2_133 = arith.constant 2 : index
    %c0_134 = arith.constant 0 : index
    %c0_135 = arith.constant 0 : index
    %142 = vector.load %arg17[%c2_133, %c0_134, %c0_135] : memref<4x1x4xbf16, #tpu.memory_space<vmem>>, vector<1x1x4xbf16>
    %143 = vector.shape_cast %142 : vector<1x1x4xbf16> to vector<1x4xbf16>
    %cst_136 = arith.constant dense<0.000000e+00> : vector<1x256xf32>
    %144 = tpu.matmul %143, %124, %cst_136 {dimension_numbers = #tpu.dot_dimension_numbers<[1], [0], [0], [1], [0, 0, 1, 1], [], []>} : vector<1x4xbf16>, vector<4x256xbf16>, vector<1x256xf32> -> vector<1x256xf32>
    %145 = arith.truncf %144 : vector<1x256xf32> to vector<1x256xbf16>
    %c2_137 = arith.constant 2 : index
    %c0_138 = arith.constant 0 : index
    %c0_139 = arith.constant 0 : index
    %146 = vector.load %arg18[%c2_137, %c0_138, %c0_139] : memref<4x256x512xbf16, #tpu.memory_space<vmem>>, vector<1x256x512xbf16>
    %147 = vector.shape_cast %146 : vector<1x256x512xbf16> to vector<256x512xbf16>
    %cst_140 = arith.constant dense<0.000000e+00> : vector<1x512xf32>
    %148 = tpu.matmul %145, %147, %cst_140 {dimension_numbers = #tpu.dot_dimension_numbers<[1], [0], [0], [1], [0, 0, 1, 1], [], []>} : vector<1x256xbf16>, vector<256x512xbf16>, vector<1x512xf32> -> vector<1x512xf32>
    %149 = arith.addf %141, %148 : vector<1x512xf32>
    %c3 = arith.constant 3 : index
    %c0_141 = arith.constant 0 : index
    %c0_142 = arith.constant 0 : index
    %150 = vector.load %arg17[%c3, %c0_141, %c0_142] : memref<4x1x4xbf16, #tpu.memory_space<vmem>>, vector<1x1x4xbf16>
    %151 = vector.shape_cast %150 : vector<1x1x4xbf16> to vector<1x4xbf16>
    %cst_143 = arith.constant dense<0.000000e+00> : vector<1x256xf32>
    %152 = tpu.matmul %151, %124, %cst_143 {dimension_numbers = #tpu.dot_dimension_numbers<[1], [0], [0], [1], [0, 0, 1, 1], [], []>} : vector<1x4xbf16>, vector<4x256xbf16>, vector<1x256xf32> -> vector<1x256xf32>
    %153 = arith.truncf %152 : vector<1x256xf32> to vector<1x256xbf16>
    %c3_144 = arith.constant 3 : index
    %c0_145 = arith.constant 0 : index
    %c0_146 = arith.constant 0 : index
    %154 = vector.load %arg18[%c3_144, %c0_145, %c0_146] : memref<4x256x512xbf16, #tpu.memory_space<vmem>>, vector<1x256x512xbf16>
    %155 = vector.shape_cast %154 : vector<1x256x512xbf16> to vector<256x512xbf16>
    %cst_147 = arith.constant dense<0.000000e+00> : vector<1x512xf32>
    %156 = tpu.matmul %153, %155, %cst_147 {dimension_numbers = #tpu.dot_dimension_numbers<[1], [0], [0], [1], [0, 0, 1, 1], [], []>} : vector<1x256xbf16>, vector<256x512xbf16>, vector<1x512xf32> -> vector<1x512xf32>
    %157 = arith.addf %149, %156 : vector<1x512xf32>
    %c0_148 = arith.constant 0 : index
    %c0_149 = arith.constant 0 : index
    %158 = vector.load %arg19[%c0_148, %c0_149] : memref<1x512xf32, #tpu.memory_space<vmem>>, vector<1x512xf32>
    %159 = arith.addf %157, %158 : vector<1x512xf32>
    %cst_150 = arith.constant 0.000000e+00 : f32
    %160 = vector.broadcast %cst_150 : f32 to vector<1x512xf32>
    %161 = arith.maximumf %159, %160 : vector<1x512xf32>
    %162 = arith.truncf %161 : vector<1x512xf32> to vector<1x512xbf16>
    %c0_151 = arith.constant 0 : index
    %c0_152 = arith.constant 0 : index
    %163 = vector.load %arg20[%c0_151, %c0_152] : memref<512x256xbf16, #tpu.memory_space<vmem>>, vector<512x256xbf16>
    %cst_153 = arith.constant dense<0.000000e+00> : vector<1x256xf32>
    %164 = tpu.matmul %162, %163, %cst_153 {dimension_numbers = #tpu.dot_dimension_numbers<[1], [0], [0], [1], [0, 0, 1, 1], [], []>} : vector<1x512xbf16>, vector<512x256xbf16>, vector<1x256xf32> -> vector<1x256xf32>
    %c0_154 = arith.constant 0 : index
    %c0_155 = arith.constant 0 : index
    %165 = vector.load %arg21[%c0_154, %c0_155] : memref<1x256xf32, #tpu.memory_space<vmem>>, vector<1x256xf32>
    %166 = arith.addf %164, %165 : vector<1x256xf32>
    %167 = vector.shape_cast %166 : vector<1x256xf32> to vector<1x1x256xf32>
    %c0_156 = arith.constant 0 : index
    %c0_157 = arith.constant 0 : index
    %c0_158 = arith.constant 0 : index
    %168 = vector.load %arg22[%c0_156, %c0_157, %c0_158] : memref<1x1x256xf32, #tpu.memory_space<vmem>>, vector<1x1x256xf32>
    tpu.vector_store %arg22[%c0_156, %c0_157, %c0_158], %167 {strides = array<i32>} : memref<1x1x256xf32, #tpu.memory_space<vmem>>, vector<1x1x256xf32>,
    return
  }
  func.func @transform_0(%arg0: i32) -> (i32, i32, i32) {
    %c0_i32 = arith.constant 0 : i32
    %c0_i32_0 = arith.constant 0 : i32
    %c0_i32_1 = arith.constant 0 : i32
    return %arg0, %c0_i32, %c0_i32_0 : i32, i32, i32
  }
  func.func @transform_1(%arg0: i32) -> (i32, i32, i32) {
    %c0_i32 = arith.constant 0 : i32
    %c0_i32_0 = arith.constant 0 : i32
    %c0_i32_1 = arith.constant 0 : i32
    %c0_i32_2 = arith.constant 0 : i32
    return %c0_i32, %c0_i32_0, %c0_i32_1 : i32, i32, i32
  }
  func.func @transform_2(%arg0: i32) -> (i32, i32) {
    %c0_i32 = arith.constant 0 : i32
    %c0_i32_0 = arith.constant 0 : i32
    %c0_i32_1 = arith.constant 0 : i32
    return %c0_i32, %c0_i32_0 : i32, i32
  }
  func.func @transform_3(%arg0: i32) -> (i32, i32, i32) {
    %c0_i32 = arith.constant 0 : i32
    %c0_i32_0 = arith.constant 0 : i32
    %c0_i32_1 = arith.constant 0 : i32
    %c0_i32_2 = arith.constant 0 : i32
    return %c0_i32, %c0_i32_0, %c0_i32_1 : i32, i32, i32
  }
  func.func @transform_4(%arg0: i32) -> (i32, i32, i32) {
    %c0_i32 = arith.constant 0 : i32
    %c0_i32_0 = arith.constant 0 : i32
    %c0_i32_1 = arith.constant 0 : i32
    %c0_i32_2 = arith.constant 0 : i32
    return %c0_i32, %c0_i32_0, %c0_i32_1 : i32, i32, i32
  }
  func.func @transform_5(%arg0: i32) -> (i32, i32, i32) {
    %c0_i32 = arith.constant 0 : i32
    %c0_i32_0 = arith.constant 0 : i32
    %c0_i32_1 = arith.constant 0 : i32
    %c0_i32_2 = arith.constant 0 : i32
    return %c0_i32, %c0_i32_0, %c0_i32_1 : i32, i32, i32
  }
  func.func @transform_6(%arg0: i32) -> (i32, i32, i32) {
    %c0_i32 = arith.constant 0 : i32
    %c0_i32_0 = arith.constant 0 : i32
    %c0_i32_1 = arith.constant 0 : i32
    %c0_i32_2 = arith.constant 0 : i32
    return %c0_i32, %c0_i32_0, %c0_i32_1 : i32, i32, i32
  }
  func.func @transform_7(%arg0: i32) -> (i32, i32) {
    %c0_i32 = arith.constant 0 : i32
    %c0_i32_0 = arith.constant 0 : i32
    %c0_i32_1 = arith.constant 0 : i32
    return %c0_i32, %c0_i32_0 : i32, i32
  }
  func.func @transform_8(%arg0: i32) -> (i32, i32, i32) {
    %c0_i32 = arith.constant 0 : i32
    %c0_i32_0 = arith.constant 0 : i32
    %c0_i32_1 = arith.constant 0 : i32
    %c0_i32_2 = arith.constant 0 : i32
    return %c0_i32, %c0_i32_0, %c0_i32_1 : i32, i32, i32
  }
  func.func @transform_9(%arg0: i32) -> (i32, i32, i32) {
    %c0_i32 = arith.constant 0 : i32
    %c0_i32_0 = arith.constant 0 : i32
    %c0_i32_1 = arith.constant 0 : i32
    %c0_i32_2 = arith.constant 0 : i32
    return %c0_i32, %c0_i32_0, %c0_i32_1 : i32, i32, i32
  }
  func.func @transform_10(%arg0: i32) -> (i32, i32, i32) {
    %c0_i32 = arith.constant 0 : i32
    %c0_i32_0 = arith.constant 0 : i32
    %c0_i32_1 = arith.constant 0 : i32
    %c0_i32_2 = arith.constant 0 : i32
    return %c0_i32, %c0_i32_0, %c0_i32_1 : i32, i32, i32
  }
  func.func @transform_11(%arg0: i32) -> (i32, i32, i32) {
    %c0_i32 = arith.constant 0 : i32
    %c0_i32_0 = arith.constant 0 : i32
    %c0_i32_1 = arith.constant 0 : i32
    %c0_i32_2 = arith.constant 0 : i32
    return %c0_i32, %c0_i32_0, %c0_i32_1 : i32, i32, i32
  }
  func.func @transform_12(%arg0: i32) -> (i32, i32) {
    %c0_i32 = arith.constant 0 : i32
    %c0_i32_0 = arith.constant 0 : i32
    %c0_i32_1 = arith.constant 0 : i32
    return %c0_i32, %c0_i32_0 : i32, i32
  }
  func.func @transform_13(%arg0: i32) -> (i32, i32, i32) {
    %c0_i32 = arith.constant 0 : i32
    %c0_i32_0 = arith.constant 0 : i32
    %c0_i32_1 = arith.constant 0 : i32
    %c0_i32_2 = arith.constant 0 : i32
    return %c0_i32, %c0_i32_0, %c0_i32_1 : i32, i32, i32
  }
  func.func @transform_14(%arg0: i32) -> (i32, i32, i32) {
    %c0_i32 = arith.constant 0 : i32
    %c0_i32_0 = arith.constant 0 : i32
    %c0_i32_1 = arith.constant 0 : i32
    %c0_i32_2 = arith.constant 0 : i32
    return %c0_i32, %c0_i32_0, %c0_i32_1 : i32, i32, i32
  }
  func.func @transform_15(%arg0: i32) -> (i32, i32, i32) {
    %c0_i32 = arith.constant 0 : i32
    %c0_i32_0 = arith.constant 0 : i32
    %c0_i32_1 = arith.constant 0 : i32
    %c0_i32_2 = arith.constant 0 : i32
    return %c0_i32, %c0_i32_0, %c0_i32_1 : i32, i32, i32
  }
  func.func @transform_16(%arg0: i32) -> (i32, i32, i32) {
    %c0_i32 = arith.constant 0 : i32
    %c0_i32_0 = arith.constant 0 : i32
    %c0_i32_1 = arith.constant 0 : i32
    %c0_i32_2 = arith.constant 0 : i32
    return %c0_i32, %c0_i32_0, %c0_i32_1 : i32, i32, i32
  }
  func.func @transform_17(%arg0: i32) -> (i32, i32, i32) {
    %c0_i32 = arith.constant 0 : i32
    %c0_i32_0 = arith.constant 0 : i32
    %c0_i32_1 = arith.constant 0 : i32
    %c0_i32_2 = arith.constant 0 : i32
    return %c0_i32, %c0_i32_0, %c0_i32_1 : i32, i32, i32
  }
  func.func @transform_18(%arg0: i32) -> (i32, i32) {
    %c0_i32 = arith.constant 0 : i32
    %c0_i32_0 = arith.constant 0 : i32
    %c0_i32_1 = arith.constant 0 : i32
    return %c0_i32, %c0_i32_0 : i32, i32
  }
  func.func @transform_19(%arg0: i32) -> (i32, i32) {
    %c0_i32 = arith.constant 0 : i32
    %c0_i32_0 = arith.constant 0 : i32
    %c0_i32_1 = arith.constant 0 : i32
    return %c0_i32, %c0_i32_0 : i32, i32
  }
  func.func @transform_20(%arg0: i32) -> (i32, i32) {
    %c0_i32 = arith.constant 0 : i32
    %c0_i32_0 = arith.constant 0 : i32
    %c0_i32_1 = arith.constant 0 : i32
    return %c0_i32, %c0_i32_0 : i32, i32
  }
  func.func @transform_21(%arg0: i32) -> (i32, i32, i32) {
    %c0_i32 = arith.constant 0 : i32
    %c0_i32_0 = arith.constant 0 : i32
    %c0_i32_1 = arith.constant 0 : i32
    return %arg0, %c0_i32, %c0_i32_0 : i32, i32, i32
  }
}

</mosaic_0001>

<llo_original>
// kernel: net_forward.1
$region0: #{net_forward.1}
  #allocation0 [shape = 'u32[]', space=smem, size = 0x4, offset = 0x4, fixed_abs, tag = 'smem constant byte address 0x4 - core index']
  #allocation1 [shape = 'u32[144,128]{1,0:T(1,128)}', space=vmem, size = 0x12000, scoped, tag = 'internal scratch']
  %s0 = inlined_call_operand.vmem [shape: bf16[2,32,96], index: 0, kind: input, shape index: {}]
  %s1 = inlined_call_operand.vmem [shape: bf16[3,96,512], index: 1, kind: input, shape index: {}]
  %s2 = inlined_call_operand.hbm [shape: f32[1,512], index: 2, kind: input, shape index: {}]
  %s3 = inlined_call_operand.vmem [shape: bf16[2,32,32], index: 3, kind: input, shape index: {}]
  %s4 = inlined_call_operand.hbm [shape: bf16[2,16,32], index: 4, kind: input, shape index: {}]
  %s5 = inlined_call_operand.hbm [shape: bf16[2,512,256], index: 5, kind: input, shape index: {}]
  %s6 = inlined_call_operand.hbm [shape: bf16[3,256,512], index: 6, kind: input, shape index: {}]
  %s7 = inlined_call_operand.hbm [shape: f32[1,512], index: 7, kind: input, shape index: {}]
  %s8 = inlined_call_operand.vmem [shape: bf16[2,16,16], index: 8, kind: input, shape index: {}]
  %s9 = inlined_call_operand.hbm [shape: bf16[2,8,16], index: 9, kind: input, shape index: {}]
  %s10 = inlined_call_operand.hbm [shape: bf16[2,512,256], index: 10, kind: input, shape index: {}]
  %s11 = inlined_call_operand.hbm [shape: bf16[3,256,512], index: 11, kind: input, shape index: {}]
  %s12 = inlined_call_operand.hbm [shape: f32[1,512], index: 12, kind: input, shape index: {}]
  %s13 = inlined_call_operand.vmem [shape: bf16[2,8,8], index: 13, kind: input, shape index: {}]
  %s14 = inlined_call_operand.hbm [shape: bf16[2,4,8], index: 14, kind: input, shape index: {}]
  %s15 = inlined_call_operand.hbm [shape: bf16[2,512,256], index: 15, kind: input, shape index: {}]
  %s16 = inlined_call_operand.vmem [shape: bf16[4,1,4], index: 16, kind: input, shape index: {}]
  %s17 = inlined_call_operand.hbm [shape: bf16[4,256,512], index: 17, kind: input, shape index: {}]
  %s18 = inlined_call_operand.hbm [shape: f32[1,512], index: 18, kind: input, shape index: {}]
  %s19 = inlined_call_operand.hbm [shape: bf16[512,256], index: 19, kind: input, shape index: {}]
  %s20 = inlined_call_operand.hbm [shape: f32[1,256], index: 20, kind: input, shape index: {}]
  %s21 = inlined_call_operand.vmem [shape: f32[2,1,256], index: 21, kind: output, shape index: {}]
  %s22 = sld [smem:[#allocation0]]
  $region177: #{net_forward.1} parent=0
    _
  %s24 = ssub.s32 1, %s22
  %s25 = scalar_select 0, %s24, %s22
  $region1: #{net_forward.1} parent=0
    #allocation2 [shape = 'u8[2048]{0}', space=vmem, size = 0x800, scoped, tag = 'input window, operand 2, single buffered']
    #allocation3 [shape = 's32[2]{0}', space=sflag, size = 0x8, scoped, tag = 'scoped memory for net_forward.1']
    #allocation4 [shape = 'u8[8192]{0}', space=vmem, size = 0x2000, scoped, tag = 'input window, operand 4, single buffered']
    #allocation5 [shape = 's32[1]{0}', space=sflag, size = 0x4, scoped, tag = 'scoped memory for net_forward.1']
    #allocation6 [shape = 'u8[524288]{0}', space=vmem, size = 0x80000, scoped, tag = 'input window, operand 5, single buffered']
    #allocation7 [shape = 'u8[786432]{0}', space=vmem, size = 0xc0000, scoped, tag = 'input window, operand 6, single buffered']
    #allocation8 [shape = 's32[1]{0}', space=sflag, size = 0x4, scoped, tag = 'scoped memory for net_forward.1']
    #allocation9 [shape = 'u8[2048]{0}', space=vmem, size = 0x800, scoped, tag = 'input window, operand 7, single buffered']
    #allocation10 [shape = 'u8[4096]{0}', space=vmem, size = 0x1000, scoped, tag = 'input window, operand 9, single buffered']
    #allocation11 [shape = 's32[1]{0}', space=sflag, size = 0x4, scoped, tag = 'scoped memory for net_forward.1']
    #allocation12 [shape = 'u8[524288]{0}', space=vmem, size = 0x80000, scoped, tag = 'input window, operand 10, single buffered']
    #allocation13 [shape = 'u8[786432]{0}', space=vmem, size = 0xc0000, scoped, tag = 'input window, operand 11, single buffered']
    #allocation14 [shape = 's32[1]{0}', space=sflag, size = 0x4, scoped, tag = 'scoped memory for net_forward.1']
    #allocation15 [shape = 'u8[2048]{0}', space=vmem, size = 0x800, scoped, tag = 'input window, operand 12, single buffered']
    #allocation16 [shape = 'u8[2048]{0}', space=vmem, size = 0x800, scoped, tag = 'input window, operand 14, single buffered']
    #allocation17 [shape = 's32[1]{0}', space=sflag, size = 0x4, scoped, tag = 'scoped memory for net_forward.1']
    #allocation18 [shape = 'u8[524288]{0}', space=vmem, size = 0x80000, scoped, tag = 'input window, operand 15, single buffered']
    #allocation19 [shape = 'u8[1048576]{0}', space=vmem, size = 0x100000, scoped, tag = 'input window, operand 17, single buffered']
    #allocation20 [shape = 's32[1]{0}', space=sflag, size = 0x4, scoped, tag = 'scoped memory for net_forward.1']
    #allocation21 [shape = 'u8[2048]{0}', space=vmem, size = 0x800, scoped, tag = 'input window, operand 18, single buffered']
    #allocation22 [shape = 'u8[262144]{0}', space=vmem, size = 0x40000, scoped, tag = 'input window, operand 19, single buffered']
    #allocation23 [shape = 's32[1]{0}', space=sflag, size = 0x4, scoped, tag = 'scoped memory for net_forward.1']
    #allocation24 [shape = 'u8[1024]{0}', space=vmem, size = 0x400, scoped, tag = 'input window, operand 20, single buffered']
    %26 = vsyncpa [#allocation3], 0
    %27 = vsyncpa [#allocation5], 0
    %28 = vsyncpa [#allocation8], 0
    %29 = vsyncpa [#allocation11], 0
    %30 = vsyncpa [#allocation14], 0
    %31 = vsyncpa [#allocation17], 0
    %32 = vsyncpa [#allocation20], 0
    %33 = vsyncpa [#allocation23], 0
    loop: start=0, step=1, limit=4
    $region2: #{net_forward.1} parent=1 // loop_pre_header
      _
    $region3: #{net_forward.1} parent=1 // loop_header
      %s35 = sphi 0, %s39
      %p36 = scmp.ge.s32.totalorder %s35, 4
      %s45 = sphi 0, %s47
      %s48 = sphi 0, %s45
      %s49 = sphi 0, %s48
      %s65 = sphi 0, %s49
      %s69 = sphi 0, %s69
      %s71 = sphi 0, %s69
      %s72 = sphi 0, %s71
      %s86 = sphi 0, %s72
      %s90 = sphi 0, %s90
      %s92 = sphi 0, %s90
      %s93 = sphi 0, %s92
      %s107 = sphi 0, %s93
      %s111 = sphi 0, %s111
      %s113 = sphi 0, %s111
      %s114 = sphi 0, %s113
      %s128 = sphi 0, %s114
      %s132 = sphi 0, %s132
      %s134 = sphi 0, %s132
      %s135 = sphi 0, %s134
      %s149 = sphi 0, %s135
      %s153 = sphi 0, %s153
      %s155 = sphi 0, %s153
      %s156 = sphi 0, %s155
      %s170 = sphi 0, %s156
      %s174 = sphi 0, %s174
      %s176 = sphi 0, %s174
      %s177 = sphi 0, %s176
      %s191 = sphi 0, %s177
      %s195 = sphi 0, %s195
      %s197 = sphi 0, %s195
      %s198 = sphi 0, %s197
      %s212 = sphi 0, %s198
      %s216 = sphi 0, %s216
      %s218 = sphi 0, %s216
      %s219 = sphi 0, %s218
      %s233 = sphi 0, %s219
      %s237 = sphi 0, %s237
      %s239 = sphi 0, %s237
      %s240 = sphi 0, %s239
      %s254 = sphi 0, %s240
      %s258 = sphi 0, %s258
      %s260 = sphi 0, %s258
      %s261 = sphi 0, %s260
      %s275 = sphi 0, %s261
      %s279 = sphi 0, %s279
      %s281 = sphi 0, %s279
      %s282 = sphi 0, %s281
      %s296 = sphi 0, %s282
      %s300 = sphi 0, %s300
      %s302 = sphi 0, %s300
      %s303 = sphi 0, %s302
      %s317 = sphi 0, %s303
      %s321 = sphi 0, %s321
      %s323 = sphi 0, %s321
      %s324 = sphi 0, %s323
      %s338 = sphi 0, %s324
      %s342 = sphi 0, %s342
      %s344 = sphi 0, %s342
      %s345 = sphi 0, %s344
      %s359 = sphi 0, %s345
      %s363 = sphi 0, %s363
      %s365 = sphi 0, %s363
      %s366 = sphi 0, %s365
      %s380 = sphi 0, %s366
      %s384 = sphi 0, %s384
      %s386 = sphi 0, %s384
      %s387 = sphi 0, %s386
      %s401 = sphi 0, %s387
      %s405 = sphi 0, %s405
      %s407 = sphi 0, %s405
      %s408 = sphi 0, %s407
      %s422 = sphi 0, %s408
      %s426 = sphi 0, %s426
      %s428 = sphi 0, %s426
      %s429 = sphi 0, %s428
      %s443 = sphi 0, %s429
      %s447 = sphi 0, %s447
      %s449 = sphi 0, %s447
      %s450 = sphi 0, %s449
      %s464 = sphi 0, %s450
      %s468 = sphi 0, %s468
      %s470 = sphi 0, %s468
      %s471 = sphi 0, %s470
      %s485 = sphi 0, %s471
      %s491 = sphi 0, %s493
      %s494 = sphi 0, %s491
      %s495 = sphi 0, %s494
      %s511 = sphi 0, %s495
    $region4: #{net_forward.1} parent=1 // loop_header_branch
      %38 = sbr.rel (%p36) target = $region8
    $region5: #{net_forward.1} parent=1 // loop_body
      %s40 = ssub.s32 %s35, 1
      %s41 = ssub.s32 %s35, 2
      %s42 = sadd.s32 %s35, 1
      %s43 = ssub.s32 %s35, %s42
      %p44 = scmp.eq.s32.totalorder %s43, 0
      %s46 = sadd.s32 %s45, 1
      %s47 = scalar_select %p44, %s45, %s46
      %p50 = pneg %p44
      %p51 = scmp.eq.s32.totalorder %s35, 1
      %p52 = por %p50, %p51
      %p53 = scmp.ne.s32.totalorder %s45, %s48
      %p54 = scmp.eq.s32.totalorder %s35, 0
      %p55 = por %p53, %p54
      %p56 = scmp.ne.s32.totalorder %s45, %s48
      %p57 = scmp.eq.s32.totalorder %s40, 1
      %p58 = por %p56, %p57
      %p59 = scmp.ne.s32.totalorder %s48, %s49
      %p60 = scmp.eq.s32.totalorder %s40, 0
      %p61 = por %p59, %p60
      %p62 = scmp.ne.s32.totalorder %s48, %s49
      %p63 = scmp.eq.s32.totalorder %s41, 1
      %p64 = por %p62, %p63
      %p66 = scmp.ne.s32.totalorder %s49, %s65
      %p67 = scmp.eq.s32.totalorder %s41, 0
      %p68 = por %p66, %p67
      %s70 = sadd.s32 %s69, 1
      %p73 = scmp.eq.s32.totalorder %s35, 1
      %p74 = scmp.ne.s32.totalorder %s69, %s71
      %p75 = scmp.eq.s32.totalorder %s35, 0
      %p76 = por %p74, %p75
      %p77 = scmp.ne.s32.totalorder %s69, %s71
      %p78 = scmp.eq.s32.totalorder %s40, 1
      %p79 = por %p77, %p78
      %p80 = scmp.ne.s32.totalorder %s71, %s72
      %p81 = scmp.eq.s32.totalorder %s40, 0
      %p82 = por %p80, %p81
      %p83 = scmp.ne.s32.totalorder %s71, %s72
      %p84 = scmp.eq.s32.totalorder %s41, 1
      %p85 = por %p83, %p84
      %p87 = scmp.ne.s32.totalorder %s72, %s86
      %p88 = scmp.eq.s32.totalorder %s41, 0
      %p89 = por %p87, %p88
      %s91 = sadd.s32 %s90, 1
      %p94 = scmp.eq.s32.totalorder %s35, 1
      %p95 = scmp.ne.s32.totalorder %s90, %s92
      %p96 = scmp.eq.s32.totalorder %s35, 0
      %p97 = por %p95, %p96
      %p98 = scmp.ne.s32.totalorder %s90, %s92
      %p99 = scmp.eq.s32.totalorder %s40, 1
      %p100 = por %p98, %p99
      %p101 = scmp.ne.s32.totalorder %s92, %s93
      %p102 = scmp.eq.s32.totalorder %s40, 0
      %p103 = por %p101, %p102
      %p104 = scmp.ne.s32.totalorder %s92, %s93
      %p105 = scmp.eq.s32.totalorder %s41, 1
      %p106 = por %p104, %p105
      %p108 = scmp.ne.s32.totalorder %s93, %s107
      %p109 = scmp.eq.s32.totalorder %s41, 0
      %p110 = por %p108, %p109
      %s112 = sadd.s32 %s111, 1
      %p115 = scmp.eq.s32.totalorder %s35, 1
      %p116 = scmp.ne.s32.totalorder %s111, %s113
      %p117 = scmp.eq.s32.totalorder %s35, 0
      %p118 = por %p116, %p117
      %p119 = scmp.ne.s32.totalorder %s111, %s113
      %p120 = scmp.eq.s32.totalorder %s40, 1
      %p121 = por %p119, %p120
      %p122 = scmp.ne.s32.totalorder %s113, %s114
      %p123 = scmp.eq.s32.totalorder %s40, 0
      %p124 = por %p122, %p123
      %p125 = scmp.ne.s32.totalorder %s113, %s114
      %p126 = scmp.eq.s32.totalorder %s41, 1
      %p127 = por %p125, %p126
      %p129 = scmp.ne.s32.totalorder %s114, %s128
      %p130 = scmp.eq.s32.totalorder %s41, 0
      %p131 = por %p129, %p130
      %s133 = sadd.s32 %s132, 1
      %p136 = scmp.eq.s32.totalorder %s35, 1
      %p137 = scmp.ne.s32.totalorder %s132, %s134
      %p138 = scmp.eq.s32.totalorder %s35, 0
      %p139 = por %p137, %p138
      %p140 = scmp.ne.s32.totalorder %s132, %s134
      %p141 = scmp.eq.s32.totalorder %s40, 1
      %p142 = por %p140, %p141
      %p143 = scmp.ne.s32.totalorder %s134, %s135
      %p144 = scmp.eq.s32.totalorder %s40, 0
      %p145 = por %p143, %p144
      %p146 = scmp.ne.s32.totalorder %s134, %s135
      %p147 = scmp.eq.s32.totalorder %s41, 1
      %p148 = por %p146, %p147
      %p150 = scmp.ne.s32.totalorder %s135, %s149
      %p151 = scmp.eq.s32.totalorder %s41, 0
      %p152 = por %p150, %p151
      %s154 = sadd.s32 %s153, 1
      %p157 = scmp.eq.s32.totalorder %s35, 1
      %p158 = scmp.ne.s32.totalorder %s153, %s155
      %p159 = scmp.eq.s32.totalorder %s35, 0
      %p160 = por %p158, %p159
      %p161 = scmp.ne.s32.totalorder %s153, %s155
      %p162 = scmp.eq.s32.totalorder %s40, 1
      %p163 = por %p161, %p162
      %p164 = scmp.ne.s32.totalorder %s155, %s156
      %p165 = scmp.eq.s32.totalorder %s40, 0
      %p166 = por %p164, %p165
      %p167 = scmp.ne.s32.totalorder %s155, %s156
      %p168 = scmp.eq.s32.totalorder %s41, 1
      %p169 = por %p167, %p168
      %p171 = scmp.ne.s32.totalorder %s156, %s170
      %p172 = scmp.eq.s32.totalorder %s41, 0
      %p173 = por %p171, %p172
      %s175 = sadd.s32 %s174, 1
      %p178 = scmp.eq.s32.totalorder %s35, 1
      %p179 = scmp.ne.s32.totalorder %s174, %s176
      %p180 = scmp.eq.s32.totalorder %s35, 0
      %p181 = por %p179, %p180
      %p182 = scmp.ne.s32.totalorder %s174, %s176
      %p183 = scmp.eq.s32.totalorder %s40, 1
      %p184 = por %p182, %p183
      %p185 = scmp.ne.s32.totalorder %s176, %s177
      %p186 = scmp.eq.s32.totalorder %s40, 0
      %p187 = por %p185, %p186
      %p188 = scmp.ne.s32.totalorder %s176, %s177
      %p189 = scmp.eq.s32.totalorder %s41, 1
      %p190 = por %p188, %p189
      %p192 = scmp.ne.s32.totalorder %s177, %s191
      %p193 = scmp.eq.s32.totalorder %s41, 0
      %p194 = por %p192, %p193
      %s196 = sadd.s32 %s195, 1
      %p199 = scmp.eq.s32.totalorder %s35, 1
      %p200 = scmp.ne.s32.totalorder %s195, %s197
      %p201 = scmp.eq.s32.totalorder %s35, 0
      %p202 = por %p200, %p201
      %p203 = scmp.ne.s32.totalorder %s195, %s197
      %p204 = scmp.eq.s32.totalorder %s40, 1
      %p205 = por %p203, %p204
      %p206 = scmp.ne.s32.totalorder %s197, %s198
      %p207 = scmp.eq.s32.totalorder %s40, 0
      %p208 = por %p206, %p207
      %p209 = scmp.ne.s32.totalorder %s197, %s198
      %p210 = scmp.eq.s32.totalorder %s41, 1
      %p211 = por %p209, %p210
      %p213 = scmp.ne.s32.totalorder %s198, %s212
      %p214 = scmp.eq.s32.totalorder %s41, 0
      %p215 = por %p213, %p214
      %s217 = sadd.s32 %s216, 1
      %p220 = scmp.eq.s32.totalorder %s35, 1
      %p221 = scmp.ne.s32.totalorder %s216, %s218
      %p222 = scmp.eq.s32.totalorder %s35, 0
      %p223 = por %p221, %p222
      %p224 = scmp.ne.s32.totalorder %s216, %s218
      %p225 = scmp.eq.s32.totalorder %s40, 1
      %p226 = por %p224, %p225
      %p227 = scmp.ne.s32.totalorder %s218, %s219
      %p228 = scmp.eq.s32.totalorder %s40, 0
      %p229 = por %p227, %p228
      %p230 = scmp.ne.s32.totalorder %s218, %s219
      %p231 = scmp.eq.s32.totalorder %s41, 1
      %p232 = por %p230, %p231
      %p234 = scmp.ne.s32.totalorder %s219, %s233
      %p235 = scmp.eq.s32.totalorder %s41, 0
      %p236 = por %p234, %p235
      %s238 = sadd.s32 %s237, 1
      %p241 = scmp.eq.s32.totalorder %s35, 1
      %p242 = scmp.ne.s32.totalorder %s237, %s239
      %p243 = scmp.eq.s32.totalorder %s35, 0
      %p244 = por %p242, %p243
      %p245 = scmp.ne.s32.totalorder %s237, %s239
      %p246 = scmp.eq.s32.totalorder %s40, 1
      %p247 = por %p245, %p246
      %p248 = scmp.ne.s32.totalorder %s239, %s240
      %p249 = scmp.eq.s32.totalorder %s40, 0
      %p250 = por %p248, %p249
      %p251 = scmp.ne.s32.totalorder %s239, %s240
      %p252 = scmp.eq.s32.totalorder %s41, 1
      %p253 = por %p251, %p252
      %p255 = scmp.ne.s32.totalorder %s240, %s254
      %p256 = scmp.eq.s32.totalorder %s41, 0
      %p257 = por %p255, %p256
      %s259 = sadd.s32 %s258, 1
      %p262 = scmp.eq.s32.totalorder %s35, 1
      %p263 = scmp.ne.s32.totalorder %s258, %s260
      %p264 = scmp.eq.s32.totalorder %s35, 0
      %p265 = por %p263, %p264
      %p266 = scmp.ne.s32.totalorder %s258, %s260
      %p267 = scmp.eq.s32.totalorder %s40, 1
      %p268 = por %p266, %p267
      %p269 = scmp.ne.s32.totalorder %s260, %s261
      %p270 = scmp.eq.s32.totalorder %s40, 0
      %p271 = por %p269, %p270
      %p272 = scmp.ne.s32.totalorder %s260, %s261
      %p273 = scmp.eq.s32.totalorder %s41, 1
      %p274 = por %p272, %p273
      %p276 = scmp.ne.s32.totalorder %s261, %s275
      %p277 = scmp.eq.s32.totalorder %s41, 0
      %p278 = por %p276, %p277
      %s280 = sadd.s32 %s279, 1
      %p283 = scmp.eq.s32.totalorder %s35, 1
      %p284 = scmp.ne.s32.totalorder %s279, %s281
      %p285 = scmp.eq.s32.totalorder %s35, 0
      %p286 = por %p284, %p285
      %p287 = scmp.ne.s32.totalorder %s279, %s281
      %p288 = scmp.eq.s32.totalorder %s40, 1
      %p289 = por %p287, %p288
      %p290 = scmp.ne.s32.totalorder %s281, %s282
      %p291 = scmp.eq.s32.totalorder %s40, 0
      %p292 = por %p290, %p291
      %p293 = scmp.ne.s32.totalorder %s281, %s282
      %p294 = scmp.eq.s32.totalorder %s41, 1
      %p295 = por %p293, %p294
      %p297 = scmp.ne.s32.totalorder %s282, %s296
      %p298 = scmp.eq.s32.totalorder %s41, 0
      %p299 = por %p297, %p298
      %s301 = sadd.s32 %s300, 1
      %p304 = scmp.eq.s32.totalorder %s35, 1
      %p305 = scmp.ne.s32.totalorder %s300, %s302
      %p306 = scmp.eq.s32.totalorder %s35, 0
      %p307 = por %p305, %p306
      %p308 = scmp.ne.s32.totalorder %s300, %s302
      %p309 = scmp.eq.s32.totalorder %s40, 1
      %p310 = por %p308, %p309
      %p311 = scmp.ne.s32.totalorder %s302, %s303
      %p312 = scmp.eq.s32.totalorder %s40, 0
      %p313 = por %p311, %p312
      %p314 = scmp.ne.s32.totalorder %s302, %s303
      %p315 = scmp.eq.s32.totalorder %s41, 1
      %p316 = por %p314, %p315
      %p318 = scmp.ne.s32.totalorder %s303, %s317
      %p319 = scmp.eq.s32.totalorder %s41, 0
      %p320 = por %p318, %p319
      %s322 = sadd.s32 %s321, 1
      %p325 = scmp.eq.s32.totalorder %s35, 1
      %p326 = scmp.ne.s32.totalorder %s321, %s323
      %p327 = scmp.eq.s32.totalorder %s35, 0
      %p328 = por %p326, %p327
      %p329 = scmp.ne.s32.totalorder %s321, %s323
      %p330 = scmp.eq.s32.totalorder %s40, 1
      %p331 = por %p329, %p330
      %p332 = scmp.ne.s32.totalorder %s323, %s324
      %p333 = scmp.eq.s32.totalorder %s40, 0
      %p334 = por %p332, %p333
      %p335 = scmp.ne.s32.totalorder %s323, %s324
      %p336 = scmp.eq.s32.totalorder %s41, 1
      %p337 = por %p335, %p336
      %p339 = scmp.ne.s32.totalorder %s324, %s338
      %p340 = scmp.eq.s32.totalorder %s41, 0
      %p341 = por %p339, %p340
      %s343 = sadd.s32 %s342, 1
      %p346 = scmp.eq.s32.totalorder %s35, 1
      %p347 = scmp.ne.s32.totalorder %s342, %s344
      %p348 = scmp.eq.s32.totalorder %s35, 0
      %p349 = por %p347, %p348
      %p350 = scmp.ne.s32.totalorder %s342, %s344
      %p351 = scmp.eq.s32.totalorder %s40, 1
      %p352 = por %p350, %p351
      %p353 = scmp.ne.s32.totalorder %s344, %s345
      %p354 = scmp.eq.s32.totalorder %s40, 0
      %p355 = por %p353, %p354
      %p356 = scmp.ne.s32.totalorder %s344, %s345
      %p357 = scmp.eq.s32.totalorder %s41, 1
      %p358 = por %p356, %p357
      %p360 = scmp.ne.s32.totalorder %s345, %s359
      %p361 = scmp.eq.s32.totalorder %s41, 0
      %p362 = por %p360, %p361
      %s364 = sadd.s32 %s363, 1
      %p367 = scmp.eq.s32.totalorder %s35, 1
      %p368 = scmp.ne.s32.totalorder %s363, %s365
      %p369 = scmp.eq.s32.totalorder %s35, 0
      %p370 = por %p368, %p369
      %p371 = scmp.ne.s32.totalorder %s363, %s365
      %p372 = scmp.eq.s32.totalorder %s40, 1
      %p373 = por %p371, %p372
      %p374 = scmp.ne.s32.totalorder %s365, %s366
      %p375 = scmp.eq.s32.totalorder %s40, 0
      %p376 = por %p374, %p375
      %p377 = scmp.ne.s32.totalorder %s365, %s366
      %p378 = scmp.eq.s32.totalorder %s41, 1
      %p379 = por %p377, %p378
      %p381 = scmp.ne.s32.totalorder %s366, %s380
      %p382 = scmp.eq.s32.totalorder %s41, 0
      %p383 = por %p381, %p382
      %s385 = sadd.s32 %s384, 1
      %p388 = scmp.eq.s32.totalorder %s35, 1
      %p389 = scmp.ne.s32.totalorder %s384, %s386
      %p390 = scmp.eq.s32.totalorder %s35, 0
      %p391 = por %p389, %p390
      %p392 = scmp.ne.s32.totalorder %s384, %s386
      %p393 = scmp.eq.s32.totalorder %s40, 1
      %p394 = por %p392, %p393
      %p395 = scmp.ne.s32.totalorder %s386, %s387
      %p396 = scmp.eq.s32.totalorder %s40, 0
      %p397 = por %p395, %p396
      %p398 = scmp.ne.s32.totalorder %s386, %s387
      %p399 = scmp.eq.s32.totalorder %s41, 1
      %p400 = por %p398, %p399
      %p402 = scmp.ne.s32.totalorder %s387, %s401
      %p403 = scmp.eq.s32.totalorder %s41, 0
      %p404 = por %p402, %p403
      %s406 = sadd.s32 %s405, 1
      %p409 = scmp.eq.s32.totalorder %s35, 1
      %p410 = scmp.ne.s32.totalorder %s405, %s407
      %p411 = scmp.eq.s32.totalorder %s35, 0
      %p412 = por %p410, %p411
      %p413 = scmp.ne.s32.totalorder %s405, %s407
      %p414 = scmp.eq.s32.totalorder %s40, 1
      %p415 = por %p413, %p414
      %p416 = scmp.ne.s32.totalorder %s407, %s408
      %p417 = scmp.eq.s32.totalorder %s40, 0
      %p418 = por %p416, %p417
      %p419 = scmp.ne.s32.totalorder %s407, %s408
      %p420 = scmp.eq.s32.totalorder %s41, 1
      %p421 = por %p419, %p420
      %p423 = scmp.ne.s32.totalorder %s408, %s422
      %p424 = scmp.eq.s32.totalorder %s41, 0
      %p425 = por %p423, %p424
      %s427 = sadd.s32 %s426, 1
      %p430 = scmp.eq.s32.totalorder %s35, 1
      %p431 = scmp.ne.s32.totalorder %s426, %s428
      %p432 = scmp.eq.s32.totalorder %s35, 0
      %p433 = por %p431, %p432
      %p434 = scmp.ne.s32.totalorder %s426, %s428
      %p435 = scmp.eq.s32.totalorder %s40, 1
      %p436 = por %p434, %p435
      %p437 = scmp.ne.s32.totalorder %s428, %s429
      %p438 = scmp.eq.s32.totalorder %s40, 0
      %p439 = por %p437, %p438
      %p440 = scmp.ne.s32.totalorder %s428, %s429
      %p441 = scmp.eq.s32.totalorder %s41, 1
      %p442 = por %p440, %p441
      %p444 = scmp.ne.s32.totalorder %s429, %s443
      %p445 = scmp.eq.s32.totalorder %s41, 0
      %p446 = por %p444, %p445
      %s448 = sadd.s32 %s447, 1
      %p451 = scmp.eq.s32.totalorder %s35, 1
      %p452 = scmp.ne.s32.totalorder %s447, %s449
      %p453 = scmp.eq.s32.totalorder %s35, 0
      %p454 = por %p452, %p453
      %p455 = scmp.ne.s32.totalorder %s447, %s449
      %p456 = scmp.eq.s32.totalorder %s40, 1
      %p457 = por %p455, %p456
      %p458 = scmp.ne.s32.totalorder %s449, %s450
      %p459 = scmp.eq.s32.totalorder %s40, 0
      %p460 = por %p458, %p459
      %p461 = scmp.ne.s32.totalorder %s449, %s450
      %p462 = scmp.eq.s32.totalorder %s41, 1
      %p463 = por %p461, %p462
      %p465 = scmp.ne.s32.totalorder %s450, %s464
      %p466 = scmp.eq.s32.totalorder %s41, 0
      %p467 = por %p465, %p466
      %s469 = sadd.s32 %s468, 1
      %p472 = scmp.eq.s32.totalorder %s35, 1
      %p473 = scmp.ne.s32.totalorder %s468, %s470
      %p474 = scmp.eq.s32.totalorder %s35, 0
      %p475 = por %p473, %p474
      %p476 = scmp.ne.s32.totalorder %s468, %s470
      %p477 = scmp.eq.s32.totalorder %s40, 1
      %p478 = por %p476, %p477
      %p479 = scmp.ne.s32.totalorder %s470, %s471
      %p480 = scmp.eq.s32.totalorder %s40, 0
      %p481 = por %p479, %p480
      %p482 = scmp.ne.s32.totalorder %s470, %s471
      %p483 = scmp.eq.s32.totalorder %s41, 1
      %p484 = por %p482, %p483
      %p486 = scmp.ne.s32.totalorder %s471, %s485
      %p487 = scmp.eq.s32.totalorder %s41, 0
      %p488 = por %p486, %p487
      %s489 = ssub.s32 %s35, %s42
      %p490 = scmp.eq.s32.totalorder %s489, 0
      %s492 = sadd.s32 %s491, 1
      %s493 = scalar_select %p490, %s491, %s492
      %p496 = pneg %p490
      %p497 = scmp.eq.s32.totalorder %s35, 1
      %p498 = por %p496, %p497
      %p499 = scmp.ne.s32.totalorder %s491, %s494
      %p500 = scmp.eq.s32.totalorder %s35, 0
      %p501 = por %p499, %p500
      %p502 = scmp.ne.s32.totalorder %s491, %s494
      %p503 = scmp.eq.s32.totalorder %s40, 1
      %p504 = por %p502, %p503
      %p505 = scmp.ne.s32.totalorder %s494, %s495
      %p506 = scmp.eq.s32.totalorder %s40, 0
      %p507 = por %p505, %p506
      %p508 = scmp.ne.s32.totalorder %s494, %s495
      %p509 = scmp.eq.s32.totalorder %s41, 1
      %p510 = por %p508, %p509
      %p512 = scmp.ne.s32.totalorder %s495, %s511
      %p513 = scmp.eq.s32.totalorder %s41, 0
      %p514 = por %p512, %p513
      %p515 = scmp.le.s32.totalorder 1, %s35
      %p516 = scmp.lt.s32.totalorder %s35, 3
      %p517 = pnand %p515, %p516
      %p518 = pneg %p517
      // Predicated region
      $region9: #{net_forward.1} parent=5 // pred_check
        _
      $region10: #{net_forward.1} parent=5 // pred_check_branch
        %520 = sbr.rel (%p517) target = $region12
      $region11: #{net_forward.1} parent=5 // pred_region
        %s521 = ssub.s32 %s35, 1
        // Predicated region
        $region13: #{net_forward.1} parent=11 // pred_check
          %p522 = pneg %p82
        $region14: #{net_forward.1} parent=11 // pred_check_branch
          %524 = sbr.rel (%p522) target = $region16
        $region15: #{net_forward.1} parent=11 // pred_region
          _
        $region16: #{net_forward.1} parent=11 // pred_fallthru
          _
        // Predicated region
        $region17: #{net_forward.1} parent=11 // pred_check
          %p525 = pneg %p103
        $region18: #{net_forward.1} parent=11 // pred_check_branch
          %527 = sbr.rel (%p525) target = $region20
        $region19: #{net_forward.1} parent=11 // pred_region
          %s529 = ssub.s32 64, 64
          %530 = vsyncadd [#allocation3], %s529
          %s532 = sshll.u32 [#allocation2], 4
          %s533 = int_to_ptr.vmem [resolvable:$true] %s532
          %535 = dma.hbm_to_vmem [thread:$0]  %s2, 64, %s533, [#allocation3]
        $region20: #{net_forward.1} parent=11 // pred_fallthru
          _
        // Predicated region
        $region21: #{net_forward.1} parent=11 // pred_check
          %p536 = pneg %p124
        $region22: #{net_forward.1} parent=11 // pred_check_branch
          %538 = sbr.rel (%p536) target = $region24
        $region23: #{net_forward.1} parent=11 // pred_region
          _
        $region24: #{net_forward.1} parent=11 // pred_fallthru
          _
        // Predicated region
        $region25: #{net_forward.1} parent=11 // pred_check
          %p539 = pneg %p145
        $region26: #{net_forward.1} parent=11 // pred_check_branch
          %541 = sbr.rel (%p539) target = $region28
        $region27: #{net_forward.1} parent=11 // pred_region
          %s543 = ssub.s32 256, 256
          %544 = vsyncadd [#allocation5], %s543
          %s545 = sshll.u32 [#allocation4], 4
          %s546 = int_to_ptr.vmem [resolvable:$true] %s545
          %551 = dma.hbm_to_vmem [thread:$0]  %s4, 256, %s546, [#allocation5], 64, 64, 4
        $region28: #{net_forward.1} parent=11 // pred_fallthru
          _
        // Predicated region
        $region29: #{net_forward.1} parent=11 // pred_check
          %p552 = pneg %p166
        $region30: #{net_forward.1} parent=11 // pred_check_branch
          %554 = sbr.rel (%p552) target = $region32
        $region31: #{net_forward.1} parent=11 // pred_region
          %s556 = ssub.s32 16384, 16384
          %557 = vsyncadd [#allocation5], %s556
          %s558 = sshll.u32 [#allocation6], 4
          %s559 = int_to_ptr.vmem [resolvable:$true] %s558
          %564 = dma.hbm_to_vmem [thread:$0]  %s5, 16384, %s559, [#allocation5], 128, 128, 8
        $region32: #{net_forward.1} parent=11 // pred_fallthru
          _
        // Predicated region
        $region33: #{net_forward.1} parent=11 // pred_check
          %p565 = pneg %p187
        $region34: #{net_forward.1} parent=11 // pred_check_branch
          %567 = sbr.rel (%p565) target = $region36
        $region35: #{net_forward.1} parent=11 // pred_region
          %s569 = ssub.s32 24576, 24576
          %570 = vsyncadd [#allocation8], %s569
          %s571 = sshll.u32 [#allocation7], 4
          %s572 = int_to_ptr.vmem [resolvable:$true] %s571
          %577 = dma.hbm_to_vmem [thread:$0]  %s6, 24576, %s572, [#allocation8], 256, 256, 16
        $region36: #{net_forward.1} parent=11 // pred_fallthru
          _
        // Predicated region
        $region37: #{net_forward.1} parent=11 // pred_check
          %p578 = pneg %p208
        $region38: #{net_forward.1} parent=11 // pred_check_branch
          %580 = sbr.rel (%p578) target = $region40
        $region39: #{net_forward.1} parent=11 // pred_region
          %s582 = ssub.s32 64, 64
          %583 = vsyncadd [#allocation8], %s582
          %s585 = sshll.u32 [#allocation9], 4
          %s586 = int_to_ptr.vmem [resolvable:$true] %s585
          %588 = dma.hbm_to_vmem [thread:$0]  %s7, 64, %s586, [#allocation8]
        $region40: #{net_forward.1} parent=11 // pred_fallthru
          _
        // Predicated region
        $region41: #{net_forward.1} parent=11 // pred_check
          %p589 = pneg %p229
        $region42: #{net_forward.1} parent=11 // pred_check_branch
          %591 = sbr.rel (%p589) target = $region44
        $region43: #{net_forward.1} parent=11 // pred_region
          _
        $region44: #{net_forward.1} parent=11 // pred_fallthru
          _
        // Predicated region
        $region45: #{net_forward.1} parent=11 // pred_check
          %p592 = pneg %p250
        $region46: #{net_forward.1} parent=11 // pred_check_branch
          %594 = sbr.rel (%p592) target = $region48
        $region47: #{net_forward.1} parent=11 // pred_region
          %s596 = ssub.s32 128, 128
          %597 = vsyncadd [#allocation11], %s596
          %s598 = sshll.u32 [#allocation10], 4
          %s599 = int_to_ptr.vmem [resolvable:$true] %s598
          %604 = dma.hbm_to_vmem [thread:$0]  %s9, 128, %s599, [#allocation11], 64, 64, 4
        $region48: #{net_forward.1} parent=11 // pred_fallthru
          _
        // Predicated region
        $region49: #{net_forward.1} parent=11 // pred_check
          %p605 = pneg %p271
        $region50: #{net_forward.1} parent=11 // pred_check_branch
          %607 = sbr.rel (%p605) target = $region52
        $region51: #{net_forward.1} parent=11 // pred_region
          %s609 = ssub.s32 16384, 16384
          %610 = vsyncadd [#allocation11], %s609
          %s611 = sshll.u32 [#allocation12], 4
          %s612 = int_to_ptr.vmem [resolvable:$true] %s611
          %617 = dma.hbm_to_vmem [thread:$0]  %s10, 16384, %s612, [#allocation11], 128, 128, 8
        $region52: #{net_forward.1} parent=11 // pred_fallthru
          _
        // Predicated region
        $region53: #{net_forward.1} parent=11 // pred_check
          %p618 = pneg %p292
        $region54: #{net_forward.1} parent=11 // pred_check_branch
          %620 = sbr.rel (%p618) target = $region56
        $region55: #{net_forward.1} parent=11 // pred_region
          %s622 = ssub.s32 24576, 24576
          %623 = vsyncadd [#allocation14], %s622
          %s624 = sshll.u32 [#allocation13], 4
          %s625 = int_to_ptr.vmem [resolvable:$true] %s624
          %630 = dma.hbm_to_vmem [thread:$0]  %s11, 24576, %s625, [#allocation14], 256, 256, 16
        $region56: #{net_forward.1} parent=11 // pred_fallthru
          _
        // Predicated region
        $region57: #{net_forward.1} parent=11 // pred_check
          %p631 = pneg %p313
        $region58: #{net_forward.1} parent=11 // pred_check_branch
          %633 = sbr.rel (%p631) target = $region60
        $region59: #{net_forward.1} parent=11 // pred_region
          %s635 = ssub.s32 64, 64
          %636 = vsyncadd [#allocation14], %s635
          %s638 = sshll.u32 [#allocation15], 4
          %s639 = int_to_ptr.vmem [resolvable:$true] %s638
          %641 = dma.hbm_to_vmem [thread:$0]  %s12, 64, %s639, [#allocation14]
        $region60: #{net_forward.1} parent=11 // pred_fallthru
          _
        // Predicated region
        $region61: #{net_forward.1} parent=11 // pred_check
          %p642 = pneg %p334
        $region62: #{net_forward.1} parent=11 // pred_check_branch
          %644 = sbr.rel (%p642) target = $region64
        $region63: #{net_forward.1} parent=11 // pred_region
          _
        $region64: #{net_forward.1} parent=11 // pred_fallthru
          _
        // Predicated region
        $region65: #{net_forward.1} parent=11 // pred_check
          %p645 = pneg %p355
        $region66: #{net_forward.1} parent=11 // pred_check_branch
          %647 = sbr.rel (%p645) target = $region68
        $region67: #{net_forward.1} parent=11 // pred_region
          %s649 = ssub.s32 64, 64
          %650 = vsyncadd [#allocation17], %s649
          %s651 = sshll.u32 [#allocation16], 4
          %s652 = int_to_ptr.vmem [resolvable:$true] %s651
          %657 = dma.hbm_to_vmem [thread:$0]  %s14, 64, %s652, [#allocation17], 32, 32, 2
        $region68: #{net_forward.1} parent=11 // pred_fallthru
          _
        // Predicated region
        $region69: #{net_forward.1} parent=11 // pred_check
          %p658 = pneg %p376
        $region70: #{net_forward.1} parent=11 // pred_check_branch
          %660 = sbr.rel (%p658) target = $region72
        $region71: #{net_forward.1} parent=11 // pred_region
          %s662 = ssub.s32 16384, 16384
          %663 = vsyncadd [#allocation17], %s662
          %s664 = sshll.u32 [#allocation18], 4
          %s665 = int_to_ptr.vmem [resolvable:$true] %s664
          %670 = dma.hbm_to_vmem [thread:$0]  %s15, 16384, %s665, [#allocation17], 128, 128, 8
        $region72: #{net_forward.1} parent=11 // pred_fallthru
          _
        // Predicated region
        $region73: #{net_forward.1} parent=11 // pred_check
          %p671 = pneg %p397
        $region74: #{net_forward.1} parent=11 // pred_check_branch
          %673 = sbr.rel (%p671) target = $region76
        $region75: #{net_forward.1} parent=11 // pred_region
          _
        $region76: #{net_forward.1} parent=11 // pred_fallthru
          _
        // Predicated region
        $region77: #{net_forward.1} parent=11 // pred_check
          %p674 = pneg %p418
        $region78: #{net_forward.1} parent=11 // pred_check_branch
          %676 = sbr.rel (%p674) target = $region80
        $region79: #{net_forward.1} parent=11 // pred_region
          %s678 = ssub.s32 32768, 32768
          %679 = vsyncadd [#allocation20], %s678
          %s680 = sshll.u32 [#allocation19], 4
          %s681 = int_to_ptr.vmem [resolvable:$true] %s680
          %686 = dma.hbm_to_vmem [thread:$0]  %s17, 32768, %s681, [#allocation20], 256, 256, 16
        $region80: #{net_forward.1} parent=11 // pred_fallthru
          _
        // Predicated region
        $region81: #{net_forward.1} parent=11 // pred_check
          %p687 = pneg %p439
        $region82: #{net_forward.1} parent=11 // pred_check_branch
          %689 = sbr.rel (%p687) target = $region84
        $region83: #{net_forward.1} parent=11 // pred_region
          %s691 = ssub.s32 64, 64
          %692 = vsyncadd [#allocation20], %s691
          %s694 = sshll.u32 [#allocation21], 4
          %s695 = int_to_ptr.vmem [resolvable:$true] %s694
          %697 = dma.hbm_to_vmem [thread:$0]  %s18, 64, %s695, [#allocation20]
        $region84: #{net_forward.1} parent=11 // pred_fallthru
          _
        // Predicated region
        $region85: #{net_forward.1} parent=11 // pred_check
          %p698 = pneg %p460
        $region86: #{net_forward.1} parent=11 // pred_check_branch
          %700 = sbr.rel (%p698) target = $region88
        $region87: #{net_forward.1} parent=11 // pred_region
          %s702 = ssub.s32 8192, 8192
          %703 = vsyncadd [#allocation23], %s702
          %s704 = sshll.u32 [#allocation22], 4
          %s705 = int_to_ptr.vmem [resolvable:$true] %s704
          %710 = dma.hbm_to_vmem [thread:$0]  %s19, 8192, %s705, [#allocation23], 128, 128, 8
        $region88: #{net_forward.1} parent=11 // pred_fallthru
          _
        // Predicated region
        $region89: #{net_forward.1} parent=11 // pred_check
          %p711 = pneg %p481
        $region90: #{net_forward.1} parent=11 // pred_check_branch
          %713 = sbr.rel (%p711) target = $region92
        $region91: #{net_forward.1} parent=11 // pred_region
          %s715 = ssub.s32 32, 32
          %716 = vsyncadd [#allocation23], %s715
          %s718 = sshll.u32 [#allocation24], 4
          %s719 = int_to_ptr.vmem [resolvable:$true] %s718
          %721 = dma.hbm_to_vmem [thread:$0]  %s20, 32, %s719, [#allocation23]
        $region92: #{net_forward.1} parent=11 // pred_fallthru
          _
      $region12: #{net_forward.1} parent=5 // pred_fallthru
        _
      %p722 = scmp.lt.s32.totalorder %s35, 2
      // Predicated region
      $region93: #{net_forward.1} parent=5 // pred_check
        %p723 = pneg %p722
      $region94: #{net_forward.1} parent=5 // pred_check_branch
        %725 = sbr.rel (%p723) target = $region96
      $region95: #{net_forward.1} parent=5 // pred_region
        // Predicated region
        $region97: #{net_forward.1} parent=95 // pred_check
          %p726 = pneg %p55
        $region98: #{net_forward.1} parent=95 // pred_check_branch
          %728 = sbr.rel (%p726) target = $region100
        $region99: #{net_forward.1} parent=95 // pred_region
          %p729 = scmp.lt.s32.totalorder %s35, 1
          %s730 = scalar_select %p729, %s35, 1
          %s731 = smul.addr %s730, 4
          %s732 = smul.addr %s731, 4
          %s733 = scalar_lea.vmem %s0, %s732
        $region100: #{net_forward.1} parent=95 // pred_fallthru
          _
      $region96: #{net_forward.1} parent=5 // pred_fallthru
        _
      %p734 = scmp.le.s32.totalorder 1, %s35
      %p735 = scmp.lt.s32.totalorder %s35, 3
      %p736 = pnand %p734, %p735
      %p737 = pneg %p736
      // Predicated region
      $region101: #{net_forward.1} parent=5 // pred_check
        _
      $region102: #{net_forward.1} parent=5 // pred_check_branch
        %739 = sbr.rel (%p736) target = $region104
      $region103: #{net_forward.1} parent=5 // pred_region
        %s740 = ssub.s32 %s35, 1
        // Predicated region
        $region105: #{net_forward.1} parent=103 // pred_check
          %p741 = pneg %p103
        $region106: #{net_forward.1} parent=103 // pred_check_branch
          %743 = sbr.rel (%p741) target = $region108
        $region107: #{net_forward.1} parent=103 // pred_region
          %744 = dma.done [#allocation3], 64
        $region108: #{net_forward.1} parent=103 // pred_fallthru
          _
        // Predicated region
        $region109: #{net_forward.1} parent=103 // pred_check
          %p745 = pneg %p145
        $region110: #{net_forward.1} parent=103 // pred_check_branch
          %747 = sbr.rel (%p745) target = $region112
        $region111: #{net_forward.1} parent=103 // pred_region
          %748 = dma.done [#allocation5], 256
        $region112: #{net_forward.1} parent=103 // pred_fallthru
          _
        // Predicated region
        $region113: #{net_forward.1} parent=103 // pred_check
          %p749 = pneg %p166
        $region114: #{net_forward.1} parent=103 // pred_check_branch
          %751 = sbr.rel (%p749) target = $region116
        $region115: #{net_forward.1} parent=103 // pred_region
          %752 = dma.done [#allocation5], 16384
        $region116: #{net_forward.1} parent=103 // pred_fallthru
          _
        // Predicated region
        $region117: #{net_forward.1} parent=103 // pred_check
          %p753 = pneg %p187
        $region118: #{net_forward.1} parent=103 // pred_check_branch
          %755 = sbr.rel (%p753) target = $region120
        $region119: #{net_forward.1} parent=103 // pred_region
          %756 = dma.done [#allocation8], 24576
        $region120: #{net_forward.1} parent=103 // pred_fallthru
          _
        // Predicated region
        $region121: #{net_forward.1} parent=103 // pred_check
          %p757 = pneg %p208
        $region122: #{net_forward.1} parent=103 // pred_check_branch
          %759 = sbr.rel (%p757) target = $region124
        $region123: #{net_forward.1} parent=103 // pred_region
          %760 = dma.done [#allocation8], 64
        $region124: #{net_forward.1} parent=103 // pred_fallthru
          _
        // Predicated region
        $region125: #{net_forward.1} parent=103 // pred_check
          %p761 = pneg %p250
        $region126: #{net_forward.1} parent=103 // pred_check_branch
          %763 = sbr.rel (%p761) target = $region128
        $region127: #{net_forward.1} parent=103 // pred_region
          %764 = dma.done [#allocation11], 128
        $region128: #{net_forward.1} parent=103 // pred_fallthru
          _
        // Predicated region
        $region129: #{net_forward.1} parent=103 // pred_check
          %p765 = pneg %p271
        $region130: #{net_forward.1} parent=103 // pred_check_branch
          %767 = sbr.rel (%p765) target = $region132
        $region131: #{net_forward.1} parent=103 // pred_region
          %768 = dma.done [#allocation11], 16384
        $region132: #{net_forward.1} parent=103 // pred_fallthru
          _
        // Predicated region
        $region133: #{net_forward.1} parent=103 // pred_check
          %p769 = pneg %p292
        $region134: #{net_forward.1} parent=103 // pred_check_branch
          %771 = sbr.rel (%p769) target = $region136
        $region135: #{net_forward.1} parent=103 // pred_region
          %772 = dma.done [#allocation14], 24576
        $region136: #{net_forward.1} parent=103 // pred_fallthru
          _
        // Predicated region
        $region137: #{net_forward.1} parent=103 // pred_check
          %p773 = pneg %p313
        $region138: #{net_forward.1} parent=103 // pred_check_branch
          %775 = sbr.rel (%p773) target = $region140
        $region139: #{net_forward.1} parent=103 // pred_region
          %776 = dma.done [#allocation14], 64
        $region140: #{net_forward.1} parent=103 // pred_fallthru
          _
        // Predicated region
        $region141: #{net_forward.1} parent=103 // pred_check
          %p777 = pneg %p355
        $region142: #{net_forward.1} parent=103 // pred_check_branch
          %779 = sbr.rel (%p777) target = $region144
        $region143: #{net_forward.1} parent=103 // pred_region
          %780 = dma.done [#allocation17], 64
        $region144: #{net_forward.1} parent=103 // pred_fallthru
          _
        // Predicated region
        $region145: #{net_forward.1} parent=103 // pred_check
          %p781 = pneg %p376
        $region146: #{net_forward.1} parent=103 // pred_check_branch
          %783 = sbr.rel (%p781) target = $region148
        $region147: #{net_forward.1} parent=103 // pred_region
          %784 = dma.done [#allocation17], 16384
        $region148: #{net_forward.1} parent=103 // pred_fallthru
          _
        // Predicated region
        $region149: #{net_forward.1} parent=103 // pred_check
          %p785 = pneg %p418
        $region150: #{net_forward.1} parent=103 // pred_check_branch
          %787 = sbr.rel (%p785) target = $region152
        $region151: #{net_forward.1} parent=103 // pred_region
          %788 = dma.done [#allocation20], 32768
        $region152: #{net_forward.1} parent=103 // pred_fallthru
          _
        // Predicated region
        $region153: #{net_forward.1} parent=103 // pred_check
          %p789 = pneg %p439
        $region154: #{net_forward.1} parent=103 // pred_check_branch
          %791 = sbr.rel (%p789) target = $region156
        $region155: #{net_forward.1} parent=103 // pred_region
          %792 = dma.done [#allocation20], 64
        $region156: #{net_forward.1} parent=103 // pred_fallthru
          _
        // Predicated region
        $region157: #{net_forward.1} parent=103 // pred_check
          %p793 = pneg %p460
        $region158: #{net_forward.1} parent=103 // pred_check_branch
          %795 = sbr.rel (%p793) target = $region160
        $region159: #{net_forward.1} parent=103 // pred_region
          %796 = dma.done [#allocation23], 8192
        $region160: #{net_forward.1} parent=103 // pred_fallthru
          _
        // Predicated region
        $region161: #{net_forward.1} parent=103 // pred_check
          %p797 = pneg %p481
        $region162: #{net_forward.1} parent=103 // pred_check_branch
          %799 = sbr.rel (%p797) target = $region164
        $region163: #{net_forward.1} parent=103 // pred_region
          %800 = dma.done [#allocation23], 32
        $region164: #{net_forward.1} parent=103 // pred_fallthru
          _
        %p801 = scmp.lt.s32.totalorder %s40, 1
        %s802 = scalar_select %p801, %s40, 1
        %s803 = smul.addr %s802, 4
        %s804 = smul.addr %s803, 4
        %s805 = scalar_lea.vmem %s0, %s804
        %p806 = pneg %p61
        %p807 = pneg %p58
        %p808 = pneg %p82
        %p809 = pneg %p79
        %p810 = pneg %p103
        %p811 = pneg %p100
        %p812 = pneg %p124
        %p813 = pneg %p121
        %p814 = pneg %p145
        %p815 = pneg %p142
        %p816 = pneg %p166
        %p817 = pneg %p163
        %p818 = pneg %p187
        %p819 = pneg %p184
        %p820 = pneg %p208
        %p821 = pneg %p205
        %p822 = pneg %p229
        %p823 = pneg %p226
        %p824 = pneg %p250
        %p825 = pneg %p247
        %p826 = pneg %p271
        %p827 = pneg %p268
        %p828 = pneg %p292
        %p829 = pneg %p289
        %p830 = pneg %p313
        %p831 = pneg %p310
        %p832 = pneg %p334
        %p833 = pneg %p331
        %p834 = pneg %p355
        %p835 = pneg %p352
        %p836 = pneg %p376
        %p837 = pneg %p373
        %p838 = pneg %p397
        %p839 = pneg %p394
        %p840 = pneg %p418
        %p841 = pneg %p415
        %p842 = pneg %p439
        %p843 = pneg %p436
        %p844 = pneg %p460
        %p845 = pneg %p457
        %p846 = pneg %p481
        %p847 = pneg %p478
        %p848 = pneg %p507
        %p849 = pneg %p504
        %p850 = scmp.lt.s32.totalorder %s40, 1
        %s851 = scalar_select %p850, %s40, 1
        %s852 = smul.addr %s851, 2
        %s853 = scalar_lea.vmem %s21, %s852
        %p854 = scmp.lt.s32.totalorder %s40, 1
        %s855 = scalar_select %p854, %s40, 1
        %s856 = smul.addr %s855, 4
        %s857 = smul.addr %s856, 4
        %s858 = scalar_lea.vmem %s0, %s857
        %p859 = scmp.lt.s32.totalorder %s40, 1
        %s860 = scalar_select %p859, %s40, 1
        %s861 = smul.addr %s860, 2
        %s862 = scalar_lea.vmem %s21, %s861
        %v864 = vld [vmem:[%s858] sm:$0xf]
        %v865 = vld [vmem:[%s858 + $0x4] sm:$0xf]
        %v866 = vld [vmem:[%s858 + $0x8] sm:$0xf]
        %v867 = vld [vmem:[%s858 + $0xc] sm:$0xf]
        %v868 = vld [vmem:[%s3] sm:$0xf]
        %v869 = vld [vmem:[%s3 + $0x4] sm:$0xf]
        %v870 = vld [vmem:[%s3 + $0x8] sm:$0xf]
        %v871 = vld [vmem:[%s3 + $0xc] sm:$0xf]
        %v876 = vunpack.c.l.b16 %v868
        %v877 = vunpack.c.l.b16 %v869
        %v878 = vunpack.c.l.b16 %v870
        %v879 = vunpack.c.l.b16 %v871
        %v880 = vpack.c.b16 %v877, %v876
        %v881 = vpack.c.b16 %v879, %v878
        %v886 = vunpack.c.l.b16 %v864
        %v887 = vunpack.c.l.b16 %v865
        %v888 = vunpack.c.l.b16 %v866
        %v889 = vunpack.c.l.b16 %v867
        %v890 = vpack.c.b16 %v887, %v886
        %v891 = vpack.c.b16 %v889, %v888
        %vm894 = vcmask 261120
        %v896 = vsel %vm894, %v880, 0
        %v899 = vsel %vm894, %v881, 0
        %901 = vmatprep.subr.bf16.mxu0 0
        %902 = vmatpush1.bf16.msra.mxu0 0
        %903 = vmatprep.subr.bf16.mxu0 0
        %904 = vmatpush1.bf16.msra.mxu0 0
        %905 = vmatprep.subr.bf16.mxu0 0
        %906 = vmatpush1.bf16.msra.mxu0 0
        %907 = vmatprep.subr.bf16.mxu0 0
        %908 = vmatpush1.bf16.msra.mxu0 0
        %909 = vmatprep.subr.bf16.mxu0 0
        %910 = vmatpush1.bf16.msra.mxu0 0
        %911 = vmatprep.subr.bf16.mxu0 0
        %912 = vmatpush1.bf16.msra.mxu0 0
        %913 = vmatprep.subr.bf16.mxu0 0
        %914 = vmatpush1.bf16.msra.mxu0 %v891
        %915 = vmatprep.subr.bf16.mxu0 0
        %916 = vmatpush1.bf16.msra.mxu0 %v890
        %917 = vmatprep.subr.bf16.mxu0 0
        %918 = vmatpush2.bf16.msra.mxu0 0
        %919 = vmatprep.subr.bf16.mxu0 0
        %920 = vmatpush2.bf16.msra.mxu0 0
        %921 = vmatprep.subr.bf16.mxu0 0
        %922 = vmatpush2.bf16.msra.mxu0 0
        %923 = vmatprep.subr.bf16.mxu0 0
        %924 = vmatpush2.bf16.msra.mxu0 0
        %925 = vmatprep.subr.bf16.mxu0 0
        %926 = vmatpush2.bf16.msra.mxu0 0
        %927 = vmatprep.subr.bf16.mxu0 0
        %928 = vmatpush2.bf16.msra.mxu0 0
        %929 = vmatprep.subr.bf16.mxu0 0
        %930 = vmatpush2.bf16.msra.mxu0 0
        %931 = vmatprep.subr.bf16.mxu0 0
        %932 = vmatpush2.bf16.msra.mxu0 0
        %933 = vmatprep.mubr.bf16.mxu0 0
        %934 = vmatmul.mubr.bf16.gmra.mxu0 %v896
        %v935 = vpop.f32.mrf.mxu0
        %v936 = vadd.f32 0.0, %v935
        %v937 = vpop.f32.mrf.mxu0
        %v938 = vpop.f32.mrf.mxu0
        %v939 = vadd.f32 0.0, %v938
        %v940 = vpop.f32.mrf.mxu0
        %941 = vmatprep.mubr.bf16.mxu0 0
        %942 = vmatmul.mubr.bf16.gmra.mxu0 %v899
        %v943 = vpop.f32.mrf.mxu0
        %v944 = vadd.f32 0.0, %v943
        %v945 = vpop.f32.mrf.mxu0
        %v946 = vpop.f32.mrf.mxu0
        %v947 = vadd.f32 0.0, %v946
        %v948 = vpop.f32.mrf.mxu0
        %949 = vdwg.mxu0
        %v950 = vpack.c.bf16 %v939, %v936
        %v951 = vpack.c.bf16 %v947, %v944
        %s952 = scalar_lea.vmem %s3, 16
        %v953 = vld [vmem:[%s952] sm:$0xf]
        %v954 = vld [vmem:[%s952 + $0x4] sm:$0xf]
        %v955 = vld [vmem:[%s952 + $0x8] sm:$0xf]
        %v956 = vld [vmem:[%s952 + $0xc] sm:$0xf]
        %v961 = vunpack.c.l.b16 %v953
        %v962 = vunpack.c.l.b16 %v954
        %v963 = vunpack.c.l.b16 %v955
        %v964 = vunpack.c.l.b16 %v956
        %v965 = vpack.c.b16 %v962, %v961
        %v966 = vpack.c.b16 %v964, %v963
        %v968 = vsel %vm894, %v965, 0
        %v971 = vsel %vm894, %v966, 0
        %973 = vmatprep.subr.bf16.mxu0 0
        %974 = vmatpush1.bf16.msra.mxu0 0
        %975 = vmatprep.subr.bf16.mxu0 0
        %976 = vmatpush1.bf16.msra.mxu0 0
        %977 = vmatprep.subr.bf16.mxu0 0
        %978 = vmatpush1.bf16.msra.mxu0 0
        %979 = vmatprep.subr.bf16.mxu0 0
        %980 = vmatpush1.bf16.msra.mxu0 0
        %981 = vmatprep.subr.bf16.mxu0 0
        %982 = vmatpush1.bf16.msra.mxu0 0
        %983 = vmatprep.subr.bf16.mxu0 0
        %984 = vmatpush1.bf16.msra.mxu0 0
        %985 = vmatprep.subr.bf16.mxu0 0
        %986 = vmatpush1.bf16.msra.mxu0 %v891
        %987 = vmatprep.subr.bf16.mxu0 0
        %988 = vmatpush1.bf16.msra.mxu0 %v890
        %989 = vmatprep.subr.bf16.mxu0 0
        %990 = vmatpush2.bf16.msra.mxu0 0
        %991 = vmatprep.subr.bf16.mxu0 0
        %992 = vmatpush2.bf16.msra.mxu0 0
        %993 = vmatprep.subr.bf16.mxu0 0
        %994 = vmatpush2.bf16.msra.mxu0 0
        %995 = vmatprep.subr.bf16.mxu0 0
        %996 = vmatpush2.bf16.msra.mxu0 0
        %997 = vmatprep.subr.bf16.mxu0 0
        %998 = vmatpush2.bf16.msra.mxu0 0
        %999 = vmatprep.subr.bf16.mxu0 0
        %1000 = vmatpush2.bf16.msra.mxu0 0
        %1001 = vmatprep.subr.bf16.mxu0 0
        %1002 = vmatpush2.bf16.msra.mxu0 0
        %1003 = vmatprep.subr.bf16.mxu0 0
        %1004 = vmatpush2.bf16.msra.mxu0 0
        %1005 = vmatprep.mubr.bf16.mxu0 0
        %1006 = vmatmul.mubr.bf16.gmra.mxu0 %v968
        %v1007 = vpop.f32.mrf.mxu0
        %v1008 = vadd.f32 0.0, %v1007
        %v1009 = vpop.f32.mrf.mxu0
        %v1010 = vpop.f32.mrf.mxu0
        %v1011 = vadd.f32 0.0, %v1010
        %v1012 = vpop.f32.mrf.mxu0
        %1013 = vmatprep.mubr.bf16.mxu0 0
        %1014 = vmatmul.mubr.bf16.gmra.mxu0 %v971
        %v1015 = vpop.f32.mrf.mxu0
        %v1016 = vadd.f32 0.0, %v1015
        %v1017 = vpop.f32.mrf.mxu0
        %v1018 = vpop.f32.mrf.mxu0
        %v1019 = vadd.f32 0.0, %v1018
        %v1020 = vpop.f32.mrf.mxu0
        %1021 = vdwg.mxu0
        %v1022 = vpack.c.bf16 %v1011, %v1008
        %v1023 = vpack.c.bf16 %v1019, %v1016
        %v1024 = vld [vmem:[%s1] sm:$0xff]
        %v1025 = vld [vmem:[%s1 + $0x8] sm:$0xff]
        %v1026 = vld [vmem:[%s1 + $0x10] sm:$0xff]
        %v1027 = vld [vmem:[%s1 + $0x18] sm:$0xff]
        %v1028 = vld [vmem:[%s1 + $0x20] sm:$0xff]
        %v1029 = vld [vmem:[%s1 + $0x28] sm:$0xff]
        %v1030 = vld [vmem:[%s1 + $0x30] sm:$0xff]
        %v1031 = vld [vmem:[%s1 + $0x38] sm:$0xff]
        %v1032 = vld [vmem:[%s1 + $0x40] sm:$0xff]
        %v1033 = vld [vmem:[%s1 + $0x48] sm:$0xff]
        %v1034 = vld [vmem:[%s1 + $0x50] sm:$0xff]
        %v1035 = vld [vmem:[%s1 + $0x58] sm:$0xff]
        %v1036 = vld [vmem:[%s1 + $0x60] sm:$0xff]
        %v1037 = vld [vmem:[%s1 + $0x68] sm:$0xff]
        %v1038 = vld [vmem:[%s1 + $0x70] sm:$0xff]
        %v1039 = vld [vmem:[%s1 + $0x78] sm:$0xff]
        %v1040 = vld [vmem:[%s1 + $0x80] sm:$0xff]
        %v1041 = vld [vmem:[%s1 + $0x88] sm:$0xff]
        %v1042 = vld [vmem:[%s1 + $0x90] sm:$0xff]
        %v1043 = vld [vmem:[%s1 + $0x98] sm:$0xff]
        %v1044 = vld [vmem:[%s1 + $0xa0] sm:$0xff]
        %v1045 = vld [vmem:[%s1 + $0xa8] sm:$0xff]
        %v1046 = vld [vmem:[%s1 + $0xb0] sm:$0xff]
        %v1047 = vld [vmem:[%s1 + $0xb8] sm:$0xff]
        %s1048 = scalar_lea.vmem %s1, 192
        %v1049 = vld [vmem:[%s1048] sm:$0xff]
        %v1050 = vld [vmem:[%s1048 + $0x8] sm:$0xff]
        %v1051 = vld [vmem:[%s1048 + $0x10] sm:$0xff]
        %v1052 = vld [vmem:[%s1048 + $0x18] sm:$0xff]
        %v1053 = vld [vmem:[%s1048 + $0x20] sm:$0xff]
        %v1054 = vld [vmem:[%s1048 + $0x28] sm:$0xff]
        %v1055 = vld [vmem:[%s1048 + $0x30] sm:$0xff]
        %v1056 = vld [vmem:[%s1048 + $0x38] sm:$0xff]
        %v1057 = vld [vmem:[%s1048 + $0x40] sm:$0xff]
        %v1058 = vld [vmem:[%s1048 + $0x48] sm:$0xff]
        %v1059 = vld [vmem:[%s1048 + $0x50] sm:$0xff]
        %v1060 = vld [vmem:[%s1048 + $0x58] sm:$0xff]
        %v1061 = vld [vmem:[%s1048 + $0x60] sm:$0xff]
        %v1062 = vld [vmem:[%s1048 + $0x68] sm:$0xff]
        %v1063 = vld [vmem:[%s1048 + $0x70] sm:$0xff]
        %v1064 = vld [vmem:[%s1048 + $0x78] sm:$0xff]
        %v1065 = vld [vmem:[%s1048 + $0x80] sm:$0xff]
        %v1066 = vld [vmem:[%s1048 + $0x88] sm:$0xff]
        %v1067 = vld [vmem:[%s1048 + $0x90] sm:$0xff]
        %v1068 = vld [vmem:[%s1048 + $0x98] sm:$0xff]
        %v1069 = vld [vmem:[%s1048 + $0xa0] sm:$0xff]
        %v1070 = vld [vmem:[%s1048 + $0xa8] sm:$0xff]
        %v1071 = vld [vmem:[%s1048 + $0xb0] sm:$0xff]
        %v1072 = vld [vmem:[%s1048 + $0xb8] sm:$0xff]
        %v1097 = vunpack.c.l.b16 %v1049
        %v1098 = vunpack.c.h.b16 %v1049
        %v1099 = vunpack.c.l.b16 %v1050
        %v1100 = vunpack.c.h.b16 %v1050
        %v1101 = vunpack.c.l.b16 %v1051
        %v1102 = vunpack.c.h.b16 %v1051
        %v1103 = vunpack.c.l.b16 %v1052
        %v1104 = vunpack.c.h.b16 %v1052
        %v1105 = vunpack.c.l.b16 %v1053
        %v1106 = vunpack.c.h.b16 %v1053
        %v1107 = vunpack.c.l.b16 %v1054
        %v1108 = vunpack.c.h.b16 %v1054
        %v1109 = vunpack.c.l.b16 %v1055
        %v1110 = vunpack.c.h.b16 %v1055
        %v1111 = vunpack.c.l.b16 %v1056
        %v1112 = vunpack.c.h.b16 %v1056
        %v1113 = vunpack.c.l.b16 %v1057
        %v1114 = vunpack.c.h.b16 %v1057
        %v1115 = vunpack.c.l.b16 %v1058
        %v1116 = vunpack.c.h.b16 %v1058
        %v1117 = vunpack.c.l.b16 %v1059
        %v1118 = vunpack.c.h.b16 %v1059
        %v1119 = vunpack.c.l.b16 %v1060
        %v1120 = vunpack.c.h.b16 %v1060
        %v1121 = vunpack.c.l.b16 %v1061
        %v1122 = vunpack.c.h.b16 %v1061
        %v1123 = vunpack.c.l.b16 %v1062
        %v1124 = vunpack.c.h.b16 %v1062
        %v1125 = vunpack.c.l.b16 %v1063
        %v1126 = vunpack.c.h.b16 %v1063
        %v1127 = vunpack.c.l.b16 %v1064
        %v1128 = vunpack.c.h.b16 %v1064
        %v1129 = vunpack.c.l.b16 %v1065
        %v1130 = vunpack.c.h.b16 %v1065
        %v1131 = vunpack.c.l.b16 %v1066
        %v1132 = vunpack.c.h.b16 %v1066
        %v1133 = vunpack.c.l.b16 %v1067
        %v1134 = vunpack.c.h.b16 %v1067
        %v1135 = vunpack.c.l.b16 %v1068
        %v1136 = vunpack.c.h.b16 %v1068
        %v1137 = vunpack.c.l.b16 %v1069
        %v1138 = vunpack.c.h.b16 %v1069
        %v1139 = vunpack.c.l.b16 %v1070
        %v1140 = vunpack.c.h.b16 %v1070
        %v1141 = vunpack.c.l.b16 %v1071
        %v1142 = vunpack.c.h.b16 %v1071
        %v1143 = vunpack.c.l.b16 %v1072
        %v1144 = vunpack.c.h.b16 %v1072
        %v1145 = vpack.c.b16 %v1101, %v1097
        %v1146 = vpack.c.b16 %v1102, %v1098
        %v1147 = vpack.c.b16 %v1103, %v1099
        %v1148 = vpack.c.b16 %v1104, %v1100
        %v1149 = vpack.c.b16 %v1109, %v1105
        %v1150 = vpack.c.b16 %v1110, %v1106
        %v1151 = vpack.c.b16 %v1111, %v1107
        %v1152 = vpack.c.b16 %v1112, %v1108
        %v1153 = vpack.c.b16 %v1117, %v1113
        %v1154 = vpack.c.b16 %v1118, %v1114
        %v1155 = vpack.c.b16 %v1119, %v1115
        %v1156 = vpack.c.b16 %v1120, %v1116
        %v1157 = vpack.c.b16 %v1125, %v1121
        %v1158 = vpack.c.b16 %v1126, %v1122
        %v1159 = vpack.c.b16 %v1127, %v1123
        %v1160 = vpack.c.b16 %v1128, %v1124
        %v1161 = vpack.c.b16 %v1133, %v1129
        %v1162 = vpack.c.b16 %v1134, %v1130
        %v1163 = vpack.c.b16 %v1135, %v1131
        %v1164 = vpack.c.b16 %v1136, %v1132
        %v1165 = vpack.c.b16 %v1141, %v1137
        %v1166 = vpack.c.b16 %v1142, %v1138
        %v1167 = vpack.c.b16 %v1143, %v1139
        %v1168 = vpack.c.b16 %v1144, %v1140
        %vm1193 = vcmask 785408
        %v1195 = vsel %vm1193, %v890, 0
        %v1198 = vsel %vm1193, %v891, 0
        %1200 = vmatprep.subr.bf16.mxu0 0
        %1201 = vmatpush1.bf16.msra.mxu0 0
        %1202 = vmatprep.subr.bf16.mxu0 0
        %1203 = vmatpush1.bf16.msra.mxu0 0
        %1204 = vmatprep.subr.bf16.mxu0 %v1166
        %1205 = vmatpush1.bf16.msra.mxu0 %v1165
        %1206 = vmatprep.subr.bf16.mxu0 %v1162
        %1207 = vmatpush1.bf16.msra.mxu0 %v1161
        %1208 = vmatprep.subr.bf16.mxu0 %v1158
        %1209 = vmatpush1.bf16.msra.mxu0 %v1157
        %1210 = vmatprep.subr.bf16.mxu0 %v1154
        %1211 = vmatpush1.bf16.msra.mxu0 %v1153
        %1212 = vmatprep.subr.bf16.mxu0 %v1150
        %1213 = vmatpush1.bf16.msra.mxu0 %v1149
        %1214 = vmatprep.subr.bf16.mxu0 %v1146
        %1215 = vmatpush1.bf16.msra.mxu0 %v1145
        %1216 = vmatprep.subr.bf16.mxu0 0
        %1217 = vmatpush2.bf16.msra.mxu0 0
        %1218 = vmatprep.subr.bf16.mxu0 0
        %1219 = vmatpush2.bf16.msra.mxu0 0
        %1220 = vmatprep.subr.bf16.mxu0 0
        %1221 = vmatpush2.bf16.msra.mxu0 0
        %1222 = vmatprep.subr.bf16.mxu0 0
        %1223 = vmatpush2.bf16.msra.mxu0 0
        %1224 = vmatprep.subr.bf16.mxu0 0
        %1225 = vmatpush2.bf16.msra.mxu0 0
        %1226 = vmatprep.subr.bf16.mxu0 0
        %1227 = vmatpush2.bf16.msra.mxu0 0
        %1228 = vmatprep.subr.bf16.mxu0 0
        %1229 = vmatpush2.bf16.msra.mxu0 0
        %1230 = vmatprep.subr.bf16.mxu0 0
        %1231 = vmatpush2.bf16.msra.mxu0 0
        %1232 = vmatprep.mubr.bf16.mxu0 0
        %1233 = vmatmul.mubr.bf16.gmra.mxu0 %v1195
        %v1234 = vpop.f32.mrf.mxu0
        %v1235 = vadd.f32 0.0, %v1234
        %v1236 = vpop.f32.mrf.mxu0
        %v1237 = vadd.f32 0.0, %v1236
        %v1238 = vpop.f32.mrf.mxu0
        %v1239 = vadd.f32 0.0, %v1238
        %v1240 = vpop.f32.mrf.mxu0
        %v1241 = vadd.f32 0.0, %v1240
        %1242 = vmatprep.mubr.bf16.mxu0 0
        %1243 = vmatmul.mubr.bf16.gmra.mxu0 %v1198
        %v1244 = vpop.f32.mrf.mxu0
        %v1245 = vadd.f32 0.0, %v1244
        %v1246 = vpop.f32.mrf.mxu0
        %v1247 = vadd.f32 0.0, %v1246
        %v1248 = vpop.f32.mrf.mxu0
        %v1249 = vadd.f32 0.0, %v1248
        %v1250 = vpop.f32.mrf.mxu0
        %v1251 = vadd.f32 0.0, %v1250
        %1252 = vdwg.mxu0
        %1253 = vmatprep.subr.bf16.mxu0 0
        %1254 = vmatpush1.bf16.msra.mxu0 0
        %1255 = vmatprep.subr.bf16.mxu0 0
        %1256 = vmatpush1.bf16.msra.mxu0 0
        %1257 = vmatprep.subr.bf16.mxu0 %v1168
        %1258 = vmatpush1.bf16.msra.mxu0 %v1167
        %1259 = vmatprep.subr.bf16.mxu0 %v1164
        %1260 = vmatpush1.bf16.msra.mxu0 %v1163
        %1261 = vmatprep.subr.bf16.mxu0 %v1160
        %1262 = vmatpush1.bf16.msra.mxu0 %v1159
        %1263 = vmatprep.subr.bf16.mxu0 %v1156
        %1264 = vmatpush1.bf16.msra.mxu0 %v1155
        %1265 = vmatprep.subr.bf16.mxu0 %v1152
        %1266 = vmatpush1.bf16.msra.mxu0 %v1151
        %1267 = vmatprep.subr.bf16.mxu0 %v1148
        %1268 = vmatpush1.bf16.msra.mxu0 %v1147
        %1269 = vmatprep.subr.bf16.mxu0 0
        %1270 = vmatpush2.bf16.msra.mxu0 0
        %1271 = vmatprep.subr.bf16.mxu0 0
        %1272 = vmatpush2.bf16.msra.mxu0 0
        %1273 = vmatprep.subr.bf16.mxu0 0
        %1274 = vmatpush2.bf16.msra.mxu0 0
        %1275 = vmatprep.subr.bf16.mxu0 0
        %1276 = vmatpush2.bf16.msra.mxu0 0
        %1277 = vmatprep.subr.bf16.mxu0 0
        %1278 = vmatpush2.bf16.msra.mxu0 0
        %1279 = vmatprep.subr.bf16.mxu0 0
        %1280 = vmatpush2.bf16.msra.mxu0 0
        %1281 = vmatprep.subr.bf16.mxu0 0
        %1282 = vmatpush2.bf16.msra.mxu0 0
        %1283 = vmatprep.subr.bf16.mxu0 0
        %1284 = vmatpush2.bf16.msra.mxu0 0
        %1285 = vmatprep.mubr.bf16.mxu0 0
        %1286 = vmatmul.mubr.bf16.gmra.mxu0 %v1195
        %v1287 = vpop.f32.mrf.mxu0
        %v1288 = vadd.f32 0.0, %v1287
        %v1289 = vpop.f32.mrf.mxu0
        %v1290 = vadd.f32 0.0, %v1289
        %v1291 = vpop.f32.mrf.mxu0
        %v1292 = vadd.f32 0.0, %v1291
        %v1293 = vpop.f32.mrf.mxu0
        %v1294 = vadd.f32 0.0, %v1293
        %1295 = vmatprep.mubr.bf16.mxu0 0
        %1296 = vmatmul.mubr.bf16.gmra.mxu0 %v1198
        %v1297 = vpop.f32.mrf.mxu0
        %v1298 = vadd.f32 0.0, %v1297
        %v1299 = vpop.f32.mrf.mxu0
        %v1300 = vadd.f32 0.0, %v1299
        %v1301 = vpop.f32.mrf.mxu0
        %v1302 = vadd.f32 0.0, %v1301
        %v1303 = vpop.f32.mrf.mxu0
        %v1304 = vadd.f32 0.0, %v1303
        %1305 = vdwg.mxu0
        %v1330 = vunpack.c.l.b16 %v1024
        %v1331 = vunpack.c.h.b16 %v1024
        %v1332 = vunpack.c.l.b16 %v1025
        %v1333 = vunpack.c.h.b16 %v1025
        %v1334 = vunpack.c.l.b16 %v1026
        %v1335 = vunpack.c.h.b16 %v1026
        %v1336 = vunpack.c.l.b16 %v1027
        %v1337 = vunpack.c.h.b16 %v1027
        %v1338 = vunpack.c.l.b16 %v1028
        %v1339 = vunpack.c.h.b16 %v1028
        %v1340 = vunpack.c.l.b16 %v1029
        %v1341 = vunpack.c.h.b16 %v1029
        %v1342 = vunpack.c.l.b16 %v1030
        %v1343 = vunpack.c.h.b16 %v1030
        %v1344 = vunpack.c.l.b16 %v1031
        %v1345 = vunpack.c.h.b16 %v1031
        %v1346 = vunpack.c.l.b16 %v1032
        %v1347 = vunpack.c.h.b16 %v1032
        %v1348 = vunpack.c.l.b16 %v1033
        %v1349 = vunpack.c.h.b16 %v1033
        %v1350 = vunpack.c.l.b16 %v1034
        %v1351 = vunpack.c.h.b16 %v1034
        %v1352 = vunpack.c.l.b16 %v1035
        %v1353 = vunpack.c.h.b16 %v1035
        %v1354 = vunpack.c.l.b16 %v1036
        %v1355 = vunpack.c.h.b16 %v1036
        %v1356 = vunpack.c.l.b16 %v1037
        %v1357 = vunpack.c.h.b16 %v1037
        %v1358 = vunpack.c.l.b16 %v1038
        %v1359 = vunpack.c.h.b16 %v1038
        %v1360 = vunpack.c.l.b16 %v1039
        %v1361 = vunpack.c.h.b16 %v1039
        %v1362 = vunpack.c.l.b16 %v1040
        %v1363 = vunpack.c.h.b16 %v1040
        %v1364 = vunpack.c.l.b16 %v1041
        %v1365 = vunpack.c.h.b16 %v1041
        %v1366 = vunpack.c.l.b16 %v1042
        %v1367 = vunpack.c.h.b16 %v1042
        %v1368 = vunpack.c.l.b16 %v1043
        %v1369 = vunpack.c.h.b16 %v1043
        %v1370 = vunpack.c.l.b16 %v1044
        %v1371 = vunpack.c.h.b16 %v1044
        %v1372 = vunpack.c.l.b16 %v1045
        %v1373 = vunpack.c.h.b16 %v1045
        %v1374 = vunpack.c.l.b16 %v1046
        %v1375 = vunpack.c.h.b16 %v1046
        %v1376 = vunpack.c.l.b16 %v1047
        %v1377 = vunpack.c.h.b16 %v1047
        %v1378 = vpack.c.b16 %v1334, %v1330
        %v1379 = vpack.c.b16 %v1335, %v1331
        %v1380 = vpack.c.b16 %v1336, %v1332
        %v1381 = vpack.c.b16 %v1337, %v1333
        %v1382 = vpack.c.b16 %v1342, %v1338
        %v1383 = vpack.c.b16 %v1343, %v1339
        %v1384 = vpack.c.b16 %v1344, %v1340
        %v1385 = vpack.c.b16 %v1345, %v1341
        %v1386 = vpack.c.b16 %v1350, %v1346
        %v1387 = vpack.c.b16 %v1351, %v1347
        %v1388 = vpack.c.b16 %v1352, %v1348
        %v1389 = vpack.c.b16 %v1353, %v1349
        %v1390 = vpack.c.b16 %v1358, %v1354
        %v1391 = vpack.c.b16 %v1359, %v1355
        %v1392 = vpack.c.b16 %v1360, %v1356
        %v1393 = vpack.c.b16 %v1361, %v1357
        %v1394 = vpack.c.b16 %v1366, %v1362
        %v1395 = vpack.c.b16 %v1367, %v1363
        %v1396 = vpack.c.b16 %v1368, %v1364
        %v1397 = vpack.c.b16 %v1369, %v1365
        %v1398 = vpack.c.b16 %v1374, %v1370
        %v1399 = vpack.c.b16 %v1375, %v1371
        %v1400 = vpack.c.b16 %v1376, %v1372
        %v1401 = vpack.c.b16 %v1377, %v1373
        %v1427 = vsel %vm1193, %v950, 0
        %v1430 = vsel %vm1193, %v951, 0
        %1432 = vmatprep.subr.bf16.mxu0 0
        %1433 = vmatpush1.bf16.msra.mxu0 0
        %1434 = vmatprep.subr.bf16.mxu0 0
        %1435 = vmatpush1.bf16.msra.mxu0 0
        %1436 = vmatprep.subr.bf16.mxu0 %v1399
        %1437 = vmatpush1.bf16.msra.mxu0 %v1398
        %1438 = vmatprep.subr.bf16.mxu0 %v1395
        %1439 = vmatpush1.bf16.msra.mxu0 %v1394
        %1440 = vmatprep.subr.bf16.mxu0 %v1391
        %1441 = vmatpush1.bf16.msra.mxu0 %v1390
        %1442 = vmatprep.subr.bf16.mxu0 %v1387
        %1443 = vmatpush1.bf16.msra.mxu0 %v1386
        %1444 = vmatprep.subr.bf16.mxu0 %v1383
        %1445 = vmatpush1.bf16.msra.mxu0 %v1382
        %1446 = vmatprep.subr.bf16.mxu0 %v1379
        %1447 = vmatpush1.bf16.msra.mxu0 %v1378
        %1448 = vmatprep.subr.bf16.mxu0 0
        %1449 = vmatpush2.bf16.msra.mxu0 0
        %1450 = vmatprep.subr.bf16.mxu0 0
        %1451 = vmatpush2.bf16.msra.mxu0 0
        %1452 = vmatprep.subr.bf16.mxu0 0
        %1453 = vmatpush2.bf16.msra.mxu0 0
        %1454 = vmatprep.subr.bf16.mxu0 0
        %1455 = vmatpush2.bf16.msra.mxu0 0
        %1456 = vmatprep.subr.bf16.mxu0 0
        %1457 = vmatpush2.bf16.msra.mxu0 0
        %1458 = vmatprep.subr.bf16.mxu0 0
        %1459 = vmatpush2.bf16.msra.mxu0 0
        %1460 = vmatprep.subr.bf16.mxu0 0
        %1461 = vmatpush2.bf16.msra.mxu0 0
        %1462 = vmatprep.subr.bf16.mxu0 0
        %1463 = vmatpush2.bf16.msra.mxu0 0
        %1464 = vmatprep.mubr.bf16.mxu0 0
        %1465 = vmatmul.mubr.bf16.gmra.mxu0 %v1427
        %v1466 = vpop.f32.mrf.mxu0
        %v1467 = vadd.f32 %v1235, %v1466
        %v1468 = vpop.f32.mrf.mxu0
        %v1469 = vadd.f32 %v1237, %v1468
        %v1470 = vpop.f32.mrf.mxu0
        %v1471 = vadd.f32 %v1239, %v1470
        %v1472 = vpop.f32.mrf.mxu0
        %v1473 = vadd.f32 %v1241, %v1472
        %1474 = vmatprep.mubr.bf16.mxu0 0
        %1475 = vmatmul.mubr.bf16.gmra.mxu0 %v1430
        %v1476 = vpop.f32.mrf.mxu0
        %v1477 = vadd.f32 %v1245, %v1476
        %v1478 = vpop.f32.mrf.mxu0
        %v1479 = vadd.f32 %v1247, %v1478
        %v1480 = vpop.f32.mrf.mxu0
        %v1481 = vadd.f32 %v1249, %v1480
        %v1482 = vpop.f32.mrf.mxu0
        %v1483 = vadd.f32 %v1251, %v1482
        %1484 = vdwg.mxu0
        %1485 = vmatprep.subr.bf16.mxu0 0
        %1486 = vmatpush1.bf16.msra.mxu0 0
        %1487 = vmatprep.subr.bf16.mxu0 0
        %1488 = vmatpush1.bf16.msra.mxu0 0
        %1489 = vmatprep.subr.bf16.mxu0 %v1401
        %1490 = vmatpush1.bf16.msra.mxu0 %v1400
        %1491 = vmatprep.subr.bf16.mxu0 %v1397
        %1492 = vmatpush1.bf16.msra.mxu0 %v1396
        %1493 = vmatprep.subr.bf16.mxu0 %v1393
        %1494 = vmatpush1.bf16.msra.mxu0 %v1392
        %1495 = vmatprep.subr.bf16.mxu0 %v1389
        %1496 = vmatpush1.bf16.msra.mxu0 %v1388
        %1497 = vmatprep.subr.bf16.mxu0 %v1385
        %1498 = vmatpush1.bf16.msra.mxu0 %v1384
        %1499 = vmatprep.subr.bf16.mxu0 %v1381
        %1500 = vmatpush1.bf16.msra.mxu0 %v1380
        %1501 = vmatprep.subr.bf16.mxu0 0
        %1502 = vmatpush2.bf16.msra.mxu0 0
        %1503 = vmatprep.subr.bf16.mxu0 0
        %1504 = vmatpush2.bf16.msra.mxu0 0
        %1505 = vmatprep.subr.bf16.mxu0 0
        %1506 = vmatpush2.bf16.msra.mxu0 0
        %1507 = vmatprep.subr.bf16.mxu0 0
        %1508 = vmatpush2.bf16.msra.mxu0 0
        %1509 = vmatprep.subr.bf16.mxu0 0
        %1510 = vmatpush2.bf16.msra.mxu0 0
        %1511 = vmatprep.subr.bf16.mxu0 0
        %1512 = vmatpush2.bf16.msra.mxu0 0
        %1513 = vmatprep.subr.bf16.mxu0 0
        %1514 = vmatpush2.bf16.msra.mxu0 0
        %1515 = vmatprep.subr.bf16.mxu0 0
        %1516 = vmatpush2.bf16.msra.mxu0 0
        %1517 = vmatprep.mubr.bf16.mxu0 0
        %1518 = vmatmul.mubr.bf16.gmra.mxu0 %v1427
        %v1519 = vpop.f32.mrf.mxu0
        %v1520 = vadd.f32 %v1288, %v1519
        %v1521 = vpop.f32.mrf.mxu0
        %v1522 = vadd.f32 %v1290, %v1521
        %v1523 = vpop.f32.mrf.mxu0
        %v1524 = vadd.f32 %v1292, %v1523
        %v1525 = vpop.f32.mrf.mxu0
        %v1526 = vadd.f32 %v1294, %v1525
        %1527 = vmatprep.mubr.bf16.mxu0 0
        %1528 = vmatmul.mubr.bf16.gmra.mxu0 %v1430
        %v1529 = vpop.f32.mrf.mxu0
        %v1530 = vadd.f32 %v1298, %v1529
        %v1531 = vpop.f32.mrf.mxu0
        %v1532 = vadd.f32 %v1300, %v1531
        %v1533 = vpop.f32.mrf.mxu0
        %v1534 = vadd.f32 %v1302, %v1533
        %v1535 = vpop.f32.mrf.mxu0
        %v1536 = vadd.f32 %v1304, %v1535
        %1537 = vdwg.mxu0
        %s1538 = scalar_lea.vmem %s1, 384
        %v1539 = vld [vmem:[%s1538] sm:$0xff]
        %v1540 = vld [vmem:[%s1538 + $0x8] sm:$0xff]
        %v1541 = vld [vmem:[%s1538 + $0x10] sm:$0xff]
        %v1542 = vld [vmem:[%s1538 + $0x18] sm:$0xff]
        %v1543 = vld [vmem:[%s1538 + $0x20] sm:$0xff]
        %v1544 = vld [vmem:[%s1538 + $0x28] sm:$0xff]
        %v1545 = vld [vmem:[%s1538 + $0x30] sm:$0xff]
        %v1546 = vld [vmem:[%s1538 + $0x38] sm:$0xff]
        %v1547 = vld [vmem:[%s1538 + $0x40] sm:$0xff]
        %v1548 = vld [vmem:[%s1538 + $0x48] sm:$0xff]
        %v1549 = vld [vmem:[%s1538 + $0x50] sm:$0xff]
        %v1550 = vld [vmem:[%s1538 + $0x58] sm:$0xff]
        %v1551 = vld [vmem:[%s1538 + $0x60] sm:$0xff]
        %v1552 = vld [vmem:[%s1538 + $0x68] sm:$0xff]
        %v1553 = vld [vmem:[%s1538 + $0x70] sm:$0xff]
        %v1554 = vld [vmem:[%s1538 + $0x78] sm:$0xff]
        %v1555 = vld [vmem:[%s1538 + $0x80] sm:$0xff]
        %v1556 = vld [vmem:[%s1538 + $0x88] sm:$0xff]
        %v1557 = vld [vmem:[%s1538 + $0x90] sm:$0xff]
        %v1558 = vld [vmem:[%s1538 + $0x98] sm:$0xff]
        %v1559 = vld [vmem:[%s1538 + $0xa0] sm:$0xff]
        %v1560 = vld [vmem:[%s1538 + $0xa8] sm:$0xff]
        %v1561 = vld [vmem:[%s1538 + $0xb0] sm:$0xff]
        %v1562 = vld [vmem:[%s1538 + $0xb8] sm:$0xff]
        %v1587 = vunpack.c.l.b16 %v1539
        %v1588 = vunpack.c.h.b16 %v1539
        %v1589 = vunpack.c.l.b16 %v1540
        %v1590 = vunpack.c.h.b16 %v1540
        %v1591 = vunpack.c.l.b16 %v1541
        %v1592 = vunpack.c.h.b16 %v1541
        %v1593 = vunpack.c.l.b16 %v1542
        %v1594 = vunpack.c.h.b16 %v1542
        %v1595 = vunpack.c.l.b16 %v1543
        %v1596 = vunpack.c.h.b16 %v1543
        %v1597 = vunpack.c.l.b16 %v1544
        %v1598 = vunpack.c.h.b16 %v1544
        %v1599 = vunpack.c.l.b16 %v1545
        %v1600 = vunpack.c.h.b16 %v1545
        %v1601 = vunpack.c.l.b16 %v1546
        %v1602 = vunpack.c.h.b16 %v1546
        %v1603 = vunpack.c.l.b16 %v1547
        %v1604 = vunpack.c.h.b16 %v1547
        %v1605 = vunpack.c.l.b16 %v1548
        %v1606 = vunpack.c.h.b16 %v1548
        %v1607 = vunpack.c.l.b16 %v1549
        %v1608 = vunpack.c.h.b16 %v1549
        %v1609 = vunpack.c.l.b16 %v1550
        %v1610 = vunpack.c.h.b16 %v1550
        %v1611 = vunpack.c.l.b16 %v1551
        %v1612 = vunpack.c.h.b16 %v1551
        %v1613 = vunpack.c.l.b16 %v1552
        %v1614 = vunpack.c.h.b16 %v1552
        %v1615 = vunpack.c.l.b16 %v1553
        %v1616 = vunpack.c.h.b16 %v1553
        %v1617 = vunpack.c.l.b16 %v1554
        %v1618 = vunpack.c.h.b16 %v1554
        %v1619 = vunpack.c.l.b16 %v1555
        %v1620 = vunpack.c.h.b16 %v1555
        %v1621 = vunpack.c.l.b16 %v1556
        %v1622 = vunpack.c.h.b16 %v1556
        %v1623 = vunpack.c.l.b16 %v1557
        %v1624 = vunpack.c.h.b16 %v1557
        %v1625 = vunpack.c.l.b16 %v1558
        %v1626 = vunpack.c.h.b16 %v1558
        %v1627 = vunpack.c.l.b16 %v1559
        %v1628 = vunpack.c.h.b16 %v1559
        %v1629 = vunpack.c.l.b16 %v1560
        %v1630 = vunpack.c.h.b16 %v1560
        %v1631 = vunpack.c.l.b16 %v1561
        %v1632 = vunpack.c.h.b16 %v1561
        %v1633 = vunpack.c.l.b16 %v1562
        %v1634 = vunpack.c.h.b16 %v1562
        %v1635 = vpack.c.b16 %v1591, %v1587
        %v1636 = vpack.c.b16 %v1592, %v1588
        %v1637 = vpack.c.b16 %v1593, %v1589
        %v1638 = vpack.c.b16 %v1594, %v1590
        %v1639 = vpack.c.b16 %v1599, %v1595
        %v1640 = vpack.c.b16 %v1600, %v1596
        %v1641 = vpack.c.b16 %v1601, %v1597
        %v1642 = vpack.c.b16 %v1602, %v1598
        %v1643 = vpack.c.b16 %v1607, %v1603
        %v1644 = vpack.c.b16 %v1608, %v1604
        %v1645 = vpack.c.b16 %v1609, %v1605
        %v1646 = vpack.c.b16 %v1610, %v1606
        %v1647 = vpack.c.b16 %v1615, %v1611
        %v1648 = vpack.c.b16 %v1616, %v1612
        %v1649 = vpack.c.b16 %v1617, %v1613
        %v1650 = vpack.c.b16 %v1618, %v1614
        %v1651 = vpack.c.b16 %v1623, %v1619
        %v1652 = vpack.c.b16 %v1624, %v1620
        %v1653 = vpack.c.b16 %v1625, %v1621
        %v1654 = vpack.c.b16 %v1626, %v1622
        %v1655 = vpack.c.b16 %v1631, %v1627
        %v1656 = vpack.c.b16 %v1632, %v1628
        %v1657 = vpack.c.b16 %v1633, %v1629
        %v1658 = vpack.c.b16 %v1634, %v1630
        %v1684 = vsel %vm1193, %v1022, 0
        %v1687 = vsel %vm1193, %v1023, 0
        %1689 = vmatprep.subr.bf16.mxu0 0
        %1690 = vmatpush1.bf16.msra.mxu0 0
        %1691 = vmatprep.subr.bf16.mxu0 0
        %1692 = vmatpush1.bf16.msra.mxu0 0
        %1693 = vmatprep.subr.bf16.mxu0 %v1656
        %1694 = vmatpush1.bf16.msra.mxu0 %v1655
        %1695 = vmatprep.subr.bf16.mxu0 %v1652
        %1696 = vmatpush1.bf16.msra.mxu0 %v1651
        %1697 = vmatprep.subr.bf16.mxu0 %v1648
        %1698 = vmatpush1.bf16.msra.mxu0 %v1647
        %1699 = vmatprep.subr.bf16.mxu0 %v1644
        %1700 = vmatpush1.bf16.msra.mxu0 %v1643
        %1701 = vmatprep.subr.bf16.mxu0 %v1640
        %1702 = vmatpush1.bf16.msra.mxu0 %v1639
        %1703 = vmatprep.subr.bf16.mxu0 %v1636
        %1704 = vmatpush1.bf16.msra.mxu0 %v1635
        %1705 = vmatprep.subr.bf16.mxu0 0
        %1706 = vmatpush2.bf16.msra.mxu0 0
        %1707 = vmatprep.subr.bf16.mxu0 0
        %1708 = vmatpush2.bf16.msra.mxu0 0
        %1709 = vmatprep.subr.bf16.mxu0 0
        %1710 = vmatpush2.bf16.msra.mxu0 0
        %1711 = vmatprep.subr.bf16.mxu0 0
        %1712 = vmatpush2.bf16.msra.mxu0 0
        %1713 = vmatprep.subr.bf16.mxu0 0
        %1714 = vmatpush2.bf16.msra.mxu0 0
        %1715 = vmatprep.subr.bf16.mxu0 0
        %1716 = vmatpush2.bf16.msra.mxu0 0
        %1717 = vmatprep.subr.bf16.mxu0 0
        %1718 = vmatpush2.bf16.msra.mxu0 0
        %1719 = vmatprep.subr.bf16.mxu0 0
        %1720 = vmatpush2.bf16.msra.mxu0 0
        %1721 = vmatprep.mubr.bf16.mxu0 0
        %1722 = vmatmul.mubr.bf16.gmra.mxu0 %v1684
        %v1723 = vpop.f32.mrf.mxu0
        %v1724 = vadd.f32 0.0, %v1723
        %v1725 = vpop.f32.mrf.mxu0
        %v1726 = vadd.f32 0.0, %v1725
        %v1727 = vpop.f32.mrf.mxu0
        %v1728 = vadd.f32 0.0, %v1727
        %v1729 = vpop.f32.mrf.mxu0
        %v1730 = vadd.f32 0.0, %v1729
        %1731 = vmatprep.mubr.bf16.mxu0 0
        %1732 = vmatmul.mubr.bf16.gmra.mxu0 %v1687
        %v1733 = vpop.f32.mrf.mxu0
        %v1734 = vadd.f32 0.0, %v1733
        %v1735 = vpop.f32.mrf.mxu0
        %v1736 = vadd.f32 0.0, %v1735
        %v1737 = vpop.f32.mrf.mxu0
        %v1738 = vadd.f32 0.0, %v1737
        %v1739 = vpop.f32.mrf.mxu0
        %v1740 = vadd.f32 0.0, %v1739
        %1741 = vdwg.mxu0
        %1742 = vmatprep.subr.bf16.mxu0 0
        %1743 = vmatpush1.bf16.msra.mxu0 0
        %1744 = vmatprep.subr.bf16.mxu0 0
        %1745 = vmatpush1.bf16.msra.mxu0 0
        %1746 = vmatprep.subr.bf16.mxu0 %v1658
        %1747 = vmatpush1.bf16.msra.mxu0 %v1657
        %1748 = vmatprep.subr.bf16.mxu0 %v1654
        %1749 = vmatpush1.bf16.msra.mxu0 %v1653
        %1750 = vmatprep.subr.bf16.mxu0 %v1650
        %1751 = vmatpush1.bf16.msra.mxu0 %v1649
        %1752 = vmatprep.subr.bf16.mxu0 %v1646
        %1753 = vmatpush1.bf16.msra.mxu0 %v1645
        %1754 = vmatprep.subr.bf16.mxu0 %v1642
        %1755 = vmatpush1.bf16.msra.mxu0 %v1641
        %1756 = vmatprep.subr.bf16.mxu0 %v1638
        %1757 = vmatpush1.bf16.msra.mxu0 %v1637
        %1758 = vmatprep.subr.bf16.mxu0 0
        %1759 = vmatpush2.bf16.msra.mxu0 0
        %1760 = vmatprep.subr.bf16.mxu0 0
        %1761 = vmatpush2.bf16.msra.mxu0 0
        %1762 = vmatprep.subr.bf16.mxu0 0
        %1763 = vmatpush2.bf16.msra.mxu0 0
        %1764 = vmatprep.subr.bf16.mxu0 0
        %1765 = vmatpush2.bf16.msra.mxu0 0
        %1766 = vmatprep.subr.bf16.mxu0 0
        %1767 = vmatpush2.bf16.msra.mxu0 0
        %1768 = vmatprep.subr.bf16.mxu0 0
        %1769 = vmatpush2.bf16.msra.mxu0 0
        %1770 = vmatprep.subr.bf16.mxu0 0
        %1771 = vmatpush2.bf16.msra.mxu0 0
        %1772 = vmatprep.subr.bf16.mxu0 0
        %1773 = vmatpush2.bf16.msra.mxu0 0
        %1774 = vmatprep.mubr.bf16.mxu0 0
        %1775 = vmatmul.mubr.bf16.gmra.mxu0 %v1684
        %v1776 = vpop.f32.mrf.mxu0
        %v1777 = vadd.f32 0.0, %v1776
        %v1778 = vpop.f32.mrf.mxu0
        %v1779 = vadd.f32 0.0, %v1778
        %v1780 = vpop.f32.mrf.mxu0
        %v1781 = vadd.f32 0.0, %v1780
        %v1782 = vpop.f32.mrf.mxu0
        %v1783 = vadd.f32 0.0, %v1782
        %1784 = vmatprep.mubr.bf16.mxu0 0
        %1785 = vmatmul.mubr.bf16.gmra.mxu0 %v1687
        %v1786 = vpop.f32.mrf.mxu0
        %v1787 = vadd.f32 0.0, %v1786
        %v1788 = vpop.f32.mrf.mxu0
        %v1789 = vadd.f32 0.0, %v1788
        %v1790 = vpop.f32.mrf.mxu0
        %v1791 = vadd.f32 0.0, %v1790
        %v1792 = vpop.f32.mrf.mxu0
        %v1793 = vadd.f32 0.0, %v1792
        %1794 = vdwg.mxu0
        %v1795 = vadd.f32 %v1467, %v1724
        %v1796 = vadd.f32 %v1469, %v1726
        %v1797 = vadd.f32 %v1520, %v1777
        %v1798 = vadd.f32 %v1522, %v1779
        %v1799 = vadd.f32 %v1471, %v1728
        %v1800 = vadd.f32 %v1473, %v1730
        %v1801 = vadd.f32 %v1524, %v1781
        %v1802 = vadd.f32 %v1526, %v1783
        %v1803 = vadd.f32 %v1477, %v1734
        %v1804 = vadd.f32 %v1479, %v1736
        %v1805 = vadd.f32 %v1530, %v1787
        %v1806 = vadd.f32 %v1532, %v1789
        %v1807 = vadd.f32 %v1481, %v1738
        %v1808 = vadd.f32 %v1483, %v1740
        %v1809 = vadd.f32 %v1534, %v1791
        %v1810 = vadd.f32 %v1536, %v1793
        %v1811 = vld [vmem:[#allocation2] sm:$0xf]
        %v1813 = vlaneseq
        %v1814 = vshrl.u32 %v1813, 7
        %v1815 = vsub.s32 0, %v1814
        %v1816 = vrot.slane %v1811, %v1815
        %v1817 = vlaneseq
        %v1818 = vshrl.u32 %v1817, 7
        %v1819 = vsub.s32 1, %v1818
        %v1820 = vrot.slane %v1811, %v1819
        %v1821 = vlaneseq
        %v1822 = vshrl.u32 %v1821, 7
        %v1823 = vsub.s32 2, %v1822
        %v1824 = vrot.slane %v1811, %v1823
        %v1825 = vlaneseq
        %v1826 = vshrl.u32 %v1825, 7
        %v1827 = vsub.s32 3, %v1826
        %v1828 = vrot.slane %v1811, %v1827
        %v1833 = vadd.f32 %v1795, %v1816
        %v1834 = vadd.f32 %v1796, %v1820
        %v1835 = vadd.f32 %v1797, %v1824
        %v1836 = vadd.f32 %v1798, %v1828
        %v1837 = vadd.f32 %v1799, %v1816
        %v1838 = vadd.f32 %v1800, %v1820
        %v1839 = vadd.f32 %v1801, %v1824
        %v1840 = vadd.f32 %v1802, %v1828
        %v1841 = vadd.f32 %v1803, %v1816
        %v1842 = vadd.f32 %v1804, %v1820
        %v1843 = vadd.f32 %v1805, %v1824
        %v1844 = vadd.f32 %v1806, %v1828
        %v1845 = vadd.f32 %v1807, %v1816
        %v1846 = vadd.f32 %v1808, %v1820
        %v1847 = vadd.f32 %v1809, %v1824
        %v1848 = vadd.f32 %v1810, %v1828
        %v1849 = vmax.f32 %v1833, 0.0
        %v1850 = vmax.f32 %v1834, 0.0
        %v1851 = vmax.f32 %v1835, 0.0
        %v1852 = vmax.f32 %v1836, 0.0
        %v1853 = vmax.f32 %v1837, 0.0
        %v1854 = vmax.f32 %v1838, 0.0
        %v1855 = vmax.f32 %v1839, 0.0
        %v1856 = vmax.f32 %v1840, 0.0
        %v1857 = vmax.f32 %v1841, 0.0
        %v1858 = vmax.f32 %v1842, 0.0
        %v1859 = vmax.f32 %v1843, 0.0
        %v1860 = vmax.f32 %v1844, 0.0
        %v1861 = vmax.f32 %v1845, 0.0
        %v1862 = vmax.f32 %v1846, 0.0
        %v1863 = vmax.f32 %v1847, 0.0
        %v1864 = vmax.f32 %v1848, 0.0
        %v1865 = vpack.c.bf16 %v1853, %v1849
        %v1866 = vpack.c.bf16 %v1854, %v1850
        %v1867 = vpack.c.bf16 %v1855, %v1851
        %v1868 = vpack.c.bf16 %v1856, %v1852
        %v1869 = vpack.c.bf16 %v1861, %v1857
        %v1870 = vpack.c.bf16 %v1862, %v1858
        %v1871 = vpack.c.bf16 %v1863, %v1859
        %v1872 = vpack.c.bf16 %v1864, %v1860
        %v1873 = vld [vmem:[#allocation4] sm:$0xf]
        %v1874 = vld [vmem:[#allocation4 + $0x4] sm:$0xf]
        %v1877 = vunpack.c.l.b16 %v1873
        %v1878 = vunpack.c.l.b16 %v1874
        %v1879 = vpack.c.b16 %v1878, %v1877
        %v1881 = vsel %vm894, %v1879, 0
        %1883 = vmatprep.subr.bf16.mxu0 0
        %1884 = vmatpush1.bf16.msra.mxu0 0
        %1885 = vmatprep.subr.bf16.mxu0 0
        %1886 = vmatpush1.bf16.msra.mxu0 0
        %1887 = vmatprep.subr.bf16.mxu0 0
        %1888 = vmatpush1.bf16.msra.mxu0 0
        %1889 = vmatprep.subr.bf16.mxu0 0
        %1890 = vmatpush1.bf16.msra.mxu0 0
        %1891 = vmatprep.subr.bf16.mxu0 0
        %1892 = vmatpush1.bf16.msra.mxu0 0
        %1893 = vmatprep.subr.bf16.mxu0 0
        %1894 = vmatpush1.bf16.msra.mxu0 0
        %1895 = vmatprep.subr.bf16.mxu0 %v1870
        %1896 = vmatpush1.bf16.msra.mxu0 %v1869
        %1897 = vmatprep.subr.bf16.mxu0 %v1866
        %1898 = vmatpush1.bf16.msra.mxu0 %v1865
        %1899 = vmatprep.subr.bf16.mxu0 0
        %1900 = vmatpush2.bf16.msra.mxu0 0
        %1901 = vmatprep.subr.bf16.mxu0 0
        %1902 = vmatpush2.bf16.msra.mxu0 0
        %1903 = vmatprep.subr.bf16.mxu0 0
        %1904 = vmatpush2.bf16.msra.mxu0 0
        %1905 = vmatprep.subr.bf16.mxu0 0
        %1906 = vmatpush2.bf16.msra.mxu0 0
        %1907 = vmatprep.subr.bf16.mxu0 0
        %1908 = vmatpush2.bf16.msra.mxu0 0
        %1909 = vmatprep.subr.bf16.mxu0 0
        %1910 = vmatpush2.bf16.msra.mxu0 0
        %1911 = vmatprep.subr.bf16.mxu0 0
        %1912 = vmatpush2.bf16.msra.mxu0 0
        %1913 = vmatprep.subr.bf16.mxu0 0
        %1914 = vmatpush2.bf16.msra.mxu0 0
        %1915 = vmatprep.mubr.bf16.mxu0 0
        %1916 = vmatmul.mubr.bf16.gmra.mxu0 %v1881
        %v1917 = vpop.f32.mrf.mxu0
        %v1918 = vadd.f32 0.0, %v1917
        %v1919 = vpop.f32.mrf.mxu0
        %v1920 = vadd.f32 0.0, %v1919
        %v1921 = vpop.f32.mrf.mxu0
        %v1922 = vadd.f32 0.0, %v1921
        %v1923 = vpop.f32.mrf.mxu0
        %v1924 = vadd.f32 0.0, %v1923
        %1925 = vdwg.mxu0
        %1926 = vmatprep.subr.bf16.mxu0 0
        %1927 = vmatpush1.bf16.msra.mxu0 0
        %1928 = vmatprep.subr.bf16.mxu0 0
        %1929 = vmatpush1.bf16.msra.mxu0 0
        %1930 = vmatprep.subr.bf16.mxu0 0
        %1931 = vmatpush1.bf16.msra.mxu0 0
        %1932 = vmatprep.subr.bf16.mxu0 0
        %1933 = vmatpush1.bf16.msra.mxu0 0
        %1934 = vmatprep.subr.bf16.mxu0 0
        %1935 = vmatpush1.bf16.msra.mxu0 0
        %1936 = vmatprep.subr.bf16.mxu0 0
        %1937 = vmatpush1.bf16.msra.mxu0 0
        %1938 = vmatprep.subr.bf16.mxu0 %v1872
        %1939 = vmatpush1.bf16.msra.mxu0 %v1871
        %1940 = vmatprep.subr.bf16.mxu0 %v1868
        %1941 = vmatpush1.bf16.msra.mxu0 %v1867
        %1942 = vmatprep.subr.bf16.mxu0 0
        %1943 = vmatpush2.bf16.msra.mxu0 0
        %1944 = vmatprep.subr.bf16.mxu0 0
        %1945 = vmatpush2.bf16.msra.mxu0 0
        %1946 = vmatprep.subr.bf16.mxu0 0
        %1947 = vmatpush2.bf16.msra.mxu0 0
        %1948 = vmatprep.subr.bf16.mxu0 0
        %1949 = vmatpush2.bf16.msra.mxu0 0
        %1950 = vmatprep.subr.bf16.mxu0 0
        %1951 = vmatpush2.bf16.msra.mxu0 0
        %1952 = vmatprep.subr.bf16.mxu0 0
        %1953 = vmatpush2.bf16.msra.mxu0 0
        %1954 = vmatprep.subr.bf16.mxu0 0
        %1955 = vmatpush2.bf16.msra.mxu0 0
        %1956 = vmatprep.subr.bf16.mxu0 0
        %1957 = vmatpush2.bf16.msra.mxu0 0
        %1958 = vmatprep.mubr.bf16.mxu0 0
        %1959 = vmatmul.mubr.bf16.gmra.mxu0 %v1881
        %v1960 = vpop.f32.mrf.mxu0
        %v1961 = vadd.f32 0.0, %v1960
        %v1962 = vpop.f32.mrf.mxu0
        %v1963 = vadd.f32 0.0, %v1962
        %v1964 = vpop.f32.mrf.mxu0
        %v1965 = vadd.f32 0.0, %v1964
        %v1966 = vpop.f32.mrf.mxu0
        %v1967 = vadd.f32 0.0, %v1966
        %1968 = vdwg.mxu0
        %s1969 = scalar_lea.vmem [#allocation4], 8
        %v1970 = vld [vmem:[%s1969] sm:$0xf]
        %v1971 = vld [vmem:[%s1969 + $0x4] sm:$0xf]
        %v1974 = vunpack.c.l.b16 %v1970
        %v1975 = vunpack.c.l.b16 %v1971
        %v1976 = vpack.c.b16 %v1975, %v1974
        %v1978 = vsel %vm894, %v1976, 0
        %1980 = vmatprep.subr.bf16.mxu0 0
        %1981 = vmatpush1.bf16.msra.mxu0 0
        %1982 = vmatprep.subr.bf16.mxu0 0
        %1983 = vmatpush1.bf16.msra.mxu0 0
        %1984 = vmatprep.subr.bf16.mxu0 0
        %1985 = vmatpush1.bf16.msra.mxu0 0
        %1986 = vmatprep.subr.bf16.mxu0 0
        %1987 = vmatpush1.bf16.msra.mxu0 0
        %1988 = vmatprep.subr.bf16.mxu0 0
        %1989 = vmatpush1.bf16.msra.mxu0 0
        %1990 = vmatprep.subr.bf16.mxu0 0
        %1991 = vmatpush1.bf16.msra.mxu0 0
        %1992 = vmatprep.subr.bf16.mxu0 %v1870
        %1993 = vmatpush1.bf16.msra.mxu0 %v1869
        %1994 = vmatprep.subr.bf16.mxu0 %v1866
        %1995 = vmatpush1.bf16.msra.mxu0 %v1865
        %1996 = vmatprep.subr.bf16.mxu0 0
        %1997 = vmatpush2.bf16.msra.mxu0 0
        %1998 = vmatprep.subr.bf16.mxu0 0
        %1999 = vmatpush2.bf16.msra.mxu0 0
        %2000 = vmatprep.subr.bf16.mxu0 0
        %2001 = vmatpush2.bf16.msra.mxu0 0
        %2002 = vmatprep.subr.bf16.mxu0 0
        %2003 = vmatpush2.bf16.msra.mxu0 0
        %2004 = vmatprep.subr.bf16.mxu0 0
        %2005 = vmatpush2.bf16.msra.mxu0 0
        %2006 = vmatprep.subr.bf16.mxu0 0
        %2007 = vmatpush2.bf16.msra.mxu0 0
        %2008 = vmatprep.subr.bf16.mxu0 0
        %2009 = vmatpush2.bf16.msra.mxu0 0
        %2010 = vmatprep.subr.bf16.mxu0 0
        %2011 = vmatpush2.bf16.msra.mxu0 0
        %2012 = vmatprep.mubr.bf16.mxu0 0
        %2013 = vmatmul.mubr.bf16.gmra.mxu0 %v1978
        %v2014 = vpop.f32.mrf.mxu0
        %v2015 = vadd.f32 0.0, %v2014
        %v2016 = vpop.f32.mrf.mxu0
        %v2017 = vadd.f32 0.0, %v2016
        %v2018 = vpop.f32.mrf.mxu0
        %v2019 = vadd.f32 0.0, %v2018
        %v2020 = vpop.f32.mrf.mxu0
        %v2021 = vadd.f32 0.0, %v2020
        %2022 = vdwg.mxu0
        %2023 = vmatprep.subr.bf16.mxu0 0
        %2024 = vmatpush1.bf16.msra.mxu0 0
        %2025 = vmatprep.subr.bf16.mxu0 0
        %2026 = vmatpush1.bf16.msra.mxu0 0
        %2027 = vmatprep.subr.bf16.mxu0 0
        %2028 = vmatpush1.bf16.msra.mxu0 0
        %2029 = vmatprep.subr.bf16.mxu0 0
        %2030 = vmatpush1.bf16.msra.mxu0 0
        %2031 = vmatprep.subr.bf16.mxu0 0
        %2032 = vmatpush1.bf16.msra.mxu0 0
        %2033 = vmatprep.subr.bf16.mxu0 0
        %2034 = vmatpush1.bf16.msra.mxu0 0
        %2035 = vmatprep.subr.bf16.mxu0 %v1872
        %2036 = vmatpush1.bf16.msra.mxu0 %v1871
        %2037 = vmatprep.subr.bf16.mxu0 %v1868
        %2038 = vmatpush1.bf16.msra.mxu0 %v1867
        %2039 = vmatprep.subr.bf16.mxu0 0
        %2040 = vmatpush2.bf16.msra.mxu0 0
        %2041 = vmatprep.subr.bf16.mxu0 0
        %2042 = vmatpush2.bf16.msra.mxu0 0
        %2043 = vmatprep.subr.bf16.mxu0 0
        %2044 = vmatpush2.bf16.msra.mxu0 0
        %2045 = vmatprep.subr.bf16.mxu0 0
        %2046 = vmatpush2.bf16.msra.mxu0 0
        %2047 = vmatprep.subr.bf16.mxu0 0
        %2048 = vmatpush2.bf16.msra.mxu0 0
        %2049 = vmatprep.subr.bf16.mxu0 0
        %2050 = vmatpush2.bf16.msra.mxu0 0
        %2051 = vmatprep.subr.bf16.mxu0 0
        %2052 = vmatpush2.bf16.msra.mxu0 0
        %2053 = vmatprep.subr.bf16.mxu0 0
        %2054 = vmatpush2.bf16.msra.mxu0 0
        %2055 = vmatprep.mubr.bf16.mxu0 0
        %2056 = vmatmul.mubr.bf16.gmra.mxu0 %v1978
        %v2057 = vpop.f32.mrf.mxu0
        %v2058 = vadd.f32 0.0, %v2057
        %v2059 = vpop.f32.mrf.mxu0
        %v2060 = vadd.f32 0.0, %v2059
        %v2061 = vpop.f32.mrf.mxu0
        %v2062 = vadd.f32 0.0, %v2061
        %v2063 = vpop.f32.mrf.mxu0
        %v2064 = vadd.f32 0.0, %v2063
        %2065 = vdwg.mxu0
        %v2066 = vmax.f32 %v1918, %v2015
        %v2067 = vmax.f32 %v1920, %v2017
        %v2068 = vmax.f32 %v1961, %v2058
        %v2069 = vmax.f32 %v1963, %v2060
        %v2070 = vmax.f32 %v1922, %v2019
        %v2071 = vmax.f32 %v1924, %v2021
        %v2072 = vmax.f32 %v1965, %v2062
        %v2073 = vmax.f32 %v1967, %v2064
        %v2074 = vpack.c.bf16 %v2070, %v2066
        %v2075 = vpack.c.bf16 %v2071, %v2067
        %v2076 = vpack.c.bf16 %v2072, %v2068
        %v2077 = vpack.c.bf16 %v2073, %v2069
        %v2078 = vld [vmem:[#allocation6] sm:$0xff]
        %v2079 = vld [vmem:[#allocation6 + $0x8] sm:$0xff]
        %v2080 = vld [vmem:[#allocation6 + $0x10] sm:$0xff]
        %v2081 = vld [vmem:[#allocation6 + $0x18] sm:$0xff]
        %v2082 = vld [vmem:[#allocation6 + $0x20] sm:$0xff]
        %v2083 = vld [vmem:[#allocation6 + $0x28] sm:$0xff]
        %v2084 = vld [vmem:[#allocation6 + $0x30] sm:$0xff]
        %v2085 = vld [vmem:[#allocation6 + $0x38] sm:$0xff]
        %v2086 = vld [vmem:[#allocation6 + $0x40] sm:$0xff]
        %v2087 = vld [vmem:[#allocation6 + $0x48] sm:$0xff]
        %v2088 = vld [vmem:[#allocation6 + $0x50] sm:$0xff]
        %v2089 = vld [vmem:[#allocation6 + $0x58] sm:$0xff]
        %v2090 = vld [vmem:[#allocation6 + $0x60] sm:$0xff]
        %v2091 = vld [vmem:[#allocation6 + $0x68] sm:$0xff]
        %v2092 = vld [vmem:[#allocation6 + $0x70] sm:$0xff]
        %v2093 = vld [vmem:[#allocation6 + $0x78] sm:$0xff]
        %v2094 = vld [vmem:[#allocation6 + $0x80] sm:$0xff]
        %v2095 = vld [vmem:[#allocation6 + $0x88] sm:$0xff]
        %v2096 = vld [vmem:[#allocation6 + $0x90] sm:$0xff]
        %v2097 = vld [vmem:[#allocation6 + $0x98] sm:$0xff]
        %v2098 = vld [vmem:[#allocation6 + $0xa0] sm:$0xff]
        %v2099 = vld [vmem:[#allocation6 + $0xa8] sm:$0xff]
        %v2100 = vld [vmem:[#allocation6 + $0xb0] sm:$0xff]
        %v2101 = vld [vmem:[#allocation6 + $0xb8] sm:$0xff]
        %v2102 = vld [vmem:[#allocation6 + $0xc0] sm:$0xff]
        %v2103 = vld [vmem:[#allocation6 + $0xc8] sm:$0xff]
        %v2104 = vld [vmem:[#allocation6 + $0xd0] sm:$0xff]
        %v2105 = vld [vmem:[#allocation6 + $0xd8] sm:$0xff]
        %v2106 = vld [vmem:[#allocation6 + $0xe0] sm:$0xff]
        %v2107 = vld [vmem:[#allocation6 + $0xe8] sm:$0xff]
        %v2108 = vld [vmem:[#allocation6 + $0xf0] sm:$0xff]
        %v2109 = vld [vmem:[#allocation6 + $0xf8] sm:$0xff]
        %v2110 = vld [vmem:[#allocation6 + $0x100] sm:$0xff]
        %v2111 = vld [vmem:[#allocation6 + $0x108] sm:$0xff]
        %v2112 = vld [vmem:[#allocation6 + $0x110] sm:$0xff]
        %v2113 = vld [vmem:[#allocation6 + $0x118] sm:$0xff]
        %v2114 = vld [vmem:[#allocation6 + $0x120] sm:$0xff]
        %v2115 = vld [vmem:[#allocation6 + $0x128] sm:$0xff]
        %v2116 = vld [vmem:[#allocation6 + $0x130] sm:$0xff]
        %v2117 = vld [vmem:[#allocation6 + $0x138] sm:$0xff]
        %v2118 = vld [vmem:[#allocation6 + $0x140] sm:$0xff]
        %v2119 = vld [vmem:[#allocation6 + $0x148] sm:$0xff]
        %v2120 = vld [vmem:[#allocation6 + $0x150] sm:$0xff]
        %v2121 = vld [vmem:[#allocation6 + $0x158] sm:$0xff]
        %v2122 = vld [vmem:[#allocation6 + $0x160] sm:$0xff]
        %v2123 = vld [vmem:[#allocation6 + $0x168] sm:$0xff]
        %v2124 = vld [vmem:[#allocation6 + $0x170] sm:$0xff]
        %v2125 = vld [vmem:[#allocation6 + $0x178] sm:$0xff]
        %v2126 = vld [vmem:[#allocation6 + $0x180] sm:$0xff]
        %v2127 = vld [vmem:[#allocation6 + $0x188] sm:$0xff]
        %v2128 = vld [vmem:[#allocation6 + $0x190] sm:$0xff]
        %v2129 = vld [vmem:[#allocation6 + $0x198] sm:$0xff]
        %v2130 = vld [vmem:[#allocation6 + $0x1a0] sm:$0xff]
        %v2131 = vld [vmem:[#allocation6 + $0x1a8] sm:$0xff]
        %v2132 = vld [vmem:[#allocation6 + $0x1b0] sm:$0xff]
        %v2133 = vld [vmem:[#allocation6 + $0x1b8] sm:$0xff]
        %v2134 = vld [vmem:[#allocation6 + $0x1c0] sm:$0xff]
        %v2135 = vld [vmem:[#allocation6 + $0x1c8] sm:$0xff]
        %v2136 = vld [vmem:[#allocation6 + $0x1d0] sm:$0xff]
        %v2137 = vld [vmem:[#allocation6 + $0x1d8] sm:$0xff]
        %v2138 = vld [vmem:[#allocation6 + $0x1e0] sm:$0xff]
        %v2139 = vld [vmem:[#allocation6 + $0x1e8] sm:$0xff]
        %v2140 = vld [vmem:[#allocation6 + $0x1f0] sm:$0xff]
        %v2141 = vld [vmem:[#allocation6 + $0x1f8] sm:$0xff]
        %v2206 = vunpack.c.l.b16 %v2078
        %v2207 = vunpack.c.h.b16 %v2078
        %v2208 = vunpack.c.l.b16 %v2079
        %v2209 = vunpack.c.h.b16 %v2079
        %v2210 = vunpack.c.l.b16 %v2080
        %v2211 = vunpack.c.h.b16 %v2080
        %v2212 = vunpack.c.l.b16 %v2081
        %v2213 = vunpack.c.h.b16 %v2081
        %v2214 = vunpack.c.l.b16 %v2082
        %v2215 = vunpack.c.h.b16 %v2082
        %v2216 = vunpack.c.l.b16 %v2083
        %v2217 = vunpack.c.h.b16 %v2083
        %v2218 = vunpack.c.l.b16 %v2084
        %v2219 = vunpack.c.h.b16 %v2084
        %v2220 = vunpack.c.l.b16 %v2085
        %v2221 = vunpack.c.h.b16 %v2085
        %v2222 = vunpack.c.l.b16 %v2086
        %v2223 = vunpack.c.h.b16 %v2086
        %v2224 = vunpack.c.l.b16 %v2087
        %v2225 = vunpack.c.h.b16 %v2087
        %v2226 = vunpack.c.l.b16 %v2088
        %v2227 = vunpack.c.h.b16 %v2088
        %v2228 = vunpack.c.l.b16 %v2089
        %v2229 = vunpack.c.h.b16 %v2089
        %v2230 = vunpack.c.l.b16 %v2090
        %v2231 = vunpack.c.h.b16 %v2090
        %v2232 = vunpack.c.l.b16 %v2091
        %v2233 = vunpack.c.h.b16 %v2091
        %v2234 = vunpack.c.l.b16 %v2092
        %v2235 = vunpack.c.h.b16 %v2092
        %v2236 = vunpack.c.l.b16 %v2093
        %v2237 = vunpack.c.h.b16 %v2093
        %v2238 = vunpack.c.l.b16 %v2094
        %v2239 = vunpack.c.h.b16 %v2094
        %v2240 = vunpack.c.l.b16 %v2095
        %v2241 = vunpack.c.h.b16 %v2095
        %v2242 = vunpack.c.l.b16 %v2096
        %v2243 = vunpack.c.h.b16 %v2096
        %v2244 = vunpack.c.l.b16 %v2097
        %v2245 = vunpack.c.h.b16 %v2097
        %v2246 = vunpack.c.l.b16 %v2098
        %v2247 = vunpack.c.h.b16 %v2098
        %v2248 = vunpack.c.l.b16 %v2099
        %v2249 = vunpack.c.h.b16 %v2099
        %v2250 = vunpack.c.l.b16 %v2100
        %v2251 = vunpack.c.h.b16 %v2100
        %v2252 = vunpack.c.l.b16 %v2101
        %v2253 = vunpack.c.h.b16 %v2101
        %v2254 = vunpack.c.l.b16 %v2102
        %v2255 = vunpack.c.h.b16 %v2102
        %v2256 = vunpack.c.l.b16 %v2103
        %v2257 = vunpack.c.h.b16 %v2103
        %v2258 = vunpack.c.l.b16 %v2104
        %v2259 = vunpack.c.h.b16 %v2104
        %v2260 = vunpack.c.l.b16 %v2105
        %v2261 = vunpack.c.h.b16 %v2105
        %v2262 = vunpack.c.l.b16 %v2106
        %v2263 = vunpack.c.h.b16 %v2106
        %v2264 = vunpack.c.l.b16 %v2107
        %v2265 = vunpack.c.h.b16 %v2107
        %v2266 = vunpack.c.l.b16 %v2108
        %v2267 = vunpack.c.h.b16 %v2108
        %v2268 = vunpack.c.l.b16 %v2109
        %v2269 = vunpack.c.h.b16 %v2109
        %v2270 = vunpack.c.l.b16 %v2110
        %v2271 = vunpack.c.h.b16 %v2110
        %v2272 = vunpack.c.l.b16 %v2111
        %v2273 = vunpack.c.h.b16 %v2111
        %v2274 = vunpack.c.l.b16 %v2112
        %v2275 = vunpack.c.h.b16 %v2112
        %v2276 = vunpack.c.l.b16 %v2113
        %v2277 = vunpack.c.h.b16 %v2113
        %v2278 = vunpack.c.l.b16 %v2114
        %v2279 = vunpack.c.h.b16 %v2114
        %v2280 = vunpack.c.l.b16 %v2115
        %v2281 = vunpack.c.h.b16 %v2115
        %v2282 = vunpack.c.l.b16 %v2116
        %v2283 = vunpack.c.h.b16 %v2116
        %v2284 = vunpack.c.l.b16 %v2117
        %v2285 = vunpack.c.h.b16 %v2117
        %v2286 = vunpack.c.l.b16 %v2118
        %v2287 = vunpack.c.h.b16 %v2118
        %v2288 = vunpack.c.l.b16 %v2119
        %v2289 = vunpack.c.h.b16 %v2119
        %v2290 = vunpack.c.l.b16 %v2120
        %v2291 = vunpack.c.h.b16 %v2120
        %v2292 = vunpack.c.l.b16 %v2121
        %v2293 = vunpack.c.h.b16 %v2121
        %v2294 = vunpack.c.l.b16 %v2122
        %v2295 = vunpack.c.h.b16 %v2122
        %v2296 = vunpack.c.l.b16 %v2123
        %v2297 = vunpack.c.h.b16 %v2123
        %v2298 = vunpack.c.l.b16 %v2124
        %v2299 = vunpack.c.h.b16 %v2124
        %v2300 = vunpack.c.l.b16 %v2125
        %v2301 = vunpack.c.h.b16 %v2125
        %v2302 = vunpack.c.l.b16 %v2126
        %v2303 = vunpack.c.h.b16 %v2126
        %v2304 = vunpack.c.l.b16 %v2127
        %v2305 = vunpack.c.h.b16 %v2127
        %v2306 = vunpack.c.l.b16 %v2128
        %v2307 = vunpack.c.h.b16 %v2128
        %v2308 = vunpack.c.l.b16 %v2129
        %v2309 = vunpack.c.h.b16 %v2129
        %v2310 = vunpack.c.l.b16 %v2130
        %v2311 = vunpack.c.h.b16 %v2130
        %v2312 = vunpack.c.l.b16 %v2131
        %v2313 = vunpack.c.h.b16 %v2131
        %v2314 = vunpack.c.l.b16 %v2132
        %v2315 = vunpack.c.h.b16 %v2132
        %v2316 = vunpack.c.l.b16 %v2133
        %v2317 = vunpack.c.h.b16 %v2133
        %v2318 = vunpack.c.l.b16 %v2134
        %v2319 = vunpack.c.h.b16 %v2134
        %v2320 = vunpack.c.l.b16 %v2135
        %v2321 = vunpack.c.h.b16 %v2135
        %v2322 = vunpack.c.l.b16 %v2136
        %v2323 = vunpack.c.h.b16 %v2136
        %v2324 = vunpack.c.l.b16 %v2137
        %v2325 = vunpack.c.h.b16 %v2137
        %v2326 = vunpack.c.l.b16 %v2138
        %v2327 = vunpack.c.h.b16 %v2138
        %v2328 = vunpack.c.l.b16 %v2139
        %v2329 = vunpack.c.h.b16 %v2139
        %v2330 = vunpack.c.l.b16 %v2140
        %v2331 = vunpack.c.h.b16 %v2140
        %v2332 = vunpack.c.l.b16 %v2141
        %v2333 = vunpack.c.h.b16 %v2141
        %v2334 = vpack.c.b16 %v2208, %v2206
        %v2335 = vpack.c.b16 %v2209, %v2207
        %v2336 = vpack.c.b16 %v2212, %v2210
        %v2337 = vpack.c.b16 %v2213, %v2211
        %v2338 = vpack.c.b16 %v2216, %v2214
        %v2339 = vpack.c.b16 %v2217, %v2215
        %v2340 = vpack.c.b16 %v2220, %v2218
        %v2341 = vpack.c.b16 %v2221, %v2219
        %v2342 = vpack.c.b16 %v2224, %v2222
        %v2343 = vpack.c.b16 %v2225, %v2223
        %v2344 = vpack.c.b16 %v2228, %v2226
        %v2345 = vpack.c.b16 %v2229, %v2227
        %v2346 = vpack.c.b16 %v2232, %v2230
        %v2347 = vpack.c.b16 %v2233, %v2231
        %v2348 = vpack.c.b16 %v2236, %v2234
        %v2349 = vpack.c.b16 %v2237, %v2235
        %v2350 = vpack.c.b16 %v2240, %v2238
        %v2351 = vpack.c.b16 %v2241, %v2239
        %v2352 = vpack.c.b16 %v2244, %v2242
        %v2353 = vpack.c.b16 %v2245, %v2243
        %v2354 = vpack.c.b16 %v2248, %v2246
        %v2355 = vpack.c.b16 %v2249, %v2247
        %v2356 = vpack.c.b16 %v2252, %v2250
        %v2357 = vpack.c.b16 %v2253, %v2251
        %v2358 = vpack.c.b16 %v2256, %v2254
        %v2359 = vpack.c.b16 %v2257, %v2255
        %v2360 = vpack.c.b16 %v2260, %v2258
        %v2361 = vpack.c.b16 %v2261, %v2259
        %v2362 = vpack.c.b16 %v2264, %v2262
        %v2363 = vpack.c.b16 %v2265, %v2263
        %v2364 = vpack.c.b16 %v2268, %v2266
        %v2365 = vpack.c.b16 %v2269, %v2267
        %v2366 = vpack.c.b16 %v2272, %v2270
        %v2367 = vpack.c.b16 %v2273, %v2271
        %v2368 = vpack.c.b16 %v2276, %v2274
        %v2369 = vpack.c.b16 %v2277, %v2275
        %v2370 = vpack.c.b16 %v2280, %v2278
        %v2371 = vpack.c.b16 %v2281, %v2279
        %v2372 = vpack.c.b16 %v2284, %v2282
        %v2373 = vpack.c.b16 %v2285, %v2283
        %v2374 = vpack.c.b16 %v2288, %v2286
        %v2375 = vpack.c.b16 %v2289, %v2287
        %v2376 = vpack.c.b16 %v2292, %v2290
        %v2377 = vpack.c.b16 %v2293, %v2291
        %v2378 = vpack.c.b16 %v2296, %v2294
        %v2379 = vpack.c.b16 %v2297, %v2295
        %v2380 = vpack.c.b16 %v2300, %v2298
        %v2381 = vpack.c.b16 %v2301, %v2299
        %v2382 = vpack.c.b16 %v2304, %v2302
        %v2383 = vpack.c.b16 %v2305, %v2303
        %v2384 = vpack.c.b16 %v2308, %v2306
        %v2385 = vpack.c.b16 %v2309, %v2307
        %v2386 = vpack.c.b16 %v2312, %v2310
        %v2387 = vpack.c.b16 %v2313, %v2311
        %v2388 = vpack.c.b16 %v2316, %v2314
        %v2389 = vpack.c.b16 %v2317, %v2315
        %v2390 = vpack.c.b16 %v2320, %v2318
        %v2391 = vpack.c.b16 %v2321, %v2319
        %v2392 = vpack.c.b16 %v2324, %v2322
        %v2393 = vpack.c.b16 %v2325, %v2323
        %v2394 = vpack.c.b16 %v2328, %v2326
        %v2395 = vpack.c.b16 %v2329, %v2327
        %v2396 = vpack.c.b16 %v2332, %v2330
        %v2397 = vpack.c.b16 %v2333, %v2331
        %2462 = vmatprep.subr.bf16.mxu0 %v2349
        %2463 = vmatpush1.bf16.msra.mxu0 %v2348
        %2464 = vmatprep.subr.bf16.mxu0 %v2347
        %2465 = vmatpush1.bf16.msra.mxu0 %v2346
        %2466 = vmatprep.subr.bf16.mxu0 %v2345
        %2467 = vmatpush1.bf16.msra.mxu0 %v2344
        %2468 = vmatprep.subr.bf16.mxu0 %v2343
        %2469 = vmatpush1.bf16.msra.mxu0 %v2342
        %2470 = vmatprep.subr.bf16.mxu0 %v2341
        %2471 = vmatpush1.bf16.msra.mxu0 %v2340
        %2472 = vmatprep.subr.bf16.mxu0 %v2339
        %2473 = vmatpush1.bf16.msra.mxu0 %v2338
        %2474 = vmatprep.subr.bf16.mxu0 %v2337
        %2475 = vmatpush1.bf16.msra.mxu0 %v2336
        %2476 = vmatprep.subr.bf16.mxu0 %v2335
        %2477 = vmatpush1.bf16.msra.mxu0 %v2334
        %2478 = vmatprep.subr.bf16.mxu0 %v2365
        %2479 = vmatpush2.bf16.msra.mxu0 %v2364
        %2480 = vmatprep.subr.bf16.mxu0 %v2363
        %2481 = vmatpush2.bf16.msra.mxu0 %v2362
        %2482 = vmatprep.subr.bf16.mxu0 %v2361
        %2483 = vmatpush2.bf16.msra.mxu0 %v2360
        %2484 = vmatprep.subr.bf16.mxu0 %v2359
        %2485 = vmatpush2.bf16.msra.mxu0 %v2358
        %2486 = vmatprep.subr.bf16.mxu0 %v2357
        %2487 = vmatpush2.bf16.msra.mxu0 %v2356
        %2488 = vmatprep.subr.bf16.mxu0 %v2355
        %2489 = vmatpush2.bf16.msra.mxu0 %v2354
        %2490 = vmatprep.subr.bf16.mxu0 %v2353
        %2491 = vmatpush2.bf16.msra.mxu0 %v2352
        %2492 = vmatprep.subr.bf16.mxu0 %v2351
        %2493 = vmatpush2.bf16.msra.mxu0 %v2350
        %2494 = vmatprep.mubr.bf16.mxu0 %v2075
        %2495 = vmatmul.mubr.bf16.gmra.mxu0 %v2074
        %v2496 = vpop.f32.mrf.mxu0
        %v2497 = vadd.f32 0.0, %v2496
        %v2498 = vpop.f32.mrf.mxu0
        %v2499 = vadd.f32 0.0, %v2498
        %v2500 = vpop.f32.mrf.mxu0
        %v2501 = vadd.f32 0.0, %v2500
        %v2502 = vpop.f32.mrf.mxu0
        %v2503 = vadd.f32 0.0, %v2502
        %2504 = vdwg.mxu0
        %2505 = vmatprep.subr.bf16.mxu0 %v2381
        %2506 = vmatpush1.bf16.msra.mxu0 %v2380
        %2507 = vmatprep.subr.bf16.mxu0 %v2379
        %2508 = vmatpush1.bf16.msra.mxu0 %v2378
        %2509 = vmatprep.subr.bf16.mxu0 %v2377
        %2510 = vmatpush1.bf16.msra.mxu0 %v2376
        %2511 = vmatprep.subr.bf16.mxu0 %v2375
        %2512 = vmatpush1.bf16.msra.mxu0 %v2374
        %2513 = vmatprep.subr.bf16.mxu0 %v2373
        %2514 = vmatpush1.bf16.msra.mxu0 %v2372
        %2515 = vmatprep.subr.bf16.mxu0 %v2371
        %2516 = vmatpush1.bf16.msra.mxu0 %v2370
        %2517 = vmatprep.subr.bf16.mxu0 %v2369
        %2518 = vmatpush1.bf16.msra.mxu0 %v2368
        %2519 = vmatprep.subr.bf16.mxu0 %v2367
        %2520 = vmatpush1.bf16.msra.mxu0 %v2366
        %2521 = vmatprep.subr.bf16.mxu0 %v2397
        %2522 = vmatpush2.bf16.msra.mxu0 %v2396
        %2523 = vmatprep.subr.bf16.mxu0 %v2395
        %2524 = vmatpush2.bf16.msra.mxu0 %v2394
        %2525 = vmatprep.subr.bf16.mxu0 %v2393
        %2526 = vmatpush2.bf16.msra.mxu0 %v2392
        %2527 = vmatprep.subr.bf16.mxu0 %v2391
        %2528 = vmatpush2.bf16.msra.mxu0 %v2390
        %2529 = vmatprep.subr.bf16.mxu0 %v2389
        %2530 = vmatpush2.bf16.msra.mxu0 %v2388
        %2531 = vmatprep.subr.bf16.mxu0 %v2387
        %2532 = vmatpush2.bf16.msra.mxu0 %v2386
        %2533 = vmatprep.subr.bf16.mxu0 %v2385
        %2534 = vmatpush2.bf16.msra.mxu0 %v2384
        %2535 = vmatprep.subr.bf16.mxu0 %v2383
        %2536 = vmatpush2.bf16.msra.mxu0 %v2382
        %2537 = vmatprep.mubr.bf16.mxu0 %v2077
        %2538 = vmatmul.mubr.bf16.gmra.mxu0 %v2076
        %v2539 = vpop.f32.mrf.mxu0
        %v2540 = vadd.f32 %v2497, %v2539
        %v2541 = vpop.f32.mrf.mxu0
        %v2542 = vadd.f32 %v2499, %v2541
        %v2543 = vpop.f32.mrf.mxu0
        %v2544 = vadd.f32 %v2501, %v2543
        %v2545 = vpop.f32.mrf.mxu0
        %v2546 = vadd.f32 %v2503, %v2545
        %2547 = vdwg.mxu0
        %s2548 = scalar_lea.vmem [#allocation6], 512
        %v2549 = vld [vmem:[%s2548] sm:$0xff]
        %v2550 = vld [vmem:[%s2548 + $0x8] sm:$0xff]
        %v2551 = vld [vmem:[%s2548 + $0x10] sm:$0xff]
        %v2552 = vld [vmem:[%s2548 + $0x18] sm:$0xff]
        %v2553 = vld [vmem:[%s2548 + $0x20] sm:$0xff]
        %v2554 = vld [vmem:[%s2548 + $0x28] sm:$0xff]
        %v2555 = vld [vmem:[%s2548 + $0x30] sm:$0xff]
        %v2556 = vld [vmem:[%s2548 + $0x38] sm:$0xff]
        %v2557 = vld [vmem:[%s2548 + $0x40] sm:$0xff]
        %v2558 = vld [vmem:[%s2548 + $0x48] sm:$0xff]
        %v2559 = vld [vmem:[%s2548 + $0x50] sm:$0xff]
        %v2560 = vld [vmem:[%s2548 + $0x58] sm:$0xff]
        %v2561 = vld [vmem:[%s2548 + $0x60] sm:$0xff]
        %v2562 = vld [vmem:[%s2548 + $0x68] sm:$0xff]
        %v2563 = vld [vmem:[%s2548 + $0x70] sm:$0xff]
        %v2564 = vld [vmem:[%s2548 + $0x78] sm:$0xff]
        %v2565 = vld [vmem:[%s2548 + $0x80] sm:$0xff]
        %v2566 = vld [vmem:[%s2548 + $0x88] sm:$0xff]
        %v2567 = vld [vmem:[%s2548 + $0x90] sm:$0xff]
        %v2568 = vld [vmem:[%s2548 + $0x98] sm:$0xff]
        %v2569 = vld [vmem:[%s2548 + $0xa0] sm:$0xff]
        %v2570 = vld [vmem:[%s2548 + $0xa8] sm:$0xff]
        %v2571 = vld [vmem:[%s2548 + $0xb0] sm:$0xff]
        %v2572 = vld [vmem:[%s2548 + $0xb8] sm:$0xff]
        %v2573 = vld [vmem:[%s2548 + $0xc0] sm:$0xff]
        %v2574 = vld [vmem:[%s2548 + $0xc8] sm:$0xff]
        %v2575 = vld [vmem:[%s2548 + $0xd0] sm:$0xff]
        %v2576 = vld [vmem:[%s2548 + $0xd8] sm:$0xff]
        %v2577 = vld [vmem:[%s2548 + $0xe0] sm:$0xff]
        %v2578 = vld [vmem:[%s2548 + $0xe8] sm:$0xff]
        %v2579 = vld [vmem:[%s2548 + $0xf0] sm:$0xff]
        %v2580 = vld [vmem:[%s2548 + $0xf8] sm:$0xff]
        %v2581 = vld [vmem:[%s2548 + $0x100] sm:$0xff]
        %v2582 = vld [vmem:[%s2548 + $0x108] sm:$0xff]
        %v2583 = vld [vmem:[%s2548 + $0x110] sm:$0xff]
        %v2584 = vld [vmem:[%s2548 + $0x118] sm:$0xff]
        %v2585 = vld [vmem:[%s2548 + $0x120] sm:$0xff]
        %v2586 = vld [vmem:[%s2548 + $0x128] sm:$0xff]
        %v2587 = vld [vmem:[%s2548 + $0x130] sm:$0xff]
        %v2588 = vld [vmem:[%s2548 + $0x138] sm:$0xff]
        %v2589 = vld [vmem:[%s2548 + $0x140] sm:$0xff]
        %v2590 = vld [vmem:[%s2548 + $0x148] sm:$0xff]
        %v2591 = vld [vmem:[%s2548 + $0x150] sm:$0xff]
        %v2592 = vld [vmem:[%s2548 + $0x158] sm:$0xff]
        %v2593 = vld [vmem:[%s2548 + $0x160] sm:$0xff]
        %v2594 = vld [vmem:[%s2548 + $0x168] sm:$0xff]
        %v2595 = vld [vmem:[%s2548 + $0x170] sm:$0xff]
        %v2596 = vld [vmem:[%s2548 + $0x178] sm:$0xff]
        %v2597 = vld [vmem:[%s2548 + $0x180] sm:$0xff]
        %v2598 = vld [vmem:[%s2548 + $0x188] sm:$0xff]
        %v2599 = vld [vmem:[%s2548 + $0x190] sm:$0xff]
        %v2600 = vld [vmem:[%s2548 + $0x198] sm:$0xff]
        %v2601 = vld [vmem:[%s2548 + $0x1a0] sm:$0xff]
        %v2602 = vld [vmem:[%s2548 + $0x1a8] sm:$0xff]
        %v2603 = vld [vmem:[%s2548 + $0x1b0] sm:$0xff]
        %v2604 = vld [vmem:[%s2548 + $0x1b8] sm:$0xff]
        %v2605 = vld [vmem:[%s2548 + $0x1c0] sm:$0xff]
        %v2606 = vld [vmem:[%s2548 + $0x1c8] sm:$0xff]
        %v2607 = vld [vmem:[%s2548 + $0x1d0] sm:$0xff]
        %v2608 = vld [vmem:[%s2548 + $0x1d8] sm:$0xff]
        %v2609 = vld [vmem:[%s2548 + $0x1e0] sm:$0xff]
        %v2610 = vld [vmem:[%s2548 + $0x1e8] sm:$0xff]
        %v2611 = vld [vmem:[%s2548 + $0x1f0] sm:$0xff]
        %v2612 = vld [vmem:[%s2548 + $0x1f8] sm:$0xff]
        %v2677 = vunpack.c.l.b16 %v2549
        %v2678 = vunpack.c.h.b16 %v2549
        %v2679 = vunpack.c.l.b16 %v2550
        %v2680 = vunpack.c.h.b16 %v2550
        %v2681 = vunpack.c.l.b16 %v2551
        %v2682 = vunpack.c.h.b16 %v2551
        %v2683 = vunpack.c.l.b16 %v2552
        %v2684 = vunpack.c.h.b16 %v2552
        %v2685 = vunpack.c.l.b16 %v2553
        %v2686 = vunpack.c.h.b16 %v2553
        %v2687 = vunpack.c.l.b16 %v2554
        %v2688 = vunpack.c.h.b16 %v2554
        %v2689 = vunpack.c.l.b16 %v2555
        %v2690 = vunpack.c.h.b16 %v2555
        %v2691 = vunpack.c.l.b16 %v2556
        %v2692 = vunpack.c.h.b16 %v2556
        %v2693 = vunpack.c.l.b16 %v2557
        %v2694 = vunpack.c.h.b16 %v2557
        %v2695 = vunpack.c.l.b16 %v2558
        %v2696 = vunpack.c.h.b16 %v2558
        %v2697 = vunpack.c.l.b16 %v2559
        %v2698 = vunpack.c.h.b16 %v2559
        %v2699 = vunpack.c.l.b16 %v2560
        %v2700 = vunpack.c.h.b16 %v2560
        %v2701 = vunpack.c.l.b16 %v2561
        %v2702 = vunpack.c.h.b16 %v2561
        %v2703 = vunpack.c.l.b16 %v2562
        %v2704 = vunpack.c.h.b16 %v2562
        %v2705 = vunpack.c.l.b16 %v2563
        %v2706 = vunpack.c.h.b16 %v2563
        %v2707 = vunpack.c.l.b16 %v2564
        %v2708 = vunpack.c.h.b16 %v2564
        %v2709 = vunpack.c.l.b16 %v2565
        %v2710 = vunpack.c.h.b16 %v2565
        %v2711 = vunpack.c.l.b16 %v2566
        %v2712 = vunpack.c.h.b16 %v2566
        %v2713 = vunpack.c.l.b16 %v2567
        %v2714 = vunpack.c.h.b16 %v2567
        %v2715 = vunpack.c.l.b16 %v2568
        %v2716 = vunpack.c.h.b16 %v2568
        %v2717 = vunpack.c.l.b16 %v2569
        %v2718 = vunpack.c.h.b16 %v2569
        %v2719 = vunpack.c.l.b16 %v2570
        %v2720 = vunpack.c.h.b16 %v2570
        %v2721 = vunpack.c.l.b16 %v2571
        %v2722 = vunpack.c.h.b16 %v2571
        %v2723 = vunpack.c.l.b16 %v2572
        %v2724 = vunpack.c.h.b16 %v2572
        %v2725 = vunpack.c.l.b16 %v2573
        %v2726 = vunpack.c.h.b16 %v2573
        %v2727 = vunpack.c.l.b16 %v2574
        %v2728 = vunpack.c.h.b16 %v2574
        %v2729 = vunpack.c.l.b16 %v2575
        %v2730 = vunpack.c.h.b16 %v2575
        %v2731 = vunpack.c.l.b16 %v2576
        %v2732 = vunpack.c.h.b16 %v2576
        %v2733 = vunpack.c.l.b16 %v2577
        %v2734 = vunpack.c.h.b16 %v2577
        %v2735 = vunpack.c.l.b16 %v2578
        %v2736 = vunpack.c.h.b16 %v2578
        %v2737 = vunpack.c.l.b16 %v2579
        %v2738 = vunpack.c.h.b16 %v2579
        %v2739 = vunpack.c.l.b16 %v2580
        %v2740 = vunpack.c.h.b16 %v2580
        %v2741 = vunpack.c.l.b16 %v2581
        %v2742 = vunpack.c.h.b16 %v2581
        %v2743 = vunpack.c.l.b16 %v2582
        %v2744 = vunpack.c.h.b16 %v2582
        %v2745 = vunpack.c.l.b16 %v2583
        %v2746 = vunpack.c.h.b16 %v2583
        %v2747 = vunpack.c.l.b16 %v2584
        %v2748 = vunpack.c.h.b16 %v2584
        %v2749 = vunpack.c.l.b16 %v2585
        %v2750 = vunpack.c.h.b16 %v2585
        %v2751 = vunpack.c.l.b16 %v2586
        %v2752 = vunpack.c.h.b16 %v2586
        %v2753 = vunpack.c.l.b16 %v2587
        %v2754 = vunpack.c.h.b16 %v2587
        %v2755 = vunpack.c.l.b16 %v2588
        %v2756 = vunpack.c.h.b16 %v2588
        %v2757 = vunpack.c.l.b16 %v2589
        %v2758 = vunpack.c.h.b16 %v2589
        %v2759 = vunpack.c.l.b16 %v2590
        %v2760 = vunpack.c.h.b16 %v2590
        %v2761 = vunpack.c.l.b16 %v2591
        %v2762 = vunpack.c.h.b16 %v2591
        %v2763 = vunpack.c.l.b16 %v2592
        %v2764 = vunpack.c.h.b16 %v2592
        %v2765 = vunpack.c.l.b16 %v2593
        %v2766 = vunpack.c.h.b16 %v2593
        %v2767 = vunpack.c.l.b16 %v2594
        %v2768 = vunpack.c.h.b16 %v2594
        %v2769 = vunpack.c.l.b16 %v2595
        %v2770 = vunpack.c.h.b16 %v2595
        %v2771 = vunpack.c.l.b16 %v2596
        %v2772 = vunpack.c.h.b16 %v2596
        %v2773 = vunpack.c.l.b16 %v2597
        %v2774 = vunpack.c.h.b16 %v2597
        %v2775 = vunpack.c.l.b16 %v2598
        %v2776 = vunpack.c.h.b16 %v2598
        %v2777 = vunpack.c.l.b16 %v2599
        %v2778 = vunpack.c.h.b16 %v2599
        %v2779 = vunpack.c.l.b16 %v2600
        %v2780 = vunpack.c.h.b16 %v2600
        %v2781 = vunpack.c.l.b16 %v2601
        %v2782 = vunpack.c.h.b16 %v2601
        %v2783 = vunpack.c.l.b16 %v2602
        %v2784 = vunpack.c.h.b16 %v2602
        %v2785 = vunpack.c.l.b16 %v2603
        %v2786 = vunpack.c.h.b16 %v2603
        %v2787 = vunpack.c.l.b16 %v2604
        %v2788 = vunpack.c.h.b16 %v2604
        %v2789 = vunpack.c.l.b16 %v2605
        %v2790 = vunpack.c.h.b16 %v2605
        %v2791 = vunpack.c.l.b16 %v2606
        %v2792 = vunpack.c.h.b16 %v2606
        %v2793 = vunpack.c.l.b16 %v2607
        %v2794 = vunpack.c.h.b16 %v2607
        %v2795 = vunpack.c.l.b16 %v2608
        %v2796 = vunpack.c.h.b16 %v2608
        %v2797 = vunpack.c.l.b16 %v2609
        %v2798 = vunpack.c.h.b16 %v2609
        %v2799 = vunpack.c.l.b16 %v2610
        %v2800 = vunpack.c.h.b16 %v2610
        %v2801 = vunpack.c.l.b16 %v2611
        %v2802 = vunpack.c.h.b16 %v2611
        %v2803 = vunpack.c.l.b16 %v2612
        %v2804 = vunpack.c.h.b16 %v2612
        %v2805 = vpack.c.b16 %v2679, %v2677
        %v2806 = vpack.c.b16 %v2680, %v2678
        %v2807 = vpack.c.b16 %v2683, %v2681
        %v2808 = vpack.c.b16 %v2684, %v2682
        %v2809 = vpack.c.b16 %v2687, %v2685
        %v2810 = vpack.c.b16 %v2688, %v2686
        %v2811 = vpack.c.b16 %v2691, %v2689
        %v2812 = vpack.c.b16 %v2692, %v2690
        %v2813 = vpack.c.b16 %v2695, %v2693
        %v2814 = vpack.c.b16 %v2696, %v2694
        %v2815 = vpack.c.b16 %v2699, %v2697
        %v2816 = vpack.c.b16 %v2700, %v2698
        %v2817 = vpack.c.b16 %v2703, %v2701
        %v2818 = vpack.c.b16 %v2704, %v2702
        %v2819 = vpack.c.b16 %v2707, %v2705
        %v2820 = vpack.c.b16 %v2708, %v2706
        %v2821 = vpack.c.b16 %v2711, %v2709
        %v2822 = vpack.c.b16 %v2712, %v2710
        %v2823 = vpack.c.b16 %v2715, %v2713
        %v2824 = vpack.c.b16 %v2716, %v2714
        %v2825 = vpack.c.b16 %v2719, %v2717
        %v2826 = vpack.c.b16 %v2720, %v2718
        %v2827 = vpack.c.b16 %v2723, %v2721
        %v2828 = vpack.c.b16 %v2724, %v2722
        %v2829 = vpack.c.b16 %v2727, %v2725
        %v2830 = vpack.c.b16 %v2728, %v2726
        %v2831 = vpack.c.b16 %v2731, %v2729
        %v2832 = vpack.c.b16 %v2732, %v2730
        %v2833 = vpack.c.b16 %v2735, %v2733
        %v2834 = vpack.c.b16 %v2736, %v2734
        %v2835 = vpack.c.b16 %v2739, %v2737
        %v2836 = vpack.c.b16 %v2740, %v2738
        %v2837 = vpack.c.b16 %v2743, %v2741
        %v2838 = vpack.c.b16 %v2744, %v2742
        %v2839 = vpack.c.b16 %v2747, %v2745
        %v2840 = vpack.c.b16 %v2748, %v2746
        %v2841 = vpack.c.b16 %v2751, %v2749
        %v2842 = vpack.c.b16 %v2752, %v2750
        %v2843 = vpack.c.b16 %v2755, %v2753
        %v2844 = vpack.c.b16 %v2756, %v2754
        %v2845 = vpack.c.b16 %v2759, %v2757
        %v2846 = vpack.c.b16 %v2760, %v2758
        %v2847 = vpack.c.b16 %v2763, %v2761
        %v2848 = vpack.c.b16 %v2764, %v2762
        %v2849 = vpack.c.b16 %v2767, %v2765
        %v2850 = vpack.c.b16 %v2768, %v2766
        %v2851 = vpack.c.b16 %v2771, %v2769
        %v2852 = vpack.c.b16 %v2772, %v2770
        %v2853 = vpack.c.b16 %v2775, %v2773
        %v2854 = vpack.c.b16 %v2776, %v2774
        %v2855 = vpack.c.b16 %v2779, %v2777
        %v2856 = vpack.c.b16 %v2780, %v2778
        %v2857 = vpack.c.b16 %v2783, %v2781
        %v2858 = vpack.c.b16 %v2784, %v2782
        %v2859 = vpack.c.b16 %v2787, %v2785
        %v2860 = vpack.c.b16 %v2788, %v2786
        %v2861 = vpack.c.b16 %v2791, %v2789
        %v2862 = vpack.c.b16 %v2792, %v2790
        %v2863 = vpack.c.b16 %v2795, %v2793
        %v2864 = vpack.c.b16 %v2796, %v2794
        %v2865 = vpack.c.b16 %v2799, %v2797
        %v2866 = vpack.c.b16 %v2800, %v2798
        %v2867 = vpack.c.b16 %v2803, %v2801
        %v2868 = vpack.c.b16 %v2804, %v2802
        %2933 = vmatprep.subr.bf16.mxu0 %v2820
        %2934 = vmatpush1.bf16.msra.mxu0 %v2819
        %2935 = vmatprep.subr.bf16.mxu0 %v2818
        %2936 = vmatpush1.bf16.msra.mxu0 %v2817
        %2937 = vmatprep.subr.bf16.mxu0 %v2816
        %2938 = vmatpush1.bf16.msra.mxu0 %v2815
        %2939 = vmatprep.subr.bf16.mxu0 %v2814
        %2940 = vmatpush1.bf16.msra.mxu0 %v2813
        %2941 = vmatprep.subr.bf16.mxu0 %v2812
        %2942 = vmatpush1.bf16.msra.mxu0 %v2811
        %2943 = vmatprep.subr.bf16.mxu0 %v2810
        %2944 = vmatpush1.bf16.msra.mxu0 %v2809
        %2945 = vmatprep.subr.bf16.mxu0 %v2808
        %2946 = vmatpush1.bf16.msra.mxu0 %v2807
        %2947 = vmatprep.subr.bf16.mxu0 %v2806
        %2948 = vmatpush1.bf16.msra.mxu0 %v2805
        %2949 = vmatprep.subr.bf16.mxu0 %v2836
        %2950 = vmatpush2.bf16.msra.mxu0 %v2835
        %2951 = vmatprep.subr.bf16.mxu0 %v2834
        %2952 = vmatpush2.bf16.msra.mxu0 %v2833
        %2953 = vmatprep.subr.bf16.mxu0 %v2832
        %2954 = vmatpush2.bf16.msra.mxu0 %v2831
        %2955 = vmatprep.subr.bf16.mxu0 %v2830
        %2956 = vmatpush2.bf16.msra.mxu0 %v2829
        %2957 = vmatprep.subr.bf16.mxu0 %v2828
        %2958 = vmatpush2.bf16.msra.mxu0 %v2827
        %2959 = vmatprep.subr.bf16.mxu0 %v2826
        %2960 = vmatpush2.bf16.msra.mxu0 %v2825
        %2961 = vmatprep.subr.bf16.mxu0 %v2824
        %2962 = vmatpush2.bf16.msra.mxu0 %v2823
        %2963 = vmatprep.subr.bf16.mxu0 %v2822
        %2964 = vmatpush2.bf16.msra.mxu0 %v2821
        %2965 = vmatprep.mubr.bf16.mxu0 %v2075
        %2966 = vmatmul.mubr.bf16.gmra.mxu0 %v2074
        %v2967 = vpop.f32.mrf.mxu0
        %v2968 = vadd.f32 0.0, %v2967
        %v2969 = vpop.f32.mrf.mxu0
        %v2970 = vadd.f32 0.0, %v2969
        %v2971 = vpop.f32.mrf.mxu0
        %v2972 = vadd.f32 0.0, %v2971
        %v2973 = vpop.f32.mrf.mxu0
        %v2974 = vadd.f32 0.0, %v2973
        %2975 = vdwg.mxu0
        %2976 = vmatprep.subr.bf16.mxu0 %v2852
        %2977 = vmatpush1.bf16.msra.mxu0 %v2851
        %2978 = vmatprep.subr.bf16.mxu0 %v2850
        %2979 = vmatpush1.bf16.msra.mxu0 %v2849
        %2980 = vmatprep.subr.bf16.mxu0 %v2848
        %2981 = vmatpush1.bf16.msra.mxu0 %v2847
        %2982 = vmatprep.subr.bf16.mxu0 %v2846
        %2983 = vmatpush1.bf16.msra.mxu0 %v2845
        %2984 = vmatprep.subr.bf16.mxu0 %v2844
        %2985 = vmatpush1.bf16.msra.mxu0 %v2843
        %2986 = vmatprep.subr.bf16.mxu0 %v2842
        %2987 = vmatpush1.bf16.msra.mxu0 %v2841
        %2988 = vmatprep.subr.bf16.mxu0 %v2840
        %2989 = vmatpush1.bf16.msra.mxu0 %v2839
        %2990 = vmatprep.subr.bf16.mxu0 %v2838
        %2991 = vmatpush1.bf16.msra.mxu0 %v2837
        %2992 = vmatprep.subr.bf16.mxu0 %v2868
        %2993 = vmatpush2.bf16.msra.mxu0 %v2867
        %2994 = vmatprep.subr.bf16.mxu0 %v2866
        %2995 = vmatpush2.bf16.msra.mxu0 %v2865
        %2996 = vmatprep.subr.bf16.mxu0 %v2864
        %2997 = vmatpush2.bf16.msra.mxu0 %v2863
        %2998 = vmatprep.subr.bf16.mxu0 %v2862
        %2999 = vmatpush2.bf16.msra.mxu0 %v2861
        %3000 = vmatprep.subr.bf16.mxu0 %v2860
        %3001 = vmatpush2.bf16.msra.mxu0 %v2859
        %3002 = vmatprep.subr.bf16.mxu0 %v2858
        %3003 = vmatpush2.bf16.msra.mxu0 %v2857
        %3004 = vmatprep.subr.bf16.mxu0 %v2856
        %3005 = vmatpush2.bf16.msra.mxu0 %v2855
        %3006 = vmatprep.subr.bf16.mxu0 %v2854
        %3007 = vmatpush2.bf16.msra.mxu0 %v2853
        %3008 = vmatprep.mubr.bf16.mxu0 %v2077
        %3009 = vmatmul.mubr.bf16.gmra.mxu0 %v2076
        %v3010 = vpop.f32.mrf.mxu0
        %v3011 = vadd.f32 %v2968, %v3010
        %v3012 = vpop.f32.mrf.mxu0
        %v3013 = vadd.f32 %v2970, %v3012
        %v3014 = vpop.f32.mrf.mxu0
        %v3015 = vadd.f32 %v2972, %v3014
        %v3016 = vpop.f32.mrf.mxu0
        %v3017 = vadd.f32 %v2974, %v3016
        %3018 = vdwg.mxu0
        %v3019 = vmax.f32 %v2540, %v3011
        %v3020 = vmax.f32 %v2542, %v3013
        %v3021 = vmax.f32 %v2544, %v3015
        %v3022 = vmax.f32 %v2546, %v3017
        %v3023 = vpack.c.bf16 %v3021, %v3019
        %v3024 = vpack.c.bf16 %v3022, %v3020
        %v3025 = vld [vmem:[%s8] sm:$0xf]
        %v3026 = vld [vmem:[%s8 + $0x4] sm:$0xf]
        %v3029 = vunpack.c.l.b16 %v3025
        %v3030 = vunpack.c.l.b16 %v3026
        %v3031 = vpack.c.b16 %v3030, %v3029
        %vm3032 = vcmask 130048
        %v3034 = vsel %vm3032, %v3031, 0
        %3036 = vmatprep.subr.bf16.mxu0 0
        %3037 = vmatpush1.bf16.msra.mxu0 0
        %3038 = vmatprep.subr.bf16.mxu0 0
        %3039 = vmatpush1.bf16.msra.mxu0 0
        %3040 = vmatprep.subr.bf16.mxu0 0
        %3041 = vmatpush1.bf16.msra.mxu0 0
        %3042 = vmatprep.subr.bf16.mxu0 0
        %3043 = vmatpush1.bf16.msra.mxu0 0
        %3044 = vmatprep.subr.bf16.mxu0 0
        %3045 = vmatpush1.bf16.msra.mxu0 0
        %3046 = vmatprep.subr.bf16.mxu0 0
        %3047 = vmatpush1.bf16.msra.mxu0 0
        %3048 = vmatprep.subr.bf16.mxu0 0
        %3049 = vmatpush1.bf16.msra.mxu0 0
        %3050 = vmatprep.subr.bf16.mxu0 %v3024
        %3051 = vmatpush1.bf16.msra.mxu0 %v3023
        %3052 = vmatprep.subr.bf16.mxu0 0
        %3053 = vmatpush2.bf16.msra.mxu0 0
        %3054 = vmatprep.subr.bf16.mxu0 0
        %3055 = vmatpush2.bf16.msra.mxu0 0
        %3056 = vmatprep.subr.bf16.mxu0 0
        %3057 = vmatpush2.bf16.msra.mxu0 0
        %3058 = vmatprep.subr.bf16.mxu0 0
        %3059 = vmatpush2.bf16.msra.mxu0 0
        %3060 = vmatprep.subr.bf16.mxu0 0
        %3061 = vmatpush2.bf16.msra.mxu0 0
        %3062 = vmatprep.subr.bf16.mxu0 0
        %3063 = vmatpush2.bf16.msra.mxu0 0
        %3064 = vmatprep.subr.bf16.mxu0 0
        %3065 = vmatpush2.bf16.msra.mxu0 0
        %3066 = vmatprep.subr.bf16.mxu0 0
        %3067 = vmatpush2.bf16.msra.mxu0 0
        %3068 = vmatprep.mubr.bf16.mxu0 0
        %3069 = vmatmul.mubr.bf16.gmra.mxu0 %v3034
        %v3070 = vpop.f32.mrf.mxu0
        %v3071 = vadd.f32 0.0, %v3070
        %v3072 = vpop.f32.mrf.mxu0
        %v3073 = vadd.f32 0.0, %v3072
        %v3074 = vpop.f32.mrf.mxu0
        %v3075 = vadd.f32 0.0, %v3074
        %v3076 = vpop.f32.mrf.mxu0
        %v3077 = vadd.f32 0.0, %v3076
        %3078 = vdwg.mxu0
        %v3079 = vpack.c.bf16 %v3075, %v3071
        %v3080 = vpack.c.bf16 %v3077, %v3073
        %s3081 = scalar_lea.vmem %s8, 8
        %v3082 = vld [vmem:[%s3081] sm:$0xf]
        %v3083 = vld [vmem:[%s3081 + $0x4] sm:$0xf]
        %v3086 = vunpack.c.l.b16 %v3082
        %v3087 = vunpack.c.l.b16 %v3083
        %v3088 = vpack.c.b16 %v3087, %v3086
        %v3090 = vsel %vm3032, %v3088, 0
        %3092 = vmatprep.subr.bf16.mxu0 0
        %3093 = vmatpush1.bf16.msra.mxu0 0
        %3094 = vmatprep.subr.bf16.mxu0 0
        %3095 = vmatpush1.bf16.msra.mxu0 0
        %3096 = vmatprep.subr.bf16.mxu0 0
        %3097 = vmatpush1.bf16.msra.mxu0 0
        %3098 = vmatprep.subr.bf16.mxu0 0
        %3099 = vmatpush1.bf16.msra.mxu0 0
        %3100 = vmatprep.subr.bf16.mxu0 0
        %3101 = vmatpush1.bf16.msra.mxu0 0
        %3102 = vmatprep.subr.bf16.mxu0 0
        %3103 = vmatpush1.bf16.msra.mxu0 0
        %3104 = vmatprep.subr.bf16.mxu0 0
        %3105 = vmatpush1.bf16.msra.mxu0 0
        %3106 = vmatprep.subr.bf16.mxu0 %v3024
        %3107 = vmatpush1.bf16.msra.mxu0 %v3023
        %3108 = vmatprep.subr.bf16.mxu0 0
        %3109 = vmatpush2.bf16.msra.mxu0 0
        %3110 = vmatprep.subr.bf16.mxu0 0
        %3111 = vmatpush2.bf16.msra.mxu0 0
        %3112 = vmatprep.subr.bf16.mxu0 0
        %3113 = vmatpush2.bf16.msra.mxu0 0
        %3114 = vmatprep.subr.bf16.mxu0 0
        %3115 = vmatpush2.bf16.msra.mxu0 0
        %3116 = vmatprep.subr.bf16.mxu0 0
        %3117 = vmatpush2.bf16.msra.mxu0 0
        %3118 = vmatprep.subr.bf16.mxu0 0
        %3119 = vmatpush2.bf16.msra.mxu0 0
        %3120 = vmatprep.subr.bf16.mxu0 0
        %3121 = vmatpush2.bf16.msra.mxu0 0
        %3122 = vmatprep.subr.bf16.mxu0 0
        %3123 = vmatpush2.bf16.msra.mxu0 0
        %3124 = vmatprep.mubr.bf16.mxu0 0
        %3125 = vmatmul.mubr.bf16.gmra.mxu0 %v3090
        %v3126 = vpop.f32.mrf.mxu0
        %v3127 = vadd.f32 0.0, %v3126
        %v3128 = vpop.f32.mrf.mxu0
        %v3129 = vadd.f32 0.0, %v3128
        %v3130 = vpop.f32.mrf.mxu0
        %v3131 = vadd.f32 0.0, %v3130
        %v3132 = vpop.f32.mrf.mxu0
        %v3133 = vadd.f32 0.0, %v3132
        %3134 = vdwg.mxu0
        %v3135 = vpack.c.bf16 %v3131, %v3127
        %v3136 = vpack.c.bf16 %v3133, %v3129
        %v3137 = vld [vmem:[#allocation7] sm:$0xff]
        %v3138 = vld [vmem:[#allocation7 + $0x8] sm:$0xff]
        %v3139 = vld [vmem:[#allocation7 + $0x10] sm:$0xff]
        %v3140 = vld [vmem:[#allocation7 + $0x18] sm:$0xff]
        %v3141 = vld [vmem:[#allocation7 + $0x20] sm:$0xff]
        %v3142 = vld [vmem:[#allocation7 + $0x28] sm:$0xff]
        %v3143 = vld [vmem:[#allocation7 + $0x30] sm:$0xff]
        %v3144 = vld [vmem:[#allocation7 + $0x38] sm:$0xff]
        %v3145 = vld [vmem:[#allocation7 + $0x40] sm:$0xff]
        %v3146 = vld [vmem:[#allocation7 + $0x48] sm:$0xff]
        %v3147 = vld [vmem:[#allocation7 + $0x50] sm:$0xff]
        %v3148 = vld [vmem:[#allocation7 + $0x58] sm:$0xff]
        %v3149 = vld [vmem:[#allocation7 + $0x60] sm:$0xff]
        %v3150 = vld [vmem:[#allocation7 + $0x68] sm:$0xff]
        %v3151 = vld [vmem:[#allocation7 + $0x70] sm:$0xff]
        %v3152 = vld [vmem:[#allocation7 + $0x78] sm:$0xff]
        %v3153 = vld [vmem:[#allocation7 + $0x80] sm:$0xff]
        %v3154 = vld [vmem:[#allocation7 + $0x88] sm:$0xff]
        %v3155 = vld [vmem:[#allocation7 + $0x90] sm:$0xff]
        %v3156 = vld [vmem:[#allocation7 + $0x98] sm:$0xff]
        %v3157 = vld [vmem:[#allocation7 + $0xa0] sm:$0xff]
        %v3158 = vld [vmem:[#allocation7 + $0xa8] sm:$0xff]
        %v3159 = vld [vmem:[#allocation7 + $0xb0] sm:$0xff]
        %v3160 = vld [vmem:[#allocation7 + $0xb8] sm:$0xff]
        %v3161 = vld [vmem:[#allocation7 + $0xc0] sm:$0xff]
        %v3162 = vld [vmem:[#allocation7 + $0xc8] sm:$0xff]
        %v3163 = vld [vmem:[#allocation7 + $0xd0] sm:$0xff]
        %v3164 = vld [vmem:[#allocation7 + $0xd8] sm:$0xff]
        %v3165 = vld [vmem:[#allocation7 + $0xe0] sm:$0xff]
        %v3166 = vld [vmem:[#allocation7 + $0xe8] sm:$0xff]
        %v3167 = vld [vmem:[#allocation7 + $0xf0] sm:$0xff]
        %v3168 = vld [vmem:[#allocation7 + $0xf8] sm:$0xff]
        %v3169 = vld [vmem:[#allocation7 + $0x100] sm:$0xff]
        %v3170 = vld [vmem:[#allocation7 + $0x108] sm:$0xff]
        %v3171 = vld [vmem:[#allocation7 + $0x110] sm:$0xff]
        %v3172 = vld [vmem:[#allocation7 + $0x118] sm:$0xff]
        %v3173 = vld [vmem:[#allocation7 + $0x120] sm:$0xff]
        %v3174 = vld [vmem:[#allocation7 + $0x128] sm:$0xff]
        %v3175 = vld [vmem:[#allocation7 + $0x130] sm:$0xff]
        %v3176 = vld [vmem:[#allocation7 + $0x138] sm:$0xff]
        %v3177 = vld [vmem:[#allocation7 + $0x140] sm:$0xff]
        %v3178 = vld [vmem:[#allocation7 + $0x148] sm:$0xff]
        %v3179 = vld [vmem:[#allocation7 + $0x150] sm:$0xff]
        %v3180 = vld [vmem:[#allocation7 + $0x158] sm:$0xff]
        %v3181 = vld [vmem:[#allocation7 + $0x160] sm:$0xff]
        %v3182 = vld [vmem:[#allocation7 + $0x168] sm:$0xff]
        %v3183 = vld [vmem:[#allocation7 + $0x170] sm:$0xff]
        %v3184 = vld [vmem:[#allocation7 + $0x178] sm:$0xff]
        %v3185 = vld [vmem:[#allocation7 + $0x180] sm:$0xff]
        %v3186 = vld [vmem:[#allocation7 + $0x188] sm:$0xff]
        %v3187 = vld [vmem:[#allocation7 + $0x190] sm:$0xff]
        %v3188 = vld [vmem:[#allocation7 + $0x198] sm:$0xff]
        %v3189 = vld [vmem:[#allocation7 + $0x1a0] sm:$0xff]
        %v3190 = vld [vmem:[#allocation7 + $0x1a8] sm:$0xff]
        %v3191 = vld [vmem:[#allocation7 + $0x1b0] sm:$0xff]
        %v3192 = vld [vmem:[#allocation7 + $0x1b8] sm:$0xff]
        %v3193 = vld [vmem:[#allocation7 + $0x1c0] sm:$0xff]
        %v3194 = vld [vmem:[#allocation7 + $0x1c8] sm:$0xff]
        %v3195 = vld [vmem:[#allocation7 + $0x1d0] sm:$0xff]
        %v3196 = vld [vmem:[#allocation7 + $0x1d8] sm:$0xff]
        %v3197 = vld [vmem:[#allocation7 + $0x1e0] sm:$0xff]
        %v3198 = vld [vmem:[#allocation7 + $0x1e8] sm:$0xff]
        %v3199 = vld [vmem:[#allocation7 + $0x1f0] sm:$0xff]
        %v3200 = vld [vmem:[#allocation7 + $0x1f8] sm:$0xff]
        %s3201 = scalar_lea.vmem [#allocation7], 512
        %v3202 = vld [vmem:[%s3201] sm:$0xff]
        %v3203 = vld [vmem:[%s3201 + $0x8] sm:$0xff]
        %v3204 = vld [vmem:[%s3201 + $0x10] sm:$0xff]
        %v3205 = vld [vmem:[%s3201 + $0x18] sm:$0xff]
        %v3206 = vld [vmem:[%s3201 + $0x20] sm:$0xff]
        %v3207 = vld [vmem:[%s3201 + $0x28] sm:$0xff]
        %v3208 = vld [vmem:[%s3201 + $0x30] sm:$0xff]
        %v3209 = vld [vmem:[%s3201 + $0x38] sm:$0xff]
        %v3210 = vld [vmem:[%s3201 + $0x40] sm:$0xff]
        %v3211 = vld [vmem:[%s3201 + $0x48] sm:$0xff]
        %v3212 = vld [vmem:[%s3201 + $0x50] sm:$0xff]
        %v3213 = vld [vmem:[%s3201 + $0x58] sm:$0xff]
        %v3214 = vld [vmem:[%s3201 + $0x60] sm:$0xff]
        %v3215 = vld [vmem:[%s3201 + $0x68] sm:$0xff]
        %v3216 = vld [vmem:[%s3201 + $0x70] sm:$0xff]
        %v3217 = vld [vmem:[%s3201 + $0x78] sm:$0xff]
        %v3218 = vld [vmem:[%s3201 + $0x80] sm:$0xff]
        %v3219 = vld [vmem:[%s3201 + $0x88] sm:$0xff]
        %v3220 = vld [vmem:[%s3201 + $0x90] sm:$0xff]
        %v3221 = vld [vmem:[%s3201 + $0x98] sm:$0xff]
        %v3222 = vld [vmem:[%s3201 + $0xa0] sm:$0xff]
        %v3223 = vld [vmem:[%s3201 + $0xa8] sm:$0xff]
        %v3224 = vld [vmem:[%s3201 + $0xb0] sm:$0xff]
        %v3225 = vld [vmem:[%s3201 + $0xb8] sm:$0xff]
        %v3226 = vld [vmem:[%s3201 + $0xc0] sm:$0xff]
        %v3227 = vld [vmem:[%s3201 + $0xc8] sm:$0xff]
        %v3228 = vld [vmem:[%s3201 + $0xd0] sm:$0xff]
        %v3229 = vld [vmem:[%s3201 + $0xd8] sm:$0xff]
        %v3230 = vld [vmem:[%s3201 + $0xe0] sm:$0xff]
        %v3231 = vld [vmem:[%s3201 + $0xe8] sm:$0xff]
        %v3232 = vld [vmem:[%s3201 + $0xf0] sm:$0xff]
        %v3233 = vld [vmem:[%s3201 + $0xf8] sm:$0xff]
        %v3234 = vld [vmem:[%s3201 + $0x100] sm:$0xff]
        %v3235 = vld [vmem:[%s3201 + $0x108] sm:$0xff]
        %v3236 = vld [vmem:[%s3201 + $0x110] sm:$0xff]
        %v3237 = vld [vmem:[%s3201 + $0x118] sm:$0xff]
        %v3238 = vld [vmem:[%s3201 + $0x120] sm:$0xff]
        %v3239 = vld [vmem:[%s3201 + $0x128] sm:$0xff]
        %v3240 = vld [vmem:[%s3201 + $0x130] sm:$0xff]
        %v3241 = vld [vmem:[%s3201 + $0x138] sm:$0xff]
        %v3242 = vld [vmem:[%s3201 + $0x140] sm:$0xff]
        %v3243 = vld [vmem:[%s3201 + $0x148] sm:$0xff]
        %v3244 = vld [vmem:[%s3201 + $0x150] sm:$0xff]
        %v3245 = vld [vmem:[%s3201 + $0x158] sm:$0xff]
        %v3246 = vld [vmem:[%s3201 + $0x160] sm:$0xff]
        %v3247 = vld [vmem:[%s3201 + $0x168] sm:$0xff]
        %v3248 = vld [vmem:[%s3201 + $0x170] sm:$0xff]
        %v3249 = vld [vmem:[%s3201 + $0x178] sm:$0xff]
        %v3250 = vld [vmem:[%s3201 + $0x180] sm:$0xff]
        %v3251 = vld [vmem:[%s3201 + $0x188] sm:$0xff]
        %v3252 = vld [vmem:[%s3201 + $0x190] sm:$0xff]
        %v3253 = vld [vmem:[%s3201 + $0x198] sm:$0xff]
        %v3254 = vld [vmem:[%s3201 + $0x1a0] sm:$0xff]
        %v3255 = vld [vmem:[%s3201 + $0x1a8] sm:$0xff]
        %v3256 = vld [vmem:[%s3201 + $0x1b0] sm:$0xff]
        %v3257 = vld [vmem:[%s3201 + $0x1b8] sm:$0xff]
        %v3258 = vld [vmem:[%s3201 + $0x1c0] sm:$0xff]
        %v3259 = vld [vmem:[%s3201 + $0x1c8] sm:$0xff]
        %v3260 = vld [vmem:[%s3201 + $0x1d0] sm:$0xff]
        %v3261 = vld [vmem:[%s3201 + $0x1d8] sm:$0xff]
        %v3262 = vld [vmem:[%s3201 + $0x1e0] sm:$0xff]
        %v3263 = vld [vmem:[%s3201 + $0x1e8] sm:$0xff]
        %v3264 = vld [vmem:[%s3201 + $0x1f0] sm:$0xff]
        %v3265 = vld [vmem:[%s3201 + $0x1f8] sm:$0xff]
        %v3330 = vunpack.c.l.b16 %v3202
        %v3331 = vunpack.c.h.b16 %v3202
        %v3332 = vunpack.c.l.b16 %v3203
        %v3333 = vunpack.c.h.b16 %v3203
        %v3334 = vunpack.c.l.b16 %v3204
        %v3335 = vunpack.c.h.b16 %v3204
        %v3336 = vunpack.c.l.b16 %v3205
        %v3337 = vunpack.c.h.b16 %v3205
        %v3338 = vunpack.c.l.b16 %v3206
        %v3339 = vunpack.c.h.b16 %v3206
        %v3340 = vunpack.c.l.b16 %v3207
        %v3341 = vunpack.c.h.b16 %v3207
        %v3342 = vunpack.c.l.b16 %v3208
        %v3343 = vunpack.c.h.b16 %v3208
        %v3344 = vunpack.c.l.b16 %v3209
        %v3345 = vunpack.c.h.b16 %v3209
        %v3346 = vunpack.c.l.b16 %v3210
        %v3347 = vunpack.c.h.b16 %v3210
        %v3348 = vunpack.c.l.b16 %v3211
        %v3349 = vunpack.c.h.b16 %v3211
        %v3350 = vunpack.c.l.b16 %v3212
        %v3351 = vunpack.c.h.b16 %v3212
        %v3352 = vunpack.c.l.b16 %v3213
        %v3353 = vunpack.c.h.b16 %v3213
        %v3354 = vunpack.c.l.b16 %v3214
        %v3355 = vunpack.c.h.b16 %v3214
        %v3356 = vunpack.c.l.b16 %v3215
        %v3357 = vunpack.c.h.b16 %v3215
        %v3358 = vunpack.c.l.b16 %v3216
        %v3359 = vunpack.c.h.b16 %v3216
        %v3360 = vunpack.c.l.b16 %v3217
        %v3361 = vunpack.c.h.b16 %v3217
        %v3362 = vunpack.c.l.b16 %v3218
        %v3363 = vunpack.c.h.b16 %v3218
        %v3364 = vunpack.c.l.b16 %v3219
        %v3365 = vunpack.c.h.b16 %v3219
        %v3366 = vunpack.c.l.b16 %v3220
        %v3367 = vunpack.c.h.b16 %v3220
        %v3368 = vunpack.c.l.b16 %v3221
        %v3369 = vunpack.c.h.b16 %v3221
        %v3370 = vunpack.c.l.b16 %v3222
        %v3371 = vunpack.c.h.b16 %v3222
        %v3372 = vunpack.c.l.b16 %v3223
        %v3373 = vunpack.c.h.b16 %v3223
        %v3374 = vunpack.c.l.b16 %v3224
        %v3375 = vunpack.c.h.b16 %v3224
        %v3376 = vunpack.c.l.b16 %v3225
        %v3377 = vunpack.c.h.b16 %v3225
        %v3378 = vunpack.c.l.b16 %v3226
        %v3379 = vunpack.c.h.b16 %v3226
        %v3380 = vunpack.c.l.b16 %v3227
        %v3381 = vunpack.c.h.b16 %v3227
        %v3382 = vunpack.c.l.b16 %v3228
        %v3383 = vunpack.c.h.b16 %v3228
        %v3384 = vunpack.c.l.b16 %v3229
        %v3385 = vunpack.c.h.b16 %v3229
        %v3386 = vunpack.c.l.b16 %v3230
        %v3387 = vunpack.c.h.b16 %v3230
        %v3388 = vunpack.c.l.b16 %v3231
        %v3389 = vunpack.c.h.b16 %v3231
        %v3390 = vunpack.c.l.b16 %v3232
        %v3391 = vunpack.c.h.b16 %v3232
        %v3392 = vunpack.c.l.b16 %v3233
        %v3393 = vunpack.c.h.b16 %v3233
        %v3394 = vunpack.c.l.b16 %v3234
        %v3395 = vunpack.c.h.b16 %v3234
        %v3396 = vunpack.c.l.b16 %v3235
        %v3397 = vunpack.c.h.b16 %v3235
        %v3398 = vunpack.c.l.b16 %v3236
        %v3399 = vunpack.c.h.b16 %v3236
        %v3400 = vunpack.c.l.b16 %v3237
        %v3401 = vunpack.c.h.b16 %v3237
        %v3402 = vunpack.c.l.b16 %v3238
        %v3403 = vunpack.c.h.b16 %v3238
        %v3404 = vunpack.c.l.b16 %v3239
        %v3405 = vunpack.c.h.b16 %v3239
        %v3406 = vunpack.c.l.b16 %v3240
        %v3407 = vunpack.c.h.b16 %v3240
        %v3408 = vunpack.c.l.b16 %v3241
        %v3409 = vunpack.c.h.b16 %v3241
        %v3410 = vunpack.c.l.b16 %v3242
        %v3411 = vunpack.c.h.b16 %v3242
        %v3412 = vunpack.c.l.b16 %v3243
        %v3413 = vunpack.c.h.b16 %v3243
        %v3414 = vunpack.c.l.b16 %v3244
        %v3415 = vunpack.c.h.b16 %v3244
        %v3416 = vunpack.c.l.b16 %v3245
        %v3417 = vunpack.c.h.b16 %v3245
        %v3418 = vunpack.c.l.b16 %v3246
        %v3419 = vunpack.c.h.b16 %v3246
        %v3420 = vunpack.c.l.b16 %v3247
        %v3421 = vunpack.c.h.b16 %v3247
        %v3422 = vunpack.c.l.b16 %v3248
        %v3423 = vunpack.c.h.b16 %v3248
        %v3424 = vunpack.c.l.b16 %v3249
        %v3425 = vunpack.c.h.b16 %v3249
        %v3426 = vunpack.c.l.b16 %v3250
        %v3427 = vunpack.c.h.b16 %v3250
        %v3428 = vunpack.c.l.b16 %v3251
        %v3429 = vunpack.c.h.b16 %v3251
        %v3430 = vunpack.c.l.b16 %v3252
        %v3431 = vunpack.c.h.b16 %v3252
        %v3432 = vunpack.c.l.b16 %v3253
        %v3433 = vunpack.c.h.b16 %v3253
        %v3434 = vunpack.c.l.b16 %v3254
        %v3435 = vunpack.c.h.b16 %v3254
        %v3436 = vunpack.c.l.b16 %v3255
        %v3437 = vunpack.c.h.b16 %v3255
        %v3438 = vunpack.c.l.b16 %v3256
        %v3439 = vunpack.c.h.b16 %v3256
        %v3440 = vunpack.c.l.b16 %v3257
        %v3441 = vunpack.c.h.b16 %v3257
        %v3442 = vunpack.c.l.b16 %v3258
        %v3443 = vunpack.c.h.b16 %v3258
        %v3444 = vunpack.c.l.b16 %v3259
        %v3445 = vunpack.c.h.b16 %v3259
        %v3446 = vunpack.c.l.b16 %v3260
        %v3447 = vunpack.c.h.b16 %v3260
        %v3448 = vunpack.c.l.b16 %v3261
        %v3449 = vunpack.c.h.b16 %v3261
        %v3450 = vunpack.c.l.b16 %v3262
        %v3451 = vunpack.c.h.b16 %v3262
        %v3452 = vunpack.c.l.b16 %v3263
        %v3453 = vunpack.c.h.b16 %v3263
        %v3454 = vunpack.c.l.b16 %v3264
        %v3455 = vunpack.c.h.b16 %v3264
        %v3456 = vunpack.c.l.b16 %v3265
        %v3457 = vunpack.c.h.b16 %v3265
        %v3458 = vpack.c.b16 %v3334, %v3330
        %v3459 = vpack.c.b16 %v3335, %v3331
        %v3460 = vpack.c.b16 %v3336, %v3332
        %v3461 = vpack.c.b16 %v3337, %v3333
        %v3462 = vpack.c.b16 %v3342, %v3338
        %v3463 = vpack.c.b16 %v3343, %v3339
        %v3464 = vpack.c.b16 %v3344, %v3340
        %v3465 = vpack.c.b16 %v3345, %v3341
        %v3466 = vpack.c.b16 %v3350, %v3346
        %v3467 = vpack.c.b16 %v3351, %v3347
        %v3468 = vpack.c.b16 %v3352, %v3348
        %v3469 = vpack.c.b16 %v3353, %v3349
        %v3470 = vpack.c.b16 %v3358, %v3354
        %v3471 = vpack.c.b16 %v3359, %v3355
        %v3472 = vpack.c.b16 %v3360, %v3356
        %v3473 = vpack.c.b16 %v3361, %v3357
        %v3474 = vpack.c.b16 %v3366, %v3362
        %v3475 = vpack.c.b16 %v3367, %v3363
        %v3476 = vpack.c.b16 %v3368, %v3364
        %v3477 = vpack.c.b16 %v3369, %v3365
        %v3478 = vpack.c.b16 %v3374, %v3370
        %v3479 = vpack.c.b16 %v3375, %v3371
        %v3480 = vpack.c.b16 %v3376, %v3372
        %v3481 = vpack.c.b16 %v3377, %v3373
        %v3482 = vpack.c.b16 %v3382, %v3378
        %v3483 = vpack.c.b16 %v3383, %v3379
        %v3484 = vpack.c.b16 %v3384, %v3380
        %v3485 = vpack.c.b16 %v3385, %v3381
        %v3486 = vpack.c.b16 %v3390, %v3386
        %v3487 = vpack.c.b16 %v3391, %v3387
        %v3488 = vpack.c.b16 %v3392, %v3388
        %v3489 = vpack.c.b16 %v3393, %v3389
        %v3490 = vpack.c.b16 %v3398, %v3394
        %v3491 = vpack.c.b16 %v3399, %v3395
        %v3492 = vpack.c.b16 %v3400, %v3396
        %v3493 = vpack.c.b16 %v3401, %v3397
        %v3494 = vpack.c.b16 %v3406, %v3402
        %v3495 = vpack.c.b16 %v3407, %v3403
        %v3496 = vpack.c.b16 %v3408, %v3404
        %v3497 = vpack.c.b16 %v3409, %v3405
        %v3498 = vpack.c.b16 %v3414, %v3410
        %v3499 = vpack.c.b16 %v3415, %v3411
        %v3500 = vpack.c.b16 %v3416, %v3412
        %v3501 = vpack.c.b16 %v3417, %v3413
        %v3502 = vpack.c.b16 %v3422, %v3418
        %v3503 = vpack.c.b16 %v3423, %v3419
        %v3504 = vpack.c.b16 %v3424, %v3420
        %v3505 = vpack.c.b16 %v3425, %v3421
        %v3506 = vpack.c.b16 %v3430, %v3426
        %v3507 = vpack.c.b16 %v3431, %v3427
        %v3508 = vpack.c.b16 %v3432, %v3428
        %v3509 = vpack.c.b16 %v3433, %v3429
        %v3510 = vpack.c.b16 %v3438, %v3434
        %v3511 = vpack.c.b16 %v3439, %v3435
        %v3512 = vpack.c.b16 %v3440, %v3436
        %v3513 = vpack.c.b16 %v3441, %v3437
        %v3514 = vpack.c.b16 %v3446, %v3442
        %v3515 = vpack.c.b16 %v3447, %v3443
        %v3516 = vpack.c.b16 %v3448, %v3444
        %v3517 = vpack.c.b16 %v3449, %v3445
        %v3518 = vpack.c.b16 %v3454, %v3450
        %v3519 = vpack.c.b16 %v3455, %v3451
        %v3520 = vpack.c.b16 %v3456, %v3452
        %v3521 = vpack.c.b16 %v3457, %v3453
        %3586 = vmatprep.subr.bf16.mxu0 %v3487
        %3587 = vmatpush1.bf16.msra.mxu0 %v3486
        %3588 = vmatprep.subr.bf16.mxu0 %v3483
        %3589 = vmatpush1.bf16.msra.mxu0 %v3482
        %3590 = vmatprep.subr.bf16.mxu0 %v3479
        %3591 = vmatpush1.bf16.msra.mxu0 %v3478
        %3592 = vmatprep.subr.bf16.mxu0 %v3475
        %3593 = vmatpush1.bf16.msra.mxu0 %v3474
        %3594 = vmatprep.subr.bf16.mxu0 %v3471
        %3595 = vmatpush1.bf16.msra.mxu0 %v3470
        %3596 = vmatprep.subr.bf16.mxu0 %v3467
        %3597 = vmatpush1.bf16.msra.mxu0 %v3466
        %3598 = vmatprep.subr.bf16.mxu0 %v3463
        %3599 = vmatpush1.bf16.msra.mxu0 %v3462
        %3600 = vmatprep.subr.bf16.mxu0 %v3459
        %3601 = vmatpush1.bf16.msra.mxu0 %v3458
        %3602 = vmatprep.subr.bf16.mxu0 %v3519
        %3603 = vmatpush2.bf16.msra.mxu0 %v3518
        %3604 = vmatprep.subr.bf16.mxu0 %v3515
        %3605 = vmatpush2.bf16.msra.mxu0 %v3514
        %3606 = vmatprep.subr.bf16.mxu0 %v3511
        %3607 = vmatpush2.bf16.msra.mxu0 %v3510
        %3608 = vmatprep.subr.bf16.mxu0 %v3507
        %3609 = vmatpush2.bf16.msra.mxu0 %v3506
        %3610 = vmatprep.subr.bf16.mxu0 %v3503
        %3611 = vmatpush2.bf16.msra.mxu0 %v3502
        %3612 = vmatprep.subr.bf16.mxu0 %v3499
        %3613 = vmatpush2.bf16.msra.mxu0 %v3498
        %3614 = vmatprep.subr.bf16.mxu0 %v3495
        %3615 = vmatpush2.bf16.msra.mxu0 %v3494
        %3616 = vmatprep.subr.bf16.mxu0 %v3491
        %3617 = vmatpush2.bf16.msra.mxu0 %v3490
        %3618 = vmatprep.mubr.bf16.mxu0 %v3024
        %3619 = vmatmul.mubr.bf16.gmra.mxu0 %v3023
        %v3620 = vpop.f32.mrf.mxu0
        %v3621 = vadd.f32 0.0, %v3620
        %v3622 = vpop.f32.mrf.mxu0
        %v3623 = vadd.f32 0.0, %v3622
        %v3624 = vpop.f32.mrf.mxu0
        %v3625 = vadd.f32 0.0, %v3624
        %v3626 = vpop.f32.mrf.mxu0
        %v3627 = vadd.f32 0.0, %v3626
        %3628 = vdwg.mxu0
        %3629 = vmatprep.subr.bf16.mxu0 %v3489
        %3630 = vmatpush1.bf16.msra.mxu0 %v3488
        %3631 = vmatprep.subr.bf16.mxu0 %v3485
        %3632 = vmatpush1.bf16.msra.mxu0 %v3484
        %3633 = vmatprep.subr.bf16.mxu0 %v3481
        %3634 = vmatpush1.bf16.msra.mxu0 %v3480
        %3635 = vmatprep.subr.bf16.mxu0 %v3477
        %3636 = vmatpush1.bf16.msra.mxu0 %v3476
        %3637 = vmatprep.subr.bf16.mxu0 %v3473
        %3638 = vmatpush1.bf16.msra.mxu0 %v3472
        %3639 = vmatprep.subr.bf16.mxu0 %v3469
        %3640 = vmatpush1.bf16.msra.mxu0 %v3468
        %3641 = vmatprep.subr.bf16.mxu0 %v3465
        %3642 = vmatpush1.bf16.msra.mxu0 %v3464
        %3643 = vmatprep.subr.bf16.mxu0 %v3461
        %3644 = vmatpush1.bf16.msra.mxu0 %v3460
        %3645 = vmatprep.subr.bf16.mxu0 %v3521
        %3646 = vmatpush2.bf16.msra.mxu0 %v3520
        %3647 = vmatprep.subr.bf16.mxu0 %v3517
        %3648 = vmatpush2.bf16.msra.mxu0 %v3516
        %3649 = vmatprep.subr.bf16.mxu0 %v3513
        %3650 = vmatpush2.bf16.msra.mxu0 %v3512
        %3651 = vmatprep.subr.bf16.mxu0 %v3509
        %3652 = vmatpush2.bf16.msra.mxu0 %v3508
        %3653 = vmatprep.subr.bf16.mxu0 %v3505
        %3654 = vmatpush2.bf16.msra.mxu0 %v3504
        %3655 = vmatprep.subr.bf16.mxu0 %v3501
        %3656 = vmatpush2.bf16.msra.mxu0 %v3500
        %3657 = vmatprep.subr.bf16.mxu0 %v3497
        %3658 = vmatpush2.bf16.msra.mxu0 %v3496
        %3659 = vmatprep.subr.bf16.mxu0 %v3493
        %3660 = vmatpush2.bf16.msra.mxu0 %v3492
        %3661 = vmatprep.mubr.bf16.mxu0 %v3024
        %3662 = vmatmul.mubr.bf16.gmra.mxu0 %v3023
        %v3663 = vpop.f32.mrf.mxu0
        %v3664 = vadd.f32 0.0, %v3663
        %v3665 = vpop.f32.mrf.mxu0
        %v3666 = vadd.f32 0.0, %v3665
        %v3667 = vpop.f32.mrf.mxu0
        %v3668 = vadd.f32 0.0, %v3667
        %v3669 = vpop.f32.mrf.mxu0
        %v3670 = vadd.f32 0.0, %v3669
        %3671 = vdwg.mxu0
        %v3736 = vunpack.c.l.b16 %v3137
        %v3737 = vunpack.c.h.b16 %v3137
        %v3738 = vunpack.c.l.b16 %v3138
        %v3739 = vunpack.c.h.b16 %v3138
        %v3740 = vunpack.c.l.b16 %v3139
        %v3741 = vunpack.c.h.b16 %v3139
        %v3742 = vunpack.c.l.b16 %v3140
        %v3743 = vunpack.c.h.b16 %v3140
        %v3744 = vunpack.c.l.b16 %v3141
        %v3745 = vunpack.c.h.b16 %v3141
        %v3746 = vunpack.c.l.b16 %v3142
        %v3747 = vunpack.c.h.b16 %v3142
        %v3748 = vunpack.c.l.b16 %v3143
        %v3749 = vunpack.c.h.b16 %v3143
        %v3750 = vunpack.c.l.b16 %v3144
        %v3751 = vunpack.c.h.b16 %v3144
        %v3752 = vunpack.c.l.b16 %v3145
        %v3753 = vunpack.c.h.b16 %v3145
        %v3754 = vunpack.c.l.b16 %v3146
        %v3755 = vunpack.c.h.b16 %v3146
        %v3756 = vunpack.c.l.b16 %v3147
        %v3757 = vunpack.c.h.b16 %v3147
        %v3758 = vunpack.c.l.b16 %v3148
        %v3759 = vunpack.c.h.b16 %v3148
        %v3760 = vunpack.c.l.b16 %v3149
        %v3761 = vunpack.c.h.b16 %v3149
        %v3762 = vunpack.c.l.b16 %v3150
        %v3763 = vunpack.c.h.b16 %v3150
        %v3764 = vunpack.c.l.b16 %v3151
        %v3765 = vunpack.c.h.b16 %v3151
        %v3766 = vunpack.c.l.b16 %v3152
        %v3767 = vunpack.c.h.b16 %v3152
        %v3768 = vunpack.c.l.b16 %v3153
        %v3769 = vunpack.c.h.b16 %v3153
        %v3770 = vunpack.c.l.b16 %v3154
        %v3771 = vunpack.c.h.b16 %v3154
        %v3772 = vunpack.c.l.b16 %v3155
        %v3773 = vunpack.c.h.b16 %v3155
        %v3774 = vunpack.c.l.b16 %v3156
        %v3775 = vunpack.c.h.b16 %v3156
        %v3776 = vunpack.c.l.b16 %v3157
        %v3777 = vunpack.c.h.b16 %v3157
        %v3778 = vunpack.c.l.b16 %v3158
        %v3779 = vunpack.c.h.b16 %v3158
        %v3780 = vunpack.c.l.b16 %v3159
        %v3781 = vunpack.c.h.b16 %v3159
        %v3782 = vunpack.c.l.b16 %v3160
        %v3783 = vunpack.c.h.b16 %v3160
        %v3784 = vunpack.c.l.b16 %v3161
        %v3785 = vunpack.c.h.b16 %v3161
        %v3786 = vunpack.c.l.b16 %v3162
        %v3787 = vunpack.c.h.b16 %v3162
        %v3788 = vunpack.c.l.b16 %v3163
        %v3789 = vunpack.c.h.b16 %v3163
        %v3790 = vunpack.c.l.b16 %v3164
        %v3791 = vunpack.c.h.b16 %v3164
        %v3792 = vunpack.c.l.b16 %v3165
        %v3793 = vunpack.c.h.b16 %v3165
        %v3794 = vunpack.c.l.b16 %v3166
        %v3795 = vunpack.c.h.b16 %v3166
        %v3796 = vunpack.c.l.b16 %v3167
        %v3797 = vunpack.c.h.b16 %v3167
        %v3798 = vunpack.c.l.b16 %v3168
        %v3799 = vunpack.c.h.b16 %v3168
        %v3800 = vunpack.c.l.b16 %v3169
        %v3801 = vunpack.c.h.b16 %v3169
        %v3802 = vunpack.c.l.b16 %v3170
        %v3803 = vunpack.c.h.b16 %v3170
        %v3804 = vunpack.c.l.b16 %v3171
        %v3805 = vunpack.c.h.b16 %v3171
        %v3806 = vunpack.c.l.b16 %v3172
        %v3807 = vunpack.c.h.b16 %v3172
        %v3808 = vunpack.c.l.b16 %v3173
        %v3809 = vunpack.c.h.b16 %v3173
        %v3810 = vunpack.c.l.b16 %v3174
        %v3811 = vunpack.c.h.b16 %v3174
        %v3812 = vunpack.c.l.b16 %v3175
        %v3813 = vunpack.c.h.b16 %v3175
        %v3814 = vunpack.c.l.b16 %v3176
        %v3815 = vunpack.c.h.b16 %v3176
        %v3816 = vunpack.c.l.b16 %v3177
        %v3817 = vunpack.c.h.b16 %v3177
        %v3818 = vunpack.c.l.b16 %v3178
        %v3819 = vunpack.c.h.b16 %v3178
        %v3820 = vunpack.c.l.b16 %v3179
        %v3821 = vunpack.c.h.b16 %v3179
        %v3822 = vunpack.c.l.b16 %v3180
        %v3823 = vunpack.c.h.b16 %v3180
        %v3824 = vunpack.c.l.b16 %v3181
        %v3825 = vunpack.c.h.b16 %v3181
        %v3826 = vunpack.c.l.b16 %v3182
        %v3827 = vunpack.c.h.b16 %v3182
        %v3828 = vunpack.c.l.b16 %v3183
        %v3829 = vunpack.c.h.b16 %v3183
        %v3830 = vunpack.c.l.b16 %v3184
        %v3831 = vunpack.c.h.b16 %v3184
        %v3832 = vunpack.c.l.b16 %v3185
        %v3833 = vunpack.c.h.b16 %v3185
        %v3834 = vunpack.c.l.b16 %v3186
        %v3835 = vunpack.c.h.b16 %v3186
        %v3836 = vunpack.c.l.b16 %v3187
        %v3837 = vunpack.c.h.b16 %v3187
        %v3838 = vunpack.c.l.b16 %v3188
        %v3839 = vunpack.c.h.b16 %v3188
        %v3840 = vunpack.c.l.b16 %v3189
        %v3841 = vunpack.c.h.b16 %v3189
        %v3842 = vunpack.c.l.b16 %v3190
        %v3843 = vunpack.c.h.b16 %v3190
        %v3844 = vunpack.c.l.b16 %v3191
        %v3845 = vunpack.c.h.b16 %v3191
        %v3846 = vunpack.c.l.b16 %v3192
        %v3847 = vunpack.c.h.b16 %v3192
        %v3848 = vunpack.c.l.b16 %v3193
        %v3849 = vunpack.c.h.b16 %v3193
        %v3850 = vunpack.c.l.b16 %v3194
        %v3851 = vunpack.c.h.b16 %v3194
        %v3852 = vunpack.c.l.b16 %v3195
        %v3853 = vunpack.c.h.b16 %v3195
        %v3854 = vunpack.c.l.b16 %v3196
        %v3855 = vunpack.c.h.b16 %v3196
        %v3856 = vunpack.c.l.b16 %v3197
        %v3857 = vunpack.c.h.b16 %v3197
        %v3858 = vunpack.c.l.b16 %v3198
        %v3859 = vunpack.c.h.b16 %v3198
        %v3860 = vunpack.c.l.b16 %v3199
        %v3861 = vunpack.c.h.b16 %v3199
        %v3862 = vunpack.c.l.b16 %v3200
        %v3863 = vunpack.c.h.b16 %v3200
        %v3864 = vpack.c.b16 %v3740, %v3736
        %v3865 = vpack.c.b16 %v3741, %v3737
        %v3866 = vpack.c.b16 %v3742, %v3738
        %v3867 = vpack.c.b16 %v3743, %v3739
        %v3868 = vpack.c.b16 %v3748, %v3744
        %v3869 = vpack.c.b16 %v3749, %v3745
        %v3870 = vpack.c.b16 %v3750, %v3746
        %v3871 = vpack.c.b16 %v3751, %v3747
        %v3872 = vpack.c.b16 %v3756, %v3752
        %v3873 = vpack.c.b16 %v3757, %v3753
        %v3874 = vpack.c.b16 %v3758, %v3754
        %v3875 = vpack.c.b16 %v3759, %v3755
        %v3876 = vpack.c.b16 %v3764, %v3760
        %v3877 = vpack.c.b16 %v3765, %v3761
        %v3878 = vpack.c.b16 %v3766, %v3762
        %v3879 = vpack.c.b16 %v3767, %v3763
        %v3880 = vpack.c.b16 %v3772, %v3768
        %v3881 = vpack.c.b16 %v3773, %v3769
        %v3882 = vpack.c.b16 %v3774, %v3770
        %v3883 = vpack.c.b16 %v3775, %v3771
        %v3884 = vpack.c.b16 %v3780, %v3776
        %v3885 = vpack.c.b16 %v3781, %v3777
        %v3886 = vpack.c.b16 %v3782, %v3778
        %v3887 = vpack.c.b16 %v3783, %v3779
        %v3888 = vpack.c.b16 %v3788, %v3784
        %v3889 = vpack.c.b16 %v3789, %v3785
        %v3890 = vpack.c.b16 %v3790, %v3786
        %v3891 = vpack.c.b16 %v3791, %v3787
        %v3892 = vpack.c.b16 %v3796, %v3792
        %v3893 = vpack.c.b16 %v3797, %v3793
        %v3894 = vpack.c.b16 %v3798, %v3794
        %v3895 = vpack.c.b16 %v3799, %v3795
        %v3896 = vpack.c.b16 %v3804, %v3800
        %v3897 = vpack.c.b16 %v3805, %v3801
        %v3898 = vpack.c.b16 %v3806, %v3802
        %v3899 = vpack.c.b16 %v3807, %v3803
        %v3900 = vpack.c.b16 %v3812, %v3808
        %v3901 = vpack.c.b16 %v3813, %v3809
        %v3902 = vpack.c.b16 %v3814, %v3810
        %v3903 = vpack.c.b16 %v3815, %v3811
        %v3904 = vpack.c.b16 %v3820, %v3816
        %v3905 = vpack.c.b16 %v3821, %v3817
        %v3906 = vpack.c.b16 %v3822, %v3818
        %v3907 = vpack.c.b16 %v3823, %v3819
        %v3908 = vpack.c.b16 %v3828, %v3824
        %v3909 = vpack.c.b16 %v3829, %v3825
        %v3910 = vpack.c.b16 %v3830, %v3826
        %v3911 = vpack.c.b16 %v3831, %v3827
        %v3912 = vpack.c.b16 %v3836, %v3832
        %v3913 = vpack.c.b16 %v3837, %v3833
        %v3914 = vpack.c.b16 %v3838, %v3834
        %v3915 = vpack.c.b16 %v3839, %v3835
        %v3916 = vpack.c.b16 %v3844, %v3840
        %v3917 = vpack.c.b16 %v3845, %v3841
        %v3918 = vpack.c.b16 %v3846, %v3842
        %v3919 = vpack.c.b16 %v3847, %v3843
        %v3920 = vpack.c.b16 %v3852, %v3848
        %v3921 = vpack.c.b16 %v3853, %v3849
        %v3922 = vpack.c.b16 %v3854, %v3850
        %v3923 = vpack.c.b16 %v3855, %v3851
        %v3924 = vpack.c.b16 %v3860, %v3856
        %v3925 = vpack.c.b16 %v3861, %v3857
        %v3926 = vpack.c.b16 %v3862, %v3858
        %v3927 = vpack.c.b16 %v3863, %v3859
        %3992 = vmatprep.subr.bf16.mxu0 %v3893
        %3993 = vmatpush1.bf16.msra.mxu0 %v3892
        %3994 = vmatprep.subr.bf16.mxu0 %v3889
        %3995 = vmatpush1.bf16.msra.mxu0 %v3888
        %3996 = vmatprep.subr.bf16.mxu0 %v3885
        %3997 = vmatpush1.bf16.msra.mxu0 %v3884
        %3998 = vmatprep.subr.bf16.mxu0 %v3881
        %3999 = vmatpush1.bf16.msra.mxu0 %v3880
        %4000 = vmatprep.subr.bf16.mxu0 %v3877
        %4001 = vmatpush1.bf16.msra.mxu0 %v3876
        %4002 = vmatprep.subr.bf16.mxu0 %v3873
        %4003 = vmatpush1.bf16.msra.mxu0 %v3872
        %4004 = vmatprep.subr.bf16.mxu0 %v3869
        %4005 = vmatpush1.bf16.msra.mxu0 %v3868
        %4006 = vmatprep.subr.bf16.mxu0 %v3865
        %4007 = vmatpush1.bf16.msra.mxu0 %v3864
        %4008 = vmatprep.subr.bf16.mxu0 %v3925
        %4009 = vmatpush2.bf16.msra.mxu0 %v3924
        %4010 = vmatprep.subr.bf16.mxu0 %v3921
        %4011 = vmatpush2.bf16.msra.mxu0 %v3920
        %4012 = vmatprep.subr.bf16.mxu0 %v3917
        %4013 = vmatpush2.bf16.msra.mxu0 %v3916
        %4014 = vmatprep.subr.bf16.mxu0 %v3913
        %4015 = vmatpush2.bf16.msra.mxu0 %v3912
        %4016 = vmatprep.subr.bf16.mxu0 %v3909
        %4017 = vmatpush2.bf16.msra.mxu0 %v3908
        %4018 = vmatprep.subr.bf16.mxu0 %v3905
        %4019 = vmatpush2.bf16.msra.mxu0 %v3904
        %4020 = vmatprep.subr.bf16.mxu0 %v3901
        %4021 = vmatpush2.bf16.msra.mxu0 %v3900
        %4022 = vmatprep.subr.bf16.mxu0 %v3897
        %4023 = vmatpush2.bf16.msra.mxu0 %v3896
        %4024 = vmatprep.mubr.bf16.mxu0 %v3080
        %4025 = vmatmul.mubr.bf16.gmra.mxu0 %v3079
        %v4026 = vpop.f32.mrf.mxu0
        %v4027 = vadd.f32 %v3621, %v4026
        %v4028 = vpop.f32.mrf.mxu0
        %v4029 = vadd.f32 %v3623, %v4028
        %v4030 = vpop.f32.mrf.mxu0
        %v4031 = vadd.f32 %v3625, %v4030
        %v4032 = vpop.f32.mrf.mxu0
        %v4033 = vadd.f32 %v3627, %v4032
        %4034 = vdwg.mxu0
        %4035 = vmatprep.subr.bf16.mxu0 %v3895
        %4036 = vmatpush1.bf16.msra.mxu0 %v3894
        %4037 = vmatprep.subr.bf16.mxu0 %v3891
        %4038 = vmatpush1.bf16.msra.mxu0 %v3890
        %4039 = vmatprep.subr.bf16.mxu0 %v3887
        %4040 = vmatpush1.bf16.msra.mxu0 %v3886
        %4041 = vmatprep.subr.bf16.mxu0 %v3883
        %4042 = vmatpush1.bf16.msra.mxu0 %v3882
        %4043 = vmatprep.subr.bf16.mxu0 %v3879
        %4044 = vmatpush1.bf16.msra.mxu0 %v3878
        %4045 = vmatprep.subr.bf16.mxu0 %v3875
        %4046 = vmatpush1.bf16.msra.mxu0 %v3874
        %4047 = vmatprep.subr.bf16.mxu0 %v3871
        %4048 = vmatpush1.bf16.msra.mxu0 %v3870
        %4049 = vmatprep.subr.bf16.mxu0 %v3867
        %4050 = vmatpush1.bf16.msra.mxu0 %v3866
        %4051 = vmatprep.subr.bf16.mxu0 %v3927
        %4052 = vmatpush2.bf16.msra.mxu0 %v3926
        %4053 = vmatprep.subr.bf16.mxu0 %v3923
        %4054 = vmatpush2.bf16.msra.mxu0 %v3922
        %4055 = vmatprep.subr.bf16.mxu0 %v3919
        %4056 = vmatpush2.bf16.msra.mxu0 %v3918
        %4057 = vmatprep.subr.bf16.mxu0 %v3915
        %4058 = vmatpush2.bf16.msra.mxu0 %v3914
        %4059 = vmatprep.subr.bf16.mxu0 %v3911
        %4060 = vmatpush2.bf16.msra.mxu0 %v3910
        %4061 = vmatprep.subr.bf16.mxu0 %v3907
        %4062 = vmatpush2.bf16.msra.mxu0 %v3906
        %4063 = vmatprep.subr.bf16.mxu0 %v3903
        %4064 = vmatpush2.bf16.msra.mxu0 %v3902
        %4065 = vmatprep.subr.bf16.mxu0 %v3899
        %4066 = vmatpush2.bf16.msra.mxu0 %v3898
        %4067 = vmatprep.mubr.bf16.mxu0 %v3080
        %4068 = vmatmul.mubr.bf16.gmra.mxu0 %v3079
        %v4069 = vpop.f32.mrf.mxu0
        %v4070 = vadd.f32 %v3664, %v4069
        %v4071 = vpop.f32.mrf.mxu0
        %v4072 = vadd.f32 %v3666, %v4071
        %v4073 = vpop.f32.mrf.mxu0
        %v4074 = vadd.f32 %v3668, %v4073
        %v4075 = vpop.f32.mrf.mxu0
        %v4076 = vadd.f32 %v3670, %v4075
        %4077 = vdwg.mxu0
        %s4078 = scalar_lea.vmem [#allocation7], 1024
        %v4079 = vld [vmem:[%s4078] sm:$0xff]
        %v4080 = vld [vmem:[%s4078 + $0x8] sm:$0xff]
        %v4081 = vld [vmem:[%s4078 + $0x10] sm:$0xff]
        %v4082 = vld [vmem:[%s4078 + $0x18] sm:$0xff]
        %v4083 = vld [vmem:[%s4078 + $0x20] sm:$0xff]
        %v4084 = vld [vmem:[%s4078 + $0x28] sm:$0xff]
        %v4085 = vld [vmem:[%s4078 + $0x30] sm:$0xff]
        %v4086 = vld [vmem:[%s4078 + $0x38] sm:$0xff]
        %v4087 = vld [vmem:[%s4078 + $0x40] sm:$0xff]
        %v4088 = vld [vmem:[%s4078 + $0x48] sm:$0xff]
        %v4089 = vld [vmem:[%s4078 + $0x50] sm:$0xff]
        %v4090 = vld [vmem:[%s4078 + $0x58] sm:$0xff]
        %v4091 = vld [vmem:[%s4078 + $0x60] sm:$0xff]
        %v4092 = vld [vmem:[%s4078 + $0x68] sm:$0xff]
        %v4093 = vld [vmem:[%s4078 + $0x70] sm:$0xff]
        %v4094 = vld [vmem:[%s4078 + $0x78] sm:$0xff]
        %v4095 = vld [vmem:[%s4078 + $0x80] sm:$0xff]
        %v4096 = vld [vmem:[%s4078 + $0x88] sm:$0xff]
        %v4097 = vld [vmem:[%s4078 + $0x90] sm:$0xff]
        %v4098 = vld [vmem:[%s4078 + $0x98] sm:$0xff]
        %v4099 = vld [vmem:[%s4078 + $0xa0] sm:$0xff]
        %v4100 = vld [vmem:[%s4078 + $0xa8] sm:$0xff]
        %v4101 = vld [vmem:[%s4078 + $0xb0] sm:$0xff]
        %v4102 = vld [vmem:[%s4078 + $0xb8] sm:$0xff]
        %v4103 = vld [vmem:[%s4078 + $0xc0] sm:$0xff]
        %v4104 = vld [vmem:[%s4078 + $0xc8] sm:$0xff]
        %v4105 = vld [vmem:[%s4078 + $0xd0] sm:$0xff]
        %v4106 = vld [vmem:[%s4078 + $0xd8] sm:$0xff]
        %v4107 = vld [vmem:[%s4078 + $0xe0] sm:$0xff]
        %v4108 = vld [vmem:[%s4078 + $0xe8] sm:$0xff]
        %v4109 = vld [vmem:[%s4078 + $0xf0] sm:$0xff]
        %v4110 = vld [vmem:[%s4078 + $0xf8] sm:$0xff]
        %v4111 = vld [vmem:[%s4078 + $0x100] sm:$0xff]
        %v4112 = vld [vmem:[%s4078 + $0x108] sm:$0xff]
        %v4113 = vld [vmem:[%s4078 + $0x110] sm:$0xff]
        %v4114 = vld [vmem:[%s4078 + $0x118] sm:$0xff]
        %v4115 = vld [vmem:[%s4078 + $0x120] sm:$0xff]
        %v4116 = vld [vmem:[%s4078 + $0x128] sm:$0xff]
        %v4117 = vld [vmem:[%s4078 + $0x130] sm:$0xff]
        %v4118 = vld [vmem:[%s4078 + $0x138] sm:$0xff]
        %v4119 = vld [vmem:[%s4078 + $0x140] sm:$0xff]
        %v4120 = vld [vmem:[%s4078 + $0x148] sm:$0xff]
        %v4121 = vld [vmem:[%s4078 + $0x150] sm:$0xff]
        %v4122 = vld [vmem:[%s4078 + $0x158] sm:$0xff]
        %v4123 = vld [vmem:[%s4078 + $0x160] sm:$0xff]
        %v4124 = vld [vmem:[%s4078 + $0x168] sm:$0xff]
        %v4125 = vld [vmem:[%s4078 + $0x170] sm:$0xff]
        %v4126 = vld [vmem:[%s4078 + $0x178] sm:$0xff]
        %v4127 = vld [vmem:[%s4078 + $0x180] sm:$0xff]
        %v4128 = vld [vmem:[%s4078 + $0x188] sm:$0xff]
        %v4129 = vld [vmem:[%s4078 + $0x190] sm:$0xff]
        %v4130 = vld [vmem:[%s4078 + $0x198] sm:$0xff]
        %v4131 = vld [vmem:[%s4078 + $0x1a0] sm:$0xff]
        %v4132 = vld [vmem:[%s4078 + $0x1a8] sm:$0xff]
        %v4133 = vld [vmem:[%s4078 + $0x1b0] sm:$0xff]
        %v4134 = vld [vmem:[%s4078 + $0x1b8] sm:$0xff]
        %v4135 = vld [vmem:[%s4078 + $0x1c0] sm:$0xff]
        %v4136 = vld [vmem:[%s4078 + $0x1c8] sm:$0xff]
        %v4137 = vld [vmem:[%s4078 + $0x1d0] sm:$0xff]
        %v4138 = vld [vmem:[%s4078 + $0x1d8] sm:$0xff]
        %v4139 = vld [vmem:[%s4078 + $0x1e0] sm:$0xff]
        %v4140 = vld [vmem:[%s4078 + $0x1e8] sm:$0xff]
        %v4141 = vld [vmem:[%s4078 + $0x1f0] sm:$0xff]
        %v4142 = vld [vmem:[%s4078 + $0x1f8] sm:$0xff]
        %v4207 = vunpack.c.l.b16 %v4079
        %v4208 = vunpack.c.h.b16 %v4079
        %v4209 = vunpack.c.l.b16 %v4080
        %v4210 = vunpack.c.h.b16 %v4080
        %v4211 = vunpack.c.l.b16 %v4081
        %v4212 = vunpack.c.h.b16 %v4081
        %v4213 = vunpack.c.l.b16 %v4082
        %v4214 = vunpack.c.h.b16 %v4082
        %v4215 = vunpack.c.l.b16 %v4083
        %v4216 = vunpack.c.h.b16 %v4083
        %v4217 = vunpack.c.l.b16 %v4084
        %v4218 = vunpack.c.h.b16 %v4084
        %v4219 = vunpack.c.l.b16 %v4085
        %v4220 = vunpack.c.h.b16 %v4085
        %v4221 = vunpack.c.l.b16 %v4086
        %v4222 = vunpack.c.h.b16 %v4086
        %v4223 = vunpack.c.l.b16 %v4087
        %v4224 = vunpack.c.h.b16 %v4087
        %v4225 = vunpack.c.l.b16 %v4088
        %v4226 = vunpack.c.h.b16 %v4088
        %v4227 = vunpack.c.l.b16 %v4089
        %v4228 = vunpack.c.h.b16 %v4089
        %v4229 = vunpack.c.l.b16 %v4090
        %v4230 = vunpack.c.h.b16 %v4090
        %v4231 = vunpack.c.l.b16 %v4091
        %v4232 = vunpack.c.h.b16 %v4091
        %v4233 = vunpack.c.l.b16 %v4092
        %v4234 = vunpack.c.h.b16 %v4092
        %v4235 = vunpack.c.l.b16 %v4093
        %v4236 = vunpack.c.h.b16 %v4093
        %v4237 = vunpack.c.l.b16 %v4094
        %v4238 = vunpack.c.h.b16 %v4094
        %v4239 = vunpack.c.l.b16 %v4095
        %v4240 = vunpack.c.h.b16 %v4095
        %v4241 = vunpack.c.l.b16 %v4096
        %v4242 = vunpack.c.h.b16 %v4096
        %v4243 = vunpack.c.l.b16 %v4097
        %v4244 = vunpack.c.h.b16 %v4097
        %v4245 = vunpack.c.l.b16 %v4098
        %v4246 = vunpack.c.h.b16 %v4098
        %v4247 = vunpack.c.l.b16 %v4099
        %v4248 = vunpack.c.h.b16 %v4099
        %v4249 = vunpack.c.l.b16 %v4100
        %v4250 = vunpack.c.h.b16 %v4100
        %v4251 = vunpack.c.l.b16 %v4101
        %v4252 = vunpack.c.h.b16 %v4101
        %v4253 = vunpack.c.l.b16 %v4102
        %v4254 = vunpack.c.h.b16 %v4102
        %v4255 = vunpack.c.l.b16 %v4103
        %v4256 = vunpack.c.h.b16 %v4103
        %v4257 = vunpack.c.l.b16 %v4104
        %v4258 = vunpack.c.h.b16 %v4104
        %v4259 = vunpack.c.l.b16 %v4105
        %v4260 = vunpack.c.h.b16 %v4105
        %v4261 = vunpack.c.l.b16 %v4106
        %v4262 = vunpack.c.h.b16 %v4106
        %v4263 = vunpack.c.l.b16 %v4107
        %v4264 = vunpack.c.h.b16 %v4107
        %v4265 = vunpack.c.l.b16 %v4108
        %v4266 = vunpack.c.h.b16 %v4108
        %v4267 = vunpack.c.l.b16 %v4109
        %v4268 = vunpack.c.h.b16 %v4109
        %v4269 = vunpack.c.l.b16 %v4110
        %v4270 = vunpack.c.h.b16 %v4110
        %v4271 = vunpack.c.l.b16 %v4111
        %v4272 = vunpack.c.h.b16 %v4111
        %v4273 = vunpack.c.l.b16 %v4112
        %v4274 = vunpack.c.h.b16 %v4112
        %v4275 = vunpack.c.l.b16 %v4113
        %v4276 = vunpack.c.h.b16 %v4113
        %v4277 = vunpack.c.l.b16 %v4114
        %v4278 = vunpack.c.h.b16 %v4114
        %v4279 = vunpack.c.l.b16 %v4115
        %v4280 = vunpack.c.h.b16 %v4115
        %v4281 = vunpack.c.l.b16 %v4116
        %v4282 = vunpack.c.h.b16 %v4116
        %v4283 = vunpack.c.l.b16 %v4117
        %v4284 = vunpack.c.h.b16 %v4117
        %v4285 = vunpack.c.l.b16 %v4118
        %v4286 = vunpack.c.h.b16 %v4118
        %v4287 = vunpack.c.l.b16 %v4119
        %v4288 = vunpack.c.h.b16 %v4119
        %v4289 = vunpack.c.l.b16 %v4120
        %v4290 = vunpack.c.h.b16 %v4120
        %v4291 = vunpack.c.l.b16 %v4121
        %v4292 = vunpack.c.h.b16 %v4121
        %v4293 = vunpack.c.l.b16 %v4122
        %v4294 = vunpack.c.h.b16 %v4122
        %v4295 = vunpack.c.l.b16 %v4123
        %v4296 = vunpack.c.h.b16 %v4123
        %v4297 = vunpack.c.l.b16 %v4124
        %v4298 = vunpack.c.h.b16 %v4124
        %v4299 = vunpack.c.l.b16 %v4125
        %v4300 = vunpack.c.h.b16 %v4125
        %v4301 = vunpack.c.l.b16 %v4126
        %v4302 = vunpack.c.h.b16 %v4126
        %v4303 = vunpack.c.l.b16 %v4127
        %v4304 = vunpack.c.h.b16 %v4127
        %v4305 = vunpack.c.l.b16 %v4128
        %v4306 = vunpack.c.h.b16 %v4128
        %v4307 = vunpack.c.l.b16 %v4129
        %v4308 = vunpack.c.h.b16 %v4129
        %v4309 = vunpack.c.l.b16 %v4130
        %v4310 = vunpack.c.h.b16 %v4130
        %v4311 = vunpack.c.l.b16 %v4131
        %v4312 = vunpack.c.h.b16 %v4131
        %v4313 = vunpack.c.l.b16 %v4132
        %v4314 = vunpack.c.h.b16 %v4132
        %v4315 = vunpack.c.l.b16 %v4133
        %v4316 = vunpack.c.h.b16 %v4133
        %v4317 = vunpack.c.l.b16 %v4134
        %v4318 = vunpack.c.h.b16 %v4134
        %v4319 = vunpack.c.l.b16 %v4135
        %v4320 = vunpack.c.h.b16 %v4135
        %v4321 = vunpack.c.l.b16 %v4136
        %v4322 = vunpack.c.h.b16 %v4136
        %v4323 = vunpack.c.l.b16 %v4137
        %v4324 = vunpack.c.h.b16 %v4137
        %v4325 = vunpack.c.l.b16 %v4138
        %v4326 = vunpack.c.h.b16 %v4138
        %v4327 = vunpack.c.l.b16 %v4139
        %v4328 = vunpack.c.h.b16 %v4139
        %v4329 = vunpack.c.l.b16 %v4140
        %v4330 = vunpack.c.h.b16 %v4140
        %v4331 = vunpack.c.l.b16 %v4141
        %v4332 = vunpack.c.h.b16 %v4141
        %v4333 = vunpack.c.l.b16 %v4142
        %v4334 = vunpack.c.h.b16 %v4142
        %v4335 = vpack.c.b16 %v4211, %v4207
        %v4336 = vpack.c.b16 %v4212, %v4208
        %v4337 = vpack.c.b16 %v4213, %v4209
        %v4338 = vpack.c.b16 %v4214, %v4210
        %v4339 = vpack.c.b16 %v4219, %v4215
        %v4340 = vpack.c.b16 %v4220, %v4216
        %v4341 = vpack.c.b16 %v4221, %v4217
        %v4342 = vpack.c.b16 %v4222, %v4218
        %v4343 = vpack.c.b16 %v4227, %v4223
        %v4344 = vpack.c.b16 %v4228, %v4224
        %v4345 = vpack.c.b16 %v4229, %v4225
        %v4346 = vpack.c.b16 %v4230, %v4226
        %v4347 = vpack.c.b16 %v4235, %v4231
        %v4348 = vpack.c.b16 %v4236, %v4232
        %v4349 = vpack.c.b16 %v4237, %v4233
        %v4350 = vpack.c.b16 %v4238, %v4234
        %v4351 = vpack.c.b16 %v4243, %v4239
        %v4352 = vpack.c.b16 %v4244, %v4240
        %v4353 = vpack.c.b16 %v4245, %v4241
        %v4354 = vpack.c.b16 %v4246, %v4242
        %v4355 = vpack.c.b16 %v4251, %v4247
        %v4356 = vpack.c.b16 %v4252, %v4248
        %v4357 = vpack.c.b16 %v4253, %v4249
        %v4358 = vpack.c.b16 %v4254, %v4250
        %v4359 = vpack.c.b16 %v4259, %v4255
        %v4360 = vpack.c.b16 %v4260, %v4256
        %v4361 = vpack.c.b16 %v4261, %v4257
        %v4362 = vpack.c.b16 %v4262, %v4258
        %v4363 = vpack.c.b16 %v4267, %v4263
        %v4364 = vpack.c.b16 %v4268, %v4264
        %v4365 = vpack.c.b16 %v4269, %v4265
        %v4366 = vpack.c.b16 %v4270, %v4266
        %v4367 = vpack.c.b16 %v4275, %v4271
        %v4368 = vpack.c.b16 %v4276, %v4272
        %v4369 = vpack.c.b16 %v4277, %v4273
        %v4370 = vpack.c.b16 %v4278, %v4274
        %v4371 = vpack.c.b16 %v4283, %v4279
        %v4372 = vpack.c.b16 %v4284, %v4280
        %v4373 = vpack.c.b16 %v4285, %v4281
        %v4374 = vpack.c.b16 %v4286, %v4282
        %v4375 = vpack.c.b16 %v4291, %v4287
        %v4376 = vpack.c.b16 %v4292, %v4288
        %v4377 = vpack.c.b16 %v4293, %v4289
        %v4378 = vpack.c.b16 %v4294, %v4290
        %v4379 = vpack.c.b16 %v4299, %v4295
        %v4380 = vpack.c.b16 %v4300, %v4296
        %v4381 = vpack.c.b16 %v4301, %v4297
        %v4382 = vpack.c.b16 %v4302, %v4298
        %v4383 = vpack.c.b16 %v4307, %v4303
        %v4384 = vpack.c.b16 %v4308, %v4304
        %v4385 = vpack.c.b16 %v4309, %v4305
        %v4386 = vpack.c.b16 %v4310, %v4306
        %v4387 = vpack.c.b16 %v4315, %v4311
        %v4388 = vpack.c.b16 %v4316, %v4312
        %v4389 = vpack.c.b16 %v4317, %v4313
        %v4390 = vpack.c.b16 %v4318, %v4314
        %v4391 = vpack.c.b16 %v4323, %v4319
        %v4392 = vpack.c.b16 %v4324, %v4320
        %v4393 = vpack.c.b16 %v4325, %v4321
        %v4394 = vpack.c.b16 %v4326, %v4322
        %v4395 = vpack.c.b16 %v4331, %v4327
        %v4396 = vpack.c.b16 %v4332, %v4328
        %v4397 = vpack.c.b16 %v4333, %v4329
        %v4398 = vpack.c.b16 %v4334, %v4330
        %4463 = vmatprep.subr.bf16.mxu0 %v4364
        %4464 = vmatpush1.bf16.msra.mxu0 %v4363
        %4465 = vmatprep.subr.bf16.mxu0 %v4360
        %4466 = vmatpush1.bf16.msra.mxu0 %v4359
        %4467 = vmatprep.subr.bf16.mxu0 %v4356
        %4468 = vmatpush1.bf16.msra.mxu0 %v4355
        %4469 = vmatprep.subr.bf16.mxu0 %v4352
        %4470 = vmatpush1.bf16.msra.mxu0 %v4351
        %4471 = vmatprep.subr.bf16.mxu0 %v4348
        %4472 = vmatpush1.bf16.msra.mxu0 %v4347
        %4473 = vmatprep.subr.bf16.mxu0 %v4344
        %4474 = vmatpush1.bf16.msra.mxu0 %v4343
        %4475 = vmatprep.subr.bf16.mxu0 %v4340
        %4476 = vmatpush1.bf16.msra.mxu0 %v4339
        %4477 = vmatprep.subr.bf16.mxu0 %v4336
        %4478 = vmatpush1.bf16.msra.mxu0 %v4335
        %4479 = vmatprep.subr.bf16.mxu0 %v4396
        %4480 = vmatpush2.bf16.msra.mxu0 %v4395
        %4481 = vmatprep.subr.bf16.mxu0 %v4392
        %4482 = vmatpush2.bf16.msra.mxu0 %v4391
        %4483 = vmatprep.subr.bf16.mxu0 %v4388
        %4484 = vmatpush2.bf16.msra.mxu0 %v4387
        %4485 = vmatprep.subr.bf16.mxu0 %v4384
        %4486 = vmatpush2.bf16.msra.mxu0 %v4383
        %4487 = vmatprep.subr.bf16.mxu0 %v4380
        %4488 = vmatpush2.bf16.msra.mxu0 %v4379
        %4489 = vmatprep.subr.bf16.mxu0 %v4376
        %4490 = vmatpush2.bf16.msra.mxu0 %v4375
        %4491 = vmatprep.subr.bf16.mxu0 %v4372
        %4492 = vmatpush2.bf16.msra.mxu0 %v4371
        %4493 = vmatprep.subr.bf16.mxu0 %v4368
        %4494 = vmatpush2.bf16.msra.mxu0 %v4367
        %4495 = vmatprep.mubr.bf16.mxu0 %v3136
        %4496 = vmatmul.mubr.bf16.gmra.mxu0 %v3135
        %v4497 = vpop.f32.mrf.mxu0
        %v4498 = vadd.f32 0.0, %v4497
        %v4499 = vpop.f32.mrf.mxu0
        %v4500 = vadd.f32 0.0, %v4499
        %v4501 = vpop.f32.mrf.mxu0
        %v4502 = vadd.f32 0.0, %v4501
        %v4503 = vpop.f32.mrf.mxu0
        %v4504 = vadd.f32 0.0, %v4503
        %4505 = vdwg.mxu0
        %4506 = vmatprep.subr.bf16.mxu0 %v4366
        %4507 = vmatpush1.bf16.msra.mxu0 %v4365
        %4508 = vmatprep.subr.bf16.mxu0 %v4362
        %4509 = vmatpush1.bf16.msra.mxu0 %v4361
        %4510 = vmatprep.subr.bf16.mxu0 %v4358
        %4511 = vmatpush1.bf16.msra.mxu0 %v4357
        %4512 = vmatprep.subr.bf16.mxu0 %v4354
        %4513 = vmatpush1.bf16.msra.mxu0 %v4353
        %4514 = vmatprep.subr.bf16.mxu0 %v4350
        %4515 = vmatpush1.bf16.msra.mxu0 %v4349
        %4516 = vmatprep.subr.bf16.mxu0 %v4346
        %4517 = vmatpush1.bf16.msra.mxu0 %v4345
        %4518 = vmatprep.subr.bf16.mxu0 %v4342
        %4519 = vmatpush1.bf16.msra.mxu0 %v4341
        %4520 = vmatprep.subr.bf16.mxu0 %v4338
        %4521 = vmatpush1.bf16.msra.mxu0 %v4337
        %4522 = vmatprep.subr.bf16.mxu0 %v4398
        %4523 = vmatpush2.bf16.msra.mxu0 %v4397
        %4524 = vmatprep.subr.bf16.mxu0 %v4394
        %4525 = vmatpush2.bf16.msra.mxu0 %v4393
        %4526 = vmatprep.subr.bf16.mxu0 %v4390
        %4527 = vmatpush2.bf16.msra.mxu0 %v4389
        %4528 = vmatprep.subr.bf16.mxu0 %v4386
        %4529 = vmatpush2.bf16.msra.mxu0 %v4385
        %4530 = vmatprep.subr.bf16.mxu0 %v4382
        %4531 = vmatpush2.bf16.msra.mxu0 %v4381
        %4532 = vmatprep.subr.bf16.mxu0 %v4378
        %4533 = vmatpush2.bf16.msra.mxu0 %v4377
        %4534 = vmatprep.subr.bf16.mxu0 %v4374
        %4535 = vmatpush2.bf16.msra.mxu0 %v4373
        %4536 = vmatprep.subr.bf16.mxu0 %v4370
        %4537 = vmatpush2.bf16.msra.mxu0 %v4369
        %4538 = vmatprep.mubr.bf16.mxu0 %v3136
        %4539 = vmatmul.mubr.bf16.gmra.mxu0 %v3135
        %v4540 = vpop.f32.mrf.mxu0
        %v4541 = vadd.f32 0.0, %v4540
        %v4542 = vpop.f32.mrf.mxu0
        %v4543 = vadd.f32 0.0, %v4542
        %v4544 = vpop.f32.mrf.mxu0
        %v4545 = vadd.f32 0.0, %v4544
        %v4546 = vpop.f32.mrf.mxu0
        %v4547 = vadd.f32 0.0, %v4546
        %4548 = vdwg.mxu0
        %v4549 = vadd.f32 %v4027, %v4498
        %v4550 = vadd.f32 %v4029, %v4500
        %v4551 = vadd.f32 %v4070, %v4541
        %v4552 = vadd.f32 %v4072, %v4543
        %v4553 = vadd.f32 %v4031, %v4502
        %v4554 = vadd.f32 %v4033, %v4504
        %v4555 = vadd.f32 %v4074, %v4545
        %v4556 = vadd.f32 %v4076, %v4547
        %v4557 = vld [vmem:[#allocation9] sm:$0xf]
        %v4559 = vlaneseq
        %v4560 = vshrl.u32 %v4559, 7
        %v4561 = vsub.s32 0, %v4560
        %v4562 = vrot.slane %v4557, %v4561
        %v4563 = vlaneseq
        %v4564 = vshrl.u32 %v4563, 7
        %v4565 = vsub.s32 1, %v4564
        %v4566 = vrot.slane %v4557, %v4565
        %v4567 = vlaneseq
        %v4568 = vshrl.u32 %v4567, 7
        %v4569 = vsub.s32 2, %v4568
        %v4570 = vrot.slane %v4557, %v4569
        %v4571 = vlaneseq
        %v4572 = vshrl.u32 %v4571, 7
        %v4573 = vsub.s32 3, %v4572
        %v4574 = vrot.slane %v4557, %v4573
        %v4579 = vadd.f32 %v4549, %v4562
        %v4580 = vadd.f32 %v4550, %v4566
        %v4581 = vadd.f32 %v4551, %v4570
        %v4582 = vadd.f32 %v4552, %v4574
        %v4583 = vadd.f32 %v4553, %v4562
        %v4584 = vadd.f32 %v4554, %v4566
        %v4585 = vadd.f32 %v4555, %v4570
        %v4586 = vadd.f32 %v4556, %v4574
        %v4587 = vmax.f32 %v4579, 0.0
        %v4588 = vmax.f32 %v4580, 0.0
        %v4589 = vmax.f32 %v4581, 0.0
        %v4590 = vmax.f32 %v4582, 0.0
        %v4591 = vmax.f32 %v4583, 0.0
        %v4592 = vmax.f32 %v4584, 0.0
        %v4593 = vmax.f32 %v4585, 0.0
        %v4594 = vmax.f32 %v4586, 0.0
        %v4595 = vpack.c.bf16 %v4591, %v4587
        %v4596 = vpack.c.bf16 %v4592, %v4588
        %v4597 = vpack.c.bf16 %v4593, %v4589
        %v4598 = vpack.c.bf16 %v4594, %v4590
        %v4599 = vld [vmem:[#allocation10] sm:$0xf]
        %v4601 = vsel %vm3032, %v4599, 0
        %4603 = vmatprep.subr.bf16.mxu0 0
        %4604 = vmatpush1.bf16.msra.mxu0 0
        %4605 = vmatprep.subr.bf16.mxu0 0
        %4606 = vmatpush1.bf16.msra.mxu0 0
        %4607 = vmatprep.subr.bf16.mxu0 0
        %4608 = vmatpush1.bf16.msra.mxu0 0
        %4609 = vmatprep.subr.bf16.mxu0 0
        %4610 = vmatpush1.bf16.msra.mxu0 0
        %4611 = vmatprep.subr.bf16.mxu0 0
        %4612 = vmatpush1.bf16.msra.mxu0 0
        %4613 = vmatprep.subr.bf16.mxu0 0
        %4614 = vmatpush1.bf16.msra.mxu0 0
        %4615 = vmatprep.subr.bf16.mxu0 0
        %4616 = vmatpush1.bf16.msra.mxu0 0
        %4617 = vmatprep.subr.bf16.mxu0 %v4596
        %4618 = vmatpush1.bf16.msra.mxu0 %v4595
        %4619 = vmatprep.subr.bf16.mxu0 0
        %4620 = vmatpush2.bf16.msra.mxu0 0
        %4621 = vmatprep.subr.bf16.mxu0 0
        %4622 = vmatpush2.bf16.msra.mxu0 0
        %4623 = vmatprep.subr.bf16.mxu0 0
        %4624 = vmatpush2.bf16.msra.mxu0 0
        %4625 = vmatprep.subr.bf16.mxu0 0
        %4626 = vmatpush2.bf16.msra.mxu0 0
        %4627 = vmatprep.subr.bf16.mxu0 0
        %4628 = vmatpush2.bf16.msra.mxu0 0
        %4629 = vmatprep.subr.bf16.mxu0 0
        %4630 = vmatpush2.bf16.msra.mxu0 0
        %4631 = vmatprep.subr.bf16.mxu0 0
        %4632 = vmatpush2.bf16.msra.mxu0 0
        %4633 = vmatprep.subr.bf16.mxu0 0
        %4634 = vmatpush2.bf16.msra.mxu0 0
        %4635 = vmatprep.mubr.bf16.mxu0 0
        %4636 = vmatmul.mubr.bf16.gmra.mxu0 %v4601
        %v4637 = vpop.f32.mrf.mxu0
        %v4638 = vadd.f32 0.0, %v4637
        %v4639 = vpop.f32.mrf.mxu0
        %v4640 = vadd.f32 0.0, %v4639
        %v4641 = vpop.f32.mrf.mxu0
        %v4642 = vpop.f32.mrf.mxu0
        %4643 = vdwg.mxu0
        %4644 = vmatprep.subr.bf16.mxu0 0
        %4645 = vmatpush1.bf16.msra.mxu0 0
        %4646 = vmatprep.subr.bf16.mxu0 0
        %4647 = vmatpush1.bf16.msra.mxu0 0
        %4648 = vmatprep.subr.bf16.mxu0 0
        %4649 = vmatpush1.bf16.msra.mxu0 0
        %4650 = vmatprep.subr.bf16.mxu0 0
        %4651 = vmatpush1.bf16.msra.mxu0 0
        %4652 = vmatprep.subr.bf16.mxu0 0
        %4653 = vmatpush1.bf16.msra.mxu0 0
        %4654 = vmatprep.subr.bf16.mxu0 0
        %4655 = vmatpush1.bf16.msra.mxu0 0
        %4656 = vmatprep.subr.bf16.mxu0 0
        %4657 = vmatpush1.bf16.msra.mxu0 0
        %4658 = vmatprep.subr.bf16.mxu0 %v4598
        %4659 = vmatpush1.bf16.msra.mxu0 %v4597
        %4660 = vmatprep.subr.bf16.mxu0 0
        %4661 = vmatpush2.bf16.msra.mxu0 0
        %4662 = vmatprep.subr.bf16.mxu0 0
        %4663 = vmatpush2.bf16.msra.mxu0 0
        %4664 = vmatprep.subr.bf16.mxu0 0
        %4665 = vmatpush2.bf16.msra.mxu0 0
        %4666 = vmatprep.subr.bf16.mxu0 0
        %4667 = vmatpush2.bf16.msra.mxu0 0
        %4668 = vmatprep.subr.bf16.mxu0 0
        %4669 = vmatpush2.bf16.msra.mxu0 0
        %4670 = vmatprep.subr.bf16.mxu0 0
        %4671 = vmatpush2.bf16.msra.mxu0 0
        %4672 = vmatprep.subr.bf16.mxu0 0
        %4673 = vmatpush2.bf16.msra.mxu0 0
        %4674 = vmatprep.subr.bf16.mxu0 0
        %4675 = vmatpush2.bf16.msra.mxu0 0
        %4676 = vmatprep.mubr.bf16.mxu0 0
        %4677 = vmatmul.mubr.bf16.gmra.mxu0 %v4601
        %v4678 = vpop.f32.mrf.mxu0
        %v4679 = vadd.f32 0.0, %v4678
        %v4680 = vpop.f32.mrf.mxu0
        %v4681 = vadd.f32 0.0, %v4680
        %v4682 = vpop.f32.mrf.mxu0
        %v4683 = vpop.f32.mrf.mxu0
        %4684 = vdwg.mxu0
        %s4685 = scalar_lea.vmem [#allocation10], 4
        %v4686 = vld [vmem:[%s4685] sm:$0xf]
        %v4688 = vsel %vm3032, %v4686, 0
        %4690 = vmatprep.subr.bf16.mxu0 0
        %4691 = vmatpush1.bf16.msra.mxu0 0
        %4692 = vmatprep.subr.bf16.mxu0 0
        %4693 = vmatpush1.bf16.msra.mxu0 0
        %4694 = vmatprep.subr.bf16.mxu0 0
        %4695 = vmatpush1.bf16.msra.mxu0 0
        %4696 = vmatprep.subr.bf16.mxu0 0
        %4697 = vmatpush1.bf16.msra.mxu0 0
        %4698 = vmatprep.subr.bf16.mxu0 0
        %4699 = vmatpush1.bf16.msra.mxu0 0
        %4700 = vmatprep.subr.bf16.mxu0 0
        %4701 = vmatpush1.bf16.msra.mxu0 0
        %4702 = vmatprep.subr.bf16.mxu0 0
        %4703 = vmatpush1.bf16.msra.mxu0 0
        %4704 = vmatprep.subr.bf16.mxu0 %v4596
        %4705 = vmatpush1.bf16.msra.mxu0 %v4595
        %4706 = vmatprep.subr.bf16.mxu0 0
        %4707 = vmatpush2.bf16.msra.mxu0 0
        %4708 = vmatprep.subr.bf16.mxu0 0
        %4709 = vmatpush2.bf16.msra.mxu0 0
        %4710 = vmatprep.subr.bf16.mxu0 0
        %4711 = vmatpush2.bf16.msra.mxu0 0
        %4712 = vmatprep.subr.bf16.mxu0 0
        %4713 = vmatpush2.bf16.msra.mxu0 0
        %4714 = vmatprep.subr.bf16.mxu0 0
        %4715 = vmatpush2.bf16.msra.mxu0 0
        %4716 = vmatprep.subr.bf16.mxu0 0
        %4717 = vmatpush2.bf16.msra.mxu0 0
        %4718 = vmatprep.subr.bf16.mxu0 0
        %4719 = vmatpush2.bf16.msra.mxu0 0
        %4720 = vmatprep.subr.bf16.mxu0 0
        %4721 = vmatpush2.bf16.msra.mxu0 0
        %4722 = vmatprep.mubr.bf16.mxu0 0
        %4723 = vmatmul.mubr.bf16.gmra.mxu0 %v4688
        %v4724 = vpop.f32.mrf.mxu0
        %v4725 = vadd.f32 0.0, %v4724
        %v4726 = vpop.f32.mrf.mxu0
        %v4727 = vadd.f32 0.0, %v4726
        %v4728 = vpop.f32.mrf.mxu0
        %v4729 = vpop.f32.mrf.mxu0
        %4730 = vdwg.mxu0
        %4731 = vmatprep.subr.bf16.mxu0 0
        %4732 = vmatpush1.bf16.msra.mxu0 0
        %4733 = vmatprep.subr.bf16.mxu0 0
        %4734 = vmatpush1.bf16.msra.mxu0 0
        %4735 = vmatprep.subr.bf16.mxu0 0
        %4736 = vmatpush1.bf16.msra.mxu0 0
        %4737 = vmatprep.subr.bf16.mxu0 0
        %4738 = vmatpush1.bf16.msra.mxu0 0
        %4739 = vmatprep.subr.bf16.mxu0 0
        %4740 = vmatpush1.bf16.msra.mxu0 0
        %4741 = vmatprep.subr.bf16.mxu0 0
        %4742 = vmatpush1.bf16.msra.mxu0 0
        %4743 = vmatprep.subr.bf16.mxu0 0
        %4744 = vmatpush1.bf16.msra.mxu0 0
        %4745 = vmatprep.subr.bf16.mxu0 %v4598
        %4746 = vmatpush1.bf16.msra.mxu0 %v4597
        %4747 = vmatprep.subr.bf16.mxu0 0
        %4748 = vmatpush2.bf16.msra.mxu0 0
        %4749 = vmatprep.subr.bf16.mxu0 0
        %4750 = vmatpush2.bf16.msra.mxu0 0
        %4751 = vmatprep.subr.bf16.mxu0 0
        %4752 = vmatpush2.bf16.msra.mxu0 0
        %4753 = vmatprep.subr.bf16.mxu0 0
        %4754 = vmatpush2.bf16.msra.mxu0 0
        %4755 = vmatprep.subr.bf16.mxu0 0
        %4756 = vmatpush2.bf16.msra.mxu0 0
        %4757 = vmatprep.subr.bf16.mxu0 0
        %4758 = vmatpush2.bf16.msra.mxu0 0
        %4759 = vmatprep.subr.bf16.mxu0 0
        %4760 = vmatpush2.bf16.msra.mxu0 0
        %4761 = vmatprep.subr.bf16.mxu0 0
        %4762 = vmatpush2.bf16.msra.mxu0 0
        %4763 = vmatprep.mubr.bf16.mxu0 0
        %4764 = vmatmul.mubr.bf16.gmra.mxu0 %v4688
        %v4765 = vpop.f32.mrf.mxu0
        %v4766 = vadd.f32 0.0, %v4765
        %v4767 = vpop.f32.mrf.mxu0
        %v4768 = vadd.f32 0.0, %v4767
        %v4769 = vpop.f32.mrf.mxu0
        %v4770 = vpop.f32.mrf.mxu0
        %4771 = vdwg.mxu0
        %v4772 = vmax.f32 %v4638, %v4725
        %v4773 = vmax.f32 %v4640, %v4727
        %v4774 = vmax.f32 %v4679, %v4766
        %v4775 = vmax.f32 %v4681, %v4768
        %v4776 = vpack.c.bf16 %v4772, %v4772
        %v4777 = vpack.c.bf16 %v4773, %v4773
        %v4778 = vpack.c.bf16 %v4774, %v4774
        %v4779 = vpack.c.bf16 %v4775, %v4775
        %v4780 = vld [vmem:[#allocation12] sm:$0xff]
        %v4781 = vld [vmem:[#allocation12 + $0x8] sm:$0xff]
        %v4782 = vld [vmem:[#allocation12 + $0x10] sm:$0xff]
        %v4783 = vld [vmem:[#allocation12 + $0x18] sm:$0xff]
        %v4784 = vld [vmem:[#allocation12 + $0x20] sm:$0xff]
        %v4785 = vld [vmem:[#allocation12 + $0x28] sm:$0xff]
        %v4786 = vld [vmem:[#allocation12 + $0x30] sm:$0xff]
        %v4787 = vld [vmem:[#allocation12 + $0x38] sm:$0xff]
        %v4788 = vld [vmem:[#allocation12 + $0x40] sm:$0xff]
        %v4789 = vld [vmem:[#allocation12 + $0x48] sm:$0xff]
        %v4790 = vld [vmem:[#allocation12 + $0x50] sm:$0xff]
        %v4791 = vld [vmem:[#allocation12 + $0x58] sm:$0xff]
        %v4792 = vld [vmem:[#allocation12 + $0x60] sm:$0xff]
        %v4793 = vld [vmem:[#allocation12 + $0x68] sm:$0xff]
        %v4794 = vld [vmem:[#allocation12 + $0x70] sm:$0xff]
        %v4795 = vld [vmem:[#allocation12 + $0x78] sm:$0xff]
        %v4796 = vld [vmem:[#allocation12 + $0x80] sm:$0xff]
        %v4797 = vld [vmem:[#allocation12 + $0x88] sm:$0xff]
        %v4798 = vld [vmem:[#allocation12 + $0x90] sm:$0xff]
        %v4799 = vld [vmem:[#allocation12 + $0x98] sm:$0xff]
        %v4800 = vld [vmem:[#allocation12 + $0xa0] sm:$0xff]
        %v4801 = vld [vmem:[#allocation12 + $0xa8] sm:$0xff]
        %v4802 = vld [vmem:[#allocation12 + $0xb0] sm:$0xff]
        %v4803 = vld [vmem:[#allocation12 + $0xb8] sm:$0xff]
        %v4804 = vld [vmem:[#allocation12 + $0xc0] sm:$0xff]
        %v4805 = vld [vmem:[#allocation12 + $0xc8] sm:$0xff]
        %v4806 = vld [vmem:[#allocation12 + $0xd0] sm:$0xff]
        %v4807 = vld [vmem:[#allocation12 + $0xd8] sm:$0xff]
        %v4808 = vld [vmem:[#allocation12 + $0xe0] sm:$0xff]
        %v4809 = vld [vmem:[#allocation12 + $0xe8] sm:$0xff]
        %v4810 = vld [vmem:[#allocation12 + $0xf0] sm:$0xff]
        %v4811 = vld [vmem:[#allocation12 + $0xf8] sm:$0xff]
        %v4812 = vld [vmem:[#allocation12 + $0x100] sm:$0xff]
        %v4813 = vld [vmem:[#allocation12 + $0x108] sm:$0xff]
        %v4814 = vld [vmem:[#allocation12 + $0x110] sm:$0xff]
        %v4815 = vld [vmem:[#allocation12 + $0x118] sm:$0xff]
        %v4816 = vld [vmem:[#allocation12 + $0x120] sm:$0xff]
        %v4817 = vld [vmem:[#allocation12 + $0x128] sm:$0xff]
        %v4818 = vld [vmem:[#allocation12 + $0x130] sm:$0xff]
        %v4819 = vld [vmem:[#allocation12 + $0x138] sm:$0xff]
        %v4820 = vld [vmem:[#allocation12 + $0x140] sm:$0xff]
        %v4821 = vld [vmem:[#allocation12 + $0x148] sm:$0xff]
        %v4822 = vld [vmem:[#allocation12 + $0x150] sm:$0xff]
        %v4823 = vld [vmem:[#allocation12 + $0x158] sm:$0xff]
        %v4824 = vld [vmem:[#allocation12 + $0x160] sm:$0xff]
        %v4825 = vld [vmem:[#allocation12 + $0x168] sm:$0xff]
        %v4826 = vld [vmem:[#allocation12 + $0x170] sm:$0xff]
        %v4827 = vld [vmem:[#allocation12 + $0x178] sm:$0xff]
        %v4828 = vld [vmem:[#allocation12 + $0x180] sm:$0xff]
        %v4829 = vld [vmem:[#allocation12 + $0x188] sm:$0xff]
        %v4830 = vld [vmem:[#allocation12 + $0x190] sm:$0xff]
        %v4831 = vld [vmem:[#allocation12 + $0x198] sm:$0xff]
        %v4832 = vld [vmem:[#allocation12 + $0x1a0] sm:$0xff]
        %v4833 = vld [vmem:[#allocation12 + $0x1a8] sm:$0xff]
        %v4834 = vld [vmem:[#allocation12 + $0x1b0] sm:$0xff]
        %v4835 = vld [vmem:[#allocation12 + $0x1b8] sm:$0xff]
        %v4836 = vld [vmem:[#allocation12 + $0x1c0] sm:$0xff]
        %v4837 = vld [vmem:[#allocation12 + $0x1c8] sm:$0xff]
        %v4838 = vld [vmem:[#allocation12 + $0x1d0] sm:$0xff]
        %v4839 = vld [vmem:[#allocation12 + $0x1d8] sm:$0xff]
        %v4840 = vld [vmem:[#allocation12 + $0x1e0] sm:$0xff]
        %v4841 = vld [vmem:[#allocation12 + $0x1e8] sm:$0xff]
        %v4842 = vld [vmem:[#allocation12 + $0x1f0] sm:$0xff]
        %v4843 = vld [vmem:[#allocation12 + $0x1f8] sm:$0xff]
        %v4908 = vunpack.c.l.b16 %v4780
        %v4909 = vunpack.c.h.b16 %v4780
        %v4910 = vunpack.c.l.b16 %v4781
        %v4911 = vunpack.c.h.b16 %v4781
        %v4912 = vunpack.c.l.b16 %v4782
        %v4913 = vunpack.c.h.b16 %v4782
        %v4914 = vunpack.c.l.b16 %v4783
        %v4915 = vunpack.c.h.b16 %v4783
        %v4916 = vunpack.c.l.b16 %v4784
        %v4917 = vunpack.c.h.b16 %v4784
        %v4918 = vunpack.c.l.b16 %v4785
        %v4919 = vunpack.c.h.b16 %v4785
        %v4920 = vunpack.c.l.b16 %v4786
        %v4921 = vunpack.c.h.b16 %v4786
        %v4922 = vunpack.c.l.b16 %v4787
        %v4923 = vunpack.c.h.b16 %v4787
        %v4924 = vunpack.c.l.b16 %v4788
        %v4925 = vunpack.c.h.b16 %v4788
        %v4926 = vunpack.c.l.b16 %v4789
        %v4927 = vunpack.c.h.b16 %v4789
        %v4928 = vunpack.c.l.b16 %v4790
        %v4929 = vunpack.c.h.b16 %v4790
        %v4930 = vunpack.c.l.b16 %v4791
        %v4931 = vunpack.c.h.b16 %v4791
        %v4932 = vunpack.c.l.b16 %v4792
        %v4933 = vunpack.c.h.b16 %v4792
        %v4934 = vunpack.c.l.b16 %v4793
        %v4935 = vunpack.c.h.b16 %v4793
        %v4936 = vunpack.c.l.b16 %v4794
        %v4937 = vunpack.c.h.b16 %v4794
        %v4938 = vunpack.c.l.b16 %v4795
        %v4939 = vunpack.c.h.b16 %v4795
        %v4940 = vunpack.c.l.b16 %v4796
        %v4941 = vunpack.c.h.b16 %v4796
        %v4942 = vunpack.c.l.b16 %v4797
        %v4943 = vunpack.c.h.b16 %v4797
        %v4944 = vunpack.c.l.b16 %v4798
        %v4945 = vunpack.c.h.b16 %v4798
        %v4946 = vunpack.c.l.b16 %v4799
        %v4947 = vunpack.c.h.b16 %v4799
        %v4948 = vunpack.c.l.b16 %v4800
        %v4949 = vunpack.c.h.b16 %v4800
        %v4950 = vunpack.c.l.b16 %v4801
        %v4951 = vunpack.c.h.b16 %v4801
        %v4952 = vunpack.c.l.b16 %v4802
        %v4953 = vunpack.c.h.b16 %v4802
        %v4954 = vunpack.c.l.b16 %v4803
        %v4955 = vunpack.c.h.b16 %v4803
        %v4956 = vunpack.c.l.b16 %v4804
        %v4957 = vunpack.c.h.b16 %v4804
        %v4958 = vunpack.c.l.b16 %v4805
        %v4959 = vunpack.c.h.b16 %v4805
        %v4960 = vunpack.c.l.b16 %v4806
        %v4961 = vunpack.c.h.b16 %v4806
        %v4962 = vunpack.c.l.b16 %v4807
        %v4963 = vunpack.c.h.b16 %v4807
        %v4964 = vunpack.c.l.b16 %v4808
        %v4965 = vunpack.c.h.b16 %v4808
        %v4966 = vunpack.c.l.b16 %v4809
        %v4967 = vunpack.c.h.b16 %v4809
        %v4968 = vunpack.c.l.b16 %v4810
        %v4969 = vunpack.c.h.b16 %v4810
        %v4970 = vunpack.c.l.b16 %v4811
        %v4971 = vunpack.c.h.b16 %v4811
        %v4972 = vunpack.c.l.b16 %v4812
        %v4973 = vunpack.c.h.b16 %v4812
        %v4974 = vunpack.c.l.b16 %v4813
        %v4975 = vunpack.c.h.b16 %v4813
        %v4976 = vunpack.c.l.b16 %v4814
        %v4977 = vunpack.c.h.b16 %v4814
        %v4978 = vunpack.c.l.b16 %v4815
        %v4979 = vunpack.c.h.b16 %v4815
        %v4980 = vunpack.c.l.b16 %v4816
        %v4981 = vunpack.c.h.b16 %v4816
        %v4982 = vunpack.c.l.b16 %v4817
        %v4983 = vunpack.c.h.b16 %v4817
        %v4984 = vunpack.c.l.b16 %v4818
        %v4985 = vunpack.c.h.b16 %v4818
        %v4986 = vunpack.c.l.b16 %v4819
        %v4987 = vunpack.c.h.b16 %v4819
        %v4988 = vunpack.c.l.b16 %v4820
        %v4989 = vunpack.c.h.b16 %v4820
        %v4990 = vunpack.c.l.b16 %v4821
        %v4991 = vunpack.c.h.b16 %v4821
        %v4992 = vunpack.c.l.b16 %v4822
        %v4993 = vunpack.c.h.b16 %v4822
        %v4994 = vunpack.c.l.b16 %v4823
        %v4995 = vunpack.c.h.b16 %v4823
        %v4996 = vunpack.c.l.b16 %v4824
        %v4997 = vunpack.c.h.b16 %v4824
        %v4998 = vunpack.c.l.b16 %v4825
        %v4999 = vunpack.c.h.b16 %v4825
        %v5000 = vunpack.c.l.b16 %v4826
        %v5001 = vunpack.c.h.b16 %v4826
        %v5002 = vunpack.c.l.b16 %v4827
        %v5003 = vunpack.c.h.b16 %v4827
        %v5004 = vunpack.c.l.b16 %v4828
        %v5005 = vunpack.c.h.b16 %v4828
        %v5006 = vunpack.c.l.b16 %v4829
        %v5007 = vunpack.c.h.b16 %v4829
        %v5008 = vunpack.c.l.b16 %v4830
        %v5009 = vunpack.c.h.b16 %v4830
        %v5010 = vunpack.c.l.b16 %v4831
        %v5011 = vunpack.c.h.b16 %v4831
        %v5012 = vunpack.c.l.b16 %v4832
        %v5013 = vunpack.c.h.b16 %v4832
        %v5014 = vunpack.c.l.b16 %v4833
        %v5015 = vunpack.c.h.b16 %v4833
        %v5016 = vunpack.c.l.b16 %v4834
        %v5017 = vunpack.c.h.b16 %v4834
        %v5018 = vunpack.c.l.b16 %v4835
        %v5019 = vunpack.c.h.b16 %v4835
        %v5020 = vunpack.c.l.b16 %v4836
        %v5021 = vunpack.c.h.b16 %v4836
        %v5022 = vunpack.c.l.b16 %v4837
        %v5023 = vunpack.c.h.b16 %v4837
        %v5024 = vunpack.c.l.b16 %v4838
        %v5025 = vunpack.c.h.b16 %v4838
        %v5026 = vunpack.c.l.b16 %v4839
        %v5027 = vunpack.c.h.b16 %v4839
        %v5028 = vunpack.c.l.b16 %v4840
        %v5029 = vunpack.c.h.b16 %v4840
        %v5030 = vunpack.c.l.b16 %v4841
        %v5031 = vunpack.c.h.b16 %v4841
        %v5032 = vunpack.c.l.b16 %v4842
        %v5033 = vunpack.c.h.b16 %v4842
        %v5034 = vunpack.c.l.b16 %v4843
        %v5035 = vunpack.c.h.b16 %v4843
        %v5036 = vpack.c.b16 %v4910, %v4908
        %v5037 = vpack.c.b16 %v4911, %v4909
        %v5038 = vpack.c.b16 %v4914, %v4912
        %v5039 = vpack.c.b16 %v4915, %v4913
        %v5040 = vpack.c.b16 %v4918, %v4916
        %v5041 = vpack.c.b16 %v4919, %v4917
        %v5042 = vpack.c.b16 %v4922, %v4920
        %v5043 = vpack.c.b16 %v4923, %v4921
        %v5044 = vpack.c.b16 %v4926, %v4924
        %v5045 = vpack.c.b16 %v4927, %v4925
        %v5046 = vpack.c.b16 %v4930, %v4928
        %v5047 = vpack.c.b16 %v4931, %v4929
        %v5048 = vpack.c.b16 %v4934, %v4932
        %v5049 = vpack.c.b16 %v4935, %v4933
        %v5050 = vpack.c.b16 %v4938, %v4936
        %v5051 = vpack.c.b16 %v4939, %v4937
        %v5052 = vpack.c.b16 %v4942, %v4940
        %v5053 = vpack.c.b16 %v4943, %v4941
        %v5054 = vpack.c.b16 %v4946, %v4944
        %v5055 = vpack.c.b16 %v4947, %v4945
        %v5056 = vpack.c.b16 %v4950, %v4948
        %v5057 = vpack.c.b16 %v4951, %v4949
        %v5058 = vpack.c.b16 %v4954, %v4952
        %v5059 = vpack.c.b16 %v4955, %v4953
        %v5060 = vpack.c.b16 %v4958, %v4956
        %v5061 = vpack.c.b16 %v4959, %v4957
        %v5062 = vpack.c.b16 %v4962, %v4960
        %v5063 = vpack.c.b16 %v4963, %v4961
        %v5064 = vpack.c.b16 %v4966, %v4964
        %v5065 = vpack.c.b16 %v4967, %v4965
        %v5066 = vpack.c.b16 %v4970, %v4968
        %v5067 = vpack.c.b16 %v4971, %v4969
        %v5068 = vpack.c.b16 %v4974, %v4972
        %v5069 = vpack.c.b16 %v4975, %v4973
        %v5070 = vpack.c.b16 %v4978, %v4976
        %v5071 = vpack.c.b16 %v4979, %v4977
        %v5072 = vpack.c.b16 %v4982, %v4980
        %v5073 = vpack.c.b16 %v4983, %v4981
        %v5074 = vpack.c.b16 %v4986, %v4984
        %v5075 = vpack.c.b16 %v4987, %v4985
        %v5076 = vpack.c.b16 %v4990, %v4988
        %v5077 = vpack.c.b16 %v4991, %v4989
        %v5078 = vpack.c.b16 %v4994, %v4992
        %v5079 = vpack.c.b16 %v4995, %v4993
        %v5080 = vpack.c.b16 %v4998, %v4996
        %v5081 = vpack.c.b16 %v4999, %v4997
        %v5082 = vpack.c.b16 %v5002, %v5000
        %v5083 = vpack.c.b16 %v5003, %v5001
        %v5084 = vpack.c.b16 %v5006, %v5004
        %v5085 = vpack.c.b16 %v5007, %v5005
        %v5086 = vpack.c.b16 %v5010, %v5008
        %v5087 = vpack.c.b16 %v5011, %v5009
        %v5088 = vpack.c.b16 %v5014, %v5012
        %v5089 = vpack.c.b16 %v5015, %v5013
        %v5090 = vpack.c.b16 %v5018, %v5016
        %v5091 = vpack.c.b16 %v5019, %v5017
        %v5092 = vpack.c.b16 %v5022, %v5020
        %v5093 = vpack.c.b16 %v5023, %v5021
        %v5094 = vpack.c.b16 %v5026, %v5024
        %v5095 = vpack.c.b16 %v5027, %v5025
        %v5096 = vpack.c.b16 %v5030, %v5028
        %v5097 = vpack.c.b16 %v5031, %v5029
        %v5098 = vpack.c.b16 %v5034, %v5032
        %v5099 = vpack.c.b16 %v5035, %v5033
        %5164 = vmatprep.subr.bf16.mxu0 %v5051
        %5165 = vmatpush1.bf16.msra.mxu0 %v5050
        %5166 = vmatprep.subr.bf16.mxu0 %v5049
        %5167 = vmatpush1.bf16.msra.mxu0 %v5048
        %5168 = vmatprep.subr.bf16.mxu0 %v5047
        %5169 = vmatpush1.bf16.msra.mxu0 %v5046
        %5170 = vmatprep.subr.bf16.mxu0 %v5045
        %5171 = vmatpush1.bf16.msra.mxu0 %v5044
        %5172 = vmatprep.subr.bf16.mxu0 %v5043
        %5173 = vmatpush1.bf16.msra.mxu0 %v5042
        %5174 = vmatprep.subr.bf16.mxu0 %v5041
        %5175 = vmatpush1.bf16.msra.mxu0 %v5040
        %5176 = vmatprep.subr.bf16.mxu0 %v5039
        %5177 = vmatpush1.bf16.msra.mxu0 %v5038
        %5178 = vmatprep.subr.bf16.mxu0 %v5037
        %5179 = vmatpush1.bf16.msra.mxu0 %v5036
        %5180 = vmatprep.subr.bf16.mxu0 %v5067
        %5181 = vmatpush2.bf16.msra.mxu0 %v5066
        %5182 = vmatprep.subr.bf16.mxu0 %v5065
        %5183 = vmatpush2.bf16.msra.mxu0 %v5064
        %5184 = vmatprep.subr.bf16.mxu0 %v5063
        %5185 = vmatpush2.bf16.msra.mxu0 %v5062
        %5186 = vmatprep.subr.bf16.mxu0 %v5061
        %5187 = vmatpush2.bf16.msra.mxu0 %v5060
        %5188 = vmatprep.subr.bf16.mxu0 %v5059
        %5189 = vmatpush2.bf16.msra.mxu0 %v5058
        %5190 = vmatprep.subr.bf16.mxu0 %v5057
        %5191 = vmatpush2.bf16.msra.mxu0 %v5056
        %5192 = vmatprep.subr.bf16.mxu0 %v5055
        %5193 = vmatpush2.bf16.msra.mxu0 %v5054
        %5194 = vmatprep.subr.bf16.mxu0 %v5053
        %5195 = vmatpush2.bf16.msra.mxu0 %v5052
        %5196 = vmatprep.mubr.bf16.mxu0 %v4777
        %5197 = vmatmul.mubr.bf16.gmra.mxu0 %v4776
        %v5198 = vpop.f32.mrf.mxu0
        %v5199 = vadd.f32 0.0, %v5198
        %v5200 = vpop.f32.mrf.mxu0
        %v5201 = vadd.f32 0.0, %v5200
        %v5202 = vpop.f32.mrf.mxu0
        %v5203 = vpop.f32.mrf.mxu0
        %5204 = vdwg.mxu0
        %5205 = vmatprep.subr.bf16.mxu0 %v5083
        %5206 = vmatpush1.bf16.msra.mxu0 %v5082
        %5207 = vmatprep.subr.bf16.mxu0 %v5081
        %5208 = vmatpush1.bf16.msra.mxu0 %v5080
        %5209 = vmatprep.subr.bf16.mxu0 %v5079
        %5210 = vmatpush1.bf16.msra.mxu0 %v5078
        %5211 = vmatprep.subr.bf16.mxu0 %v5077
        %5212 = vmatpush1.bf16.msra.mxu0 %v5076
        %5213 = vmatprep.subr.bf16.mxu0 %v5075
        %5214 = vmatpush1.bf16.msra.mxu0 %v5074
        %5215 = vmatprep.subr.bf16.mxu0 %v5073
        %5216 = vmatpush1.bf16.msra.mxu0 %v5072
        %5217 = vmatprep.subr.bf16.mxu0 %v5071
        %5218 = vmatpush1.bf16.msra.mxu0 %v5070
        %5219 = vmatprep.subr.bf16.mxu0 %v5069
        %5220 = vmatpush1.bf16.msra.mxu0 %v5068
        %5221 = vmatprep.subr.bf16.mxu0 %v5099
        %5222 = vmatpush2.bf16.msra.mxu0 %v5098
        %5223 = vmatprep.subr.bf16.mxu0 %v5097
        %5224 = vmatpush2.bf16.msra.mxu0 %v5096
        %5225 = vmatprep.subr.bf16.mxu0 %v5095
        %5226 = vmatpush2.bf16.msra.mxu0 %v5094
        %5227 = vmatprep.subr.bf16.mxu0 %v5093
        %5228 = vmatpush2.bf16.msra.mxu0 %v5092
        %5229 = vmatprep.subr.bf16.mxu0 %v5091
        %5230 = vmatpush2.bf16.msra.mxu0 %v5090
        %5231 = vmatprep.subr.bf16.mxu0 %v5089
        %5232 = vmatpush2.bf16.msra.mxu0 %v5088
        %5233 = vmatprep.subr.bf16.mxu0 %v5087
        %5234 = vmatpush2.bf16.msra.mxu0 %v5086
        %5235 = vmatprep.subr.bf16.mxu0 %v5085
        %5236 = vmatpush2.bf16.msra.mxu0 %v5084
        %5237 = vmatprep.mubr.bf16.mxu0 %v4779
        %5238 = vmatmul.mubr.bf16.gmra.mxu0 %v4778
        %v5239 = vpop.f32.mrf.mxu0
        %v5240 = vadd.f32 %v5199, %v5239
        %v5241 = vpop.f32.mrf.mxu0
        %v5242 = vadd.f32 %v5201, %v5241
        %v5243 = vpop.f32.mrf.mxu0
        %v5244 = vpop.f32.mrf.mxu0
        %5245 = vdwg.mxu0
        %s5246 = scalar_lea.vmem [#allocation12], 512
        %v5247 = vld [vmem:[%s5246] sm:$0xff]
        %v5248 = vld [vmem:[%s5246 + $0x8] sm:$0xff]
        %v5249 = vld [vmem:[%s5246 + $0x10] sm:$0xff]
        %v5250 = vld [vmem:[%s5246 + $0x18] sm:$0xff]
        %v5251 = vld [vmem:[%s5246 + $0x20] sm:$0xff]
        %v5252 = vld [vmem:[%s5246 + $0x28] sm:$0xff]
        %v5253 = vld [vmem:[%s5246 + $0x30] sm:$0xff]
        %v5254 = vld [vmem:[%s5246 + $0x38] sm:$0xff]
        %v5255 = vld [vmem:[%s5246 + $0x40] sm:$0xff]
        %v5256 = vld [vmem:[%s5246 + $0x48] sm:$0xff]
        %v5257 = vld [vmem:[%s5246 + $0x50] sm:$0xff]
        %v5258 = vld [vmem:[%s5246 + $0x58] sm:$0xff]
        %v5259 = vld [vmem:[%s5246 + $0x60] sm:$0xff]
        %v5260 = vld [vmem:[%s5246 + $0x68] sm:$0xff]
        %v5261 = vld [vmem:[%s5246 + $0x70] sm:$0xff]
        %v5262 = vld [vmem:[%s5246 + $0x78] sm:$0xff]
        %v5263 = vld [vmem:[%s5246 + $0x80] sm:$0xff]
        %v5264 = vld [vmem:[%s5246 + $0x88] sm:$0xff]
        %v5265 = vld [vmem:[%s5246 + $0x90] sm:$0xff]
        %v5266 = vld [vmem:[%s5246 + $0x98] sm:$0xff]
        %v5267 = vld [vmem:[%s5246 + $0xa0] sm:$0xff]
        %v5268 = vld [vmem:[%s5246 + $0xa8] sm:$0xff]
        %v5269 = vld [vmem:[%s5246 + $0xb0] sm:$0xff]
        %v5270 = vld [vmem:[%s5246 + $0xb8] sm:$0xff]
        %v5271 = vld [vmem:[%s5246 + $0xc0] sm:$0xff]
        %v5272 = vld [vmem:[%s5246 + $0xc8] sm:$0xff]
        %v5273 = vld [vmem:[%s5246 + $0xd0] sm:$0xff]
        %v5274 = vld [vmem:[%s5246 + $0xd8] sm:$0xff]
        %v5275 = vld [vmem:[%s5246 + $0xe0] sm:$0xff]
        %v5276 = vld [vmem:[%s5246 + $0xe8] sm:$0xff]
        %v5277 = vld [vmem:[%s5246 + $0xf0] sm:$0xff]
        %v5278 = vld [vmem:[%s5246 + $0xf8] sm:$0xff]
        %v5279 = vld [vmem:[%s5246 + $0x100] sm:$0xff]
        %v5280 = vld [vmem:[%s5246 + $0x108] sm:$0xff]
        %v5281 = vld [vmem:[%s5246 + $0x110] sm:$0xff]
        %v5282 = vld [vmem:[%s5246 + $0x118] sm:$0xff]
        %v5283 = vld [vmem:[%s5246 + $0x120] sm:$0xff]
        %v5284 = vld [vmem:[%s5246 + $0x128] sm:$0xff]
        %v5285 = vld [vmem:[%s5246 + $0x130] sm:$0xff]
        %v5286 = vld [vmem:[%s5246 + $0x138] sm:$0xff]
        %v5287 = vld [vmem:[%s5246 + $0x140] sm:$0xff]
        %v5288 = vld [vmem:[%s5246 + $0x148] sm:$0xff]
        %v5289 = vld [vmem:[%s5246 + $0x150] sm:$0xff]
        %v5290 = vld [vmem:[%s5246 + $0x158] sm:$0xff]
        %v5291 = vld [vmem:[%s5246 + $0x160] sm:$0xff]
        %v5292 = vld [vmem:[%s5246 + $0x168] sm:$0xff]
        %v5293 = vld [vmem:[%s5246 + $0x170] sm:$0xff]
        %v5294 = vld [vmem:[%s5246 + $0x178] sm:$0xff]
        %v5295 = vld [vmem:[%s5246 + $0x180] sm:$0xff]
        %v5296 = vld [vmem:[%s5246 + $0x188] sm:$0xff]
        %v5297 = vld [vmem:[%s5246 + $0x190] sm:$0xff]
        %v5298 = vld [vmem:[%s5246 + $0x198] sm:$0xff]
        %v5299 = vld [vmem:[%s5246 + $0x1a0] sm:$0xff]
        %v5300 = vld [vmem:[%s5246 + $0x1a8] sm:$0xff]
        %v5301 = vld [vmem:[%s5246 + $0x1b0] sm:$0xff]
        %v5302 = vld [vmem:[%s5246 + $0x1b8] sm:$0xff]
        %v5303 = vld [vmem:[%s5246 + $0x1c0] sm:$0xff]
        %v5304 = vld [vmem:[%s5246 + $0x1c8] sm:$0xff]
        %v5305 = vld [vmem:[%s5246 + $0x1d0] sm:$0xff]
        %v5306 = vld [vmem:[%s5246 + $0x1d8] sm:$0xff]
        %v5307 = vld [vmem:[%s5246 + $0x1e0] sm:$0xff]
        %v5308 = vld [vmem:[%s5246 + $0x1e8] sm:$0xff]
        %v5309 = vld [vmem:[%s5246 + $0x1f0] sm:$0xff]
        %v5310 = vld [vmem:[%s5246 + $0x1f8] sm:$0xff]
        %v5375 = vunpack.c.l.b16 %v5247
        %v5376 = vunpack.c.h.b16 %v5247
        %v5377 = vunpack.c.l.b16 %v5248
        %v5378 = vunpack.c.h.b16 %v5248
        %v5379 = vunpack.c.l.b16 %v5249
        %v5380 = vunpack.c.h.b16 %v5249
        %v5381 = vunpack.c.l.b16 %v5250
        %v5382 = vunpack.c.h.b16 %v5250
        %v5383 = vunpack.c.l.b16 %v5251
        %v5384 = vunpack.c.h.b16 %v5251
        %v5385 = vunpack.c.l.b16 %v5252
        %v5386 = vunpack.c.h.b16 %v5252
        %v5387 = vunpack.c.l.b16 %v5253
        %v5388 = vunpack.c.h.b16 %v5253
        %v5389 = vunpack.c.l.b16 %v5254
        %v5390 = vunpack.c.h.b16 %v5254
        %v5391 = vunpack.c.l.b16 %v5255
        %v5392 = vunpack.c.h.b16 %v5255
        %v5393 = vunpack.c.l.b16 %v5256
        %v5394 = vunpack.c.h.b16 %v5256
        %v5395 = vunpack.c.l.b16 %v5257
        %v5396 = vunpack.c.h.b16 %v5257
        %v5397 = vunpack.c.l.b16 %v5258
        %v5398 = vunpack.c.h.b16 %v5258
        %v5399 = vunpack.c.l.b16 %v5259
        %v5400 = vunpack.c.h.b16 %v5259
        %v5401 = vunpack.c.l.b16 %v5260
        %v5402 = vunpack.c.h.b16 %v5260
        %v5403 = vunpack.c.l.b16 %v5261
        %v5404 = vunpack.c.h.b16 %v5261
        %v5405 = vunpack.c.l.b16 %v5262
        %v5406 = vunpack.c.h.b16 %v5262
        %v5407 = vunpack.c.l.b16 %v5263
        %v5408 = vunpack.c.h.b16 %v5263
        %v5409 = vunpack.c.l.b16 %v5264
        %v5410 = vunpack.c.h.b16 %v5264
        %v5411 = vunpack.c.l.b16 %v5265
        %v5412 = vunpack.c.h.b16 %v5265
        %v5413 = vunpack.c.l.b16 %v5266
        %v5414 = vunpack.c.h.b16 %v5266
        %v5415 = vunpack.c.l.b16 %v5267
        %v5416 = vunpack.c.h.b16 %v5267
        %v5417 = vunpack.c.l.b16 %v5268
        %v5418 = vunpack.c.h.b16 %v5268
        %v5419 = vunpack.c.l.b16 %v5269
        %v5420 = vunpack.c.h.b16 %v5269
        %v5421 = vunpack.c.l.b16 %v5270
        %v5422 = vunpack.c.h.b16 %v5270
        %v5423 = vunpack.c.l.b16 %v5271
        %v5424 = vunpack.c.h.b16 %v5271
        %v5425 = vunpack.c.l.b16 %v5272
        %v5426 = vunpack.c.h.b16 %v5272
        %v5427 = vunpack.c.l.b16 %v5273
        %v5428 = vunpack.c.h.b16 %v5273
        %v5429 = vunpack.c.l.b16 %v5274
        %v5430 = vunpack.c.h.b16 %v5274
        %v5431 = vunpack.c.l.b16 %v5275
        %v5432 = vunpack.c.h.b16 %v5275
        %v5433 = vunpack.c.l.b16 %v5276
        %v5434 = vunpack.c.h.b16 %v5276
        %v5435 = vunpack.c.l.b16 %v5277
        %v5436 = vunpack.c.h.b16 %v5277
        %v5437 = vunpack.c.l.b16 %v5278
        %v5438 = vunpack.c.h.b16 %v5278
        %v5439 = vunpack.c.l.b16 %v5279
        %v5440 = vunpack.c.h.b16 %v5279
        %v5441 = vunpack.c.l.b16 %v5280
        %v5442 = vunpack.c.h.b16 %v5280
        %v5443 = vunpack.c.l.b16 %v5281
        %v5444 = vunpack.c.h.b16 %v5281
        %v5445 = vunpack.c.l.b16 %v5282
        %v5446 = vunpack.c.h.b16 %v5282
        %v5447 = vunpack.c.l.b16 %v5283
        %v5448 = vunpack.c.h.b16 %v5283
        %v5449 = vunpack.c.l.b16 %v5284
        %v5450 = vunpack.c.h.b16 %v5284
        %v5451 = vunpack.c.l.b16 %v5285
        %v5452 = vunpack.c.h.b16 %v5285
        %v5453 = vunpack.c.l.b16 %v5286
        %v5454 = vunpack.c.h.b16 %v5286
        %v5455 = vunpack.c.l.b16 %v5287
        %v5456 = vunpack.c.h.b16 %v5287
        %v5457 = vunpack.c.l.b16 %v5288
        %v5458 = vunpack.c.h.b16 %v5288
        %v5459 = vunpack.c.l.b16 %v5289
        %v5460 = vunpack.c.h.b16 %v5289
        %v5461 = vunpack.c.l.b16 %v5290
        %v5462 = vunpack.c.h.b16 %v5290
        %v5463 = vunpack.c.l.b16 %v5291
        %v5464 = vunpack.c.h.b16 %v5291
        %v5465 = vunpack.c.l.b16 %v5292
        %v5466 = vunpack.c.h.b16 %v5292
        %v5467 = vunpack.c.l.b16 %v5293
        %v5468 = vunpack.c.h.b16 %v5293
        %v5469 = vunpack.c.l.b16 %v5294
        %v5470 = vunpack.c.h.b16 %v5294
        %v5471 = vunpack.c.l.b16 %v5295
        %v5472 = vunpack.c.h.b16 %v5295
        %v5473 = vunpack.c.l.b16 %v5296
        %v5474 = vunpack.c.h.b16 %v5296
        %v5475 = vunpack.c.l.b16 %v5297
        %v5476 = vunpack.c.h.b16 %v5297
        %v5477 = vunpack.c.l.b16 %v5298
        %v5478 = vunpack.c.h.b16 %v5298
        %v5479 = vunpack.c.l.b16 %v5299
        %v5480 = vunpack.c.h.b16 %v5299
        %v5481 = vunpack.c.l.b16 %v5300
        %v5482 = vunpack.c.h.b16 %v5300
        %v5483 = vunpack.c.l.b16 %v5301
        %v5484 = vunpack.c.h.b16 %v5301
        %v5485 = vunpack.c.l.b16 %v5302
        %v5486 = vunpack.c.h.b16 %v5302
        %v5487 = vunpack.c.l.b16 %v5303
        %v5488 = vunpack.c.h.b16 %v5303
        %v5489 = vunpack.c.l.b16 %v5304
        %v5490 = vunpack.c.h.b16 %v5304
        %v5491 = vunpack.c.l.b16 %v5305
        %v5492 = vunpack.c.h.b16 %v5305
        %v5493 = vunpack.c.l.b16 %v5306
        %v5494 = vunpack.c.h.b16 %v5306
        %v5495 = vunpack.c.l.b16 %v5307
        %v5496 = vunpack.c.h.b16 %v5307
        %v5497 = vunpack.c.l.b16 %v5308
        %v5498 = vunpack.c.h.b16 %v5308
        %v5499 = vunpack.c.l.b16 %v5309
        %v5500 = vunpack.c.h.b16 %v5309
        %v5501 = vunpack.c.l.b16 %v5310
        %v5502 = vunpack.c.h.b16 %v5310
        %v5503 = vpack.c.b16 %v5377, %v5375
        %v5504 = vpack.c.b16 %v5378, %v5376
        %v5505 = vpack.c.b16 %v5381, %v5379
        %v5506 = vpack.c.b16 %v5382, %v5380
        %v5507 = vpack.c.b16 %v5385, %v5383
        %v5508 = vpack.c.b16 %v5386, %v5384
        %v5509 = vpack.c.b16 %v5389, %v5387
        %v5510 = vpack.c.b16 %v5390, %v5388
        %v5511 = vpack.c.b16 %v5393, %v5391
        %v5512 = vpack.c.b16 %v5394, %v5392
        %v5513 = vpack.c.b16 %v5397, %v5395
        %v5514 = vpack.c.b16 %v5398, %v5396
        %v5515 = vpack.c.b16 %v5401, %v5399
        %v5516 = vpack.c.b16 %v5402, %v5400
        %v5517 = vpack.c.b16 %v5405, %v5403
        %v5518 = vpack.c.b16 %v5406, %v5404
        %v5519 = vpack.c.b16 %v5409, %v5407
        %v5520 = vpack.c.b16 %v5410, %v5408
        %v5521 = vpack.c.b16 %v5413, %v5411
        %v5522 = vpack.c.b16 %v5414, %v5412
        %v5523 = vpack.c.b16 %v5417, %v5415
        %v5524 = vpack.c.b16 %v5418, %v5416
        %v5525 = vpack.c.b16 %v5421, %v5419
        %v5526 = vpack.c.b16 %v5422, %v5420
        %v5527 = vpack.c.b16 %v5425, %v5423
        %v5528 = vpack.c.b16 %v5426, %v5424
        %v5529 = vpack.c.b16 %v5429, %v5427
        %v5530 = vpack.c.b16 %v5430, %v5428
        %v5531 = vpack.c.b16 %v5433, %v5431
        %v5532 = vpack.c.b16 %v5434, %v5432
        %v5533 = vpack.c.b16 %v5437, %v5435
        %v5534 = vpack.c.b16 %v5438, %v5436
        %v5535 = vpack.c.b16 %v5441, %v5439
        %v5536 = vpack.c.b16 %v5442, %v5440
        %v5537 = vpack.c.b16 %v5445, %v5443
        %v5538 = vpack.c.b16 %v5446, %v5444
        %v5539 = vpack.c.b16 %v5449, %v5447
        %v5540 = vpack.c.b16 %v5450, %v5448
        %v5541 = vpack.c.b16 %v5453, %v5451
        %v5542 = vpack.c.b16 %v5454, %v5452
        %v5543 = vpack.c.b16 %v5457, %v5455
        %v5544 = vpack.c.b16 %v5458, %v5456
        %v5545 = vpack.c.b16 %v5461, %v5459
        %v5546 = vpack.c.b16 %v5462, %v5460
        %v5547 = vpack.c.b16 %v5465, %v5463
        %v5548 = vpack.c.b16 %v5466, %v5464
        %v5549 = vpack.c.b16 %v5469, %v5467
        %v5550 = vpack.c.b16 %v5470, %v5468
        %v5551 = vpack.c.b16 %v5473, %v5471
        %v5552 = vpack.c.b16 %v5474, %v5472
        %v5553 = vpack.c.b16 %v5477, %v5475
        %v5554 = vpack.c.b16 %v5478, %v5476
        %v5555 = vpack.c.b16 %v5481, %v5479
        %v5556 = vpack.c.b16 %v5482, %v5480
        %v5557 = vpack.c.b16 %v5485, %v5483
        %v5558 = vpack.c.b16 %v5486, %v5484
        %v5559 = vpack.c.b16 %v5489, %v5487
        %v5560 = vpack.c.b16 %v5490, %v5488
        %v5561 = vpack.c.b16 %v5493, %v5491
        %v5562 = vpack.c.b16 %v5494, %v5492
        %v5563 = vpack.c.b16 %v5497, %v5495
        %v5564 = vpack.c.b16 %v5498, %v5496
        %v5565 = vpack.c.b16 %v5501, %v5499
        %v5566 = vpack.c.b16 %v5502, %v5500
        %5631 = vmatprep.subr.bf16.mxu0 %v5518
        %5632 = vmatpush1.bf16.msra.mxu0 %v5517
        %5633 = vmatprep.subr.bf16.mxu0 %v5516
        %5634 = vmatpush1.bf16.msra.mxu0 %v5515
        %5635 = vmatprep.subr.bf16.mxu0 %v5514
        %5636 = vmatpush1.bf16.msra.mxu0 %v5513
        %5637 = vmatprep.subr.bf16.mxu0 %v5512
        %5638 = vmatpush1.bf16.msra.mxu0 %v5511
        %5639 = vmatprep.subr.bf16.mxu0 %v5510
        %5640 = vmatpush1.bf16.msra.mxu0 %v5509
        %5641 = vmatprep.subr.bf16.mxu0 %v5508
        %5642 = vmatpush1.bf16.msra.mxu0 %v5507
        %5643 = vmatprep.subr.bf16.mxu0 %v5506
        %5644 = vmatpush1.bf16.msra.mxu0 %v5505
        %5645 = vmatprep.subr.bf16.mxu0 %v5504
        %5646 = vmatpush1.bf16.msra.mxu0 %v5503
        %5647 = vmatprep.subr.bf16.mxu0 %v5534
        %5648 = vmatpush2.bf16.msra.mxu0 %v5533
        %5649 = vmatprep.subr.bf16.mxu0 %v5532
        %5650 = vmatpush2.bf16.msra.mxu0 %v5531
        %5651 = vmatprep.subr.bf16.mxu0 %v5530
        %5652 = vmatpush2.bf16.msra.mxu0 %v5529
        %5653 = vmatprep.subr.bf16.mxu0 %v5528
        %5654 = vmatpush2.bf16.msra.mxu0 %v5527
        %5655 = vmatprep.subr.bf16.mxu0 %v5526
        %5656 = vmatpush2.bf16.msra.mxu0 %v5525
        %5657 = vmatprep.subr.bf16.mxu0 %v5524
        %5658 = vmatpush2.bf16.msra.mxu0 %v5523
        %5659 = vmatprep.subr.bf16.mxu0 %v5522
        %5660 = vmatpush2.bf16.msra.mxu0 %v5521
        %5661 = vmatprep.subr.bf16.mxu0 %v5520
        %5662 = vmatpush2.bf16.msra.mxu0 %v5519
        %5663 = vmatprep.mubr.bf16.mxu0 %v4777
        %5664 = vmatmul.mubr.bf16.gmra.mxu0 %v4776
        %v5665 = vpop.f32.mrf.mxu0
        %v5666 = vadd.f32 0.0, %v5665
        %v5667 = vpop.f32.mrf.mxu0
        %v5668 = vadd.f32 0.0, %v5667
        %v5669 = vpop.f32.mrf.mxu0
        %v5670 = vpop.f32.mrf.mxu0
        %5671 = vdwg.mxu0
        %5672 = vmatprep.subr.bf16.mxu0 %v5550
        %5673 = vmatpush1.bf16.msra.mxu0 %v5549
        %5674 = vmatprep.subr.bf16.mxu0 %v5548
        %5675 = vmatpush1.bf16.msra.mxu0 %v5547
        %5676 = vmatprep.subr.bf16.mxu0 %v5546
        %5677 = vmatpush1.bf16.msra.mxu0 %v5545
        %5678 = vmatprep.subr.bf16.mxu0 %v5544
        %5679 = vmatpush1.bf16.msra.mxu0 %v5543
        %5680 = vmatprep.subr.bf16.mxu0 %v5542
        %5681 = vmatpush1.bf16.msra.mxu0 %v5541
        %5682 = vmatprep.subr.bf16.mxu0 %v5540
        %5683 = vmatpush1.bf16.msra.mxu0 %v5539
        %5684 = vmatprep.subr.bf16.mxu0 %v5538
        %5685 = vmatpush1.bf16.msra.mxu0 %v5537
        %5686 = vmatprep.subr.bf16.mxu0 %v5536
        %5687 = vmatpush1.bf16.msra.mxu0 %v5535
        %5688 = vmatprep.subr.bf16.mxu0 %v5566
        %5689 = vmatpush2.bf16.msra.mxu0 %v5565
        %5690 = vmatprep.subr.bf16.mxu0 %v5564
        %5691 = vmatpush2.bf16.msra.mxu0 %v5563
        %5692 = vmatprep.subr.bf16.mxu0 %v5562
        %5693 = vmatpush2.bf16.msra.mxu0 %v5561
        %5694 = vmatprep.subr.bf16.mxu0 %v5560
        %5695 = vmatpush2.bf16.msra.mxu0 %v5559
        %5696 = vmatprep.subr.bf16.mxu0 %v5558
        %5697 = vmatpush2.bf16.msra.mxu0 %v5557
        %5698 = vmatprep.subr.bf16.mxu0 %v5556
        %5699 = vmatpush2.bf16.msra.mxu0 %v5555
        %5700 = vmatprep.subr.bf16.mxu0 %v5554
        %5701 = vmatpush2.bf16.msra.mxu0 %v5553
        %5702 = vmatprep.subr.bf16.mxu0 %v5552
        %5703 = vmatpush2.bf16.msra.mxu0 %v5551
        %5704 = vmatprep.mubr.bf16.mxu0 %v4779
        %5705 = vmatmul.mubr.bf16.gmra.mxu0 %v4778
        %v5706 = vpop.f32.mrf.mxu0
        %v5707 = vadd.f32 %v5666, %v5706
        %v5708 = vpop.f32.mrf.mxu0
        %v5709 = vadd.f32 %v5668, %v5708
        %v5710 = vpop.f32.mrf.mxu0
        %v5711 = vpop.f32.mrf.mxu0
        %5712 = vdwg.mxu0
        %v5713 = vmax.f32 %v5240, %v5707
        %v5714 = vmax.f32 %v5242, %v5709
        %v5715 = vpack.c.bf16 %v5713, %v5713
        %v5716 = vpack.c.bf16 %v5714, %v5714
        %v5717 = vld [vmem:[%s13] sm:$0xf]
        %vm5718 = vcmask 64512
        %v5720 = vsel %vm5718, %v5717, 0
        %vm5722 = vcmask 1043456
        %v5724 = vsel %vm5722, %v5715, 0
        %v5727 = vsel %vm5722, %v5716, 0
        %5729 = vmatprep.subr.bf16.mxu0 0
        %5730 = vmatpush1.bf16.msra.mxu0 0
        %5731 = vmatprep.subr.bf16.mxu0 0
        %5732 = vmatpush1.bf16.msra.mxu0 0
        %5733 = vmatprep.subr.bf16.mxu0 0
        %5734 = vmatpush1.bf16.msra.mxu0 0
        %5735 = vmatprep.subr.bf16.mxu0 0
        %5736 = vmatpush1.bf16.msra.mxu0 0
        %5737 = vmatprep.subr.bf16.mxu0 0
        %5738 = vmatpush1.bf16.msra.mxu0 0
        %5739 = vmatprep.subr.bf16.mxu0 0
        %5740 = vmatpush1.bf16.msra.mxu0 0
        %5741 = vmatprep.subr.bf16.mxu0 0
        %5742 = vmatpush1.bf16.msra.mxu0 0
        %5743 = vmatprep.subr.bf16.mxu0 %v5727
        %5744 = vmatpush1.bf16.msra.mxu0 %v5724
        %5745 = vmatprep.subr.bf16.mxu0 0
        %5746 = vmatpush2.bf16.msra.mxu0 0
        %5747 = vmatprep.subr.bf16.mxu0 0
        %5748 = vmatpush2.bf16.msra.mxu0 0
        %5749 = vmatprep.subr.bf16.mxu0 0
        %5750 = vmatpush2.bf16.msra.mxu0 0
        %5751 = vmatprep.subr.bf16.mxu0 0
        %5752 = vmatpush2.bf16.msra.mxu0 0
        %5753 = vmatprep.subr.bf16.mxu0 0
        %5754 = vmatpush2.bf16.msra.mxu0 0
        %5755 = vmatprep.subr.bf16.mxu0 0
        %5756 = vmatpush2.bf16.msra.mxu0 0
        %5757 = vmatprep.subr.bf16.mxu0 0
        %5758 = vmatpush2.bf16.msra.mxu0 0
        %5759 = vmatprep.subr.bf16.mxu0 0
        %5760 = vmatpush2.bf16.msra.mxu0 0
        %5761 = vmatprep.mubr.bf16.mxu0 0
        %5762 = vmatmul.mubr.bf16.gmra.mxu0 %v5720
        %v5763 = vpop.f32.mrf.mxu0
        %v5764 = vadd.f32 0.0, %v5763
        %v5765 = vpop.f32.mrf.mxu0
        %v5766 = vadd.f32 0.0, %v5765
        %v5767 = vpop.f32.mrf.mxu0
        %v5768 = vpop.f32.mrf.mxu0
        %5769 = vdwg.mxu0
        %v5770 = vpack.c.bf16 %v5764, %v5764
        %v5771 = vpack.c.bf16 %v5766, %v5766
        %s5772 = scalar_lea.vmem %s13, 4
        %v5773 = vld [vmem:[%s5772] sm:$0xf]
        %v5775 = vsel %vm5718, %v5773, 0
        %5777 = vmatprep.subr.bf16.mxu0 0
        %5778 = vmatpush1.bf16.msra.mxu0 0
        %5779 = vmatprep.subr.bf16.mxu0 0
        %5780 = vmatpush1.bf16.msra.mxu0 0
        %5781 = vmatprep.subr.bf16.mxu0 0
        %5782 = vmatpush1.bf16.msra.mxu0 0
        %5783 = vmatprep.subr.bf16.mxu0 0
        %5784 = vmatpush1.bf16.msra.mxu0 0
        %5785 = vmatprep.subr.bf16.mxu0 0
        %5786 = vmatpush1.bf16.msra.mxu0 0
        %5787 = vmatprep.subr.bf16.mxu0 0
        %5788 = vmatpush1.bf16.msra.mxu0 0
        %5789 = vmatprep.subr.bf16.mxu0 0
        %5790 = vmatpush1.bf16.msra.mxu0 0
        %5791 = vmatprep.subr.bf16.mxu0 %v5727
        %5792 = vmatpush1.bf16.msra.mxu0 %v5724
        %5793 = vmatprep.subr.bf16.mxu0 0
        %5794 = vmatpush2.bf16.msra.mxu0 0
        %5795 = vmatprep.subr.bf16.mxu0 0
        %5796 = vmatpush2.bf16.msra.mxu0 0
        %5797 = vmatprep.subr.bf16.mxu0 0
        %5798 = vmatpush2.bf16.msra.mxu0 0
        %5799 = vmatprep.subr.bf16.mxu0 0
        %5800 = vmatpush2.bf16.msra.mxu0 0
        %5801 = vmatprep.subr.bf16.mxu0 0
        %5802 = vmatpush2.bf16.msra.mxu0 0
        %5803 = vmatprep.subr.bf16.mxu0 0
        %5804 = vmatpush2.bf16.msra.mxu0 0
        %5805 = vmatprep.subr.bf16.mxu0 0
        %5806 = vmatpush2.bf16.msra.mxu0 0
        %5807 = vmatprep.subr.bf16.mxu0 0
        %5808 = vmatpush2.bf16.msra.mxu0 0
        %5809 = vmatprep.mubr.bf16.mxu0 0
        %5810 = vmatmul.mubr.bf16.gmra.mxu0 %v5775
        %v5811 = vpop.f32.mrf.mxu0
        %v5812 = vadd.f32 0.0, %v5811
        %v5813 = vpop.f32.mrf.mxu0
        %v5814 = vadd.f32 0.0, %v5813
        %v5815 = vpop.f32.mrf.mxu0
        %v5816 = vpop.f32.mrf.mxu0
        %5817 = vdwg.mxu0
        %v5818 = vpack.c.bf16 %v5812, %v5812
        %v5819 = vpack.c.bf16 %v5814, %v5814
        %v5820 = vld [vmem:[#allocation13] sm:$0xff]
        %v5821 = vld [vmem:[#allocation13 + $0x8] sm:$0xff]
        %v5822 = vld [vmem:[#allocation13 + $0x10] sm:$0xff]
        %v5823 = vld [vmem:[#allocation13 + $0x18] sm:$0xff]
        %v5824 = vld [vmem:[#allocation13 + $0x20] sm:$0xff]
        %v5825 = vld [vmem:[#allocation13 + $0x28] sm:$0xff]
        %v5826 = vld [vmem:[#allocation13 + $0x30] sm:$0xff]
        %v5827 = vld [vmem:[#allocation13 + $0x38] sm:$0xff]
        %v5828 = vld [vmem:[#allocation13 + $0x40] sm:$0xff]
        %v5829 = vld [vmem:[#allocation13 + $0x48] sm:$0xff]
        %v5830 = vld [vmem:[#allocation13 + $0x50] sm:$0xff]
        %v5831 = vld [vmem:[#allocation13 + $0x58] sm:$0xff]
        %v5832 = vld [vmem:[#allocation13 + $0x60] sm:$0xff]
        %v5833 = vld [vmem:[#allocation13 + $0x68] sm:$0xff]
        %v5834 = vld [vmem:[#allocation13 + $0x70] sm:$0xff]
        %v5835 = vld [vmem:[#allocation13 + $0x78] sm:$0xff]
        %v5836 = vld [vmem:[#allocation13 + $0x80] sm:$0xff]
        %v5837 = vld [vmem:[#allocation13 + $0x88] sm:$0xff]
        %v5838 = vld [vmem:[#allocation13 + $0x90] sm:$0xff]
        %v5839 = vld [vmem:[#allocation13 + $0x98] sm:$0xff]
        %v5840 = vld [vmem:[#allocation13 + $0xa0] sm:$0xff]
        %v5841 = vld [vmem:[#allocation13 + $0xa8] sm:$0xff]
        %v5842 = vld [vmem:[#allocation13 + $0xb0] sm:$0xff]
        %v5843 = vld [vmem:[#allocation13 + $0xb8] sm:$0xff]
        %v5844 = vld [vmem:[#allocation13 + $0xc0] sm:$0xff]
        %v5845 = vld [vmem:[#allocation13 + $0xc8] sm:$0xff]
        %v5846 = vld [vmem:[#allocation13 + $0xd0] sm:$0xff]
        %v5847 = vld [vmem:[#allocation13 + $0xd8] sm:$0xff]
        %v5848 = vld [vmem:[#allocation13 + $0xe0] sm:$0xff]
        %v5849 = vld [vmem:[#allocation13 + $0xe8] sm:$0xff]
        %v5850 = vld [vmem:[#allocation13 + $0xf0] sm:$0xff]
        %v5851 = vld [vmem:[#allocation13 + $0xf8] sm:$0xff]
        %v5852 = vld [vmem:[#allocation13 + $0x100] sm:$0xff]
        %v5853 = vld [vmem:[#allocation13 + $0x108] sm:$0xff]
        %v5854 = vld [vmem:[#allocation13 + $0x110] sm:$0xff]
        %v5855 = vld [vmem:[#allocation13 + $0x118] sm:$0xff]
        %v5856 = vld [vmem:[#allocation13 + $0x120] sm:$0xff]
        %v5857 = vld [vmem:[#allocation13 + $0x128] sm:$0xff]
        %v5858 = vld [vmem:[#allocation13 + $0x130] sm:$0xff]
        %v5859 = vld [vmem:[#allocation13 + $0x138] sm:$0xff]
        %v5860 = vld [vmem:[#allocation13 + $0x140] sm:$0xff]
        %v5861 = vld [vmem:[#allocation13 + $0x148] sm:$0xff]
        %v5862 = vld [vmem:[#allocation13 + $0x150] sm:$0xff]
        %v5863 = vld [vmem:[#allocation13 + $0x158] sm:$0xff]
        %v5864 = vld [vmem:[#allocation13 + $0x160] sm:$0xff]
        %v5865 = vld [vmem:[#allocation13 + $0x168] sm:$0xff]
        %v5866 = vld [vmem:[#allocation13 + $0x170] sm:$0xff]
        %v5867 = vld [vmem:[#allocation13 + $0x178] sm:$0xff]
        %v5868 = vld [vmem:[#allocation13 + $0x180] sm:$0xff]
        %v5869 = vld [vmem:[#allocation13 + $0x188] sm:$0xff]
        %v5870 = vld [vmem:[#allocation13 + $0x190] sm:$0xff]
        %v5871 = vld [vmem:[#allocation13 + $0x198] sm:$0xff]
        %v5872 = vld [vmem:[#allocation13 + $0x1a0] sm:$0xff]
        %v5873 = vld [vmem:[#allocation13 + $0x1a8] sm:$0xff]
        %v5874 = vld [vmem:[#allocation13 + $0x1b0] sm:$0xff]
        %v5875 = vld [vmem:[#allocation13 + $0x1b8] sm:$0xff]
        %v5876 = vld [vmem:[#allocation13 + $0x1c0] sm:$0xff]
        %v5877 = vld [vmem:[#allocation13 + $0x1c8] sm:$0xff]
        %v5878 = vld [vmem:[#allocation13 + $0x1d0] sm:$0xff]
        %v5879 = vld [vmem:[#allocation13 + $0x1d8] sm:$0xff]
        %v5880 = vld [vmem:[#allocation13 + $0x1e0] sm:$0xff]
        %v5881 = vld [vmem:[#allocation13 + $0x1e8] sm:$0xff]
        %v5882 = vld [vmem:[#allocation13 + $0x1f0] sm:$0xff]
        %v5883 = vld [vmem:[#allocation13 + $0x1f8] sm:$0xff]
        %s5884 = scalar_lea.vmem [#allocation13], 512
        %v5885 = vld [vmem:[%s5884] sm:$0xff]
        %v5886 = vld [vmem:[%s5884 + $0x8] sm:$0xff]
        %v5887 = vld [vmem:[%s5884 + $0x10] sm:$0xff]
        %v5888 = vld [vmem:[%s5884 + $0x18] sm:$0xff]
        %v5889 = vld [vmem:[%s5884 + $0x20] sm:$0xff]
        %v5890 = vld [vmem:[%s5884 + $0x28] sm:$0xff]
        %v5891 = vld [vmem:[%s5884 + $0x30] sm:$0xff]
        %v5892 = vld [vmem:[%s5884 + $0x38] sm:$0xff]
        %v5893 = vld [vmem:[%s5884 + $0x40] sm:$0xff]
        %v5894 = vld [vmem:[%s5884 + $0x48] sm:$0xff]
        %v5895 = vld [vmem:[%s5884 + $0x50] sm:$0xff]
        %v5896 = vld [vmem:[%s5884 + $0x58] sm:$0xff]
        %v5897 = vld [vmem:[%s5884 + $0x60] sm:$0xff]
        %v5898 = vld [vmem:[%s5884 + $0x68] sm:$0xff]
        %v5899 = vld [vmem:[%s5884 + $0x70] sm:$0xff]
        %v5900 = vld [vmem:[%s5884 + $0x78] sm:$0xff]
        %v5901 = vld [vmem:[%s5884 + $0x80] sm:$0xff]
        %v5902 = vld [vmem:[%s5884 + $0x88] sm:$0xff]
        %v5903 = vld [vmem:[%s5884 + $0x90] sm:$0xff]
        %v5904 = vld [vmem:[%s5884 + $0x98] sm:$0xff]
        %v5905 = vld [vmem:[%s5884 + $0xa0] sm:$0xff]
        %v5906 = vld [vmem:[%s5884 + $0xa8] sm:$0xff]
        %v5907 = vld [vmem:[%s5884 + $0xb0] sm:$0xff]
        %v5908 = vld [vmem:[%s5884 + $0xb8] sm:$0xff]
        %v5909 = vld [vmem:[%s5884 + $0xc0] sm:$0xff]
        %v5910 = vld [vmem:[%s5884 + $0xc8] sm:$0xff]
        %v5911 = vld [vmem:[%s5884 + $0xd0] sm:$0xff]
        %v5912 = vld [vmem:[%s5884 + $0xd8] sm:$0xff]
        %v5913 = vld [vmem:[%s5884 + $0xe0] sm:$0xff]
        %v5914 = vld [vmem:[%s5884 + $0xe8] sm:$0xff]
        %v5915 = vld [vmem:[%s5884 + $0xf0] sm:$0xff]
        %v5916 = vld [vmem:[%s5884 + $0xf8] sm:$0xff]
        %v5917 = vld [vmem:[%s5884 + $0x100] sm:$0xff]
        %v5918 = vld [vmem:[%s5884 + $0x108] sm:$0xff]
        %v5919 = vld [vmem:[%s5884 + $0x110] sm:$0xff]
        %v5920 = vld [vmem:[%s5884 + $0x118] sm:$0xff]
        %v5921 = vld [vmem:[%s5884 + $0x120] sm:$0xff]
        %v5922 = vld [vmem:[%s5884 + $0x128] sm:$0xff]
        %v5923 = vld [vmem:[%s5884 + $0x130] sm:$0xff]
        %v5924 = vld [vmem:[%s5884 + $0x138] sm:$0xff]
        %v5925 = vld [vmem:[%s5884 + $0x140] sm:$0xff]
        %v5926 = vld [vmem:[%s5884 + $0x148] sm:$0xff]
        %v5927 = vld [vmem:[%s5884 + $0x150] sm:$0xff]
        %v5928 = vld [vmem:[%s5884 + $0x158] sm:$0xff]
        %v5929 = vld [vmem:[%s5884 + $0x160] sm:$0xff]
        %v5930 = vld [vmem:[%s5884 + $0x168] sm:$0xff]
        %v5931 = vld [vmem:[%s5884 + $0x170] sm:$0xff]
        %v5932 = vld [vmem:[%s5884 + $0x178] sm:$0xff]
        %v5933 = vld [vmem:[%s5884 + $0x180] sm:$0xff]
        %v5934 = vld [vmem:[%s5884 + $0x188] sm:$0xff]
        %v5935 = vld [vmem:[%s5884 + $0x190] sm:$0xff]
        %v5936 = vld [vmem:[%s5884 + $0x198] sm:$0xff]
        %v5937 = vld [vmem:[%s5884 + $0x1a0] sm:$0xff]
        %v5938 = vld [vmem:[%s5884 + $0x1a8] sm:$0xff]
        %v5939 = vld [vmem:[%s5884 + $0x1b0] sm:$0xff]
        %v5940 = vld [vmem:[%s5884 + $0x1b8] sm:$0xff]
        %v5941 = vld [vmem:[%s5884 + $0x1c0] sm:$0xff]
        %v5942 = vld [vmem:[%s5884 + $0x1c8] sm:$0xff]
        %v5943 = vld [vmem:[%s5884 + $0x1d0] sm:$0xff]
        %v5944 = vld [vmem:[%s5884 + $0x1d8] sm:$0xff]
        %v5945 = vld [vmem:[%s5884 + $0x1e0] sm:$0xff]
        %v5946 = vld [vmem:[%s5884 + $0x1e8] sm:$0xff]
        %v5947 = vld [vmem:[%s5884 + $0x1f0] sm:$0xff]
        %v5948 = vld [vmem:[%s5884 + $0x1f8] sm:$0xff]
        %v6013 = vunpack.c.l.b16 %v5885
        %v6014 = vunpack.c.h.b16 %v5885
        %v6015 = vunpack.c.l.b16 %v5886
        %v6016 = vunpack.c.h.b16 %v5886
        %v6017 = vunpack.c.l.b16 %v5887
        %v6018 = vunpack.c.h.b16 %v5887
        %v6019 = vunpack.c.l.b16 %v5888
        %v6020 = vunpack.c.h.b16 %v5888
        %v6021 = vunpack.c.l.b16 %v5889
        %v6022 = vunpack.c.h.b16 %v5889
        %v6023 = vunpack.c.l.b16 %v5890
        %v6024 = vunpack.c.h.b16 %v5890
        %v6025 = vunpack.c.l.b16 %v5891
        %v6026 = vunpack.c.h.b16 %v5891
        %v6027 = vunpack.c.l.b16 %v5892
        %v6028 = vunpack.c.h.b16 %v5892
        %v6029 = vunpack.c.l.b16 %v5893
        %v6030 = vunpack.c.h.b16 %v5893
        %v6031 = vunpack.c.l.b16 %v5894
        %v6032 = vunpack.c.h.b16 %v5894
        %v6033 = vunpack.c.l.b16 %v5895
        %v6034 = vunpack.c.h.b16 %v5895
        %v6035 = vunpack.c.l.b16 %v5896
        %v6036 = vunpack.c.h.b16 %v5896
        %v6037 = vunpack.c.l.b16 %v5897
        %v6038 = vunpack.c.h.b16 %v5897
        %v6039 = vunpack.c.l.b16 %v5898
        %v6040 = vunpack.c.h.b16 %v5898
        %v6041 = vunpack.c.l.b16 %v5899
        %v6042 = vunpack.c.h.b16 %v5899
        %v6043 = vunpack.c.l.b16 %v5900
        %v6044 = vunpack.c.h.b16 %v5900
        %v6045 = vunpack.c.l.b16 %v5901
        %v6046 = vunpack.c.h.b16 %v5901
        %v6047 = vunpack.c.l.b16 %v5902
        %v6048 = vunpack.c.h.b16 %v5902
        %v6049 = vunpack.c.l.b16 %v5903
        %v6050 = vunpack.c.h.b16 %v5903
        %v6051 = vunpack.c.l.b16 %v5904
        %v6052 = vunpack.c.h.b16 %v5904
        %v6053 = vunpack.c.l.b16 %v5905
        %v6054 = vunpack.c.h.b16 %v5905
        %v6055 = vunpack.c.l.b16 %v5906
        %v6056 = vunpack.c.h.b16 %v5906
        %v6057 = vunpack.c.l.b16 %v5907
        %v6058 = vunpack.c.h.b16 %v5907
        %v6059 = vunpack.c.l.b16 %v5908
        %v6060 = vunpack.c.h.b16 %v5908
        %v6061 = vunpack.c.l.b16 %v5909
        %v6062 = vunpack.c.h.b16 %v5909
        %v6063 = vunpack.c.l.b16 %v5910
        %v6064 = vunpack.c.h.b16 %v5910
        %v6065 = vunpack.c.l.b16 %v5911
        %v6066 = vunpack.c.h.b16 %v5911
        %v6067 = vunpack.c.l.b16 %v5912
        %v6068 = vunpack.c.h.b16 %v5912
        %v6069 = vunpack.c.l.b16 %v5913
        %v6070 = vunpack.c.h.b16 %v5913
        %v6071 = vunpack.c.l.b16 %v5914
        %v6072 = vunpack.c.h.b16 %v5914
        %v6073 = vunpack.c.l.b16 %v5915
        %v6074 = vunpack.c.h.b16 %v5915
        %v6075 = vunpack.c.l.b16 %v5916
        %v6076 = vunpack.c.h.b16 %v5916
        %v6077 = vunpack.c.l.b16 %v5917
        %v6078 = vunpack.c.h.b16 %v5917
        %v6079 = vunpack.c.l.b16 %v5918
        %v6080 = vunpack.c.h.b16 %v5918
        %v6081 = vunpack.c.l.b16 %v5919
        %v6082 = vunpack.c.h.b16 %v5919
        %v6083 = vunpack.c.l.b16 %v5920
        %v6084 = vunpack.c.h.b16 %v5920
        %v6085 = vunpack.c.l.b16 %v5921
        %v6086 = vunpack.c.h.b16 %v5921
        %v6087 = vunpack.c.l.b16 %v5922
        %v6088 = vunpack.c.h.b16 %v5922
        %v6089 = vunpack.c.l.b16 %v5923
        %v6090 = vunpack.c.h.b16 %v5923
        %v6091 = vunpack.c.l.b16 %v5924
        %v6092 = vunpack.c.h.b16 %v5924
        %v6093 = vunpack.c.l.b16 %v5925
        %v6094 = vunpack.c.h.b16 %v5925
        %v6095 = vunpack.c.l.b16 %v5926
        %v6096 = vunpack.c.h.b16 %v5926
        %v6097 = vunpack.c.l.b16 %v5927
        %v6098 = vunpack.c.h.b16 %v5927
        %v6099 = vunpack.c.l.b16 %v5928
        %v6100 = vunpack.c.h.b16 %v5928
        %v6101 = vunpack.c.l.b16 %v5929
        %v6102 = vunpack.c.h.b16 %v5929
        %v6103 = vunpack.c.l.b16 %v5930
        %v6104 = vunpack.c.h.b16 %v5930
        %v6105 = vunpack.c.l.b16 %v5931
        %v6106 = vunpack.c.h.b16 %v5931
        %v6107 = vunpack.c.l.b16 %v5932
        %v6108 = vunpack.c.h.b16 %v5932
        %v6109 = vunpack.c.l.b16 %v5933
        %v6110 = vunpack.c.h.b16 %v5933
        %v6111 = vunpack.c.l.b16 %v5934
        %v6112 = vunpack.c.h.b16 %v5934
        %v6113 = vunpack.c.l.b16 %v5935
        %v6114 = vunpack.c.h.b16 %v5935
        %v6115 = vunpack.c.l.b16 %v5936
        %v6116 = vunpack.c.h.b16 %v5936
        %v6117 = vunpack.c.l.b16 %v5937
        %v6118 = vunpack.c.h.b16 %v5937
        %v6119 = vunpack.c.l.b16 %v5938
        %v6120 = vunpack.c.h.b16 %v5938
        %v6121 = vunpack.c.l.b16 %v5939
        %v6122 = vunpack.c.h.b16 %v5939
        %v6123 = vunpack.c.l.b16 %v5940
        %v6124 = vunpack.c.h.b16 %v5940
        %v6125 = vunpack.c.l.b16 %v5941
        %v6126 = vunpack.c.h.b16 %v5941
        %v6127 = vunpack.c.l.b16 %v5942
        %v6128 = vunpack.c.h.b16 %v5942
        %v6129 = vunpack.c.l.b16 %v5943
        %v6130 = vunpack.c.h.b16 %v5943
        %v6131 = vunpack.c.l.b16 %v5944
        %v6132 = vunpack.c.h.b16 %v5944
        %v6133 = vunpack.c.l.b16 %v5945
        %v6134 = vunpack.c.h.b16 %v5945
        %v6135 = vunpack.c.l.b16 %v5946
        %v6136 = vunpack.c.h.b16 %v5946
        %v6137 = vunpack.c.l.b16 %v5947
        %v6138 = vunpack.c.h.b16 %v5947
        %v6139 = vunpack.c.l.b16 %v5948
        %v6140 = vunpack.c.h.b16 %v5948
        %v6141 = vpack.c.b16 %v6017, %v6013
        %v6142 = vpack.c.b16 %v6018, %v6014
        %v6143 = vpack.c.b16 %v6019, %v6015
        %v6144 = vpack.c.b16 %v6020, %v6016
        %v6145 = vpack.c.b16 %v6025, %v6021
        %v6146 = vpack.c.b16 %v6026, %v6022
        %v6147 = vpack.c.b16 %v6027, %v6023
        %v6148 = vpack.c.b16 %v6028, %v6024
        %v6149 = vpack.c.b16 %v6033, %v6029
        %v6150 = vpack.c.b16 %v6034, %v6030
        %v6151 = vpack.c.b16 %v6035, %v6031
        %v6152 = vpack.c.b16 %v6036, %v6032
        %v6153 = vpack.c.b16 %v6041, %v6037
        %v6154 = vpack.c.b16 %v6042, %v6038
        %v6155 = vpack.c.b16 %v6043, %v6039
        %v6156 = vpack.c.b16 %v6044, %v6040
        %v6157 = vpack.c.b16 %v6049, %v6045
        %v6158 = vpack.c.b16 %v6050, %v6046
        %v6159 = vpack.c.b16 %v6051, %v6047
        %v6160 = vpack.c.b16 %v6052, %v6048
        %v6161 = vpack.c.b16 %v6057, %v6053
        %v6162 = vpack.c.b16 %v6058, %v6054
        %v6163 = vpack.c.b16 %v6059, %v6055
        %v6164 = vpack.c.b16 %v6060, %v6056
        %v6165 = vpack.c.b16 %v6065, %v6061
        %v6166 = vpack.c.b16 %v6066, %v6062
        %v6167 = vpack.c.b16 %v6067, %v6063
        %v6168 = vpack.c.b16 %v6068, %v6064
        %v6169 = vpack.c.b16 %v6073, %v6069
        %v6170 = vpack.c.b16 %v6074, %v6070
        %v6171 = vpack.c.b16 %v6075, %v6071
        %v6172 = vpack.c.b16 %v6076, %v6072
        %v6173 = vpack.c.b16 %v6081, %v6077
        %v6174 = vpack.c.b16 %v6082, %v6078
        %v6175 = vpack.c.b16 %v6083, %v6079
        %v6176 = vpack.c.b16 %v6084, %v6080
        %v6177 = vpack.c.b16 %v6089, %v6085
        %v6178 = vpack.c.b16 %v6090, %v6086
        %v6179 = vpack.c.b16 %v6091, %v6087
        %v6180 = vpack.c.b16 %v6092, %v6088
        %v6181 = vpack.c.b16 %v6097, %v6093
        %v6182 = vpack.c.b16 %v6098, %v6094
        %v6183 = vpack.c.b16 %v6099, %v6095
        %v6184 = vpack.c.b16 %v6100, %v6096
        %v6185 = vpack.c.b16 %v6105, %v6101
        %v6186 = vpack.c.b16 %v6106, %v6102
        %v6187 = vpack.c.b16 %v6107, %v6103
        %v6188 = vpack.c.b16 %v6108, %v6104
        %v6189 = vpack.c.b16 %v6113, %v6109
        %v6190 = vpack.c.b16 %v6114, %v6110
        %v6191 = vpack.c.b16 %v6115, %v6111
        %v6192 = vpack.c.b16 %v6116, %v6112
        %v6193 = vpack.c.b16 %v6121, %v6117
        %v6194 = vpack.c.b16 %v6122, %v6118
        %v6195 = vpack.c.b16 %v6123, %v6119
        %v6196 = vpack.c.b16 %v6124, %v6120
        %v6197 = vpack.c.b16 %v6129, %v6125
        %v6198 = vpack.c.b16 %v6130, %v6126
        %v6199 = vpack.c.b16 %v6131, %v6127
        %v6200 = vpack.c.b16 %v6132, %v6128
        %v6201 = vpack.c.b16 %v6137, %v6133
        %v6202 = vpack.c.b16 %v6138, %v6134
        %v6203 = vpack.c.b16 %v6139, %v6135
        %v6204 = vpack.c.b16 %v6140, %v6136
        %6269 = vmatprep.subr.bf16.mxu0 %v6170
        %6270 = vmatpush1.bf16.msra.mxu0 %v6169
        %6271 = vmatprep.subr.bf16.mxu0 %v6166
        %6272 = vmatpush1.bf16.msra.mxu0 %v6165
        %6273 = vmatprep.subr.bf16.mxu0 %v6162
        %6274 = vmatpush1.bf16.msra.mxu0 %v6161
        %6275 = vmatprep.subr.bf16.mxu0 %v6158
        %6276 = vmatpush1.bf16.msra.mxu0 %v6157
        %6277 = vmatprep.subr.bf16.mxu0 %v6154
        %6278 = vmatpush1.bf16.msra.mxu0 %v6153
        %6279 = vmatprep.subr.bf16.mxu0 %v6150
        %6280 = vmatpush1.bf16.msra.mxu0 %v6149
        %6281 = vmatprep.subr.bf16.mxu0 %v6146
        %6282 = vmatpush1.bf16.msra.mxu0 %v6145
        %6283 = vmatprep.subr.bf16.mxu0 %v6142
        %6284 = vmatpush1.bf16.msra.mxu0 %v6141
        %6285 = vmatprep.subr.bf16.mxu0 %v6202
        %6286 = vmatpush2.bf16.msra.mxu0 %v6201
        %6287 = vmatprep.subr.bf16.mxu0 %v6198
        %6288 = vmatpush2.bf16.msra.mxu0 %v6197
        %6289 = vmatprep.subr.bf16.mxu0 %v6194
        %6290 = vmatpush2.bf16.msra.mxu0 %v6193
        %6291 = vmatprep.subr.bf16.mxu0 %v6190
        %6292 = vmatpush2.bf16.msra.mxu0 %v6189
        %6293 = vmatprep.subr.bf16.mxu0 %v6186
        %6294 = vmatpush2.bf16.msra.mxu0 %v6185
        %6295 = vmatprep.subr.bf16.mxu0 %v6182
        %6296 = vmatpush2.bf16.msra.mxu0 %v6181
        %6297 = vmatprep.subr.bf16.mxu0 %v6178
        %6298 = vmatpush2.bf16.msra.mxu0 %v6177
        %6299 = vmatprep.subr.bf16.mxu0 %v6174
        %6300 = vmatpush2.bf16.msra.mxu0 %v6173
        %6301 = vmatprep.mubr.bf16.mxu0 %v5716
        %6302 = vmatmul.mubr.bf16.gmra.mxu0 %v5715
        %v6303 = vpop.f32.mrf.mxu0
        %v6304 = vadd.f32 0.0, %v6303
        %v6305 = vpop.f32.mrf.mxu0
        %v6306 = vadd.f32 0.0, %v6305
        %v6307 = vpop.f32.mrf.mxu0
        %v6308 = vpop.f32.mrf.mxu0
        %6309 = vdwg.mxu0
        %6310 = vmatprep.subr.bf16.mxu0 %v6172
        %6311 = vmatpush1.bf16.msra.mxu0 %v6171
        %6312 = vmatprep.subr.bf16.mxu0 %v6168
        %6313 = vmatpush1.bf16.msra.mxu0 %v6167
        %6314 = vmatprep.subr.bf16.mxu0 %v6164
        %6315 = vmatpush1.bf16.msra.mxu0 %v6163
        %6316 = vmatprep.subr.bf16.mxu0 %v6160
        %6317 = vmatpush1.bf16.msra.mxu0 %v6159
        %6318 = vmatprep.subr.bf16.mxu0 %v6156
        %6319 = vmatpush1.bf16.msra.mxu0 %v6155
        %6320 = vmatprep.subr.bf16.mxu0 %v6152
        %6321 = vmatpush1.bf16.msra.mxu0 %v6151
        %6322 = vmatprep.subr.bf16.mxu0 %v6148
        %6323 = vmatpush1.bf16.msra.mxu0 %v6147
        %6324 = vmatprep.subr.bf16.mxu0 %v6144
        %6325 = vmatpush1.bf16.msra.mxu0 %v6143
        %6326 = vmatprep.subr.bf16.mxu0 %v6204
        %6327 = vmatpush2.bf16.msra.mxu0 %v6203
        %6328 = vmatprep.subr.bf16.mxu0 %v6200
        %6329 = vmatpush2.bf16.msra.mxu0 %v6199
        %6330 = vmatprep.subr.bf16.mxu0 %v6196
        %6331 = vmatpush2.bf16.msra.mxu0 %v6195
        %6332 = vmatprep.subr.bf16.mxu0 %v6192
        %6333 = vmatpush2.bf16.msra.mxu0 %v6191
        %6334 = vmatprep.subr.bf16.mxu0 %v6188
        %6335 = vmatpush2.bf16.msra.mxu0 %v6187
        %6336 = vmatprep.subr.bf16.mxu0 %v6184
        %6337 = vmatpush2.bf16.msra.mxu0 %v6183
        %6338 = vmatprep.subr.bf16.mxu0 %v6180
        %6339 = vmatpush2.bf16.msra.mxu0 %v6179
        %6340 = vmatprep.subr.bf16.mxu0 %v6176
        %6341 = vmatpush2.bf16.msra.mxu0 %v6175
        %6342 = vmatprep.mubr.bf16.mxu0 %v5716
        %6343 = vmatmul.mubr.bf16.gmra.mxu0 %v5715
        %v6344 = vpop.f32.mrf.mxu0
        %v6345 = vadd.f32 0.0, %v6344
        %v6346 = vpop.f32.mrf.mxu0
        %v6347 = vadd.f32 0.0, %v6346
        %v6348 = vpop.f32.mrf.mxu0
        %v6349 = vpop.f32.mrf.mxu0
        %6350 = vdwg.mxu0
        %v6415 = vunpack.c.l.b16 %v5820
        %v6416 = vunpack.c.h.b16 %v5820
        %v6417 = vunpack.c.l.b16 %v5821
        %v6418 = vunpack.c.h.b16 %v5821
        %v6419 = vunpack.c.l.b16 %v5822
        %v6420 = vunpack.c.h.b16 %v5822
        %v6421 = vunpack.c.l.b16 %v5823
        %v6422 = vunpack.c.h.b16 %v5823
        %v6423 = vunpack.c.l.b16 %v5824
        %v6424 = vunpack.c.h.b16 %v5824
        %v6425 = vunpack.c.l.b16 %v5825
        %v6426 = vunpack.c.h.b16 %v5825
        %v6427 = vunpack.c.l.b16 %v5826
        %v6428 = vunpack.c.h.b16 %v5826
        %v6429 = vunpack.c.l.b16 %v5827
        %v6430 = vunpack.c.h.b16 %v5827
        %v6431 = vunpack.c.l.b16 %v5828
        %v6432 = vunpack.c.h.b16 %v5828
        %v6433 = vunpack.c.l.b16 %v5829
        %v6434 = vunpack.c.h.b16 %v5829
        %v6435 = vunpack.c.l.b16 %v5830
        %v6436 = vunpack.c.h.b16 %v5830
        %v6437 = vunpack.c.l.b16 %v5831
        %v6438 = vunpack.c.h.b16 %v5831
        %v6439 = vunpack.c.l.b16 %v5832
        %v6440 = vunpack.c.h.b16 %v5832
        %v6441 = vunpack.c.l.b16 %v5833
        %v6442 = vunpack.c.h.b16 %v5833
        %v6443 = vunpack.c.l.b16 %v5834
        %v6444 = vunpack.c.h.b16 %v5834
        %v6445 = vunpack.c.l.b16 %v5835
        %v6446 = vunpack.c.h.b16 %v5835
        %v6447 = vunpack.c.l.b16 %v5836
        %v6448 = vunpack.c.h.b16 %v5836
        %v6449 = vunpack.c.l.b16 %v5837
        %v6450 = vunpack.c.h.b16 %v5837
        %v6451 = vunpack.c.l.b16 %v5838
        %v6452 = vunpack.c.h.b16 %v5838
        %v6453 = vunpack.c.l.b16 %v5839
        %v6454 = vunpack.c.h.b16 %v5839
        %v6455 = vunpack.c.l.b16 %v5840
        %v6456 = vunpack.c.h.b16 %v5840
        %v6457 = vunpack.c.l.b16 %v5841
        %v6458 = vunpack.c.h.b16 %v5841
        %v6459 = vunpack.c.l.b16 %v5842
        %v6460 = vunpack.c.h.b16 %v5842
        %v6461 = vunpack.c.l.b16 %v5843
        %v6462 = vunpack.c.h.b16 %v5843
        %v6463 = vunpack.c.l.b16 %v5844
        %v6464 = vunpack.c.h.b16 %v5844
        %v6465 = vunpack.c.l.b16 %v5845
        %v6466 = vunpack.c.h.b16 %v5845
        %v6467 = vunpack.c.l.b16 %v5846
        %v6468 = vunpack.c.h.b16 %v5846
        %v6469 = vunpack.c.l.b16 %v5847
        %v6470 = vunpack.c.h.b16 %v5847
        %v6471 = vunpack.c.l.b16 %v5848
        %v6472 = vunpack.c.h.b16 %v5848
        %v6473 = vunpack.c.l.b16 %v5849
        %v6474 = vunpack.c.h.b16 %v5849
        %v6475 = vunpack.c.l.b16 %v5850
        %v6476 = vunpack.c.h.b16 %v5850
        %v6477 = vunpack.c.l.b16 %v5851
        %v6478 = vunpack.c.h.b16 %v5851
        %v6479 = vunpack.c.l.b16 %v5852
        %v6480 = vunpack.c.h.b16 %v5852
        %v6481 = vunpack.c.l.b16 %v5853
        %v6482 = vunpack.c.h.b16 %v5853
        %v6483 = vunpack.c.l.b16 %v5854
        %v6484 = vunpack.c.h.b16 %v5854
        %v6485 = vunpack.c.l.b16 %v5855
        %v6486 = vunpack.c.h.b16 %v5855
        %v6487 = vunpack.c.l.b16 %v5856
        %v6488 = vunpack.c.h.b16 %v5856
        %v6489 = vunpack.c.l.b16 %v5857
        %v6490 = vunpack.c.h.b16 %v5857
        %v6491 = vunpack.c.l.b16 %v5858
        %v6492 = vunpack.c.h.b16 %v5858
        %v6493 = vunpack.c.l.b16 %v5859
        %v6494 = vunpack.c.h.b16 %v5859
        %v6495 = vunpack.c.l.b16 %v5860
        %v6496 = vunpack.c.h.b16 %v5860
        %v6497 = vunpack.c.l.b16 %v5861
        %v6498 = vunpack.c.h.b16 %v5861
        %v6499 = vunpack.c.l.b16 %v5862
        %v6500 = vunpack.c.h.b16 %v5862
        %v6501 = vunpack.c.l.b16 %v5863
        %v6502 = vunpack.c.h.b16 %v5863
        %v6503 = vunpack.c.l.b16 %v5864
        %v6504 = vunpack.c.h.b16 %v5864
        %v6505 = vunpack.c.l.b16 %v5865
        %v6506 = vunpack.c.h.b16 %v5865
        %v6507 = vunpack.c.l.b16 %v5866
        %v6508 = vunpack.c.h.b16 %v5866
        %v6509 = vunpack.c.l.b16 %v5867
        %v6510 = vunpack.c.h.b16 %v5867
        %v6511 = vunpack.c.l.b16 %v5868
        %v6512 = vunpack.c.h.b16 %v5868
        %v6513 = vunpack.c.l.b16 %v5869
        %v6514 = vunpack.c.h.b16 %v5869
        %v6515 = vunpack.c.l.b16 %v5870
        %v6516 = vunpack.c.h.b16 %v5870
        %v6517 = vunpack.c.l.b16 %v5871
        %v6518 = vunpack.c.h.b16 %v5871
        %v6519 = vunpack.c.l.b16 %v5872
        %v6520 = vunpack.c.h.b16 %v5872
        %v6521 = vunpack.c.l.b16 %v5873
        %v6522 = vunpack.c.h.b16 %v5873
        %v6523 = vunpack.c.l.b16 %v5874
        %v6524 = vunpack.c.h.b16 %v5874
        %v6525 = vunpack.c.l.b16 %v5875
        %v6526 = vunpack.c.h.b16 %v5875
        %v6527 = vunpack.c.l.b16 %v5876
        %v6528 = vunpack.c.h.b16 %v5876
        %v6529 = vunpack.c.l.b16 %v5877
        %v6530 = vunpack.c.h.b16 %v5877
        %v6531 = vunpack.c.l.b16 %v5878
        %v6532 = vunpack.c.h.b16 %v5878
        %v6533 = vunpack.c.l.b16 %v5879
        %v6534 = vunpack.c.h.b16 %v5879
        %v6535 = vunpack.c.l.b16 %v5880
        %v6536 = vunpack.c.h.b16 %v5880
        %v6537 = vunpack.c.l.b16 %v5881
        %v6538 = vunpack.c.h.b16 %v5881
        %v6539 = vunpack.c.l.b16 %v5882
        %v6540 = vunpack.c.h.b16 %v5882
        %v6541 = vunpack.c.l.b16 %v5883
        %v6542 = vunpack.c.h.b16 %v5883
        %v6543 = vpack.c.b16 %v6419, %v6415
        %v6544 = vpack.c.b16 %v6420, %v6416
        %v6545 = vpack.c.b16 %v6421, %v6417
        %v6546 = vpack.c.b16 %v6422, %v6418
        %v6547 = vpack.c.b16 %v6427, %v6423
        %v6548 = vpack.c.b16 %v6428, %v6424
        %v6549 = vpack.c.b16 %v6429, %v6425
        %v6550 = vpack.c.b16 %v6430, %v6426
        %v6551 = vpack.c.b16 %v6435, %v6431
        %v6552 = vpack.c.b16 %v6436, %v6432
        %v6553 = vpack.c.b16 %v6437, %v6433
        %v6554 = vpack.c.b16 %v6438, %v6434
        %v6555 = vpack.c.b16 %v6443, %v6439
        %v6556 = vpack.c.b16 %v6444, %v6440
        %v6557 = vpack.c.b16 %v6445, %v6441
        %v6558 = vpack.c.b16 %v6446, %v6442
        %v6559 = vpack.c.b16 %v6451, %v6447
        %v6560 = vpack.c.b16 %v6452, %v6448
        %v6561 = vpack.c.b16 %v6453, %v6449
        %v6562 = vpack.c.b16 %v6454, %v6450
        %v6563 = vpack.c.b16 %v6459, %v6455
        %v6564 = vpack.c.b16 %v6460, %v6456
        %v6565 = vpack.c.b16 %v6461, %v6457
        %v6566 = vpack.c.b16 %v6462, %v6458
        %v6567 = vpack.c.b16 %v6467, %v6463
        %v6568 = vpack.c.b16 %v6468, %v6464
        %v6569 = vpack.c.b16 %v6469, %v6465
        %v6570 = vpack.c.b16 %v6470, %v6466
        %v6571 = vpack.c.b16 %v6475, %v6471
        %v6572 = vpack.c.b16 %v6476, %v6472
        %v6573 = vpack.c.b16 %v6477, %v6473
        %v6574 = vpack.c.b16 %v6478, %v6474
        %v6575 = vpack.c.b16 %v6483, %v6479
        %v6576 = vpack.c.b16 %v6484, %v6480
        %v6577 = vpack.c.b16 %v6485, %v6481
        %v6578 = vpack.c.b16 %v6486, %v6482
        %v6579 = vpack.c.b16 %v6491, %v6487
        %v6580 = vpack.c.b16 %v6492, %v6488
        %v6581 = vpack.c.b16 %v6493, %v6489
        %v6582 = vpack.c.b16 %v6494, %v6490
        %v6583 = vpack.c.b16 %v6499, %v6495
        %v6584 = vpack.c.b16 %v6500, %v6496
        %v6585 = vpack.c.b16 %v6501, %v6497
        %v6586 = vpack.c.b16 %v6502, %v6498
        %v6587 = vpack.c.b16 %v6507, %v6503
        %v6588 = vpack.c.b16 %v6508, %v6504
        %v6589 = vpack.c.b16 %v6509, %v6505
        %v6590 = vpack.c.b16 %v6510, %v6506
        %v6591 = vpack.c.b16 %v6515, %v6511
        %v6592 = vpack.c.b16 %v6516, %v6512
        %v6593 = vpack.c.b16 %v6517, %v6513
        %v6594 = vpack.c.b16 %v6518, %v6514
        %v6595 = vpack.c.b16 %v6523, %v6519
        %v6596 = vpack.c.b16 %v6524, %v6520
        %v6597 = vpack.c.b16 %v6525, %v6521
        %v6598 = vpack.c.b16 %v6526, %v6522
        %v6599 = vpack.c.b16 %v6531, %v6527
        %v6600 = vpack.c.b16 %v6532, %v6528
        %v6601 = vpack.c.b16 %v6533, %v6529
        %v6602 = vpack.c.b16 %v6534, %v6530
        %v6603 = vpack.c.b16 %v6539, %v6535
        %v6604 = vpack.c.b16 %v6540, %v6536
        %v6605 = vpack.c.b16 %v6541, %v6537
        %v6606 = vpack.c.b16 %v6542, %v6538
        %6671 = vmatprep.subr.bf16.mxu0 %v6572
        %6672 = vmatpush1.bf16.msra.mxu0 %v6571
        %6673 = vmatprep.subr.bf16.mxu0 %v6568
        %6674 = vmatpush1.bf16.msra.mxu0 %v6567
        %6675 = vmatprep.subr.bf16.mxu0 %v6564
        %6676 = vmatpush1.bf16.msra.mxu0 %v6563
        %6677 = vmatprep.subr.bf16.mxu0 %v6560
        %6678 = vmatpush1.bf16.msra.mxu0 %v6559
        %6679 = vmatprep.subr.bf16.mxu0 %v6556
        %6680 = vmatpush1.bf16.msra.mxu0 %v6555
        %6681 = vmatprep.subr.bf16.mxu0 %v6552
        %6682 = vmatpush1.bf16.msra.mxu0 %v6551
        %6683 = vmatprep.subr.bf16.mxu0 %v6548
        %6684 = vmatpush1.bf16.msra.mxu0 %v6547
        %6685 = vmatprep.subr.bf16.mxu0 %v6544
        %6686 = vmatpush1.bf16.msra.mxu0 %v6543
        %6687 = vmatprep.subr.bf16.mxu0 %v6604
        %6688 = vmatpush2.bf16.msra.mxu0 %v6603
        %6689 = vmatprep.subr.bf16.mxu0 %v6600
        %6690 = vmatpush2.bf16.msra.mxu0 %v6599
        %6691 = vmatprep.subr.bf16.mxu0 %v6596
        %6692 = vmatpush2.bf16.msra.mxu0 %v6595
        %6693 = vmatprep.subr.bf16.mxu0 %v6592
        %6694 = vmatpush2.bf16.msra.mxu0 %v6591
        %6695 = vmatprep.subr.bf16.mxu0 %v6588
        %6696 = vmatpush2.bf16.msra.mxu0 %v6587
        %6697 = vmatprep.subr.bf16.mxu0 %v6584
        %6698 = vmatpush2.bf16.msra.mxu0 %v6583
        %6699 = vmatprep.subr.bf16.mxu0 %v6580
        %6700 = vmatpush2.bf16.msra.mxu0 %v6579
        %6701 = vmatprep.subr.bf16.mxu0 %v6576
        %6702 = vmatpush2.bf16.msra.mxu0 %v6575
        %6703 = vmatprep.mubr.bf16.mxu0 %v5771
        %6704 = vmatmul.mubr.bf16.gmra.mxu0 %v5770
        %v6705 = vpop.f32.mrf.mxu0
        %v6706 = vadd.f32 %v6304, %v6705
        %v6707 = vpop.f32.mrf.mxu0
        %v6708 = vadd.f32 %v6306, %v6707
        %v6709 = vpop.f32.mrf.mxu0
        %v6710 = vpop.f32.mrf.mxu0
        %6711 = vdwg.mxu0
        %6712 = vmatprep.subr.bf16.mxu0 %v6574
        %6713 = vmatpush1.bf16.msra.mxu0 %v6573
        %6714 = vmatprep.subr.bf16.mxu0 %v6570
        %6715 = vmatpush1.bf16.msra.mxu0 %v6569
        %6716 = vmatprep.subr.bf16.mxu0 %v6566
        %6717 = vmatpush1.bf16.msra.mxu0 %v6565
        %6718 = vmatprep.subr.bf16.mxu0 %v6562
        %6719 = vmatpush1.bf16.msra.mxu0 %v6561
        %6720 = vmatprep.subr.bf16.mxu0 %v6558
        %6721 = vmatpush1.bf16.msra.mxu0 %v6557
        %6722 = vmatprep.subr.bf16.mxu0 %v6554
        %6723 = vmatpush1.bf16.msra.mxu0 %v6553
        %6724 = vmatprep.subr.bf16.mxu0 %v6550
        %6725 = vmatpush1.bf16.msra.mxu0 %v6549
        %6726 = vmatprep.subr.bf16.mxu0 %v6546
        %6727 = vmatpush1.bf16.msra.mxu0 %v6545
        %6728 = vmatprep.subr.bf16.mxu0 %v6606
        %6729 = vmatpush2.bf16.msra.mxu0 %v6605
        %6730 = vmatprep.subr.bf16.mxu0 %v6602
        %6731 = vmatpush2.bf16.msra.mxu0 %v6601
        %6732 = vmatprep.subr.bf16.mxu0 %v6598
        %6733 = vmatpush2.bf16.msra.mxu0 %v6597
        %6734 = vmatprep.subr.bf16.mxu0 %v6594
        %6735 = vmatpush2.bf16.msra.mxu0 %v6593
        %6736 = vmatprep.subr.bf16.mxu0 %v6590
        %6737 = vmatpush2.bf16.msra.mxu0 %v6589
        %6738 = vmatprep.subr.bf16.mxu0 %v6586
        %6739 = vmatpush2.bf16.msra.mxu0 %v6585
        %6740 = vmatprep.subr.bf16.mxu0 %v6582
        %6741 = vmatpush2.bf16.msra.mxu0 %v6581
        %6742 = vmatprep.subr.bf16.mxu0 %v6578
        %6743 = vmatpush2.bf16.msra.mxu0 %v6577
        %6744 = vmatprep.mubr.bf16.mxu0 %v5771
        %6745 = vmatmul.mubr.bf16.gmra.mxu0 %v5770
        %v6746 = vpop.f32.mrf.mxu0
        %v6747 = vadd.f32 %v6345, %v6746
        %v6748 = vpop.f32.mrf.mxu0
        %v6749 = vadd.f32 %v6347, %v6748
        %v6750 = vpop.f32.mrf.mxu0
        %v6751 = vpop.f32.mrf.mxu0
        %6752 = vdwg.mxu0
        %s6753 = scalar_lea.vmem [#allocation13], 1024
        %v6754 = vld [vmem:[%s6753] sm:$0xff]
        %v6755 = vld [vmem:[%s6753 + $0x8] sm:$0xff]
        %v6756 = vld [vmem:[%s6753 + $0x10] sm:$0xff]
        %v6757 = vld [vmem:[%s6753 + $0x18] sm:$0xff]
        %v6758 = vld [vmem:[%s6753 + $0x20] sm:$0xff]
        %v6759 = vld [vmem:[%s6753 + $0x28] sm:$0xff]
        %v6760 = vld [vmem:[%s6753 + $0x30] sm:$0xff]
        %v6761 = vld [vmem:[%s6753 + $0x38] sm:$0xff]
        %v6762 = vld [vmem:[%s6753 + $0x40] sm:$0xff]
        %v6763 = vld [vmem:[%s6753 + $0x48] sm:$0xff]
        %v6764 = vld [vmem:[%s6753 + $0x50] sm:$0xff]
        %v6765 = vld [vmem:[%s6753 + $0x58] sm:$0xff]
        %v6766 = vld [vmem:[%s6753 + $0x60] sm:$0xff]
        %v6767 = vld [vmem:[%s6753 + $0x68] sm:$0xff]
        %v6768 = vld [vmem:[%s6753 + $0x70] sm:$0xff]
        %v6769 = vld [vmem:[%s6753 + $0x78] sm:$0xff]
        %v6770 = vld [vmem:[%s6753 + $0x80] sm:$0xff]
        %v6771 = vld [vmem:[%s6753 + $0x88] sm:$0xff]
        %v6772 = vld [vmem:[%s6753 + $0x90] sm:$0xff]
        %v6773 = vld [vmem:[%s6753 + $0x98] sm:$0xff]
        %v6774 = vld [vmem:[%s6753 + $0xa0] sm:$0xff]
        %v6775 = vld [vmem:[%s6753 + $0xa8] sm:$0xff]
        %v6776 = vld [vmem:[%s6753 + $0xb0] sm:$0xff]
        %v6777 = vld [vmem:[%s6753 + $0xb8] sm:$0xff]
        %v6778 = vld [vmem:[%s6753 + $0xc0] sm:$0xff]
        %v6779 = vld [vmem:[%s6753 + $0xc8] sm:$0xff]
        %v6780 = vld [vmem:[%s6753 + $0xd0] sm:$0xff]
        %v6781 = vld [vmem:[%s6753 + $0xd8] sm:$0xff]
        %v6782 = vld [vmem:[%s6753 + $0xe0] sm:$0xff]
        %v6783 = vld [vmem:[%s6753 + $0xe8] sm:$0xff]
        %v6784 = vld [vmem:[%s6753 + $0xf0] sm:$0xff]
        %v6785 = vld [vmem:[%s6753 + $0xf8] sm:$0xff]
        %v6786 = vld [vmem:[%s6753 + $0x100] sm:$0xff]
        %v6787 = vld [vmem:[%s6753 + $0x108] sm:$0xff]
        %v6788 = vld [vmem:[%s6753 + $0x110] sm:$0xff]
        %v6789 = vld [vmem:[%s6753 + $0x118] sm:$0xff]
        %v6790 = vld [vmem:[%s6753 + $0x120] sm:$0xff]
        %v6791 = vld [vmem:[%s6753 + $0x128] sm:$0xff]
        %v6792 = vld [vmem:[%s6753 + $0x130] sm:$0xff]
        %v6793 = vld [vmem:[%s6753 + $0x138] sm:$0xff]
        %v6794 = vld [vmem:[%s6753 + $0x140] sm:$0xff]
        %v6795 = vld [vmem:[%s6753 + $0x148] sm:$0xff]
        %v6796 = vld [vmem:[%s6753 + $0x150] sm:$0xff]
        %v6797 = vld [vmem:[%s6753 + $0x158] sm:$0xff]
        %v6798 = vld [vmem:[%s6753 + $0x160] sm:$0xff]
        %v6799 = vld [vmem:[%s6753 + $0x168] sm:$0xff]
        %v6800 = vld [vmem:[%s6753 + $0x170] sm:$0xff]
        %v6801 = vld [vmem:[%s6753 + $0x178] sm:$0xff]
        %v6802 = vld [vmem:[%s6753 + $0x180] sm:$0xff]
        %v6803 = vld [vmem:[%s6753 + $0x188] sm:$0xff]
        %v6804 = vld [vmem:[%s6753 + $0x190] sm:$0xff]
        %v6805 = vld [vmem:[%s6753 + $0x198] sm:$0xff]
        %v6806 = vld [vmem:[%s6753 + $0x1a0] sm:$0xff]
        %v6807 = vld [vmem:[%s6753 + $0x1a8] sm:$0xff]
        %v6808 = vld [vmem:[%s6753 + $0x1b0] sm:$0xff]
        %v6809 = vld [vmem:[%s6753 + $0x1b8] sm:$0xff]
        %v6810 = vld [vmem:[%s6753 + $0x1c0] sm:$0xff]
        %v6811 = vld [vmem:[%s6753 + $0x1c8] sm:$0xff]
        %v6812 = vld [vmem:[%s6753 + $0x1d0] sm:$0xff]
        %v6813 = vld [vmem:[%s6753 + $0x1d8] sm:$0xff]
        %v6814 = vld [vmem:[%s6753 + $0x1e0] sm:$0xff]
        %v6815 = vld [vmem:[%s6753 + $0x1e8] sm:$0xff]
        %v6816 = vld [vmem:[%s6753 + $0x1f0] sm:$0xff]
        %v6817 = vld [vmem:[%s6753 + $0x1f8] sm:$0xff]
        %v6882 = vunpack.c.l.b16 %v6754
        %v6883 = vunpack.c.h.b16 %v6754
        %v6884 = vunpack.c.l.b16 %v6755
        %v6885 = vunpack.c.h.b16 %v6755
        %v6886 = vunpack.c.l.b16 %v6756
        %v6887 = vunpack.c.h.b16 %v6756
        %v6888 = vunpack.c.l.b16 %v6757
        %v6889 = vunpack.c.h.b16 %v6757
        %v6890 = vunpack.c.l.b16 %v6758
        %v6891 = vunpack.c.h.b16 %v6758
        %v6892 = vunpack.c.l.b16 %v6759
        %v6893 = vunpack.c.h.b16 %v6759
        %v6894 = vunpack.c.l.b16 %v6760
        %v6895 = vunpack.c.h.b16 %v6760
        %v6896 = vunpack.c.l.b16 %v6761
        %v6897 = vunpack.c.h.b16 %v6761
        %v6898 = vunpack.c.l.b16 %v6762
        %v6899 = vunpack.c.h.b16 %v6762
        %v6900 = vunpack.c.l.b16 %v6763
        %v6901 = vunpack.c.h.b16 %v6763
        %v6902 = vunpack.c.l.b16 %v6764
        %v6903 = vunpack.c.h.b16 %v6764
        %v6904 = vunpack.c.l.b16 %v6765
        %v6905 = vunpack.c.h.b16 %v6765
        %v6906 = vunpack.c.l.b16 %v6766
        %v6907 = vunpack.c.h.b16 %v6766
        %v6908 = vunpack.c.l.b16 %v6767
        %v6909 = vunpack.c.h.b16 %v6767
        %v6910 = vunpack.c.l.b16 %v6768
        %v6911 = vunpack.c.h.b16 %v6768
        %v6912 = vunpack.c.l.b16 %v6769
        %v6913 = vunpack.c.h.b16 %v6769
        %v6914 = vunpack.c.l.b16 %v6770
        %v6915 = vunpack.c.h.b16 %v6770
        %v6916 = vunpack.c.l.b16 %v6771
        %v6917 = vunpack.c.h.b16 %v6771
        %v6918 = vunpack.c.l.b16 %v6772
        %v6919 = vunpack.c.h.b16 %v6772
        %v6920 = vunpack.c.l.b16 %v6773
        %v6921 = vunpack.c.h.b16 %v6773
        %v6922 = vunpack.c.l.b16 %v6774
        %v6923 = vunpack.c.h.b16 %v6774
        %v6924 = vunpack.c.l.b16 %v6775
        %v6925 = vunpack.c.h.b16 %v6775
        %v6926 = vunpack.c.l.b16 %v6776
        %v6927 = vunpack.c.h.b16 %v6776
        %v6928 = vunpack.c.l.b16 %v6777
        %v6929 = vunpack.c.h.b16 %v6777
        %v6930 = vunpack.c.l.b16 %v6778
        %v6931 = vunpack.c.h.b16 %v6778
        %v6932 = vunpack.c.l.b16 %v6779
        %v6933 = vunpack.c.h.b16 %v6779
        %v6934 = vunpack.c.l.b16 %v6780
        %v6935 = vunpack.c.h.b16 %v6780
        %v6936 = vunpack.c.l.b16 %v6781
        %v6937 = vunpack.c.h.b16 %v6781
        %v6938 = vunpack.c.l.b16 %v6782
        %v6939 = vunpack.c.h.b16 %v6782
        %v6940 = vunpack.c.l.b16 %v6783
        %v6941 = vunpack.c.h.b16 %v6783
        %v6942 = vunpack.c.l.b16 %v6784
        %v6943 = vunpack.c.h.b16 %v6784
        %v6944 = vunpack.c.l.b16 %v6785
        %v6945 = vunpack.c.h.b16 %v6785
        %v6946 = vunpack.c.l.b16 %v6786
        %v6947 = vunpack.c.h.b16 %v6786
        %v6948 = vunpack.c.l.b16 %v6787
        %v6949 = vunpack.c.h.b16 %v6787
        %v6950 = vunpack.c.l.b16 %v6788
        %v6951 = vunpack.c.h.b16 %v6788
        %v6952 = vunpack.c.l.b16 %v6789
        %v6953 = vunpack.c.h.b16 %v6789
        %v6954 = vunpack.c.l.b16 %v6790
        %v6955 = vunpack.c.h.b16 %v6790
        %v6956 = vunpack.c.l.b16 %v6791
        %v6957 = vunpack.c.h.b16 %v6791
        %v6958 = vunpack.c.l.b16 %v6792
        %v6959 = vunpack.c.h.b16 %v6792
        %v6960 = vunpack.c.l.b16 %v6793
        %v6961 = vunpack.c.h.b16 %v6793
        %v6962 = vunpack.c.l.b16 %v6794
        %v6963 = vunpack.c.h.b16 %v6794
        %v6964 = vunpack.c.l.b16 %v6795
        %v6965 = vunpack.c.h.b16 %v6795
        %v6966 = vunpack.c.l.b16 %v6796
        %v6967 = vunpack.c.h.b16 %v6796
        %v6968 = vunpack.c.l.b16 %v6797
        %v6969 = vunpack.c.h.b16 %v6797
        %v6970 = vunpack.c.l.b16 %v6798
        %v6971 = vunpack.c.h.b16 %v6798
        %v6972 = vunpack.c.l.b16 %v6799
        %v6973 = vunpack.c.h.b16 %v6799
        %v6974 = vunpack.c.l.b16 %v6800
        %v6975 = vunpack.c.h.b16 %v6800
        %v6976 = vunpack.c.l.b16 %v6801
        %v6977 = vunpack.c.h.b16 %v6801
        %v6978 = vunpack.c.l.b16 %v6802
        %v6979 = vunpack.c.h.b16 %v6802
        %v6980 = vunpack.c.l.b16 %v6803
        %v6981 = vunpack.c.h.b16 %v6803
        %v6982 = vunpack.c.l.b16 %v6804
        %v6983 = vunpack.c.h.b16 %v6804
        %v6984 = vunpack.c.l.b16 %v6805
        %v6985 = vunpack.c.h.b16 %v6805
        %v6986 = vunpack.c.l.b16 %v6806
        %v6987 = vunpack.c.h.b16 %v6806
        %v6988 = vunpack.c.l.b16 %v6807
        %v6989 = vunpack.c.h.b16 %v6807
        %v6990 = vunpack.c.l.b16 %v6808
        %v6991 = vunpack.c.h.b16 %v6808
        %v6992 = vunpack.c.l.b16 %v6809
        %v6993 = vunpack.c.h.b16 %v6809
        %v6994 = vunpack.c.l.b16 %v6810
        %v6995 = vunpack.c.h.b16 %v6810
        %v6996 = vunpack.c.l.b16 %v6811
        %v6997 = vunpack.c.h.b16 %v6811
        %v6998 = vunpack.c.l.b16 %v6812
        %v6999 = vunpack.c.h.b16 %v6812
        %v7000 = vunpack.c.l.b16 %v6813
        %v7001 = vunpack.c.h.b16 %v6813
        %v7002 = vunpack.c.l.b16 %v6814
        %v7003 = vunpack.c.h.b16 %v6814
        %v7004 = vunpack.c.l.b16 %v6815
        %v7005 = vunpack.c.h.b16 %v6815
        %v7006 = vunpack.c.l.b16 %v6816
        %v7007 = vunpack.c.h.b16 %v6816
        %v7008 = vunpack.c.l.b16 %v6817
        %v7009 = vunpack.c.h.b16 %v6817
        %v7010 = vpack.c.b16 %v6886, %v6882
        %v7011 = vpack.c.b16 %v6887, %v6883
        %v7012 = vpack.c.b16 %v6888, %v6884
        %v7013 = vpack.c.b16 %v6889, %v6885
        %v7014 = vpack.c.b16 %v6894, %v6890
        %v7015 = vpack.c.b16 %v6895, %v6891
        %v7016 = vpack.c.b16 %v6896, %v6892
        %v7017 = vpack.c.b16 %v6897, %v6893
        %v7018 = vpack.c.b16 %v6902, %v6898
        %v7019 = vpack.c.b16 %v6903, %v6899
        %v7020 = vpack.c.b16 %v6904, %v6900
        %v7021 = vpack.c.b16 %v6905, %v6901
        %v7022 = vpack.c.b16 %v6910, %v6906
        %v7023 = vpack.c.b16 %v6911, %v6907
        %v7024 = vpack.c.b16 %v6912, %v6908
        %v7025 = vpack.c.b16 %v6913, %v6909
        %v7026 = vpack.c.b16 %v6918, %v6914
        %v7027 = vpack.c.b16 %v6919, %v6915
        %v7028 = vpack.c.b16 %v6920, %v6916
        %v7029 = vpack.c.b16 %v6921, %v6917
        %v7030 = vpack.c.b16 %v6926, %v6922
        %v7031 = vpack.c.b16 %v6927, %v6923
        %v7032 = vpack.c.b16 %v6928, %v6924
        %v7033 = vpack.c.b16 %v6929, %v6925
        %v7034 = vpack.c.b16 %v6934, %v6930
        %v7035 = vpack.c.b16 %v6935, %v6931
        %v7036 = vpack.c.b16 %v6936, %v6932
        %v7037 = vpack.c.b16 %v6937, %v6933
        %v7038 = vpack.c.b16 %v6942, %v6938
        %v7039 = vpack.c.b16 %v6943, %v6939
        %v7040 = vpack.c.b16 %v6944, %v6940
        %v7041 = vpack.c.b16 %v6945, %v6941
        %v7042 = vpack.c.b16 %v6950, %v6946
        %v7043 = vpack.c.b16 %v6951, %v6947
        %v7044 = vpack.c.b16 %v6952, %v6948
        %v7045 = vpack.c.b16 %v6953, %v6949
        %v7046 = vpack.c.b16 %v6958, %v6954
        %v7047 = vpack.c.b16 %v6959, %v6955
        %v7048 = vpack.c.b16 %v6960, %v6956
        %v7049 = vpack.c.b16 %v6961, %v6957
        %v7050 = vpack.c.b16 %v6966, %v6962
        %v7051 = vpack.c.b16 %v6967, %v6963
        %v7052 = vpack.c.b16 %v6968, %v6964
        %v7053 = vpack.c.b16 %v6969, %v6965
        %v7054 = vpack.c.b16 %v6974, %v6970
        %v7055 = vpack.c.b16 %v6975, %v6971
        %v7056 = vpack.c.b16 %v6976, %v6972
        %v7057 = vpack.c.b16 %v6977, %v6973
        %v7058 = vpack.c.b16 %v6982, %v6978
        %v7059 = vpack.c.b16 %v6983, %v6979
        %v7060 = vpack.c.b16 %v6984, %v6980
        %v7061 = vpack.c.b16 %v6985, %v6981
        %v7062 = vpack.c.b16 %v6990, %v6986
        %v7063 = vpack.c.b16 %v6991, %v6987
        %v7064 = vpack.c.b16 %v6992, %v6988
        %v7065 = vpack.c.b16 %v6993, %v6989
        %v7066 = vpack.c.b16 %v6998, %v6994
        %v7067 = vpack.c.b16 %v6999, %v6995
        %v7068 = vpack.c.b16 %v7000, %v6996
        %v7069 = vpack.c.b16 %v7001, %v6997
        %v7070 = vpack.c.b16 %v7006, %v7002
        %v7071 = vpack.c.b16 %v7007, %v7003
        %v7072 = vpack.c.b16 %v7008, %v7004
        %v7073 = vpack.c.b16 %v7009, %v7005
        %7138 = vmatprep.subr.bf16.mxu0 %v7039
        %7139 = vmatpush1.bf16.msra.mxu0 %v7038
        %7140 = vmatprep.subr.bf16.mxu0 %v7035
        %7141 = vmatpush1.bf16.msra.mxu0 %v7034
        %7142 = vmatprep.subr.bf16.mxu0 %v7031
        %7143 = vmatpush1.bf16.msra.mxu0 %v7030
        %7144 = vmatprep.subr.bf16.mxu0 %v7027
        %7145 = vmatpush1.bf16.msra.mxu0 %v7026
        %7146 = vmatprep.subr.bf16.mxu0 %v7023
        %7147 = vmatpush1.bf16.msra.mxu0 %v7022
        %7148 = vmatprep.subr.bf16.mxu0 %v7019
        %7149 = vmatpush1.bf16.msra.mxu0 %v7018
        %7150 = vmatprep.subr.bf16.mxu0 %v7015
        %7151 = vmatpush1.bf16.msra.mxu0 %v7014
        %7152 = vmatprep.subr.bf16.mxu0 %v7011
        %7153 = vmatpush1.bf16.msra.mxu0 %v7010
        %7154 = vmatprep.subr.bf16.mxu0 %v7071
        %7155 = vmatpush2.bf16.msra.mxu0 %v7070
        %7156 = vmatprep.subr.bf16.mxu0 %v7067
        %7157 = vmatpush2.bf16.msra.mxu0 %v7066
        %7158 = vmatprep.subr.bf16.mxu0 %v7063
        %7159 = vmatpush2.bf16.msra.mxu0 %v7062
        %7160 = vmatprep.subr.bf16.mxu0 %v7059
        %7161 = vmatpush2.bf16.msra.mxu0 %v7058
        %7162 = vmatprep.subr.bf16.mxu0 %v7055
        %7163 = vmatpush2.bf16.msra.mxu0 %v7054
        %7164 = vmatprep.subr.bf16.mxu0 %v7051
        %7165 = vmatpush2.bf16.msra.mxu0 %v7050
        %7166 = vmatprep.subr.bf16.mxu0 %v7047
        %7167 = vmatpush2.bf16.msra.mxu0 %v7046
        %7168 = vmatprep.subr.bf16.mxu0 %v7043
        %7169 = vmatpush2.bf16.msra.mxu0 %v7042
        %7170 = vmatprep.mubr.bf16.mxu0 %v5819
        %7171 = vmatmul.mubr.bf16.gmra.mxu0 %v5818
        %v7172 = vpop.f32.mrf.mxu0
        %v7173 = vadd.f32 0.0, %v7172
        %v7174 = vpop.f32.mrf.mxu0
        %v7175 = vadd.f32 0.0, %v7174
        %v7176 = vpop.f32.mrf.mxu0
        %v7177 = vpop.f32.mrf.mxu0
        %7178 = vdwg.mxu0
        %7179 = vmatprep.subr.bf16.mxu0 %v7041
        %7180 = vmatpush1.bf16.msra.mxu0 %v7040
        %7181 = vmatprep.subr.bf16.mxu0 %v7037
        %7182 = vmatpush1.bf16.msra.mxu0 %v7036
        %7183 = vmatprep.subr.bf16.mxu0 %v7033
        %7184 = vmatpush1.bf16.msra.mxu0 %v7032
        %7185 = vmatprep.subr.bf16.mxu0 %v7029
        %7186 = vmatpush1.bf16.msra.mxu0 %v7028
        %7187 = vmatprep.subr.bf16.mxu0 %v7025
        %7188 = vmatpush1.bf16.msra.mxu0 %v7024
        %7189 = vmatprep.subr.bf16.mxu0 %v7021
        %7190 = vmatpush1.bf16.msra.mxu0 %v7020
        %7191 = vmatprep.subr.bf16.mxu0 %v7017
        %7192 = vmatpush1.bf16.msra.mxu0 %v7016
        %7193 = vmatprep.subr.bf16.mxu0 %v7013
        %7194 = vmatpush1.bf16.msra.mxu0 %v7012
        %7195 = vmatprep.subr.bf16.mxu0 %v7073
        %7196 = vmatpush2.bf16.msra.mxu0 %v7072
        %7197 = vmatprep.subr.bf16.mxu0 %v7069
        %7198 = vmatpush2.bf16.msra.mxu0 %v7068
        %7199 = vmatprep.subr.bf16.mxu0 %v7065
        %7200 = vmatpush2.bf16.msra.mxu0 %v7064
        %7201 = vmatprep.subr.bf16.mxu0 %v7061
        %7202 = vmatpush2.bf16.msra.mxu0 %v7060
        %7203 = vmatprep.subr.bf16.mxu0 %v7057
        %7204 = vmatpush2.bf16.msra.mxu0 %v7056
        %7205 = vmatprep.subr.bf16.mxu0 %v7053
        %7206 = vmatpush2.bf16.msra.mxu0 %v7052
        %7207 = vmatprep.subr.bf16.mxu0 %v7049
        %7208 = vmatpush2.bf16.msra.mxu0 %v7048
        %7209 = vmatprep.subr.bf16.mxu0 %v7045
        %7210 = vmatpush2.bf16.msra.mxu0 %v7044
        %7211 = vmatprep.mubr.bf16.mxu0 %v5819
        %7212 = vmatmul.mubr.bf16.gmra.mxu0 %v5818
        %v7213 = vpop.f32.mrf.mxu0
        %v7214 = vadd.f32 0.0, %v7213
        %v7215 = vpop.f32.mrf.mxu0
        %v7216 = vadd.f32 0.0, %v7215
        %v7217 = vpop.f32.mrf.mxu0
        %v7218 = vpop.f32.mrf.mxu0
        %7219 = vdwg.mxu0
        %v7220 = vadd.f32 %v6706, %v7173
        %v7221 = vadd.f32 %v6708, %v7175
        %v7222 = vadd.f32 %v6747, %v7214
        %v7223 = vadd.f32 %v6749, %v7216
        %v7224 = vld [vmem:[#allocation15] sm:$0xf]
        %v7226 = vlaneseq
        %v7227 = vshrl.u32 %v7226, 7
        %v7228 = vsub.s32 0, %v7227
        %v7229 = vrot.slane %v7224, %v7228
        %v7230 = vlaneseq
        %v7231 = vshrl.u32 %v7230, 7
        %v7232 = vsub.s32 1, %v7231
        %v7233 = vrot.slane %v7224, %v7232
        %v7234 = vlaneseq
        %v7235 = vshrl.u32 %v7234, 7
        %v7236 = vsub.s32 2, %v7235
        %v7237 = vrot.slane %v7224, %v7236
        %v7238 = vlaneseq
        %v7239 = vshrl.u32 %v7238, 7
        %v7240 = vsub.s32 3, %v7239
        %v7241 = vrot.slane %v7224, %v7240
        %v7246 = vadd.f32 %v7220, %v7229
        %v7247 = vadd.f32 %v7221, %v7233
        %v7248 = vadd.f32 %v7222, %v7237
        %v7249 = vadd.f32 %v7223, %v7241
        %v7250 = vmax.f32 %v7246, 0.0
        %v7251 = vmax.f32 %v7247, 0.0
        %v7252 = vmax.f32 %v7248, 0.0
        %v7253 = vmax.f32 %v7249, 0.0
        %v7254 = vpack.c.bf16 %v7250, %v7250
        %v7255 = vpack.c.bf16 %v7251, %v7251
        %v7256 = vpack.c.bf16 %v7252, %v7252
        %v7257 = vpack.c.bf16 %v7253, %v7253
        %v7258 = vld [vmem:[#allocation16] sm:$0x3]
        %v7260 = vsel %vm5718, %v7258, 0
        %v7263 = vsel %vm5722, %v7254, 0
        %v7266 = vsel %vm5722, %v7255, 0
        %v7269 = vsel %vm5722, %v7256, 0
        %v7272 = vsel %vm5722, %v7257, 0
        %7274 = vmatprep.subr.bf16.mxu0 0
        %7275 = vmatpush1.bf16.msra.mxu0 0
        %7276 = vmatprep.subr.bf16.mxu0 0
        %7277 = vmatpush1.bf16.msra.mxu0 0
        %7278 = vmatprep.subr.bf16.mxu0 0
        %7279 = vmatpush1.bf16.msra.mxu0 0
        %7280 = vmatprep.subr.bf16.mxu0 0
        %7281 = vmatpush1.bf16.msra.mxu0 0
        %7282 = vmatprep.subr.bf16.mxu0 0
        %7283 = vmatpush1.bf16.msra.mxu0 0
        %7284 = vmatprep.subr.bf16.mxu0 0
        %7285 = vmatpush1.bf16.msra.mxu0 0
        %7286 = vmatprep.subr.bf16.mxu0 0
        %7287 = vmatpush1.bf16.msra.mxu0 0
        %7288 = vmatprep.subr.bf16.mxu0 %v7266
        %7289 = vmatpush1.bf16.msra.mxu0 %v7263
        %7290 = vmatprep.subr.bf16.mxu0 0
        %7291 = vmatpush2.bf16.msra.mxu0 0
        %7292 = vmatprep.subr.bf16.mxu0 0
        %7293 = vmatpush2.bf16.msra.mxu0 0
        %7294 = vmatprep.subr.bf16.mxu0 0
        %7295 = vmatpush2.bf16.msra.mxu0 0
        %7296 = vmatprep.subr.bf16.mxu0 0
        %7297 = vmatpush2.bf16.msra.mxu0 0
        %7298 = vmatprep.subr.bf16.mxu0 0
        %7299 = vmatpush2.bf16.msra.mxu0 0
        %7300 = vmatprep.subr.bf16.mxu0 0
        %7301 = vmatpush2.bf16.msra.mxu0 0
        %7302 = vmatprep.subr.bf16.mxu0 0
        %7303 = vmatpush2.bf16.msra.mxu0 0
        %7304 = vmatprep.subr.bf16.mxu0 0
        %7305 = vmatpush2.bf16.msra.mxu0 0
        %7306 = vmatprep.mubr.bf16.mxu0 0
        %7307 = vmatmul.mubr.bf16.gmra.mxu0 %v7260
        %v7308 = vpop.f32.mrf.mxu0
        %v7309 = vadd.f32 0.0, %v7308
        %v7310 = vpop.f32.mrf.mxu0
        %v7311 = vadd.f32 0.0, %v7310
        %v7312 = vpop.f32.mrf.mxu0
        %v7313 = vpop.f32.mrf.mxu0
        %7314 = vdwg.mxu0
        %7315 = vmatprep.subr.bf16.mxu0 0
        %7316 = vmatpush1.bf16.msra.mxu0 0
        %7317 = vmatprep.subr.bf16.mxu0 0
        %7318 = vmatpush1.bf16.msra.mxu0 0
        %7319 = vmatprep.subr.bf16.mxu0 0
        %7320 = vmatpush1.bf16.msra.mxu0 0
        %7321 = vmatprep.subr.bf16.mxu0 0
        %7322 = vmatpush1.bf16.msra.mxu0 0
        %7323 = vmatprep.subr.bf16.mxu0 0
        %7324 = vmatpush1.bf16.msra.mxu0 0
        %7325 = vmatprep.subr.bf16.mxu0 0
        %7326 = vmatpush1.bf16.msra.mxu0 0
        %7327 = vmatprep.subr.bf16.mxu0 0
        %7328 = vmatpush1.bf16.msra.mxu0 0
        %7329 = vmatprep.subr.bf16.mxu0 %v7272
        %7330 = vmatpush1.bf16.msra.mxu0 %v7269
        %7331 = vmatprep.subr.bf16.mxu0 0
        %7332 = vmatpush2.bf16.msra.mxu0 0
        %7333 = vmatprep.subr.bf16.mxu0 0
        %7334 = vmatpush2.bf16.msra.mxu0 0
        %7335 = vmatprep.subr.bf16.mxu0 0
        %7336 = vmatpush2.bf16.msra.mxu0 0
        %7337 = vmatprep.subr.bf16.mxu0 0
        %7338 = vmatpush2.bf16.msra.mxu0 0
        %7339 = vmatprep.subr.bf16.mxu0 0
        %7340 = vmatpush2.bf16.msra.mxu0 0
        %7341 = vmatprep.subr.bf16.mxu0 0
        %7342 = vmatpush2.bf16.msra.mxu0 0
        %7343 = vmatprep.subr.bf16.mxu0 0
        %7344 = vmatpush2.bf16.msra.mxu0 0
        %7345 = vmatprep.subr.bf16.mxu0 0
        %7346 = vmatpush2.bf16.msra.mxu0 0
        %7347 = vmatprep.mubr.bf16.mxu0 0
        %7348 = vmatmul.mubr.bf16.gmra.mxu0 %v7260
        %v7349 = vpop.f32.mrf.mxu0
        %v7350 = vadd.f32 0.0, %v7349
        %v7351 = vpop.f32.mrf.mxu0
        %v7352 = vadd.f32 0.0, %v7351
        %v7353 = vpop.f32.mrf.mxu0
        %v7354 = vpop.f32.mrf.mxu0
        %7355 = vdwg.mxu0
        %s7356 = scalar_lea.vmem [#allocation16], 2
        %v7357 = vld [vmem:[%s7356] sm:$0x3]
        %v7359 = vsel %vm5718, %v7357, 0
        %7361 = vmatprep.subr.bf16.mxu0 0
        %7362 = vmatpush1.bf16.msra.mxu0 0
        %7363 = vmatprep.subr.bf16.mxu0 0
        %7364 = vmatpush1.bf16.msra.mxu0 0
        %7365 = vmatprep.subr.bf16.mxu0 0
        %7366 = vmatpush1.bf16.msra.mxu0 0
        %7367 = vmatprep.subr.bf16.mxu0 0
        %7368 = vmatpush1.bf16.msra.mxu0 0
        %7369 = vmatprep.subr.bf16.mxu0 0
        %7370 = vmatpush1.bf16.msra.mxu0 0
        %7371 = vmatprep.subr.bf16.mxu0 0
        %7372 = vmatpush1.bf16.msra.mxu0 0
        %7373 = vmatprep.subr.bf16.mxu0 0
        %7374 = vmatpush1.bf16.msra.mxu0 0
        %7375 = vmatprep.subr.bf16.mxu0 %v7266
        %7376 = vmatpush1.bf16.msra.mxu0 %v7263
        %7377 = vmatprep.subr.bf16.mxu0 0
        %7378 = vmatpush2.bf16.msra.mxu0 0
        %7379 = vmatprep.subr.bf16.mxu0 0
        %7380 = vmatpush2.bf16.msra.mxu0 0
        %7381 = vmatprep.subr.bf16.mxu0 0
        %7382 = vmatpush2.bf16.msra.mxu0 0
        %7383 = vmatprep.subr.bf16.mxu0 0
        %7384 = vmatpush2.bf16.msra.mxu0 0
        %7385 = vmatprep.subr.bf16.mxu0 0
        %7386 = vmatpush2.bf16.msra.mxu0 0
        %7387 = vmatprep.subr.bf16.mxu0 0
        %7388 = vmatpush2.bf16.msra.mxu0 0
        %7389 = vmatprep.subr.bf16.mxu0 0
        %7390 = vmatpush2.bf16.msra.mxu0 0
        %7391 = vmatprep.subr.bf16.mxu0 0
        %7392 = vmatpush2.bf16.msra.mxu0 0
        %7393 = vmatprep.mubr.bf16.mxu0 0
        %7394 = vmatmul.mubr.bf16.gmra.mxu0 %v7359
        %v7395 = vpop.f32.mrf.mxu0
        %v7396 = vadd.f32 0.0, %v7395
        %v7397 = vpop.f32.mrf.mxu0
        %v7398 = vadd.f32 0.0, %v7397
        %v7399 = vpop.f32.mrf.mxu0
        %v7400 = vpop.f32.mrf.mxu0
        %7401 = vdwg.mxu0
        %7402 = vmatprep.subr.bf16.mxu0 0
        %7403 = vmatpush1.bf16.msra.mxu0 0
        %7404 = vmatprep.subr.bf16.mxu0 0
        %7405 = vmatpush1.bf16.msra.mxu0 0
        %7406 = vmatprep.subr.bf16.mxu0 0
        %7407 = vmatpush1.bf16.msra.mxu0 0
        %7408 = vmatprep.subr.bf16.mxu0 0
        %7409 = vmatpush1.bf16.msra.mxu0 0
        %7410 = vmatprep.subr.bf16.mxu0 0
        %7411 = vmatpush1.bf16.msra.mxu0 0
        %7412 = vmatprep.subr.bf16.mxu0 0
        %7413 = vmatpush1.bf16.msra.mxu0 0
        %7414 = vmatprep.subr.bf16.mxu0 0
        %7415 = vmatpush1.bf16.msra.mxu0 0
        %7416 = vmatprep.subr.bf16.mxu0 %v7272
        %7417 = vmatpush1.bf16.msra.mxu0 %v7269
        %7418 = vmatprep.subr.bf16.mxu0 0
        %7419 = vmatpush2.bf16.msra.mxu0 0
        %7420 = vmatprep.subr.bf16.mxu0 0
        %7421 = vmatpush2.bf16.msra.mxu0 0
        %7422 = vmatprep.subr.bf16.mxu0 0
        %7423 = vmatpush2.bf16.msra.mxu0 0
        %7424 = vmatprep.subr.bf16.mxu0 0
        %7425 = vmatpush2.bf16.msra.mxu0 0
        %7426 = vmatprep.subr.bf16.mxu0 0
        %7427 = vmatpush2.bf16.msra.mxu0 0
        %7428 = vmatprep.subr.bf16.mxu0 0
        %7429 = vmatpush2.bf16.msra.mxu0 0
        %7430 = vmatprep.subr.bf16.mxu0 0
        %7431 = vmatpush2.bf16.msra.mxu0 0
        %7432 = vmatprep.subr.bf16.mxu0 0
        %7433 = vmatpush2.bf16.msra.mxu0 0
        %7434 = vmatprep.mubr.bf16.mxu0 0
        %7435 = vmatmul.mubr.bf16.gmra.mxu0 %v7359
        %v7436 = vpop.f32.mrf.mxu0
        %v7437 = vadd.f32 0.0, %v7436
        %v7438 = vpop.f32.mrf.mxu0
        %v7439 = vadd.f32 0.0, %v7438
        %v7440 = vpop.f32.mrf.mxu0
        %v7441 = vpop.f32.mrf.mxu0
        %7442 = vdwg.mxu0
        %v7443 = vmax.f32 %v7309, %v7396
        %v7444 = vmax.f32 %v7311, %v7398
        %v7445 = vmax.f32 %v7350, %v7437
        %v7446 = vmax.f32 %v7352, %v7439
        %v7447 = vpack.c.bf16 %v7443, %v7443
        %v7448 = vpack.c.bf16 %v7444, %v7444
        %v7449 = vpack.c.bf16 %v7445, %v7445
        %v7450 = vpack.c.bf16 %v7446, %v7446
        %v7451 = vld [vmem:[#allocation18] sm:$0xff]
        %v7452 = vld [vmem:[#allocation18 + $0x8] sm:$0xff]
        %v7453 = vld [vmem:[#allocation18 + $0x10] sm:$0xff]
        %v7454 = vld [vmem:[#allocation18 + $0x18] sm:$0xff]
        %v7455 = vld [vmem:[#allocation18 + $0x20] sm:$0xff]
        %v7456 = vld [vmem:[#allocation18 + $0x28] sm:$0xff]
        %v7457 = vld [vmem:[#allocation18 + $0x30] sm:$0xff]
        %v7458 = vld [vmem:[#allocation18 + $0x38] sm:$0xff]
        %v7459 = vld [vmem:[#allocation18 + $0x40] sm:$0xff]
        %v7460 = vld [vmem:[#allocation18 + $0x48] sm:$0xff]
        %v7461 = vld [vmem:[#allocation18 + $0x50] sm:$0xff]
        %v7462 = vld [vmem:[#allocation18 + $0x58] sm:$0xff]
        %v7463 = vld [vmem:[#allocation18 + $0x60] sm:$0xff]
        %v7464 = vld [vmem:[#allocation18 + $0x68] sm:$0xff]
        %v7465 = vld [vmem:[#allocation18 + $0x70] sm:$0xff]
        %v7466 = vld [vmem:[#allocation18 + $0x78] sm:$0xff]
        %v7467 = vld [vmem:[#allocation18 + $0x80] sm:$0xff]
        %v7468 = vld [vmem:[#allocation18 + $0x88] sm:$0xff]
        %v7469 = vld [vmem:[#allocation18 + $0x90] sm:$0xff]
        %v7470 = vld [vmem:[#allocation18 + $0x98] sm:$0xff]
        %v7471 = vld [vmem:[#allocation18 + $0xa0] sm:$0xff]
        %v7472 = vld [vmem:[#allocation18 + $0xa8] sm:$0xff]
        %v7473 = vld [vmem:[#allocation18 + $0xb0] sm:$0xff]
        %v7474 = vld [vmem:[#allocation18 + $0xb8] sm:$0xff]
        %v7475 = vld [vmem:[#allocation18 + $0xc0] sm:$0xff]
        %v7476 = vld [vmem:[#allocation18 + $0xc8] sm:$0xff]
        %v7477 = vld [vmem:[#allocation18 + $0xd0] sm:$0xff]
        %v7478 = vld [vmem:[#allocation18 + $0xd8] sm:$0xff]
        %v7479 = vld [vmem:[#allocation18 + $0xe0] sm:$0xff]
        %v7480 = vld [vmem:[#allocation18 + $0xe8] sm:$0xff]
        %v7481 = vld [vmem:[#allocation18 + $0xf0] sm:$0xff]
        %v7482 = vld [vmem:[#allocation18 + $0xf8] sm:$0xff]
        %v7483 = vld [vmem:[#allocation18 + $0x100] sm:$0xff]
        %v7484 = vld [vmem:[#allocation18 + $0x108] sm:$0xff]
        %v7485 = vld [vmem:[#allocation18 + $0x110] sm:$0xff]
        %v7486 = vld [vmem:[#allocation18 + $0x118] sm:$0xff]
        %v7487 = vld [vmem:[#allocation18 + $0x120] sm:$0xff]
        %v7488 = vld [vmem:[#allocation18 + $0x128] sm:$0xff]
        %v7489 = vld [vmem:[#allocation18 + $0x130] sm:$0xff]
        %v7490 = vld [vmem:[#allocation18 + $0x138] sm:$0xff]
        %v7491 = vld [vmem:[#allocation18 + $0x140] sm:$0xff]
        %v7492 = vld [vmem:[#allocation18 + $0x148] sm:$0xff]
        %v7493 = vld [vmem:[#allocation18 + $0x150] sm:$0xff]
        %v7494 = vld [vmem:[#allocation18 + $0x158] sm:$0xff]
        %v7495 = vld [vmem:[#allocation18 + $0x160] sm:$0xff]
        %v7496 = vld [vmem:[#allocation18 + $0x168] sm:$0xff]
        %v7497 = vld [vmem:[#allocation18 + $0x170] sm:$0xff]
        %v7498 = vld [vmem:[#allocation18 + $0x178] sm:$0xff]
        %v7499 = vld [vmem:[#allocation18 + $0x180] sm:$0xff]
        %v7500 = vld [vmem:[#allocation18 + $0x188] sm:$0xff]
        %v7501 = vld [vmem:[#allocation18 + $0x190] sm:$0xff]
        %v7502 = vld [vmem:[#allocation18 + $0x198] sm:$0xff]
        %v7503 = vld [vmem:[#allocation18 + $0x1a0] sm:$0xff]
        %v7504 = vld [vmem:[#allocation18 + $0x1a8] sm:$0xff]
        %v7505 = vld [vmem:[#allocation18 + $0x1b0] sm:$0xff]
        %v7506 = vld [vmem:[#allocation18 + $0x1b8] sm:$0xff]
        %v7507 = vld [vmem:[#allocation18 + $0x1c0] sm:$0xff]
        %v7508 = vld [vmem:[#allocation18 + $0x1c8] sm:$0xff]
        %v7509 = vld [vmem:[#allocation18 + $0x1d0] sm:$0xff]
        %v7510 = vld [vmem:[#allocation18 + $0x1d8] sm:$0xff]
        %v7511 = vld [vmem:[#allocation18 + $0x1e0] sm:$0xff]
        %v7512 = vld [vmem:[#allocation18 + $0x1e8] sm:$0xff]
        %v7513 = vld [vmem:[#allocation18 + $0x1f0] sm:$0xff]
        %v7514 = vld [vmem:[#allocation18 + $0x1f8] sm:$0xff]
        %v7579 = vunpack.c.l.b16 %v7451
        %v7580 = vunpack.c.h.b16 %v7451
        %v7581 = vunpack.c.l.b16 %v7452
        %v7582 = vunpack.c.h.b16 %v7452
        %v7583 = vunpack.c.l.b16 %v7453
        %v7584 = vunpack.c.h.b16 %v7453
        %v7585 = vunpack.c.l.b16 %v7454
        %v7586 = vunpack.c.h.b16 %v7454
        %v7587 = vunpack.c.l.b16 %v7455
        %v7588 = vunpack.c.h.b16 %v7455
        %v7589 = vunpack.c.l.b16 %v7456
        %v7590 = vunpack.c.h.b16 %v7456
        %v7591 = vunpack.c.l.b16 %v7457
        %v7592 = vunpack.c.h.b16 %v7457
        %v7593 = vunpack.c.l.b16 %v7458
        %v7594 = vunpack.c.h.b16 %v7458
        %v7595 = vunpack.c.l.b16 %v7459
        %v7596 = vunpack.c.h.b16 %v7459
        %v7597 = vunpack.c.l.b16 %v7460
        %v7598 = vunpack.c.h.b16 %v7460
        %v7599 = vunpack.c.l.b16 %v7461
        %v7600 = vunpack.c.h.b16 %v7461
        %v7601 = vunpack.c.l.b16 %v7462
        %v7602 = vunpack.c.h.b16 %v7462
        %v7603 = vunpack.c.l.b16 %v7463
        %v7604 = vunpack.c.h.b16 %v7463
        %v7605 = vunpack.c.l.b16 %v7464
        %v7606 = vunpack.c.h.b16 %v7464
        %v7607 = vunpack.c.l.b16 %v7465
        %v7608 = vunpack.c.h.b16 %v7465
        %v7609 = vunpack.c.l.b16 %v7466
        %v7610 = vunpack.c.h.b16 %v7466
        %v7611 = vunpack.c.l.b16 %v7467
        %v7612 = vunpack.c.h.b16 %v7467
        %v7613 = vunpack.c.l.b16 %v7468
        %v7614 = vunpack.c.h.b16 %v7468
        %v7615 = vunpack.c.l.b16 %v7469
        %v7616 = vunpack.c.h.b16 %v7469
        %v7617 = vunpack.c.l.b16 %v7470
        %v7618 = vunpack.c.h.b16 %v7470
        %v7619 = vunpack.c.l.b16 %v7471
        %v7620 = vunpack.c.h.b16 %v7471
        %v7621 = vunpack.c.l.b16 %v7472
        %v7622 = vunpack.c.h.b16 %v7472
        %v7623 = vunpack.c.l.b16 %v7473
        %v7624 = vunpack.c.h.b16 %v7473
        %v7625 = vunpack.c.l.b16 %v7474
        %v7626 = vunpack.c.h.b16 %v7474
        %v7627 = vunpack.c.l.b16 %v7475
        %v7628 = vunpack.c.h.b16 %v7475
        %v7629 = vunpack.c.l.b16 %v7476
        %v7630 = vunpack.c.h.b16 %v7476
        %v7631 = vunpack.c.l.b16 %v7477
        %v7632 = vunpack.c.h.b16 %v7477
        %v7633 = vunpack.c.l.b16 %v7478
        %v7634 = vunpack.c.h.b16 %v7478
        %v7635 = vunpack.c.l.b16 %v7479
        %v7636 = vunpack.c.h.b16 %v7479
        %v7637 = vunpack.c.l.b16 %v7480
        %v7638 = vunpack.c.h.b16 %v7480
        %v7639 = vunpack.c.l.b16 %v7481
        %v7640 = vunpack.c.h.b16 %v7481
        %v7641 = vunpack.c.l.b16 %v7482
        %v7642 = vunpack.c.h.b16 %v7482
        %v7643 = vunpack.c.l.b16 %v7483
        %v7644 = vunpack.c.h.b16 %v7483
        %v7645 = vunpack.c.l.b16 %v7484
        %v7646 = vunpack.c.h.b16 %v7484
        %v7647 = vunpack.c.l.b16 %v7485
        %v7648 = vunpack.c.h.b16 %v7485
        %v7649 = vunpack.c.l.b16 %v7486
        %v7650 = vunpack.c.h.b16 %v7486
        %v7651 = vunpack.c.l.b16 %v7487
        %v7652 = vunpack.c.h.b16 %v7487
        %v7653 = vunpack.c.l.b16 %v7488
        %v7654 = vunpack.c.h.b16 %v7488
        %v7655 = vunpack.c.l.b16 %v7489
        %v7656 = vunpack.c.h.b16 %v7489
        %v7657 = vunpack.c.l.b16 %v7490
        %v7658 = vunpack.c.h.b16 %v7490
        %v7659 = vunpack.c.l.b16 %v7491
        %v7660 = vunpack.c.h.b16 %v7491
        %v7661 = vunpack.c.l.b16 %v7492
        %v7662 = vunpack.c.h.b16 %v7492
        %v7663 = vunpack.c.l.b16 %v7493
        %v7664 = vunpack.c.h.b16 %v7493
        %v7665 = vunpack.c.l.b16 %v7494
        %v7666 = vunpack.c.h.b16 %v7494
        %v7667 = vunpack.c.l.b16 %v7495
        %v7668 = vunpack.c.h.b16 %v7495
        %v7669 = vunpack.c.l.b16 %v7496
        %v7670 = vunpack.c.h.b16 %v7496
        %v7671 = vunpack.c.l.b16 %v7497
        %v7672 = vunpack.c.h.b16 %v7497
        %v7673 = vunpack.c.l.b16 %v7498
        %v7674 = vunpack.c.h.b16 %v7498
        %v7675 = vunpack.c.l.b16 %v7499
        %v7676 = vunpack.c.h.b16 %v7499
        %v7677 = vunpack.c.l.b16 %v7500
        %v7678 = vunpack.c.h.b16 %v7500
        %v7679 = vunpack.c.l.b16 %v7501
        %v7680 = vunpack.c.h.b16 %v7501
        %v7681 = vunpack.c.l.b16 %v7502
        %v7682 = vunpack.c.h.b16 %v7502
        %v7683 = vunpack.c.l.b16 %v7503
        %v7684 = vunpack.c.h.b16 %v7503
        %v7685 = vunpack.c.l.b16 %v7504
        %v7686 = vunpack.c.h.b16 %v7504
        %v7687 = vunpack.c.l.b16 %v7505
        %v7688 = vunpack.c.h.b16 %v7505
        %v7689 = vunpack.c.l.b16 %v7506
        %v7690 = vunpack.c.h.b16 %v7506
        %v7691 = vunpack.c.l.b16 %v7507
        %v7692 = vunpack.c.h.b16 %v7507
        %v7693 = vunpack.c.l.b16 %v7508
        %v7694 = vunpack.c.h.b16 %v7508
        %v7695 = vunpack.c.l.b16 %v7509
        %v7696 = vunpack.c.h.b16 %v7509
        %v7697 = vunpack.c.l.b16 %v7510
        %v7698 = vunpack.c.h.b16 %v7510
        %v7699 = vunpack.c.l.b16 %v7511
        %v7700 = vunpack.c.h.b16 %v7511
        %v7701 = vunpack.c.l.b16 %v7512
        %v7702 = vunpack.c.h.b16 %v7512
        %v7703 = vunpack.c.l.b16 %v7513
        %v7704 = vunpack.c.h.b16 %v7513
        %v7705 = vunpack.c.l.b16 %v7514
        %v7706 = vunpack.c.h.b16 %v7514
        %v7707 = vpack.c.b16 %v7581, %v7579
        %v7708 = vpack.c.b16 %v7582, %v7580
        %v7709 = vpack.c.b16 %v7585, %v7583
        %v7710 = vpack.c.b16 %v7586, %v7584
        %v7711 = vpack.c.b16 %v7589, %v7587
        %v7712 = vpack.c.b16 %v7590, %v7588
        %v7713 = vpack.c.b16 %v7593, %v7591
        %v7714 = vpack.c.b16 %v7594, %v7592
        %v7715 = vpack.c.b16 %v7597, %v7595
        %v7716 = vpack.c.b16 %v7598, %v7596
        %v7717 = vpack.c.b16 %v7601, %v7599
        %v7718 = vpack.c.b16 %v7602, %v7600
        %v7719 = vpack.c.b16 %v7605, %v7603
        %v7720 = vpack.c.b16 %v7606, %v7604
        %v7721 = vpack.c.b16 %v7609, %v7607
        %v7722 = vpack.c.b16 %v7610, %v7608
        %v7723 = vpack.c.b16 %v7613, %v7611
        %v7724 = vpack.c.b16 %v7614, %v7612
        %v7725 = vpack.c.b16 %v7617, %v7615
        %v7726 = vpack.c.b16 %v7618, %v7616
        %v7727 = vpack.c.b16 %v7621, %v7619
        %v7728 = vpack.c.b16 %v7622, %v7620
        %v7729 = vpack.c.b16 %v7625, %v7623
        %v7730 = vpack.c.b16 %v7626, %v7624
        %v7731 = vpack.c.b16 %v7629, %v7627
        %v7732 = vpack.c.b16 %v7630, %v7628
        %v7733 = vpack.c.b16 %v7633, %v7631
        %v7734 = vpack.c.b16 %v7634, %v7632
        %v7735 = vpack.c.b16 %v7637, %v7635
        %v7736 = vpack.c.b16 %v7638, %v7636
        %v7737 = vpack.c.b16 %v7641, %v7639
        %v7738 = vpack.c.b16 %v7642, %v7640
        %v7739 = vpack.c.b16 %v7645, %v7643
        %v7740 = vpack.c.b16 %v7646, %v7644
        %v7741 = vpack.c.b16 %v7649, %v7647
        %v7742 = vpack.c.b16 %v7650, %v7648
        %v7743 = vpack.c.b16 %v7653, %v7651
        %v7744 = vpack.c.b16 %v7654, %v7652
        %v7745 = vpack.c.b16 %v7657, %v7655
        %v7746 = vpack.c.b16 %v7658, %v7656
        %v7747 = vpack.c.b16 %v7661, %v7659
        %v7748 = vpack.c.b16 %v7662, %v7660
        %v7749 = vpack.c.b16 %v7665, %v7663
        %v7750 = vpack.c.b16 %v7666, %v7664
        %v7751 = vpack.c.b16 %v7669, %v7667
        %v7752 = vpack.c.b16 %v7670, %v7668
        %v7753 = vpack.c.b16 %v7673, %v7671
        %v7754 = vpack.c.b16 %v7674, %v7672
        %v7755 = vpack.c.b16 %v7677, %v7675
        %v7756 = vpack.c.b16 %v7678, %v7676
        %v7757 = vpack.c.b16 %v7681, %v7679
        %v7758 = vpack.c.b16 %v7682, %v7680
        %v7759 = vpack.c.b16 %v7685, %v7683
        %v7760 = vpack.c.b16 %v7686, %v7684
        %v7761 = vpack.c.b16 %v7689, %v7687
        %v7762 = vpack.c.b16 %v7690, %v7688
        %v7763 = vpack.c.b16 %v7693, %v7691
        %v7764 = vpack.c.b16 %v7694, %v7692
        %v7765 = vpack.c.b16 %v7697, %v7695
        %v7766 = vpack.c.b16 %v7698, %v7696
        %v7767 = vpack.c.b16 %v7701, %v7699
        %v7768 = vpack.c.b16 %v7702, %v7700
        %v7769 = vpack.c.b16 %v7705, %v7703
        %v7770 = vpack.c.b16 %v7706, %v7704
        %7835 = vmatprep.subr.bf16.mxu0 %v7722
        %7836 = vmatpush1.bf16.msra.mxu0 %v7721
        %7837 = vmatprep.subr.bf16.mxu0 %v7720
        %7838 = vmatpush1.bf16.msra.mxu0 %v7719
        %7839 = vmatprep.subr.bf16.mxu0 %v7718
        %7840 = vmatpush1.bf16.msra.mxu0 %v7717
        %7841 = vmatprep.subr.bf16.mxu0 %v7716
        %7842 = vmatpush1.bf16.msra.mxu0 %v7715
        %7843 = vmatprep.subr.bf16.mxu0 %v7714
        %7844 = vmatpush1.bf16.msra.mxu0 %v7713
        %7845 = vmatprep.subr.bf16.mxu0 %v7712
        %7846 = vmatpush1.bf16.msra.mxu0 %v7711
        %7847 = vmatprep.subr.bf16.mxu0 %v7710
        %7848 = vmatpush1.bf16.msra.mxu0 %v7709
        %7849 = vmatprep.subr.bf16.mxu0 %v7708
        %7850 = vmatpush1.bf16.msra.mxu0 %v7707
        %7851 = vmatprep.subr.bf16.mxu0 %v7738
        %7852 = vmatpush2.bf16.msra.mxu0 %v7737
        %7853 = vmatprep.subr.bf16.mxu0 %v7736
        %7854 = vmatpush2.bf16.msra.mxu0 %v7735
        %7855 = vmatprep.subr.bf16.mxu0 %v7734
        %7856 = vmatpush2.bf16.msra.mxu0 %v7733
        %7857 = vmatprep.subr.bf16.mxu0 %v7732
        %7858 = vmatpush2.bf16.msra.mxu0 %v7731
        %7859 = vmatprep.subr.bf16.mxu0 %v7730
        %7860 = vmatpush2.bf16.msra.mxu0 %v7729
        %7861 = vmatprep.subr.bf16.mxu0 %v7728
        %7862 = vmatpush2.bf16.msra.mxu0 %v7727
        %7863 = vmatprep.subr.bf16.mxu0 %v7726
        %7864 = vmatpush2.bf16.msra.mxu0 %v7725
        %7865 = vmatprep.subr.bf16.mxu0 %v7724
        %7866 = vmatpush2.bf16.msra.mxu0 %v7723
        %7867 = vmatprep.mubr.bf16.mxu0 %v7448
        %7868 = vmatmul.mubr.bf16.gmra.mxu0 %v7447
        %v7869 = vpop.f32.mrf.mxu0
        %v7870 = vadd.f32 0.0, %v7869
        %v7871 = vpop.f32.mrf.mxu0
        %v7872 = vadd.f32 0.0, %v7871
        %v7873 = vpop.f32.mrf.mxu0
        %v7874 = vpop.f32.mrf.mxu0
        %7875 = vdwg.mxu0
        %7876 = vmatprep.subr.bf16.mxu0 %v7754
        %7877 = vmatpush1.bf16.msra.mxu0 %v7753
        %7878 = vmatprep.subr.bf16.mxu0 %v7752
        %7879 = vmatpush1.bf16.msra.mxu0 %v7751
        %7880 = vmatprep.subr.bf16.mxu0 %v7750
        %7881 = vmatpush1.bf16.msra.mxu0 %v7749
        %7882 = vmatprep.subr.bf16.mxu0 %v7748
        %7883 = vmatpush1.bf16.msra.mxu0 %v7747
        %7884 = vmatprep.subr.bf16.mxu0 %v7746
        %7885 = vmatpush1.bf16.msra.mxu0 %v7745
        %7886 = vmatprep.subr.bf16.mxu0 %v7744
        %7887 = vmatpush1.bf16.msra.mxu0 %v7743
        %7888 = vmatprep.subr.bf16.mxu0 %v7742
        %7889 = vmatpush1.bf16.msra.mxu0 %v7741
        %7890 = vmatprep.subr.bf16.mxu0 %v7740
        %7891 = vmatpush1.bf16.msra.mxu0 %v7739
        %7892 = vmatprep.subr.bf16.mxu0 %v7770
        %7893 = vmatpush2.bf16.msra.mxu0 %v7769
        %7894 = vmatprep.subr.bf16.mxu0 %v7768
        %7895 = vmatpush2.bf16.msra.mxu0 %v7767
        %7896 = vmatprep.subr.bf16.mxu0 %v7766
        %7897 = vmatpush2.bf16.msra.mxu0 %v7765
        %7898 = vmatprep.subr.bf16.mxu0 %v7764
        %7899 = vmatpush2.bf16.msra.mxu0 %v7763
        %7900 = vmatprep.subr.bf16.mxu0 %v7762
        %7901 = vmatpush2.bf16.msra.mxu0 %v7761
        %7902 = vmatprep.subr.bf16.mxu0 %v7760
        %7903 = vmatpush2.bf16.msra.mxu0 %v7759
        %7904 = vmatprep.subr.bf16.mxu0 %v7758
        %7905 = vmatpush2.bf16.msra.mxu0 %v7757
        %7906 = vmatprep.subr.bf16.mxu0 %v7756
        %7907 = vmatpush2.bf16.msra.mxu0 %v7755
        %7908 = vmatprep.mubr.bf16.mxu0 %v7450
        %7909 = vmatmul.mubr.bf16.gmra.mxu0 %v7449
        %v7910 = vpop.f32.mrf.mxu0
        %v7911 = vadd.f32 %v7870, %v7910
        %v7912 = vpop.f32.mrf.mxu0
        %v7913 = vadd.f32 %v7872, %v7912
        %v7914 = vpop.f32.mrf.mxu0
        %v7915 = vpop.f32.mrf.mxu0
        %7916 = vdwg.mxu0
        %s7917 = scalar_lea.vmem [#allocation18], 512
        %v7918 = vld [vmem:[%s7917] sm:$0xff]
        %v7919 = vld [vmem:[%s7917 + $0x8] sm:$0xff]
        %v7920 = vld [vmem:[%s7917 + $0x10] sm:$0xff]
        %v7921 = vld [vmem:[%s7917 + $0x18] sm:$0xff]
        %v7922 = vld [vmem:[%s7917 + $0x20] sm:$0xff]
        %v7923 = vld [vmem:[%s7917 + $0x28] sm:$0xff]
        %v7924 = vld [vmem:[%s7917 + $0x30] sm:$0xff]
        %v7925 = vld [vmem:[%s7917 + $0x38] sm:$0xff]
        %v7926 = vld [vmem:[%s7917 + $0x40] sm:$0xff]
        %v7927 = vld [vmem:[%s7917 + $0x48] sm:$0xff]
        %v7928 = vld [vmem:[%s7917 + $0x50] sm:$0xff]
        %v7929 = vld [vmem:[%s7917 + $0x58] sm:$0xff]
        %v7930 = vld [vmem:[%s7917 + $0x60] sm:$0xff]
        %v7931 = vld [vmem:[%s7917 + $0x68] sm:$0xff]
        %v7932 = vld [vmem:[%s7917 + $0x70] sm:$0xff]
        %v7933 = vld [vmem:[%s7917 + $0x78] sm:$0xff]
        %v7934 = vld [vmem:[%s7917 + $0x80] sm:$0xff]
        %v7935 = vld [vmem:[%s7917 + $0x88] sm:$0xff]
        %v7936 = vld [vmem:[%s7917 + $0x90] sm:$0xff]
        %v7937 = vld [vmem:[%s7917 + $0x98] sm:$0xff]
        %v7938 = vld [vmem:[%s7917 + $0xa0] sm:$0xff]
        %v7939 = vld [vmem:[%s7917 + $0xa8] sm:$0xff]
        %v7940 = vld [vmem:[%s7917 + $0xb0] sm:$0xff]
        %v7941 = vld [vmem:[%s7917 + $0xb8] sm:$0xff]
        %v7942 = vld [vmem:[%s7917 + $0xc0] sm:$0xff]
        %v7943 = vld [vmem:[%s7917 + $0xc8] sm:$0xff]
        %v7944 = vld [vmem:[%s7917 + $0xd0] sm:$0xff]
        %v7945 = vld [vmem:[%s7917 + $0xd8] sm:$0xff]
        %v7946 = vld [vmem:[%s7917 + $0xe0] sm:$0xff]
        %v7947 = vld [vmem:[%s7917 + $0xe8] sm:$0xff]
        %v7948 = vld [vmem:[%s7917 + $0xf0] sm:$0xff]
        %v7949 = vld [vmem:[%s7917 + $0xf8] sm:$0xff]
        %v7950 = vld [vmem:[%s7917 + $0x100] sm:$0xff]
        %v7951 = vld [vmem:[%s7917 + $0x108] sm:$0xff]
        %v7952 = vld [vmem:[%s7917 + $0x110] sm:$0xff]
        %v7953 = vld [vmem:[%s7917 + $0x118] sm:$0xff]
        %v7954 = vld [vmem:[%s7917 + $0x120] sm:$0xff]
        %v7955 = vld [vmem:[%s7917 + $0x128] sm:$0xff]
        %v7956 = vld [vmem:[%s7917 + $0x130] sm:$0xff]
        %v7957 = vld [vmem:[%s7917 + $0x138] sm:$0xff]
        %v7958 = vld [vmem:[%s7917 + $0x140] sm:$0xff]
        %v7959 = vld [vmem:[%s7917 + $0x148] sm:$0xff]
        %v7960 = vld [vmem:[%s7917 + $0x150] sm:$0xff]
        %v7961 = vld [vmem:[%s7917 + $0x158] sm:$0xff]
        %v7962 = vld [vmem:[%s7917 + $0x160] sm:$0xff]
        %v7963 = vld [vmem:[%s7917 + $0x168] sm:$0xff]
        %v7964 = vld [vmem:[%s7917 + $0x170] sm:$0xff]
        %v7965 = vld [vmem:[%s7917 + $0x178] sm:$0xff]
        %v7966 = vld [vmem:[%s7917 + $0x180] sm:$0xff]
        %v7967 = vld [vmem:[%s7917 + $0x188] sm:$0xff]
        %v7968 = vld [vmem:[%s7917 + $0x190] sm:$0xff]
        %v7969 = vld [vmem:[%s7917 + $0x198] sm:$0xff]
        %v7970 = vld [vmem:[%s7917 + $0x1a0] sm:$0xff]
        %v7971 = vld [vmem:[%s7917 + $0x1a8] sm:$0xff]
        %v7972 = vld [vmem:[%s7917 + $0x1b0] sm:$0xff]
        %v7973 = vld [vmem:[%s7917 + $0x1b8] sm:$0xff]
        %v7974 = vld [vmem:[%s7917 + $0x1c0] sm:$0xff]
        %v7975 = vld [vmem:[%s7917 + $0x1c8] sm:$0xff]
        %v7976 = vld [vmem:[%s7917 + $0x1d0] sm:$0xff]
        %v7977 = vld [vmem:[%s7917 + $0x1d8] sm:$0xff]
        %v7978 = vld [vmem:[%s7917 + $0x1e0] sm:$0xff]
        %v7979 = vld [vmem:[%s7917 + $0x1e8] sm:$0xff]
        %v7980 = vld [vmem:[%s7917 + $0x1f0] sm:$0xff]
        %v7981 = vld [vmem:[%s7917 + $0x1f8] sm:$0xff]
        %v8046 = vunpack.c.l.b16 %v7918
        %v8047 = vunpack.c.h.b16 %v7918
        %v8048 = vunpack.c.l.b16 %v7919
        %v8049 = vunpack.c.h.b16 %v7919
        %v8050 = vunpack.c.l.b16 %v7920
        %v8051 = vunpack.c.h.b16 %v7920
        %v8052 = vunpack.c.l.b16 %v7921
        %v8053 = vunpack.c.h.b16 %v7921
        %v8054 = vunpack.c.l.b16 %v7922
        %v8055 = vunpack.c.h.b16 %v7922
        %v8056 = vunpack.c.l.b16 %v7923
        %v8057 = vunpack.c.h.b16 %v7923
        %v8058 = vunpack.c.l.b16 %v7924
        %v8059 = vunpack.c.h.b16 %v7924
        %v8060 = vunpack.c.l.b16 %v7925
        %v8061 = vunpack.c.h.b16 %v7925
        %v8062 = vunpack.c.l.b16 %v7926
        %v8063 = vunpack.c.h.b16 %v7926
        %v8064 = vunpack.c.l.b16 %v7927
        %v8065 = vunpack.c.h.b16 %v7927
        %v8066 = vunpack.c.l.b16 %v7928
        %v8067 = vunpack.c.h.b16 %v7928
        %v8068 = vunpack.c.l.b16 %v7929
        %v8069 = vunpack.c.h.b16 %v7929
        %v8070 = vunpack.c.l.b16 %v7930
        %v8071 = vunpack.c.h.b16 %v7930
        %v8072 = vunpack.c.l.b16 %v7931
        %v8073 = vunpack.c.h.b16 %v7931
        %v8074 = vunpack.c.l.b16 %v7932
        %v8075 = vunpack.c.h.b16 %v7932
        %v8076 = vunpack.c.l.b16 %v7933
        %v8077 = vunpack.c.h.b16 %v7933
        %v8078 = vunpack.c.l.b16 %v7934
        %v8079 = vunpack.c.h.b16 %v7934
        %v8080 = vunpack.c.l.b16 %v7935
        %v8081 = vunpack.c.h.b16 %v7935
        %v8082 = vunpack.c.l.b16 %v7936
        %v8083 = vunpack.c.h.b16 %v7936
        %v8084 = vunpack.c.l.b16 %v7937
        %v8085 = vunpack.c.h.b16 %v7937
        %v8086 = vunpack.c.l.b16 %v7938
        %v8087 = vunpack.c.h.b16 %v7938
        %v8088 = vunpack.c.l.b16 %v7939
        %v8089 = vunpack.c.h.b16 %v7939
        %v8090 = vunpack.c.l.b16 %v7940
        %v8091 = vunpack.c.h.b16 %v7940
        %v8092 = vunpack.c.l.b16 %v7941
        %v8093 = vunpack.c.h.b16 %v7941
        %v8094 = vunpack.c.l.b16 %v7942
        %v8095 = vunpack.c.h.b16 %v7942
        %v8096 = vunpack.c.l.b16 %v7943
        %v8097 = vunpack.c.h.b16 %v7943
        %v8098 = vunpack.c.l.b16 %v7944
        %v8099 = vunpack.c.h.b16 %v7944
        %v8100 = vunpack.c.l.b16 %v7945
        %v8101 = vunpack.c.h.b16 %v7945
        %v8102 = vunpack.c.l.b16 %v7946
        %v8103 = vunpack.c.h.b16 %v7946
        %v8104 = vunpack.c.l.b16 %v7947
        %v8105 = vunpack.c.h.b16 %v7947
        %v8106 = vunpack.c.l.b16 %v7948
        %v8107 = vunpack.c.h.b16 %v7948
        %v8108 = vunpack.c.l.b16 %v7949
        %v8109 = vunpack.c.h.b16 %v7949
        %v8110 = vunpack.c.l.b16 %v7950
        %v8111 = vunpack.c.h.b16 %v7950
        %v8112 = vunpack.c.l.b16 %v7951
        %v8113 = vunpack.c.h.b16 %v7951
        %v8114 = vunpack.c.l.b16 %v7952
        %v8115 = vunpack.c.h.b16 %v7952
        %v8116 = vunpack.c.l.b16 %v7953
        %v8117 = vunpack.c.h.b16 %v7953
        %v8118 = vunpack.c.l.b16 %v7954
        %v8119 = vunpack.c.h.b16 %v7954
        %v8120 = vunpack.c.l.b16 %v7955
        %v8121 = vunpack.c.h.b16 %v7955
        %v8122 = vunpack.c.l.b16 %v7956
        %v8123 = vunpack.c.h.b16 %v7956
        %v8124 = vunpack.c.l.b16 %v7957
        %v8125 = vunpack.c.h.b16 %v7957
        %v8126 = vunpack.c.l.b16 %v7958
        %v8127 = vunpack.c.h.b16 %v7958
        %v8128 = vunpack.c.l.b16 %v7959
        %v8129 = vunpack.c.h.b16 %v7959
        %v8130 = vunpack.c.l.b16 %v7960
        %v8131 = vunpack.c.h.b16 %v7960
        %v8132 = vunpack.c.l.b16 %v7961
        %v8133 = vunpack.c.h.b16 %v7961
        %v8134 = vunpack.c.l.b16 %v7962
        %v8135 = vunpack.c.h.b16 %v7962
        %v8136 = vunpack.c.l.b16 %v7963
        %v8137 = vunpack.c.h.b16 %v7963
        %v8138 = vunpack.c.l.b16 %v7964
        %v8139 = vunpack.c.h.b16 %v7964
        %v8140 = vunpack.c.l.b16 %v7965
        %v8141 = vunpack.c.h.b16 %v7965
        %v8142 = vunpack.c.l.b16 %v7966
        %v8143 = vunpack.c.h.b16 %v7966
        %v8144 = vunpack.c.l.b16 %v7967
        %v8145 = vunpack.c.h.b16 %v7967
        %v8146 = vunpack.c.l.b16 %v7968
        %v8147 = vunpack.c.h.b16 %v7968
        %v8148 = vunpack.c.l.b16 %v7969
        %v8149 = vunpack.c.h.b16 %v7969
        %v8150 = vunpack.c.l.b16 %v7970
        %v8151 = vunpack.c.h.b16 %v7970
        %v8152 = vunpack.c.l.b16 %v7971
        %v8153 = vunpack.c.h.b16 %v7971
        %v8154 = vunpack.c.l.b16 %v7972
        %v8155 = vunpack.c.h.b16 %v7972
        %v8156 = vunpack.c.l.b16 %v7973
        %v8157 = vunpack.c.h.b16 %v7973
        %v8158 = vunpack.c.l.b16 %v7974
        %v8159 = vunpack.c.h.b16 %v7974
        %v8160 = vunpack.c.l.b16 %v7975
        %v8161 = vunpack.c.h.b16 %v7975
        %v8162 = vunpack.c.l.b16 %v7976
        %v8163 = vunpack.c.h.b16 %v7976
        %v8164 = vunpack.c.l.b16 %v7977
        %v8165 = vunpack.c.h.b16 %v7977
        %v8166 = vunpack.c.l.b16 %v7978
        %v8167 = vunpack.c.h.b16 %v7978
        %v8168 = vunpack.c.l.b16 %v7979
        %v8169 = vunpack.c.h.b16 %v7979
        %v8170 = vunpack.c.l.b16 %v7980
        %v8171 = vunpack.c.h.b16 %v7980
        %v8172 = vunpack.c.l.b16 %v7981
        %v8173 = vunpack.c.h.b16 %v7981
        %v8174 = vpack.c.b16 %v8048, %v8046
        %v8175 = vpack.c.b16 %v8049, %v8047
        %v8176 = vpack.c.b16 %v8052, %v8050
        %v8177 = vpack.c.b16 %v8053, %v8051
        %v8178 = vpack.c.b16 %v8056, %v8054
        %v8179 = vpack.c.b16 %v8057, %v8055
        %v8180 = vpack.c.b16 %v8060, %v8058
        %v8181 = vpack.c.b16 %v8061, %v8059
        %v8182 = vpack.c.b16 %v8064, %v8062
        %v8183 = vpack.c.b16 %v8065, %v8063
        %v8184 = vpack.c.b16 %v8068, %v8066
        %v8185 = vpack.c.b16 %v8069, %v8067
        %v8186 = vpack.c.b16 %v8072, %v8070
        %v8187 = vpack.c.b16 %v8073, %v8071
        %v8188 = vpack.c.b16 %v8076, %v8074
        %v8189 = vpack.c.b16 %v8077, %v8075
        %v8190 = vpack.c.b16 %v8080, %v8078
        %v8191 = vpack.c.b16 %v8081, %v8079
        %v8192 = vpack.c.b16 %v8084, %v8082
        %v8193 = vpack.c.b16 %v8085, %v8083
        %v8194 = vpack.c.b16 %v8088, %v8086
        %v8195 = vpack.c.b16 %v8089, %v8087
        %v8196 = vpack.c.b16 %v8092, %v8090
        %v8197 = vpack.c.b16 %v8093, %v8091
        %v8198 = vpack.c.b16 %v8096, %v8094
        %v8199 = vpack.c.b16 %v8097, %v8095
        %v8200 = vpack.c.b16 %v8100, %v8098
        %v8201 = vpack.c.b16 %v8101, %v8099
        %v8202 = vpack.c.b16 %v8104, %v8102
        %v8203 = vpack.c.b16 %v8105, %v8103
        %v8204 = vpack.c.b16 %v8108, %v8106
        %v8205 = vpack.c.b16 %v8109, %v8107
        %v8206 = vpack.c.b16 %v8112, %v8110
        %v8207 = vpack.c.b16 %v8113, %v8111
        %v8208 = vpack.c.b16 %v8116, %v8114
        %v8209 = vpack.c.b16 %v8117, %v8115
        %v8210 = vpack.c.b16 %v8120, %v8118
        %v8211 = vpack.c.b16 %v8121, %v8119
        %v8212 = vpack.c.b16 %v8124, %v8122
        %v8213 = vpack.c.b16 %v8125, %v8123
        %v8214 = vpack.c.b16 %v8128, %v8126
        %v8215 = vpack.c.b16 %v8129, %v8127
        %v8216 = vpack.c.b16 %v8132, %v8130
        %v8217 = vpack.c.b16 %v8133, %v8131
        %v8218 = vpack.c.b16 %v8136, %v8134
        %v8219 = vpack.c.b16 %v8137, %v8135
        %v8220 = vpack.c.b16 %v8140, %v8138
        %v8221 = vpack.c.b16 %v8141, %v8139
        %v8222 = vpack.c.b16 %v8144, %v8142
        %v8223 = vpack.c.b16 %v8145, %v8143
        %v8224 = vpack.c.b16 %v8148, %v8146
        %v8225 = vpack.c.b16 %v8149, %v8147
        %v8226 = vpack.c.b16 %v8152, %v8150
        %v8227 = vpack.c.b16 %v8153, %v8151
        %v8228 = vpack.c.b16 %v8156, %v8154
        %v8229 = vpack.c.b16 %v8157, %v8155
        %v8230 = vpack.c.b16 %v8160, %v8158
        %v8231 = vpack.c.b16 %v8161, %v8159
        %v8232 = vpack.c.b16 %v8164, %v8162
        %v8233 = vpack.c.b16 %v8165, %v8163
        %v8234 = vpack.c.b16 %v8168, %v8166
        %v8235 = vpack.c.b16 %v8169, %v8167
        %v8236 = vpack.c.b16 %v8172, %v8170
        %v8237 = vpack.c.b16 %v8173, %v8171
        %8302 = vmatprep.subr.bf16.mxu0 %v8189
        %8303 = vmatpush1.bf16.msra.mxu0 %v8188
        %8304 = vmatprep.subr.bf16.mxu0 %v8187
        %8305 = vmatpush1.bf16.msra.mxu0 %v8186
        %8306 = vmatprep.subr.bf16.mxu0 %v8185
        %8307 = vmatpush1.bf16.msra.mxu0 %v8184
        %8308 = vmatprep.subr.bf16.mxu0 %v8183
        %8309 = vmatpush1.bf16.msra.mxu0 %v8182
        %8310 = vmatprep.subr.bf16.mxu0 %v8181
        %8311 = vmatpush1.bf16.msra.mxu0 %v8180
        %8312 = vmatprep.subr.bf16.mxu0 %v8179
        %8313 = vmatpush1.bf16.msra.mxu0 %v8178
        %8314 = vmatprep.subr.bf16.mxu0 %v8177
        %8315 = vmatpush1.bf16.msra.mxu0 %v8176
        %8316 = vmatprep.subr.bf16.mxu0 %v8175
        %8317 = vmatpush1.bf16.msra.mxu0 %v8174
        %8318 = vmatprep.subr.bf16.mxu0 %v8205
        %8319 = vmatpush2.bf16.msra.mxu0 %v8204
        %8320 = vmatprep.subr.bf16.mxu0 %v8203
        %8321 = vmatpush2.bf16.msra.mxu0 %v8202
        %8322 = vmatprep.subr.bf16.mxu0 %v8201
        %8323 = vmatpush2.bf16.msra.mxu0 %v8200
        %8324 = vmatprep.subr.bf16.mxu0 %v8199
        %8325 = vmatpush2.bf16.msra.mxu0 %v8198
        %8326 = vmatprep.subr.bf16.mxu0 %v8197
        %8327 = vmatpush2.bf16.msra.mxu0 %v8196
        %8328 = vmatprep.subr.bf16.mxu0 %v8195
        %8329 = vmatpush2.bf16.msra.mxu0 %v8194
        %8330 = vmatprep.subr.bf16.mxu0 %v8193
        %8331 = vmatpush2.bf16.msra.mxu0 %v8192
        %8332 = vmatprep.subr.bf16.mxu0 %v8191
        %8333 = vmatpush2.bf16.msra.mxu0 %v8190
        %8334 = vmatprep.mubr.bf16.mxu0 %v7448
        %8335 = vmatmul.mubr.bf16.gmra.mxu0 %v7447
        %v8336 = vpop.f32.mrf.mxu0
        %v8337 = vadd.f32 0.0, %v8336
        %v8338 = vpop.f32.mrf.mxu0
        %v8339 = vadd.f32 0.0, %v8338
        %v8340 = vpop.f32.mrf.mxu0
        %v8341 = vpop.f32.mrf.mxu0
        %8342 = vdwg.mxu0
        %8343 = vmatprep.subr.bf16.mxu0 %v8221
        %8344 = vmatpush1.bf16.msra.mxu0 %v8220
        %8345 = vmatprep.subr.bf16.mxu0 %v8219
        %8346 = vmatpush1.bf16.msra.mxu0 %v8218
        %8347 = vmatprep.subr.bf16.mxu0 %v8217
        %8348 = vmatpush1.bf16.msra.mxu0 %v8216
        %8349 = vmatprep.subr.bf16.mxu0 %v8215
        %8350 = vmatpush1.bf16.msra.mxu0 %v8214
        %8351 = vmatprep.subr.bf16.mxu0 %v8213
        %8352 = vmatpush1.bf16.msra.mxu0 %v8212
        %8353 = vmatprep.subr.bf16.mxu0 %v8211
        %8354 = vmatpush1.bf16.msra.mxu0 %v8210
        %8355 = vmatprep.subr.bf16.mxu0 %v8209
        %8356 = vmatpush1.bf16.msra.mxu0 %v8208
        %8357 = vmatprep.subr.bf16.mxu0 %v8207
        %8358 = vmatpush1.bf16.msra.mxu0 %v8206
        %8359 = vmatprep.subr.bf16.mxu0 %v8237
        %8360 = vmatpush2.bf16.msra.mxu0 %v8236
        %8361 = vmatprep.subr.bf16.mxu0 %v8235
        %8362 = vmatpush2.bf16.msra.mxu0 %v8234
        %8363 = vmatprep.subr.bf16.mxu0 %v8233
        %8364 = vmatpush2.bf16.msra.mxu0 %v8232
        %8365 = vmatprep.subr.bf16.mxu0 %v8231
        %8366 = vmatpush2.bf16.msra.mxu0 %v8230
        %8367 = vmatprep.subr.bf16.mxu0 %v8229
        %8368 = vmatpush2.bf16.msra.mxu0 %v8228
        %8369 = vmatprep.subr.bf16.mxu0 %v8227
        %8370 = vmatpush2.bf16.msra.mxu0 %v8226
        %8371 = vmatprep.subr.bf16.mxu0 %v8225
        %8372 = vmatpush2.bf16.msra.mxu0 %v8224
        %8373 = vmatprep.subr.bf16.mxu0 %v8223
        %8374 = vmatpush2.bf16.msra.mxu0 %v8222
        %8375 = vmatprep.mubr.bf16.mxu0 %v7450
        %8376 = vmatmul.mubr.bf16.gmra.mxu0 %v7449
        %v8377 = vpop.f32.mrf.mxu0
        %v8378 = vadd.f32 %v8337, %v8377
        %v8379 = vpop.f32.mrf.mxu0
        %v8380 = vadd.f32 %v8339, %v8379
        %v8381 = vpop.f32.mrf.mxu0
        %v8382 = vpop.f32.mrf.mxu0
        %8383 = vdwg.mxu0
        %v8384 = vmax.f32 %v7911, %v8378
        %v8385 = vmax.f32 %v7913, %v8380
        %v8386 = vpack.c.bf16 %v8384, %v8384
        %v8387 = vpack.c.bf16 %v8385, %v8385
        %v8388 = vld [vmem:[%s16] sm:$0x1]
        %vm8389 = vcmask 31744
        %v8391 = vsel %vm8389, %v8388, 0
        %vm8393 = vcmask 1041408
        %v8395 = vsel %vm8393, %v8386, 0
        %v8398 = vsel %vm8393, %v8387, 0
        %8400 = vmatprep.subr.bf16.mxu0 0
        %8401 = vmatpush1.bf16.msra.mxu0 0
        %8402 = vmatprep.subr.bf16.mxu0 0
        %8403 = vmatpush1.bf16.msra.mxu0 0
        %8404 = vmatprep.subr.bf16.mxu0 0
        %8405 = vmatpush1.bf16.msra.mxu0 0
        %8406 = vmatprep.subr.bf16.mxu0 0
        %8407 = vmatpush1.bf16.msra.mxu0 0
        %8408 = vmatprep.subr.bf16.mxu0 0
        %8409 = vmatpush1.bf16.msra.mxu0 0
        %8410 = vmatprep.subr.bf16.mxu0 0
        %8411 = vmatpush1.bf16.msra.mxu0 0
        %8412 = vmatprep.subr.bf16.mxu0 0
        %8413 = vmatpush1.bf16.msra.mxu0 0
        %8414 = vmatprep.subr.bf16.mxu0 %v8398
        %8415 = vmatpush1.bf16.msra.mxu0 %v8395
        %8416 = vmatprep.subr.bf16.mxu0 0
        %8417 = vmatpush2.bf16.msra.mxu0 0
        %8418 = vmatprep.subr.bf16.mxu0 0
        %8419 = vmatpush2.bf16.msra.mxu0 0
        %8420 = vmatprep.subr.bf16.mxu0 0
        %8421 = vmatpush2.bf16.msra.mxu0 0
        %8422 = vmatprep.subr.bf16.mxu0 0
        %8423 = vmatpush2.bf16.msra.mxu0 0
        %8424 = vmatprep.subr.bf16.mxu0 0
        %8425 = vmatpush2.bf16.msra.mxu0 0
        %8426 = vmatprep.subr.bf16.mxu0 0
        %8427 = vmatpush2.bf16.msra.mxu0 0
        %8428 = vmatprep.subr.bf16.mxu0 0
        %8429 = vmatpush2.bf16.msra.mxu0 0
        %8430 = vmatprep.subr.bf16.mxu0 0
        %8431 = vmatpush2.bf16.msra.mxu0 0
        %8432 = vmatprep.mubr.bf16.mxu0 0
        %8433 = vmatmul.mubr.bf16.gmra.mxu0 %v8391
        %v8434 = vpop.f32.mrf.mxu0
        %v8435 = vadd.f32 0.0, %v8434
        %v8436 = vpop.f32.mrf.mxu0
        %v8437 = vadd.f32 0.0, %v8436
        %v8438 = vpop.f32.mrf.mxu0
        %v8439 = vpop.f32.mrf.mxu0
        %8440 = vdwg.mxu0
        %v8441 = vpack.c.bf16 %v8435, %v8435
        %v8442 = vpack.c.bf16 %v8437, %v8437
        %v8443 = vld [vmem:[#allocation19] sm:$0xff]
        %v8444 = vld [vmem:[#allocation19 + $0x8] sm:$0xff]
        %v8445 = vld [vmem:[#allocation19 + $0x10] sm:$0xff]
        %v8446 = vld [vmem:[#allocation19 + $0x18] sm:$0xff]
        %v8447 = vld [vmem:[#allocation19 + $0x20] sm:$0xff]
        %v8448 = vld [vmem:[#allocation19 + $0x28] sm:$0xff]
        %v8449 = vld [vmem:[#allocation19 + $0x30] sm:$0xff]
        %v8450 = vld [vmem:[#allocation19 + $0x38] sm:$0xff]
        %v8451 = vld [vmem:[#allocation19 + $0x40] sm:$0xff]
        %v8452 = vld [vmem:[#allocation19 + $0x48] sm:$0xff]
        %v8453 = vld [vmem:[#allocation19 + $0x50] sm:$0xff]
        %v8454 = vld [vmem:[#allocation19 + $0x58] sm:$0xff]
        %v8455 = vld [vmem:[#allocation19 + $0x60] sm:$0xff]
        %v8456 = vld [vmem:[#allocation19 + $0x68] sm:$0xff]
        %v8457 = vld [vmem:[#allocation19 + $0x70] sm:$0xff]
        %v8458 = vld [vmem:[#allocation19 + $0x78] sm:$0xff]
        %v8459 = vld [vmem:[#allocation19 + $0x80] sm:$0xff]
        %v8460 = vld [vmem:[#allocation19 + $0x88] sm:$0xff]
        %v8461 = vld [vmem:[#allocation19 + $0x90] sm:$0xff]
        %v8462 = vld [vmem:[#allocation19 + $0x98] sm:$0xff]
        %v8463 = vld [vmem:[#allocation19 + $0xa0] sm:$0xff]
        %v8464 = vld [vmem:[#allocation19 + $0xa8] sm:$0xff]
        %v8465 = vld [vmem:[#allocation19 + $0xb0] sm:$0xff]
        %v8466 = vld [vmem:[#allocation19 + $0xb8] sm:$0xff]
        %v8467 = vld [vmem:[#allocation19 + $0xc0] sm:$0xff]
        %v8468 = vld [vmem:[#allocation19 + $0xc8] sm:$0xff]
        %v8469 = vld [vmem:[#allocation19 + $0xd0] sm:$0xff]
        %v8470 = vld [vmem:[#allocation19 + $0xd8] sm:$0xff]
        %v8471 = vld [vmem:[#allocation19 + $0xe0] sm:$0xff]
        %v8472 = vld [vmem:[#allocation19 + $0xe8] sm:$0xff]
        %v8473 = vld [vmem:[#allocation19 + $0xf0] sm:$0xff]
        %v8474 = vld [vmem:[#allocation19 + $0xf8] sm:$0xff]
        %v8475 = vld [vmem:[#allocation19 + $0x100] sm:$0xff]
        %v8476 = vld [vmem:[#allocation19 + $0x108] sm:$0xff]
        %v8477 = vld [vmem:[#allocation19 + $0x110] sm:$0xff]
        %v8478 = vld [vmem:[#allocation19 + $0x118] sm:$0xff]
        %v8479 = vld [vmem:[#allocation19 + $0x120] sm:$0xff]
        %v8480 = vld [vmem:[#allocation19 + $0x128] sm:$0xff]
        %v8481 = vld [vmem:[#allocation19 + $0x130] sm:$0xff]
        %v8482 = vld [vmem:[#allocation19 + $0x138] sm:$0xff]
        %v8483 = vld [vmem:[#allocation19 + $0x140] sm:$0xff]
        %v8484 = vld [vmem:[#allocation19 + $0x148] sm:$0xff]
        %v8485 = vld [vmem:[#allocation19 + $0x150] sm:$0xff]
        %v8486 = vld [vmem:[#allocation19 + $0x158] sm:$0xff]
        %v8487 = vld [vmem:[#allocation19 + $0x160] sm:$0xff]
        %v8488 = vld [vmem:[#allocation19 + $0x168] sm:$0xff]
        %v8489 = vld [vmem:[#allocation19 + $0x170] sm:$0xff]
        %v8490 = vld [vmem:[#allocation19 + $0x178] sm:$0xff]
        %v8491 = vld [vmem:[#allocation19 + $0x180] sm:$0xff]
        %v8492 = vld [vmem:[#allocation19 + $0x188] sm:$0xff]
        %v8493 = vld [vmem:[#allocation19 + $0x190] sm:$0xff]
        %v8494 = vld [vmem:[#allocation19 + $0x198] sm:$0xff]
        %v8495 = vld [vmem:[#allocation19 + $0x1a0] sm:$0xff]
        %v8496 = vld [vmem:[#allocation19 + $0x1a8] sm:$0xff]
        %v8497 = vld [vmem:[#allocation19 + $0x1b0] sm:$0xff]
        %v8498 = vld [vmem:[#allocation19 + $0x1b8] sm:$0xff]
        %v8499 = vld [vmem:[#allocation19 + $0x1c0] sm:$0xff]
        %v8500 = vld [vmem:[#allocation19 + $0x1c8] sm:$0xff]
        %v8501 = vld [vmem:[#allocation19 + $0x1d0] sm:$0xff]
        %v8502 = vld [vmem:[#allocation19 + $0x1d8] sm:$0xff]
        %v8503 = vld [vmem:[#allocation19 + $0x1e0] sm:$0xff]
        %v8504 = vld [vmem:[#allocation19 + $0x1e8] sm:$0xff]
        %v8505 = vld [vmem:[#allocation19 + $0x1f0] sm:$0xff]
        %v8506 = vld [vmem:[#allocation19 + $0x1f8] sm:$0xff]
        %s8507 = scalar_lea.vmem %s16, 1
        %v8508 = vld [vmem:[%s8507] sm:$0x1]
        %v8510 = vsel %vm8389, %v8508, 0
        %8512 = vmatprep.subr.bf16.mxu0 0
        %8513 = vmatpush1.bf16.msra.mxu0 0
        %8514 = vmatprep.subr.bf16.mxu0 0
        %8515 = vmatpush1.bf16.msra.mxu0 0
        %8516 = vmatprep.subr.bf16.mxu0 0
        %8517 = vmatpush1.bf16.msra.mxu0 0
        %8518 = vmatprep.subr.bf16.mxu0 0
        %8519 = vmatpush1.bf16.msra.mxu0 0
        %8520 = vmatprep.subr.bf16.mxu0 0
        %8521 = vmatpush1.bf16.msra.mxu0 0
        %8522 = vmatprep.subr.bf16.mxu0 0
        %8523 = vmatpush1.bf16.msra.mxu0 0
        %8524 = vmatprep.subr.bf16.mxu0 0
        %8525 = vmatpush1.bf16.msra.mxu0 0
        %8526 = vmatprep.subr.bf16.mxu0 %v8398
        %8527 = vmatpush1.bf16.msra.mxu0 %v8395
        %8528 = vmatprep.subr.bf16.mxu0 0
        %8529 = vmatpush2.bf16.msra.mxu0 0
        %8530 = vmatprep.subr.bf16.mxu0 0
        %8531 = vmatpush2.bf16.msra.mxu0 0
        %8532 = vmatprep.subr.bf16.mxu0 0
        %8533 = vmatpush2.bf16.msra.mxu0 0
        %8534 = vmatprep.subr.bf16.mxu0 0
        %8535 = vmatpush2.bf16.msra.mxu0 0
        %8536 = vmatprep.subr.bf16.mxu0 0
        %8537 = vmatpush2.bf16.msra.mxu0 0
        %8538 = vmatprep.subr.bf16.mxu0 0
        %8539 = vmatpush2.bf16.msra.mxu0 0
        %8540 = vmatprep.subr.bf16.mxu0 0
        %8541 = vmatpush2.bf16.msra.mxu0 0
        %8542 = vmatprep.subr.bf16.mxu0 0
        %8543 = vmatpush2.bf16.msra.mxu0 0
        %8544 = vmatprep.mubr.bf16.mxu0 0
        %8545 = vmatmul.mubr.bf16.gmra.mxu0 %v8510
        %v8546 = vpop.f32.mrf.mxu0
        %v8547 = vadd.f32 0.0, %v8546
        %v8548 = vpop.f32.mrf.mxu0
        %v8549 = vadd.f32 0.0, %v8548
        %v8550 = vpop.f32.mrf.mxu0
        %v8551 = vpop.f32.mrf.mxu0
        %8552 = vdwg.mxu0
        %v8553 = vpack.c.bf16 %v8547, %v8547
        %v8554 = vpack.c.bf16 %v8549, %v8549
        %s8555 = scalar_lea.vmem [#allocation19], 512
        %v8556 = vld [vmem:[%s8555] sm:$0xff]
        %v8557 = vld [vmem:[%s8555 + $0x8] sm:$0xff]
        %v8558 = vld [vmem:[%s8555 + $0x10] sm:$0xff]
        %v8559 = vld [vmem:[%s8555 + $0x18] sm:$0xff]
        %v8560 = vld [vmem:[%s8555 + $0x20] sm:$0xff]
        %v8561 = vld [vmem:[%s8555 + $0x28] sm:$0xff]
        %v8562 = vld [vmem:[%s8555 + $0x30] sm:$0xff]
        %v8563 = vld [vmem:[%s8555 + $0x38] sm:$0xff]
        %v8564 = vld [vmem:[%s8555 + $0x40] sm:$0xff]
        %v8565 = vld [vmem:[%s8555 + $0x48] sm:$0xff]
        %v8566 = vld [vmem:[%s8555 + $0x50] sm:$0xff]
        %v8567 = vld [vmem:[%s8555 + $0x58] sm:$0xff]
        %v8568 = vld [vmem:[%s8555 + $0x60] sm:$0xff]
        %v8569 = vld [vmem:[%s8555 + $0x68] sm:$0xff]
        %v8570 = vld [vmem:[%s8555 + $0x70] sm:$0xff]
        %v8571 = vld [vmem:[%s8555 + $0x78] sm:$0xff]
        %v8572 = vld [vmem:[%s8555 + $0x80] sm:$0xff]
        %v8573 = vld [vmem:[%s8555 + $0x88] sm:$0xff]
        %v8574 = vld [vmem:[%s8555 + $0x90] sm:$0xff]
        %v8575 = vld [vmem:[%s8555 + $0x98] sm:$0xff]
        %v8576 = vld [vmem:[%s8555 + $0xa0] sm:$0xff]
        %v8577 = vld [vmem:[%s8555 + $0xa8] sm:$0xff]
        %v8578 = vld [vmem:[%s8555 + $0xb0] sm:$0xff]
        %v8579 = vld [vmem:[%s8555 + $0xb8] sm:$0xff]
        %v8580 = vld [vmem:[%s8555 + $0xc0] sm:$0xff]
        %v8581 = vld [vmem:[%s8555 + $0xc8] sm:$0xff]
        %v8582 = vld [vmem:[%s8555 + $0xd0] sm:$0xff]
        %v8583 = vld [vmem:[%s8555 + $0xd8] sm:$0xff]
        %v8584 = vld [vmem:[%s8555 + $0xe0] sm:$0xff]
        %v8585 = vld [vmem:[%s8555 + $0xe8] sm:$0xff]
        %v8586 = vld [vmem:[%s8555 + $0xf0] sm:$0xff]
        %v8587 = vld [vmem:[%s8555 + $0xf8] sm:$0xff]
        %v8588 = vld [vmem:[%s8555 + $0x100] sm:$0xff]
        %v8589 = vld [vmem:[%s8555 + $0x108] sm:$0xff]
        %v8590 = vld [vmem:[%s8555 + $0x110] sm:$0xff]
        %v8591 = vld [vmem:[%s8555 + $0x118] sm:$0xff]
        %v8592 = vld [vmem:[%s8555 + $0x120] sm:$0xff]
        %v8593 = vld [vmem:[%s8555 + $0x128] sm:$0xff]
        %v8594 = vld [vmem:[%s8555 + $0x130] sm:$0xff]
        %v8595 = vld [vmem:[%s8555 + $0x138] sm:$0xff]
        %v8596 = vld [vmem:[%s8555 + $0x140] sm:$0xff]
        %v8597 = vld [vmem:[%s8555 + $0x148] sm:$0xff]
        %v8598 = vld [vmem:[%s8555 + $0x150] sm:$0xff]
        %v8599 = vld [vmem:[%s8555 + $0x158] sm:$0xff]
        %v8600 = vld [vmem:[%s8555 + $0x160] sm:$0xff]
        %v8601 = vld [vmem:[%s8555 + $0x168] sm:$0xff]
        %v8602 = vld [vmem:[%s8555 + $0x170] sm:$0xff]
        %v8603 = vld [vmem:[%s8555 + $0x178] sm:$0xff]
        %v8604 = vld [vmem:[%s8555 + $0x180] sm:$0xff]
        %v8605 = vld [vmem:[%s8555 + $0x188] sm:$0xff]
        %v8606 = vld [vmem:[%s8555 + $0x190] sm:$0xff]
        %v8607 = vld [vmem:[%s8555 + $0x198] sm:$0xff]
        %v8608 = vld [vmem:[%s8555 + $0x1a0] sm:$0xff]
        %v8609 = vld [vmem:[%s8555 + $0x1a8] sm:$0xff]
        %v8610 = vld [vmem:[%s8555 + $0x1b0] sm:$0xff]
        %v8611 = vld [vmem:[%s8555 + $0x1b8] sm:$0xff]
        %v8612 = vld [vmem:[%s8555 + $0x1c0] sm:$0xff]
        %v8613 = vld [vmem:[%s8555 + $0x1c8] sm:$0xff]
        %v8614 = vld [vmem:[%s8555 + $0x1d0] sm:$0xff]
        %v8615 = vld [vmem:[%s8555 + $0x1d8] sm:$0xff]
        %v8616 = vld [vmem:[%s8555 + $0x1e0] sm:$0xff]
        %v8617 = vld [vmem:[%s8555 + $0x1e8] sm:$0xff]
        %v8618 = vld [vmem:[%s8555 + $0x1f0] sm:$0xff]
        %v8619 = vld [vmem:[%s8555 + $0x1f8] sm:$0xff]
        %v8684 = vunpack.c.l.b16 %v8556
        %v8685 = vunpack.c.h.b16 %v8556
        %v8686 = vunpack.c.l.b16 %v8557
        %v8687 = vunpack.c.h.b16 %v8557
        %v8688 = vunpack.c.l.b16 %v8558
        %v8689 = vunpack.c.h.b16 %v8558
        %v8690 = vunpack.c.l.b16 %v8559
        %v8691 = vunpack.c.h.b16 %v8559
        %v8692 = vunpack.c.l.b16 %v8560
        %v8693 = vunpack.c.h.b16 %v8560
        %v8694 = vunpack.c.l.b16 %v8561
        %v8695 = vunpack.c.h.b16 %v8561
        %v8696 = vunpack.c.l.b16 %v8562
        %v8697 = vunpack.c.h.b16 %v8562
        %v8698 = vunpack.c.l.b16 %v8563
        %v8699 = vunpack.c.h.b16 %v8563
        %v8700 = vunpack.c.l.b16 %v8564
        %v8701 = vunpack.c.h.b16 %v8564
        %v8702 = vunpack.c.l.b16 %v8565
        %v8703 = vunpack.c.h.b16 %v8565
        %v8704 = vunpack.c.l.b16 %v8566
        %v8705 = vunpack.c.h.b16 %v8566
        %v8706 = vunpack.c.l.b16 %v8567
        %v8707 = vunpack.c.h.b16 %v8567
        %v8708 = vunpack.c.l.b16 %v8568
        %v8709 = vunpack.c.h.b16 %v8568
        %v8710 = vunpack.c.l.b16 %v8569
        %v8711 = vunpack.c.h.b16 %v8569
        %v8712 = vunpack.c.l.b16 %v8570
        %v8713 = vunpack.c.h.b16 %v8570
        %v8714 = vunpack.c.l.b16 %v8571
        %v8715 = vunpack.c.h.b16 %v8571
        %v8716 = vunpack.c.l.b16 %v8572
        %v8717 = vunpack.c.h.b16 %v8572
        %v8718 = vunpack.c.l.b16 %v8573
        %v8719 = vunpack.c.h.b16 %v8573
        %v8720 = vunpack.c.l.b16 %v8574
        %v8721 = vunpack.c.h.b16 %v8574
        %v8722 = vunpack.c.l.b16 %v8575
        %v8723 = vunpack.c.h.b16 %v8575
        %v8724 = vunpack.c.l.b16 %v8576
        %v8725 = vunpack.c.h.b16 %v8576
        %v8726 = vunpack.c.l.b16 %v8577
        %v8727 = vunpack.c.h.b16 %v8577
        %v8728 = vunpack.c.l.b16 %v8578
        %v8729 = vunpack.c.h.b16 %v8578
        %v8730 = vunpack.c.l.b16 %v8579
        %v8731 = vunpack.c.h.b16 %v8579
        %v8732 = vunpack.c.l.b16 %v8580
        %v8733 = vunpack.c.h.b16 %v8580
        %v8734 = vunpack.c.l.b16 %v8581
        %v8735 = vunpack.c.h.b16 %v8581
        %v8736 = vunpack.c.l.b16 %v8582
        %v8737 = vunpack.c.h.b16 %v8582
        %v8738 = vunpack.c.l.b16 %v8583
        %v8739 = vunpack.c.h.b16 %v8583
        %v8740 = vunpack.c.l.b16 %v8584
        %v8741 = vunpack.c.h.b16 %v8584
        %v8742 = vunpack.c.l.b16 %v8585
        %v8743 = vunpack.c.h.b16 %v8585
        %v8744 = vunpack.c.l.b16 %v8586
        %v8745 = vunpack.c.h.b16 %v8586
        %v8746 = vunpack.c.l.b16 %v8587
        %v8747 = vunpack.c.h.b16 %v8587
        %v8748 = vunpack.c.l.b16 %v8588
        %v8749 = vunpack.c.h.b16 %v8588
        %v8750 = vunpack.c.l.b16 %v8589
        %v8751 = vunpack.c.h.b16 %v8589
        %v8752 = vunpack.c.l.b16 %v8590
        %v8753 = vunpack.c.h.b16 %v8590
        %v8754 = vunpack.c.l.b16 %v8591
        %v8755 = vunpack.c.h.b16 %v8591
        %v8756 = vunpack.c.l.b16 %v8592
        %v8757 = vunpack.c.h.b16 %v8592
        %v8758 = vunpack.c.l.b16 %v8593
        %v8759 = vunpack.c.h.b16 %v8593
        %v8760 = vunpack.c.l.b16 %v8594
        %v8761 = vunpack.c.h.b16 %v8594
        %v8762 = vunpack.c.l.b16 %v8595
        %v8763 = vunpack.c.h.b16 %v8595
        %v8764 = vunpack.c.l.b16 %v8596
        %v8765 = vunpack.c.h.b16 %v8596
        %v8766 = vunpack.c.l.b16 %v8597
        %v8767 = vunpack.c.h.b16 %v8597
        %v8768 = vunpack.c.l.b16 %v8598
        %v8769 = vunpack.c.h.b16 %v8598
        %v8770 = vunpack.c.l.b16 %v8599
        %v8771 = vunpack.c.h.b16 %v8599
        %v8772 = vunpack.c.l.b16 %v8600
        %v8773 = vunpack.c.h.b16 %v8600
        %v8774 = vunpack.c.l.b16 %v8601
        %v8775 = vunpack.c.h.b16 %v8601
        %v8776 = vunpack.c.l.b16 %v8602
        %v8777 = vunpack.c.h.b16 %v8602
        %v8778 = vunpack.c.l.b16 %v8603
        %v8779 = vunpack.c.h.b16 %v8603
        %v8780 = vunpack.c.l.b16 %v8604
        %v8781 = vunpack.c.h.b16 %v8604
        %v8782 = vunpack.c.l.b16 %v8605
        %v8783 = vunpack.c.h.b16 %v8605
        %v8784 = vunpack.c.l.b16 %v8606
        %v8785 = vunpack.c.h.b16 %v8606
        %v8786 = vunpack.c.l.b16 %v8607
        %v8787 = vunpack.c.h.b16 %v8607
        %v8788 = vunpack.c.l.b16 %v8608
        %v8789 = vunpack.c.h.b16 %v8608
        %v8790 = vunpack.c.l.b16 %v8609
        %v8791 = vunpack.c.h.b16 %v8609
        %v8792 = vunpack.c.l.b16 %v8610
        %v8793 = vunpack.c.h.b16 %v8610
        %v8794 = vunpack.c.l.b16 %v8611
        %v8795 = vunpack.c.h.b16 %v8611
        %v8796 = vunpack.c.l.b16 %v8612
        %v8797 = vunpack.c.h.b16 %v8612
        %v8798 = vunpack.c.l.b16 %v8613
        %v8799 = vunpack.c.h.b16 %v8613
        %v8800 = vunpack.c.l.b16 %v8614
        %v8801 = vunpack.c.h.b16 %v8614
        %v8802 = vunpack.c.l.b16 %v8615
        %v8803 = vunpack.c.h.b16 %v8615
        %v8804 = vunpack.c.l.b16 %v8616
        %v8805 = vunpack.c.h.b16 %v8616
        %v8806 = vunpack.c.l.b16 %v8617
        %v8807 = vunpack.c.h.b16 %v8617
        %v8808 = vunpack.c.l.b16 %v8618
        %v8809 = vunpack.c.h.b16 %v8618
        %v8810 = vunpack.c.l.b16 %v8619
        %v8811 = vunpack.c.h.b16 %v8619
        %v8812 = vpack.c.b16 %v8688, %v8684
        %v8813 = vpack.c.b16 %v8689, %v8685
        %v8814 = vpack.c.b16 %v8690, %v8686
        %v8815 = vpack.c.b16 %v8691, %v8687
        %v8816 = vpack.c.b16 %v8696, %v8692
        %v8817 = vpack.c.b16 %v8697, %v8693
        %v8818 = vpack.c.b16 %v8698, %v8694
        %v8819 = vpack.c.b16 %v8699, %v8695
        %v8820 = vpack.c.b16 %v8704, %v8700
        %v8821 = vpack.c.b16 %v8705, %v8701
        %v8822 = vpack.c.b16 %v8706, %v8702
        %v8823 = vpack.c.b16 %v8707, %v8703
        %v8824 = vpack.c.b16 %v8712, %v8708
        %v8825 = vpack.c.b16 %v8713, %v8709
        %v8826 = vpack.c.b16 %v8714, %v8710
        %v8827 = vpack.c.b16 %v8715, %v8711
        %v8828 = vpack.c.b16 %v8720, %v8716
        %v8829 = vpack.c.b16 %v8721, %v8717
        %v8830 = vpack.c.b16 %v8722, %v8718
        %v8831 = vpack.c.b16 %v8723, %v8719
        %v8832 = vpack.c.b16 %v8728, %v8724
        %v8833 = vpack.c.b16 %v8729, %v8725
        %v8834 = vpack.c.b16 %v8730, %v8726
        %v8835 = vpack.c.b16 %v8731, %v8727
        %v8836 = vpack.c.b16 %v8736, %v8732
        %v8837 = vpack.c.b16 %v8737, %v8733
        %v8838 = vpack.c.b16 %v8738, %v8734
        %v8839 = vpack.c.b16 %v8739, %v8735
        %v8840 = vpack.c.b16 %v8744, %v8740
        %v8841 = vpack.c.b16 %v8745, %v8741
        %v8842 = vpack.c.b16 %v8746, %v8742
        %v8843 = vpack.c.b16 %v8747, %v8743
        %v8844 = vpack.c.b16 %v8752, %v8748
        %v8845 = vpack.c.b16 %v8753, %v8749
        %v8846 = vpack.c.b16 %v8754, %v8750
        %v8847 = vpack.c.b16 %v8755, %v8751
        %v8848 = vpack.c.b16 %v8760, %v8756
        %v8849 = vpack.c.b16 %v8761, %v8757
        %v8850 = vpack.c.b16 %v8762, %v8758
        %v8851 = vpack.c.b16 %v8763, %v8759
        %v8852 = vpack.c.b16 %v8768, %v8764
        %v8853 = vpack.c.b16 %v8769, %v8765
        %v8854 = vpack.c.b16 %v8770, %v8766
        %v8855 = vpack.c.b16 %v8771, %v8767
        %v8856 = vpack.c.b16 %v8776, %v8772
        %v8857 = vpack.c.b16 %v8777, %v8773
        %v8858 = vpack.c.b16 %v8778, %v8774
        %v8859 = vpack.c.b16 %v8779, %v8775
        %v8860 = vpack.c.b16 %v8784, %v8780
        %v8861 = vpack.c.b16 %v8785, %v8781
        %v8862 = vpack.c.b16 %v8786, %v8782
        %v8863 = vpack.c.b16 %v8787, %v8783
        %v8864 = vpack.c.b16 %v8792, %v8788
        %v8865 = vpack.c.b16 %v8793, %v8789
        %v8866 = vpack.c.b16 %v8794, %v8790
        %v8867 = vpack.c.b16 %v8795, %v8791
        %v8868 = vpack.c.b16 %v8800, %v8796
        %v8869 = vpack.c.b16 %v8801, %v8797
        %v8870 = vpack.c.b16 %v8802, %v8798
        %v8871 = vpack.c.b16 %v8803, %v8799
        %v8872 = vpack.c.b16 %v8808, %v8804
        %v8873 = vpack.c.b16 %v8809, %v8805
        %v8874 = vpack.c.b16 %v8810, %v8806
        %v8875 = vpack.c.b16 %v8811, %v8807
        %8940 = vmatprep.subr.bf16.mxu0 %v8841
        %8941 = vmatpush1.bf16.msra.mxu0 %v8840
        %8942 = vmatprep.subr.bf16.mxu0 %v8837
        %8943 = vmatpush1.bf16.msra.mxu0 %v8836
        %8944 = vmatprep.subr.bf16.mxu0 %v8833
        %8945 = vmatpush1.bf16.msra.mxu0 %v8832
        %8946 = vmatprep.subr.bf16.mxu0 %v8829
        %8947 = vmatpush1.bf16.msra.mxu0 %v8828
        %8948 = vmatprep.subr.bf16.mxu0 %v8825
        %8949 = vmatpush1.bf16.msra.mxu0 %v8824
        %8950 = vmatprep.subr.bf16.mxu0 %v8821
        %8951 = vmatpush1.bf16.msra.mxu0 %v8820
        %8952 = vmatprep.subr.bf16.mxu0 %v8817
        %8953 = vmatpush1.bf16.msra.mxu0 %v8816
        %8954 = vmatprep.subr.bf16.mxu0 %v8813
        %8955 = vmatpush1.bf16.msra.mxu0 %v8812
        %8956 = vmatprep.subr.bf16.mxu0 %v8873
        %8957 = vmatpush2.bf16.msra.mxu0 %v8872
        %8958 = vmatprep.subr.bf16.mxu0 %v8869
        %8959 = vmatpush2.bf16.msra.mxu0 %v8868
        %8960 = vmatprep.subr.bf16.mxu0 %v8865
        %8961 = vmatpush2.bf16.msra.mxu0 %v8864
        %8962 = vmatprep.subr.bf16.mxu0 %v8861
        %8963 = vmatpush2.bf16.msra.mxu0 %v8860
        %8964 = vmatprep.subr.bf16.mxu0 %v8857
        %8965 = vmatpush2.bf16.msra.mxu0 %v8856
        %8966 = vmatprep.subr.bf16.mxu0 %v8853
        %8967 = vmatpush2.bf16.msra.mxu0 %v8852
        %8968 = vmatprep.subr.bf16.mxu0 %v8849
        %8969 = vmatpush2.bf16.msra.mxu0 %v8848
        %8970 = vmatprep.subr.bf16.mxu0 %v8845
        %8971 = vmatpush2.bf16.msra.mxu0 %v8844
        %8972 = vmatprep.mubr.bf16.mxu0 %v8554
        %8973 = vmatmul.mubr.bf16.gmra.mxu0 %v8553
        %v8974 = vpop.f32.mrf.mxu0
        %v8975 = vadd.f32 0.0, %v8974
        %v8976 = vpop.f32.mrf.mxu0
        %v8977 = vadd.f32 0.0, %v8976
        %v8978 = vpop.f32.mrf.mxu0
        %v8979 = vpop.f32.mrf.mxu0
        %8980 = vdwg.mxu0
        %8981 = vmatprep.subr.bf16.mxu0 %v8843
        %8982 = vmatpush1.bf16.msra.mxu0 %v8842
        %8983 = vmatprep.subr.bf16.mxu0 %v8839
        %8984 = vmatpush1.bf16.msra.mxu0 %v8838
        %8985 = vmatprep.subr.bf16.mxu0 %v8835
        %8986 = vmatpush1.bf16.msra.mxu0 %v8834
        %8987 = vmatprep.subr.bf16.mxu0 %v8831
        %8988 = vmatpush1.bf16.msra.mxu0 %v8830
        %8989 = vmatprep.subr.bf16.mxu0 %v8827
        %8990 = vmatpush1.bf16.msra.mxu0 %v8826
        %8991 = vmatprep.subr.bf16.mxu0 %v8823
        %8992 = vmatpush1.bf16.msra.mxu0 %v8822
        %8993 = vmatprep.subr.bf16.mxu0 %v8819
        %8994 = vmatpush1.bf16.msra.mxu0 %v8818
        %8995 = vmatprep.subr.bf16.mxu0 %v8815
        %8996 = vmatpush1.bf16.msra.mxu0 %v8814
        %8997 = vmatprep.subr.bf16.mxu0 %v8875
        %8998 = vmatpush2.bf16.msra.mxu0 %v8874
        %8999 = vmatprep.subr.bf16.mxu0 %v8871
        %9000 = vmatpush2.bf16.msra.mxu0 %v8870
        %9001 = vmatprep.subr.bf16.mxu0 %v8867
        %9002 = vmatpush2.bf16.msra.mxu0 %v8866
        %9003 = vmatprep.subr.bf16.mxu0 %v8863
        %9004 = vmatpush2.bf16.msra.mxu0 %v8862
        %9005 = vmatprep.subr.bf16.mxu0 %v8859
        %9006 = vmatpush2.bf16.msra.mxu0 %v8858
        %9007 = vmatprep.subr.bf16.mxu0 %v8855
        %9008 = vmatpush2.bf16.msra.mxu0 %v8854
        %9009 = vmatprep.subr.bf16.mxu0 %v8851
        %9010 = vmatpush2.bf16.msra.mxu0 %v8850
        %9011 = vmatprep.subr.bf16.mxu0 %v8847
        %9012 = vmatpush2.bf16.msra.mxu0 %v8846
        %9013 = vmatprep.mubr.bf16.mxu0 %v8554
        %9014 = vmatmul.mubr.bf16.gmra.mxu0 %v8553
        %v9015 = vpop.f32.mrf.mxu0
        %v9016 = vadd.f32 0.0, %v9015
        %v9017 = vpop.f32.mrf.mxu0
        %v9018 = vadd.f32 0.0, %v9017
        %v9019 = vpop.f32.mrf.mxu0
        %v9020 = vpop.f32.mrf.mxu0
        %9021 = vdwg.mxu0
        %v9086 = vunpack.c.l.b16 %v8443
        %v9087 = vunpack.c.h.b16 %v8443
        %v9088 = vunpack.c.l.b16 %v8444
        %v9089 = vunpack.c.h.b16 %v8444
        %v9090 = vunpack.c.l.b16 %v8445
        %v9091 = vunpack.c.h.b16 %v8445
        %v9092 = vunpack.c.l.b16 %v8446
        %v9093 = vunpack.c.h.b16 %v8446
        %v9094 = vunpack.c.l.b16 %v8447
        %v9095 = vunpack.c.h.b16 %v8447
        %v9096 = vunpack.c.l.b16 %v8448
        %v9097 = vunpack.c.h.b16 %v8448
        %v9098 = vunpack.c.l.b16 %v8449
        %v9099 = vunpack.c.h.b16 %v8449
        %v9100 = vunpack.c.l.b16 %v8450
        %v9101 = vunpack.c.h.b16 %v8450
        %v9102 = vunpack.c.l.b16 %v8451
        %v9103 = vunpack.c.h.b16 %v8451
        %v9104 = vunpack.c.l.b16 %v8452
        %v9105 = vunpack.c.h.b16 %v8452
        %v9106 = vunpack.c.l.b16 %v8453
        %v9107 = vunpack.c.h.b16 %v8453
        %v9108 = vunpack.c.l.b16 %v8454
        %v9109 = vunpack.c.h.b16 %v8454
        %v9110 = vunpack.c.l.b16 %v8455
        %v9111 = vunpack.c.h.b16 %v8455
        %v9112 = vunpack.c.l.b16 %v8456
        %v9113 = vunpack.c.h.b16 %v8456
        %v9114 = vunpack.c.l.b16 %v8457
        %v9115 = vunpack.c.h.b16 %v8457
        %v9116 = vunpack.c.l.b16 %v8458
        %v9117 = vunpack.c.h.b16 %v8458
        %v9118 = vunpack.c.l.b16 %v8459
        %v9119 = vunpack.c.h.b16 %v8459
        %v9120 = vunpack.c.l.b16 %v8460
        %v9121 = vunpack.c.h.b16 %v8460
        %v9122 = vunpack.c.l.b16 %v8461
        %v9123 = vunpack.c.h.b16 %v8461
        %v9124 = vunpack.c.l.b16 %v8462
        %v9125 = vunpack.c.h.b16 %v8462
        %v9126 = vunpack.c.l.b16 %v8463
        %v9127 = vunpack.c.h.b16 %v8463
        %v9128 = vunpack.c.l.b16 %v8464
        %v9129 = vunpack.c.h.b16 %v8464
        %v9130 = vunpack.c.l.b16 %v8465
        %v9131 = vunpack.c.h.b16 %v8465
        %v9132 = vunpack.c.l.b16 %v8466
        %v9133 = vunpack.c.h.b16 %v8466
        %v9134 = vunpack.c.l.b16 %v8467
        %v9135 = vunpack.c.h.b16 %v8467
        %v9136 = vunpack.c.l.b16 %v8468
        %v9137 = vunpack.c.h.b16 %v8468
        %v9138 = vunpack.c.l.b16 %v8469
        %v9139 = vunpack.c.h.b16 %v8469
        %v9140 = vunpack.c.l.b16 %v8470
        %v9141 = vunpack.c.h.b16 %v8470
        %v9142 = vunpack.c.l.b16 %v8471
        %v9143 = vunpack.c.h.b16 %v8471
        %v9144 = vunpack.c.l.b16 %v8472
        %v9145 = vunpack.c.h.b16 %v8472
        %v9146 = vunpack.c.l.b16 %v8473
        %v9147 = vunpack.c.h.b16 %v8473
        %v9148 = vunpack.c.l.b16 %v8474
        %v9149 = vunpack.c.h.b16 %v8474
        %v9150 = vunpack.c.l.b16 %v8475
        %v9151 = vunpack.c.h.b16 %v8475
        %v9152 = vunpack.c.l.b16 %v8476
        %v9153 = vunpack.c.h.b16 %v8476
        %v9154 = vunpack.c.l.b16 %v8477
        %v9155 = vunpack.c.h.b16 %v8477
        %v9156 = vunpack.c.l.b16 %v8478
        %v9157 = vunpack.c.h.b16 %v8478
        %v9158 = vunpack.c.l.b16 %v8479
        %v9159 = vunpack.c.h.b16 %v8479
        %v9160 = vunpack.c.l.b16 %v8480
        %v9161 = vunpack.c.h.b16 %v8480
        %v9162 = vunpack.c.l.b16 %v8481
        %v9163 = vunpack.c.h.b16 %v8481
        %v9164 = vunpack.c.l.b16 %v8482
        %v9165 = vunpack.c.h.b16 %v8482
        %v9166 = vunpack.c.l.b16 %v8483
        %v9167 = vunpack.c.h.b16 %v8483
        %v9168 = vunpack.c.l.b16 %v8484
        %v9169 = vunpack.c.h.b16 %v8484
        %v9170 = vunpack.c.l.b16 %v8485
        %v9171 = vunpack.c.h.b16 %v8485
        %v9172 = vunpack.c.l.b16 %v8486
        %v9173 = vunpack.c.h.b16 %v8486
        %v9174 = vunpack.c.l.b16 %v8487
        %v9175 = vunpack.c.h.b16 %v8487
        %v9176 = vunpack.c.l.b16 %v8488
        %v9177 = vunpack.c.h.b16 %v8488
        %v9178 = vunpack.c.l.b16 %v8489
        %v9179 = vunpack.c.h.b16 %v8489
        %v9180 = vunpack.c.l.b16 %v8490
        %v9181 = vunpack.c.h.b16 %v8490
        %v9182 = vunpack.c.l.b16 %v8491
        %v9183 = vunpack.c.h.b16 %v8491
        %v9184 = vunpack.c.l.b16 %v8492
        %v9185 = vunpack.c.h.b16 %v8492
        %v9186 = vunpack.c.l.b16 %v8493
        %v9187 = vunpack.c.h.b16 %v8493
        %v9188 = vunpack.c.l.b16 %v8494
        %v9189 = vunpack.c.h.b16 %v8494
        %v9190 = vunpack.c.l.b16 %v8495
        %v9191 = vunpack.c.h.b16 %v8495
        %v9192 = vunpack.c.l.b16 %v8496
        %v9193 = vunpack.c.h.b16 %v8496
        %v9194 = vunpack.c.l.b16 %v8497
        %v9195 = vunpack.c.h.b16 %v8497
        %v9196 = vunpack.c.l.b16 %v8498
        %v9197 = vunpack.c.h.b16 %v8498
        %v9198 = vunpack.c.l.b16 %v8499
        %v9199 = vunpack.c.h.b16 %v8499
        %v9200 = vunpack.c.l.b16 %v8500
        %v9201 = vunpack.c.h.b16 %v8500
        %v9202 = vunpack.c.l.b16 %v8501
        %v9203 = vunpack.c.h.b16 %v8501
        %v9204 = vunpack.c.l.b16 %v8502
        %v9205 = vunpack.c.h.b16 %v8502
        %v9206 = vunpack.c.l.b16 %v8503
        %v9207 = vunpack.c.h.b16 %v8503
        %v9208 = vunpack.c.l.b16 %v8504
        %v9209 = vunpack.c.h.b16 %v8504
        %v9210 = vunpack.c.l.b16 %v8505
        %v9211 = vunpack.c.h.b16 %v8505
        %v9212 = vunpack.c.l.b16 %v8506
        %v9213 = vunpack.c.h.b16 %v8506
        %v9214 = vpack.c.b16 %v9090, %v9086
        %v9215 = vpack.c.b16 %v9091, %v9087
        %v9216 = vpack.c.b16 %v9092, %v9088
        %v9217 = vpack.c.b16 %v9093, %v9089
        %v9218 = vpack.c.b16 %v9098, %v9094
        %v9219 = vpack.c.b16 %v9099, %v9095
        %v9220 = vpack.c.b16 %v9100, %v9096
        %v9221 = vpack.c.b16 %v9101, %v9097
        %v9222 = vpack.c.b16 %v9106, %v9102
        %v9223 = vpack.c.b16 %v9107, %v9103
        %v9224 = vpack.c.b16 %v9108, %v9104
        %v9225 = vpack.c.b16 %v9109, %v9105
        %v9226 = vpack.c.b16 %v9114, %v9110
        %v9227 = vpack.c.b16 %v9115, %v9111
        %v9228 = vpack.c.b16 %v9116, %v9112
        %v9229 = vpack.c.b16 %v9117, %v9113
        %v9230 = vpack.c.b16 %v9122, %v9118
        %v9231 = vpack.c.b16 %v9123, %v9119
        %v9232 = vpack.c.b16 %v9124, %v9120
        %v9233 = vpack.c.b16 %v9125, %v9121
        %v9234 = vpack.c.b16 %v9130, %v9126
        %v9235 = vpack.c.b16 %v9131, %v9127
        %v9236 = vpack.c.b16 %v9132, %v9128
        %v9237 = vpack.c.b16 %v9133, %v9129
        %v9238 = vpack.c.b16 %v9138, %v9134
        %v9239 = vpack.c.b16 %v9139, %v9135
        %v9240 = vpack.c.b16 %v9140, %v9136
        %v9241 = vpack.c.b16 %v9141, %v9137
        %v9242 = vpack.c.b16 %v9146, %v9142
        %v9243 = vpack.c.b16 %v9147, %v9143
        %v9244 = vpack.c.b16 %v9148, %v9144
        %v9245 = vpack.c.b16 %v9149, %v9145
        %v9246 = vpack.c.b16 %v9154, %v9150
        %v9247 = vpack.c.b16 %v9155, %v9151
        %v9248 = vpack.c.b16 %v9156, %v9152
        %v9249 = vpack.c.b16 %v9157, %v9153
        %v9250 = vpack.c.b16 %v9162, %v9158
        %v9251 = vpack.c.b16 %v9163, %v9159
        %v9252 = vpack.c.b16 %v9164, %v9160
        %v9253 = vpack.c.b16 %v9165, %v9161
        %v9254 = vpack.c.b16 %v9170, %v9166
        %v9255 = vpack.c.b16 %v9171, %v9167
        %v9256 = vpack.c.b16 %v9172, %v9168
        %v9257 = vpack.c.b16 %v9173, %v9169
        %v9258 = vpack.c.b16 %v9178, %v9174
        %v9259 = vpack.c.b16 %v9179, %v9175
        %v9260 = vpack.c.b16 %v9180, %v9176
        %v9261 = vpack.c.b16 %v9181, %v9177
        %v9262 = vpack.c.b16 %v9186, %v9182
        %v9263 = vpack.c.b16 %v9187, %v9183
        %v9264 = vpack.c.b16 %v9188, %v9184
        %v9265 = vpack.c.b16 %v9189, %v9185
        %v9266 = vpack.c.b16 %v9194, %v9190
        %v9267 = vpack.c.b16 %v9195, %v9191
        %v9268 = vpack.c.b16 %v9196, %v9192
        %v9269 = vpack.c.b16 %v9197, %v9193
        %v9270 = vpack.c.b16 %v9202, %v9198
        %v9271 = vpack.c.b16 %v9203, %v9199
        %v9272 = vpack.c.b16 %v9204, %v9200
        %v9273 = vpack.c.b16 %v9205, %v9201
        %v9274 = vpack.c.b16 %v9210, %v9206
        %v9275 = vpack.c.b16 %v9211, %v9207
        %v9276 = vpack.c.b16 %v9212, %v9208
        %v9277 = vpack.c.b16 %v9213, %v9209
        %9342 = vmatprep.subr.bf16.mxu0 %v9243
        %9343 = vmatpush1.bf16.msra.mxu0 %v9242
        %9344 = vmatprep.subr.bf16.mxu0 %v9239
        %9345 = vmatpush1.bf16.msra.mxu0 %v9238
        %9346 = vmatprep.subr.bf16.mxu0 %v9235
        %9347 = vmatpush1.bf16.msra.mxu0 %v9234
        %9348 = vmatprep.subr.bf16.mxu0 %v9231
        %9349 = vmatpush1.bf16.msra.mxu0 %v9230
        %9350 = vmatprep.subr.bf16.mxu0 %v9227
        %9351 = vmatpush1.bf16.msra.mxu0 %v9226
        %9352 = vmatprep.subr.bf16.mxu0 %v9223
        %9353 = vmatpush1.bf16.msra.mxu0 %v9222
        %9354 = vmatprep.subr.bf16.mxu0 %v9219
        %9355 = vmatpush1.bf16.msra.mxu0 %v9218
        %9356 = vmatprep.subr.bf16.mxu0 %v9215
        %9357 = vmatpush1.bf16.msra.mxu0 %v9214
        %9358 = vmatprep.subr.bf16.mxu0 %v9275
        %9359 = vmatpush2.bf16.msra.mxu0 %v9274
        %9360 = vmatprep.subr.bf16.mxu0 %v9271
        %9361 = vmatpush2.bf16.msra.mxu0 %v9270
        %9362 = vmatprep.subr.bf16.mxu0 %v9267
        %9363 = vmatpush2.bf16.msra.mxu0 %v9266
        %9364 = vmatprep.subr.bf16.mxu0 %v9263
        %9365 = vmatpush2.bf16.msra.mxu0 %v9262
        %9366 = vmatprep.subr.bf16.mxu0 %v9259
        %9367 = vmatpush2.bf16.msra.mxu0 %v9258
        %9368 = vmatprep.subr.bf16.mxu0 %v9255
        %9369 = vmatpush2.bf16.msra.mxu0 %v9254
        %9370 = vmatprep.subr.bf16.mxu0 %v9251
        %9371 = vmatpush2.bf16.msra.mxu0 %v9250
        %9372 = vmatprep.subr.bf16.mxu0 %v9247
        %9373 = vmatpush2.bf16.msra.mxu0 %v9246
        %9374 = vmatprep.mubr.bf16.mxu0 %v8442
        %9375 = vmatmul.mubr.bf16.gmra.mxu0 %v8441
        %v9376 = vpop.f32.mrf.mxu0
        %v9377 = vadd.f32 %v8975, %v9376
        %v9378 = vpop.f32.mrf.mxu0
        %v9379 = vadd.f32 %v8977, %v9378
        %v9380 = vpop.f32.mrf.mxu0
        %v9381 = vpop.f32.mrf.mxu0
        %9382 = vdwg.mxu0
        %9383 = vmatprep.subr.bf16.mxu0 %v9245
        %9384 = vmatpush1.bf16.msra.mxu0 %v9244
        %9385 = vmatprep.subr.bf16.mxu0 %v9241
        %9386 = vmatpush1.bf16.msra.mxu0 %v9240
        %9387 = vmatprep.subr.bf16.mxu0 %v9237
        %9388 = vmatpush1.bf16.msra.mxu0 %v9236
        %9389 = vmatprep.subr.bf16.mxu0 %v9233
        %9390 = vmatpush1.bf16.msra.mxu0 %v9232
        %9391 = vmatprep.subr.bf16.mxu0 %v9229
        %9392 = vmatpush1.bf16.msra.mxu0 %v9228
        %9393 = vmatprep.subr.bf16.mxu0 %v9225
        %9394 = vmatpush1.bf16.msra.mxu0 %v9224
        %9395 = vmatprep.subr.bf16.mxu0 %v9221
        %9396 = vmatpush1.bf16.msra.mxu0 %v9220
        %9397 = vmatprep.subr.bf16.mxu0 %v9217
        %9398 = vmatpush1.bf16.msra.mxu0 %v9216
        %9399 = vmatprep.subr.bf16.mxu0 %v9277
        %9400 = vmatpush2.bf16.msra.mxu0 %v9276
        %9401 = vmatprep.subr.bf16.mxu0 %v9273
        %9402 = vmatpush2.bf16.msra.mxu0 %v9272
        %9403 = vmatprep.subr.bf16.mxu0 %v9269
        %9404 = vmatpush2.bf16.msra.mxu0 %v9268
        %9405 = vmatprep.subr.bf16.mxu0 %v9265
        %9406 = vmatpush2.bf16.msra.mxu0 %v9264
        %9407 = vmatprep.subr.bf16.mxu0 %v9261
        %9408 = vmatpush2.bf16.msra.mxu0 %v9260
        %9409 = vmatprep.subr.bf16.mxu0 %v9257
        %9410 = vmatpush2.bf16.msra.mxu0 %v9256
        %9411 = vmatprep.subr.bf16.mxu0 %v9253
        %9412 = vmatpush2.bf16.msra.mxu0 %v9252
        %9413 = vmatprep.subr.bf16.mxu0 %v9249
        %9414 = vmatpush2.bf16.msra.mxu0 %v9248
        %9415 = vmatprep.mubr.bf16.mxu0 %v8442
        %9416 = vmatmul.mubr.bf16.gmra.mxu0 %v8441
        %v9417 = vpop.f32.mrf.mxu0
        %v9418 = vadd.f32 %v9016, %v9417
        %v9419 = vpop.f32.mrf.mxu0
        %v9420 = vadd.f32 %v9018, %v9419
        %v9421 = vpop.f32.mrf.mxu0
        %v9422 = vpop.f32.mrf.mxu0
        %9423 = vdwg.mxu0
        %s9424 = scalar_lea.vmem %s16, 2
        %v9425 = vld [vmem:[%s9424] sm:$0x1]
        %v9427 = vsel %vm8389, %v9425, 0
        %9429 = vmatprep.subr.bf16.mxu0 0
        %9430 = vmatpush1.bf16.msra.mxu0 0
        %9431 = vmatprep.subr.bf16.mxu0 0
        %9432 = vmatpush1.bf16.msra.mxu0 0
        %9433 = vmatprep.subr.bf16.mxu0 0
        %9434 = vmatpush1.bf16.msra.mxu0 0
        %9435 = vmatprep.subr.bf16.mxu0 0
        %9436 = vmatpush1.bf16.msra.mxu0 0
        %9437 = vmatprep.subr.bf16.mxu0 0
        %9438 = vmatpush1.bf16.msra.mxu0 0
        %9439 = vmatprep.subr.bf16.mxu0 0
        %9440 = vmatpush1.bf16.msra.mxu0 0
        %9441 = vmatprep.subr.bf16.mxu0 0
        %9442 = vmatpush1.bf16.msra.mxu0 0
        %9443 = vmatprep.subr.bf16.mxu0 %v8398
        %9444 = vmatpush1.bf16.msra.mxu0 %v8395
        %9445 = vmatprep.subr.bf16.mxu0 0
        %9446 = vmatpush2.bf16.msra.mxu0 0
        %9447 = vmatprep.subr.bf16.mxu0 0
        %9448 = vmatpush2.bf16.msra.mxu0 0
        %9449 = vmatprep.subr.bf16.mxu0 0
        %9450 = vmatpush2.bf16.msra.mxu0 0
        %9451 = vmatprep.subr.bf16.mxu0 0
        %9452 = vmatpush2.bf16.msra.mxu0 0
        %9453 = vmatprep.subr.bf16.mxu0 0
        %9454 = vmatpush2.bf16.msra.mxu0 0
        %9455 = vmatprep.subr.bf16.mxu0 0
        %9456 = vmatpush2.bf16.msra.mxu0 0
        %9457 = vmatprep.subr.bf16.mxu0 0
        %9458 = vmatpush2.bf16.msra.mxu0 0
        %9459 = vmatprep.subr.bf16.mxu0 0
        %9460 = vmatpush2.bf16.msra.mxu0 0
        %9461 = vmatprep.mubr.bf16.mxu0 0
        %9462 = vmatmul.mubr.bf16.gmra.mxu0 %v9427
        %v9463 = vpop.f32.mrf.mxu0
        %v9464 = vadd.f32 0.0, %v9463
        %v9465 = vpop.f32.mrf.mxu0
        %v9466 = vadd.f32 0.0, %v9465
        %v9467 = vpop.f32.mrf.mxu0
        %v9468 = vpop.f32.mrf.mxu0
        %9469 = vdwg.mxu0
        %v9470 = vpack.c.bf16 %v9464, %v9464
        %v9471 = vpack.c.bf16 %v9466, %v9466
        %s9472 = scalar_lea.vmem [#allocation19], 1024
        %v9473 = vld [vmem:[%s9472] sm:$0xff]
        %v9474 = vld [vmem:[%s9472 + $0x8] sm:$0xff]
        %v9475 = vld [vmem:[%s9472 + $0x10] sm:$0xff]
        %v9476 = vld [vmem:[%s9472 + $0x18] sm:$0xff]
        %v9477 = vld [vmem:[%s9472 + $0x20] sm:$0xff]
        %v9478 = vld [vmem:[%s9472 + $0x28] sm:$0xff]
        %v9479 = vld [vmem:[%s9472 + $0x30] sm:$0xff]
        %v9480 = vld [vmem:[%s9472 + $0x38] sm:$0xff]
        %v9481 = vld [vmem:[%s9472 + $0x40] sm:$0xff]
        %v9482 = vld [vmem:[%s9472 + $0x48] sm:$0xff]
        %v9483 = vld [vmem:[%s9472 + $0x50] sm:$0xff]
        %v9484 = vld [vmem:[%s9472 + $0x58] sm:$0xff]
        %v9485 = vld [vmem:[%s9472 + $0x60] sm:$0xff]
        %v9486 = vld [vmem:[%s9472 + $0x68] sm:$0xff]
        %v9487 = vld [vmem:[%s9472 + $0x70] sm:$0xff]
        %v9488 = vld [vmem:[%s9472 + $0x78] sm:$0xff]
        %v9489 = vld [vmem:[%s9472 + $0x80] sm:$0xff]
        %v9490 = vld [vmem:[%s9472 + $0x88] sm:$0xff]
        %v9491 = vld [vmem:[%s9472 + $0x90] sm:$0xff]
        %v9492 = vld [vmem:[%s9472 + $0x98] sm:$0xff]
        %v9493 = vld [vmem:[%s9472 + $0xa0] sm:$0xff]
        %v9494 = vld [vmem:[%s9472 + $0xa8] sm:$0xff]
        %v9495 = vld [vmem:[%s9472 + $0xb0] sm:$0xff]
        %v9496 = vld [vmem:[%s9472 + $0xb8] sm:$0xff]
        %v9497 = vld [vmem:[%s9472 + $0xc0] sm:$0xff]
        %v9498 = vld [vmem:[%s9472 + $0xc8] sm:$0xff]
        %v9499 = vld [vmem:[%s9472 + $0xd0] sm:$0xff]
        %v9500 = vld [vmem:[%s9472 + $0xd8] sm:$0xff]
        %v9501 = vld [vmem:[%s9472 + $0xe0] sm:$0xff]
        %v9502 = vld [vmem:[%s9472 + $0xe8] sm:$0xff]
        %v9503 = vld [vmem:[%s9472 + $0xf0] sm:$0xff]
        %v9504 = vld [vmem:[%s9472 + $0xf8] sm:$0xff]
        %v9505 = vld [vmem:[%s9472 + $0x100] sm:$0xff]
        %v9506 = vld [vmem:[%s9472 + $0x108] sm:$0xff]
        %v9507 = vld [vmem:[%s9472 + $0x110] sm:$0xff]
        %v9508 = vld [vmem:[%s9472 + $0x118] sm:$0xff]
        %v9509 = vld [vmem:[%s9472 + $0x120] sm:$0xff]
        %v9510 = vld [vmem:[%s9472 + $0x128] sm:$0xff]
        %v9511 = vld [vmem:[%s9472 + $0x130] sm:$0xff]
        %v9512 = vld [vmem:[%s9472 + $0x138] sm:$0xff]
        %v9513 = vld [vmem:[%s9472 + $0x140] sm:$0xff]
        %v9514 = vld [vmem:[%s9472 + $0x148] sm:$0xff]
        %v9515 = vld [vmem:[%s9472 + $0x150] sm:$0xff]
        %v9516 = vld [vmem:[%s9472 + $0x158] sm:$0xff]
        %v9517 = vld [vmem:[%s9472 + $0x160] sm:$0xff]
        %v9518 = vld [vmem:[%s9472 + $0x168] sm:$0xff]
        %v9519 = vld [vmem:[%s9472 + $0x170] sm:$0xff]
        %v9520 = vld [vmem:[%s9472 + $0x178] sm:$0xff]
        %v9521 = vld [vmem:[%s9472 + $0x180] sm:$0xff]
        %v9522 = vld [vmem:[%s9472 + $0x188] sm:$0xff]
        %v9523 = vld [vmem:[%s9472 + $0x190] sm:$0xff]
        %v9524 = vld [vmem:[%s9472 + $0x198] sm:$0xff]
        %v9525 = vld [vmem:[%s9472 + $0x1a0] sm:$0xff]
        %v9526 = vld [vmem:[%s9472 + $0x1a8] sm:$0xff]
        %v9527 = vld [vmem:[%s9472 + $0x1b0] sm:$0xff]
        %v9528 = vld [vmem:[%s9472 + $0x1b8] sm:$0xff]
        %v9529 = vld [vmem:[%s9472 + $0x1c0] sm:$0xff]
        %v9530 = vld [vmem:[%s9472 + $0x1c8] sm:$0xff]
        %v9531 = vld [vmem:[%s9472 + $0x1d0] sm:$0xff]
        %v9532 = vld [vmem:[%s9472 + $0x1d8] sm:$0xff]
        %v9533 = vld [vmem:[%s9472 + $0x1e0] sm:$0xff]
        %v9534 = vld [vmem:[%s9472 + $0x1e8] sm:$0xff]
        %v9535 = vld [vmem:[%s9472 + $0x1f0] sm:$0xff]
        %v9536 = vld [vmem:[%s9472 + $0x1f8] sm:$0xff]
        %v9601 = vunpack.c.l.b16 %v9473
        %v9602 = vunpack.c.h.b16 %v9473
        %v9603 = vunpack.c.l.b16 %v9474
        %v9604 = vunpack.c.h.b16 %v9474
        %v9605 = vunpack.c.l.b16 %v9475
        %v9606 = vunpack.c.h.b16 %v9475
        %v9607 = vunpack.c.l.b16 %v9476
        %v9608 = vunpack.c.h.b16 %v9476
        %v9609 = vunpack.c.l.b16 %v9477
        %v9610 = vunpack.c.h.b16 %v9477
        %v9611 = vunpack.c.l.b16 %v9478
        %v9612 = vunpack.c.h.b16 %v9478
        %v9613 = vunpack.c.l.b16 %v9479
        %v9614 = vunpack.c.h.b16 %v9479
        %v9615 = vunpack.c.l.b16 %v9480
        %v9616 = vunpack.c.h.b16 %v9480
        %v9617 = vunpack.c.l.b16 %v9481
        %v9618 = vunpack.c.h.b16 %v9481
        %v9619 = vunpack.c.l.b16 %v9482
        %v9620 = vunpack.c.h.b16 %v9482
        %v9621 = vunpack.c.l.b16 %v9483
        %v9622 = vunpack.c.h.b16 %v9483
        %v9623 = vunpack.c.l.b16 %v9484
        %v9624 = vunpack.c.h.b16 %v9484
        %v9625 = vunpack.c.l.b16 %v9485
        %v9626 = vunpack.c.h.b16 %v9485
        %v9627 = vunpack.c.l.b16 %v9486
        %v9628 = vunpack.c.h.b16 %v9486
        %v9629 = vunpack.c.l.b16 %v9487
        %v9630 = vunpack.c.h.b16 %v9487
        %v9631 = vunpack.c.l.b16 %v9488
        %v9632 = vunpack.c.h.b16 %v9488
        %v9633 = vunpack.c.l.b16 %v9489
        %v9634 = vunpack.c.h.b16 %v9489
        %v9635 = vunpack.c.l.b16 %v9490
        %v9636 = vunpack.c.h.b16 %v9490
        %v9637 = vunpack.c.l.b16 %v9491
        %v9638 = vunpack.c.h.b16 %v9491
        %v9639 = vunpack.c.l.b16 %v9492
        %v9640 = vunpack.c.h.b16 %v9492
        %v9641 = vunpack.c.l.b16 %v9493
        %v9642 = vunpack.c.h.b16 %v9493
        %v9643 = vunpack.c.l.b16 %v9494
        %v9644 = vunpack.c.h.b16 %v9494
        %v9645 = vunpack.c.l.b16 %v9495
        %v9646 = vunpack.c.h.b16 %v9495
        %v9647 = vunpack.c.l.b16 %v9496
        %v9648 = vunpack.c.h.b16 %v9496
        %v9649 = vunpack.c.l.b16 %v9497
        %v9650 = vunpack.c.h.b16 %v9497
        %v9651 = vunpack.c.l.b16 %v9498
        %v9652 = vunpack.c.h.b16 %v9498
        %v9653 = vunpack.c.l.b16 %v9499
        %v9654 = vunpack.c.h.b16 %v9499
        %v9655 = vunpack.c.l.b16 %v9500
        %v9656 = vunpack.c.h.b16 %v9500
        %v9657 = vunpack.c.l.b16 %v9501
        %v9658 = vunpack.c.h.b16 %v9501
        %v9659 = vunpack.c.l.b16 %v9502
        %v9660 = vunpack.c.h.b16 %v9502
        %v9661 = vunpack.c.l.b16 %v9503
        %v9662 = vunpack.c.h.b16 %v9503
        %v9663 = vunpack.c.l.b16 %v9504
        %v9664 = vunpack.c.h.b16 %v9504
        %v9665 = vunpack.c.l.b16 %v9505
        %v9666 = vunpack.c.h.b16 %v9505
        %v9667 = vunpack.c.l.b16 %v9506
        %v9668 = vunpack.c.h.b16 %v9506
        %v9669 = vunpack.c.l.b16 %v9507
        %v9670 = vunpack.c.h.b16 %v9507
        %v9671 = vunpack.c.l.b16 %v9508
        %v9672 = vunpack.c.h.b16 %v9508
        %v9673 = vunpack.c.l.b16 %v9509
        %v9674 = vunpack.c.h.b16 %v9509
        %v9675 = vunpack.c.l.b16 %v9510
        %v9676 = vunpack.c.h.b16 %v9510
        %v9677 = vunpack.c.l.b16 %v9511
        %v9678 = vunpack.c.h.b16 %v9511
        %v9679 = vunpack.c.l.b16 %v9512
        %v9680 = vunpack.c.h.b16 %v9512
        %v9681 = vunpack.c.l.b16 %v9513
        %v9682 = vunpack.c.h.b16 %v9513
        %v9683 = vunpack.c.l.b16 %v9514
        %v9684 = vunpack.c.h.b16 %v9514
        %v9685 = vunpack.c.l.b16 %v9515
        %v9686 = vunpack.c.h.b16 %v9515
        %v9687 = vunpack.c.l.b16 %v9516
        %v9688 = vunpack.c.h.b16 %v9516
        %v9689 = vunpack.c.l.b16 %v9517
        %v9690 = vunpack.c.h.b16 %v9517
        %v9691 = vunpack.c.l.b16 %v9518
        %v9692 = vunpack.c.h.b16 %v9518
        %v9693 = vunpack.c.l.b16 %v9519
        %v9694 = vunpack.c.h.b16 %v9519
        %v9695 = vunpack.c.l.b16 %v9520
        %v9696 = vunpack.c.h.b16 %v9520
        %v9697 = vunpack.c.l.b16 %v9521
        %v9698 = vunpack.c.h.b16 %v9521
        %v9699 = vunpack.c.l.b16 %v9522
        %v9700 = vunpack.c.h.b16 %v9522
        %v9701 = vunpack.c.l.b16 %v9523
        %v9702 = vunpack.c.h.b16 %v9523
        %v9703 = vunpack.c.l.b16 %v9524
        %v9704 = vunpack.c.h.b16 %v9524
        %v9705 = vunpack.c.l.b16 %v9525
        %v9706 = vunpack.c.h.b16 %v9525
        %v9707 = vunpack.c.l.b16 %v9526
        %v9708 = vunpack.c.h.b16 %v9526
        %v9709 = vunpack.c.l.b16 %v9527
        %v9710 = vunpack.c.h.b16 %v9527
        %v9711 = vunpack.c.l.b16 %v9528
        %v9712 = vunpack.c.h.b16 %v9528
        %v9713 = vunpack.c.l.b16 %v9529
        %v9714 = vunpack.c.h.b16 %v9529
        %v9715 = vunpack.c.l.b16 %v9530
        %v9716 = vunpack.c.h.b16 %v9530
        %v9717 = vunpack.c.l.b16 %v9531
        %v9718 = vunpack.c.h.b16 %v9531
        %v9719 = vunpack.c.l.b16 %v9532
        %v9720 = vunpack.c.h.b16 %v9532
        %v9721 = vunpack.c.l.b16 %v9533
        %v9722 = vunpack.c.h.b16 %v9533
        %v9723 = vunpack.c.l.b16 %v9534
        %v9724 = vunpack.c.h.b16 %v9534
        %v9725 = vunpack.c.l.b16 %v9535
        %v9726 = vunpack.c.h.b16 %v9535
        %v9727 = vunpack.c.l.b16 %v9536
        %v9728 = vunpack.c.h.b16 %v9536
        %v9729 = vpack.c.b16 %v9605, %v9601
        %v9730 = vpack.c.b16 %v9606, %v9602
        %v9731 = vpack.c.b16 %v9607, %v9603
        %v9732 = vpack.c.b16 %v9608, %v9604
        %v9733 = vpack.c.b16 %v9613, %v9609
        %v9734 = vpack.c.b16 %v9614, %v9610
        %v9735 = vpack.c.b16 %v9615, %v9611
        %v9736 = vpack.c.b16 %v9616, %v9612
        %v9737 = vpack.c.b16 %v9621, %v9617
        %v9738 = vpack.c.b16 %v9622, %v9618
        %v9739 = vpack.c.b16 %v9623, %v9619
        %v9740 = vpack.c.b16 %v9624, %v9620
        %v9741 = vpack.c.b16 %v9629, %v9625
        %v9742 = vpack.c.b16 %v9630, %v9626
        %v9743 = vpack.c.b16 %v9631, %v9627
        %v9744 = vpack.c.b16 %v9632, %v9628
        %v9745 = vpack.c.b16 %v9637, %v9633
        %v9746 = vpack.c.b16 %v9638, %v9634
        %v9747 = vpack.c.b16 %v9639, %v9635
        %v9748 = vpack.c.b16 %v9640, %v9636
        %v9749 = vpack.c.b16 %v9645, %v9641
        %v9750 = vpack.c.b16 %v9646, %v9642
        %v9751 = vpack.c.b16 %v9647, %v9643
        %v9752 = vpack.c.b16 %v9648, %v9644
        %v9753 = vpack.c.b16 %v9653, %v9649
        %v9754 = vpack.c.b16 %v9654, %v9650
        %v9755 = vpack.c.b16 %v9655, %v9651
        %v9756 = vpack.c.b16 %v9656, %v9652
        %v9757 = vpack.c.b16 %v9661, %v9657
        %v9758 = vpack.c.b16 %v9662, %v9658
        %v9759 = vpack.c.b16 %v9663, %v9659
        %v9760 = vpack.c.b16 %v9664, %v9660
        %v9761 = vpack.c.b16 %v9669, %v9665
        %v9762 = vpack.c.b16 %v9670, %v9666
        %v9763 = vpack.c.b16 %v9671, %v9667
        %v9764 = vpack.c.b16 %v9672, %v9668
        %v9765 = vpack.c.b16 %v9677, %v9673
        %v9766 = vpack.c.b16 %v9678, %v9674
        %v9767 = vpack.c.b16 %v9679, %v9675
        %v9768 = vpack.c.b16 %v9680, %v9676
        %v9769 = vpack.c.b16 %v9685, %v9681
        %v9770 = vpack.c.b16 %v9686, %v9682
        %v9771 = vpack.c.b16 %v9687, %v9683
        %v9772 = vpack.c.b16 %v9688, %v9684
        %v9773 = vpack.c.b16 %v9693, %v9689
        %v9774 = vpack.c.b16 %v9694, %v9690
        %v9775 = vpack.c.b16 %v9695, %v9691
        %v9776 = vpack.c.b16 %v9696, %v9692
        %v9777 = vpack.c.b16 %v9701, %v9697
        %v9778 = vpack.c.b16 %v9702, %v9698
        %v9779 = vpack.c.b16 %v9703, %v9699
        %v9780 = vpack.c.b16 %v9704, %v9700
        %v9781 = vpack.c.b16 %v9709, %v9705
        %v9782 = vpack.c.b16 %v9710, %v9706
        %v9783 = vpack.c.b16 %v9711, %v9707
        %v9784 = vpack.c.b16 %v9712, %v9708
        %v9785 = vpack.c.b16 %v9717, %v9713
        %v9786 = vpack.c.b16 %v9718, %v9714
        %v9787 = vpack.c.b16 %v9719, %v9715
        %v9788 = vpack.c.b16 %v9720, %v9716
        %v9789 = vpack.c.b16 %v9725, %v9721
        %v9790 = vpack.c.b16 %v9726, %v9722
        %v9791 = vpack.c.b16 %v9727, %v9723
        %v9792 = vpack.c.b16 %v9728, %v9724
        %9857 = vmatprep.subr.bf16.mxu0 %v9758
        %9858 = vmatpush1.bf16.msra.mxu0 %v9757
        %9859 = vmatprep.subr.bf16.mxu0 %v9754
        %9860 = vmatpush1.bf16.msra.mxu0 %v9753
        %9861 = vmatprep.subr.bf16.mxu0 %v9750
        %9862 = vmatpush1.bf16.msra.mxu0 %v9749
        %9863 = vmatprep.subr.bf16.mxu0 %v9746
        %9864 = vmatpush1.bf16.msra.mxu0 %v9745
        %9865 = vmatprep.subr.bf16.mxu0 %v9742
        %9866 = vmatpush1.bf16.msra.mxu0 %v9741
        %9867 = vmatprep.subr.bf16.mxu0 %v9738
        %9868 = vmatpush1.bf16.msra.mxu0 %v9737
        %9869 = vmatprep.subr.bf16.mxu0 %v9734
        %9870 = vmatpush1.bf16.msra.mxu0 %v9733
        %9871 = vmatprep.subr.bf16.mxu0 %v9730
        %9872 = vmatpush1.bf16.msra.mxu0 %v9729
        %9873 = vmatprep.subr.bf16.mxu0 %v9790
        %9874 = vmatpush2.bf16.msra.mxu0 %v9789
        %9875 = vmatprep.subr.bf16.mxu0 %v9786
        %9876 = vmatpush2.bf16.msra.mxu0 %v9785
        %9877 = vmatprep.subr.bf16.mxu0 %v9782
        %9878 = vmatpush2.bf16.msra.mxu0 %v9781
        %9879 = vmatprep.subr.bf16.mxu0 %v9778
        %9880 = vmatpush2.bf16.msra.mxu0 %v9777
        %9881 = vmatprep.subr.bf16.mxu0 %v9774
        %9882 = vmatpush2.bf16.msra.mxu0 %v9773
        %9883 = vmatprep.subr.bf16.mxu0 %v9770
        %9884 = vmatpush2.bf16.msra.mxu0 %v9769
        %9885 = vmatprep.subr.bf16.mxu0 %v9766
        %9886 = vmatpush2.bf16.msra.mxu0 %v9765
        %9887 = vmatprep.subr.bf16.mxu0 %v9762
        %9888 = vmatpush2.bf16.msra.mxu0 %v9761
        %9889 = vmatprep.mubr.bf16.mxu0 %v9471
        %9890 = vmatmul.mubr.bf16.gmra.mxu0 %v9470
        %v9891 = vpop.f32.mrf.mxu0
        %v9892 = vadd.f32 0.0, %v9891
        %v9893 = vpop.f32.mrf.mxu0
        %v9894 = vadd.f32 0.0, %v9893
        %v9895 = vpop.f32.mrf.mxu0
        %v9896 = vpop.f32.mrf.mxu0
        %9897 = vdwg.mxu0
        %9898 = vmatprep.subr.bf16.mxu0 %v9760
        %9899 = vmatpush1.bf16.msra.mxu0 %v9759
        %9900 = vmatprep.subr.bf16.mxu0 %v9756
        %9901 = vmatpush1.bf16.msra.mxu0 %v9755
        %9902 = vmatprep.subr.bf16.mxu0 %v9752
        %9903 = vmatpush1.bf16.msra.mxu0 %v9751
        %9904 = vmatprep.subr.bf16.mxu0 %v9748
        %9905 = vmatpush1.bf16.msra.mxu0 %v9747
        %9906 = vmatprep.subr.bf16.mxu0 %v9744
        %9907 = vmatpush1.bf16.msra.mxu0 %v9743
        %9908 = vmatprep.subr.bf16.mxu0 %v9740
        %9909 = vmatpush1.bf16.msra.mxu0 %v9739
        %9910 = vmatprep.subr.bf16.mxu0 %v9736
        %9911 = vmatpush1.bf16.msra.mxu0 %v9735
        %9912 = vmatprep.subr.bf16.mxu0 %v9732
        %9913 = vmatpush1.bf16.msra.mxu0 %v9731
        %9914 = vmatprep.subr.bf16.mxu0 %v9792
        %9915 = vmatpush2.bf16.msra.mxu0 %v9791
        %9916 = vmatprep.subr.bf16.mxu0 %v9788
        %9917 = vmatpush2.bf16.msra.mxu0 %v9787
        %9918 = vmatprep.subr.bf16.mxu0 %v9784
        %9919 = vmatpush2.bf16.msra.mxu0 %v9783
        %9920 = vmatprep.subr.bf16.mxu0 %v9780
        %9921 = vmatpush2.bf16.msra.mxu0 %v9779
        %9922 = vmatprep.subr.bf16.mxu0 %v9776
        %9923 = vmatpush2.bf16.msra.mxu0 %v9775
        %9924 = vmatprep.subr.bf16.mxu0 %v9772
        %9925 = vmatpush2.bf16.msra.mxu0 %v9771
        %9926 = vmatprep.subr.bf16.mxu0 %v9768
        %9927 = vmatpush2.bf16.msra.mxu0 %v9767
        %9928 = vmatprep.subr.bf16.mxu0 %v9764
        %9929 = vmatpush2.bf16.msra.mxu0 %v9763
        %9930 = vmatprep.mubr.bf16.mxu0 %v9471
        %9931 = vmatmul.mubr.bf16.gmra.mxu0 %v9470
        %v9932 = vpop.f32.mrf.mxu0
        %v9933 = vadd.f32 0.0, %v9932
        %v9934 = vpop.f32.mrf.mxu0
        %v9935 = vadd.f32 0.0, %v9934
        %v9936 = vpop.f32.mrf.mxu0
        %v9937 = vpop.f32.mrf.mxu0
        %9938 = vdwg.mxu0
        %v9939 = vadd.f32 %v9377, %v9892
        %v9940 = vadd.f32 %v9379, %v9894
        %v9941 = vadd.f32 %v9418, %v9933
        %v9942 = vadd.f32 %v9420, %v9935
        %s9943 = scalar_lea.vmem %s16, 3
        %v9944 = vld [vmem:[%s9943] sm:$0x1]
        %v9946 = vsel %vm8389, %v9944, 0
        %9948 = vmatprep.subr.bf16.mxu0 0
        %9949 = vmatpush1.bf16.msra.mxu0 0
        %9950 = vmatprep.subr.bf16.mxu0 0
        %9951 = vmatpush1.bf16.msra.mxu0 0
        %9952 = vmatprep.subr.bf16.mxu0 0
        %9953 = vmatpush1.bf16.msra.mxu0 0
        %9954 = vmatprep.subr.bf16.mxu0 0
        %9955 = vmatpush1.bf16.msra.mxu0 0
        %9956 = vmatprep.subr.bf16.mxu0 0
        %9957 = vmatpush1.bf16.msra.mxu0 0
        %9958 = vmatprep.subr.bf16.mxu0 0
        %9959 = vmatpush1.bf16.msra.mxu0 0
        %9960 = vmatprep.subr.bf16.mxu0 0
        %9961 = vmatpush1.bf16.msra.mxu0 0
        %9962 = vmatprep.subr.bf16.mxu0 %v8398
        %9963 = vmatpush1.bf16.msra.mxu0 %v8395
        %9964 = vmatprep.subr.bf16.mxu0 0
        %9965 = vmatpush2.bf16.msra.mxu0 0
        %9966 = vmatprep.subr.bf16.mxu0 0
        %9967 = vmatpush2.bf16.msra.mxu0 0
        %9968 = vmatprep.subr.bf16.mxu0 0
        %9969 = vmatpush2.bf16.msra.mxu0 0
        %9970 = vmatprep.subr.bf16.mxu0 0
        %9971 = vmatpush2.bf16.msra.mxu0 0
        %9972 = vmatprep.subr.bf16.mxu0 0
        %9973 = vmatpush2.bf16.msra.mxu0 0
        %9974 = vmatprep.subr.bf16.mxu0 0
        %9975 = vmatpush2.bf16.msra.mxu0 0
        %9976 = vmatprep.subr.bf16.mxu0 0
        %9977 = vmatpush2.bf16.msra.mxu0 0
        %9978 = vmatprep.subr.bf16.mxu0 0
        %9979 = vmatpush2.bf16.msra.mxu0 0
        %9980 = vmatprep.mubr.bf16.mxu0 0
        %9981 = vmatmul.mubr.bf16.gmra.mxu0 %v9946
        %v9982 = vpop.f32.mrf.mxu0
        %v9983 = vadd.f32 0.0, %v9982
        %v9984 = vpop.f32.mrf.mxu0
        %v9985 = vadd.f32 0.0, %v9984
        %v9986 = vpop.f32.mrf.mxu0
        %v9987 = vpop.f32.mrf.mxu0
        %9988 = vdwg.mxu0
        %v9989 = vpack.c.bf16 %v9983, %v9983
        %v9990 = vpack.c.bf16 %v9985, %v9985
        %s9991 = scalar_lea.vmem [#allocation19], 1536
        %v9992 = vld [vmem:[%s9991] sm:$0xff]
        %v9993 = vld [vmem:[%s9991 + $0x8] sm:$0xff]
        %v9994 = vld [vmem:[%s9991 + $0x10] sm:$0xff]
        %v9995 = vld [vmem:[%s9991 + $0x18] sm:$0xff]
        %v9996 = vld [vmem:[%s9991 + $0x20] sm:$0xff]
        %v9997 = vld [vmem:[%s9991 + $0x28] sm:$0xff]
        %v9998 = vld [vmem:[%s9991 + $0x30] sm:$0xff]
        %v9999 = vld [vmem:[%s9991 + $0x38] sm:$0xff]
        %v10000 = vld [vmem:[%s9991 + $0x40] sm:$0xff]
        %v10001 = vld [vmem:[%s9991 + $0x48] sm:$0xff]
        %v10002 = vld [vmem:[%s9991 + $0x50] sm:$0xff]
        %v10003 = vld [vmem:[%s9991 + $0x58] sm:$0xff]
        %v10004 = vld [vmem:[%s9991 + $0x60] sm:$0xff]
        %v10005 = vld [vmem:[%s9991 + $0x68] sm:$0xff]
        %v10006 = vld [vmem:[%s9991 + $0x70] sm:$0xff]
        %v10007 = vld [vmem:[%s9991 + $0x78] sm:$0xff]
        %v10008 = vld [vmem:[%s9991 + $0x80] sm:$0xff]
        %v10009 = vld [vmem:[%s9991 + $0x88] sm:$0xff]
        %v10010 = vld [vmem:[%s9991 + $0x90] sm:$0xff]
        %v10011 = vld [vmem:[%s9991 + $0x98] sm:$0xff]
        %v10012 = vld [vmem:[%s9991 + $0xa0] sm:$0xff]
        %v10013 = vld [vmem:[%s9991 + $0xa8] sm:$0xff]
        %v10014 = vld [vmem:[%s9991 + $0xb0] sm:$0xff]
        %v10015 = vld [vmem:[%s9991 + $0xb8] sm:$0xff]
        %v10016 = vld [vmem:[%s9991 + $0xc0] sm:$0xff]
        %v10017 = vld [vmem:[%s9991 + $0xc8] sm:$0xff]
        %v10018 = vld [vmem:[%s9991 + $0xd0] sm:$0xff]
        %v10019 = vld [vmem:[%s9991 + $0xd8] sm:$0xff]
        %v10020 = vld [vmem:[%s9991 + $0xe0] sm:$0xff]
        %v10021 = vld [vmem:[%s9991 + $0xe8] sm:$0xff]
        %v10022 = vld [vmem:[%s9991 + $0xf0] sm:$0xff]
        %v10023 = vld [vmem:[%s9991 + $0xf8] sm:$0xff]
        %v10024 = vld [vmem:[%s9991 + $0x100] sm:$0xff]
        %v10025 = vld [vmem:[%s9991 + $0x108] sm:$0xff]
        %v10026 = vld [vmem:[%s9991 + $0x110] sm:$0xff]
        %v10027 = vld [vmem:[%s9991 + $0x118] sm:$0xff]
        %v10028 = vld [vmem:[%s9991 + $0x120] sm:$0xff]
        %v10029 = vld [vmem:[%s9991 + $0x128] sm:$0xff]
        %v10030 = vld [vmem:[%s9991 + $0x130] sm:$0xff]
        %v10031 = vld [vmem:[%s9991 + $0x138] sm:$0xff]
        %v10032 = vld [vmem:[%s9991 + $0x140] sm:$0xff]
        %v10033 = vld [vmem:[%s9991 + $0x148] sm:$0xff]
        %v10034 = vld [vmem:[%s9991 + $0x150] sm:$0xff]
        %v10035 = vld [vmem:[%s9991 + $0x158] sm:$0xff]
        %v10036 = vld [vmem:[%s9991 + $0x160] sm:$0xff]
        %v10037 = vld [vmem:[%s9991 + $0x168] sm:$0xff]
        %v10038 = vld [vmem:[%s9991 + $0x170] sm:$0xff]
        %v10039 = vld [vmem:[%s9991 + $0x178] sm:$0xff]
        %v10040 = vld [vmem:[%s9991 + $0x180] sm:$0xff]
        %v10041 = vld [vmem:[%s9991 + $0x188] sm:$0xff]
        %v10042 = vld [vmem:[%s9991 + $0x190] sm:$0xff]
        %v10043 = vld [vmem:[%s9991 + $0x198] sm:$0xff]
        %v10044 = vld [vmem:[%s9991 + $0x1a0] sm:$0xff]
        %v10045 = vld [vmem:[%s9991 + $0x1a8] sm:$0xff]
        %v10046 = vld [vmem:[%s9991 + $0x1b0] sm:$0xff]
        %v10047 = vld [vmem:[%s9991 + $0x1b8] sm:$0xff]
        %v10048 = vld [vmem:[%s9991 + $0x1c0] sm:$0xff]
        %v10049 = vld [vmem:[%s9991 + $0x1c8] sm:$0xff]
        %v10050 = vld [vmem:[%s9991 + $0x1d0] sm:$0xff]
        %v10051 = vld [vmem:[%s9991 + $0x1d8] sm:$0xff]
        %v10052 = vld [vmem:[%s9991 + $0x1e0] sm:$0xff]
        %v10053 = vld [vmem:[%s9991 + $0x1e8] sm:$0xff]
        %v10054 = vld [vmem:[%s9991 + $0x1f0] sm:$0xff]
        %v10055 = vld [vmem:[%s9991 + $0x1f8] sm:$0xff]
        %v10120 = vunpack.c.l.b16 %v9992
        %v10121 = vunpack.c.h.b16 %v9992
        %v10122 = vunpack.c.l.b16 %v9993
        %v10123 = vunpack.c.h.b16 %v9993
        %v10124 = vunpack.c.l.b16 %v9994
        %v10125 = vunpack.c.h.b16 %v9994
        %v10126 = vunpack.c.l.b16 %v9995
        %v10127 = vunpack.c.h.b16 %v9995
        %v10128 = vunpack.c.l.b16 %v9996
        %v10129 = vunpack.c.h.b16 %v9996
        %v10130 = vunpack.c.l.b16 %v9997
        %v10131 = vunpack.c.h.b16 %v9997
        %v10132 = vunpack.c.l.b16 %v9998
        %v10133 = vunpack.c.h.b16 %v9998
        %v10134 = vunpack.c.l.b16 %v9999
        %v10135 = vunpack.c.h.b16 %v9999
        %v10136 = vunpack.c.l.b16 %v10000
        %v10137 = vunpack.c.h.b16 %v10000
        %v10138 = vunpack.c.l.b16 %v10001
        %v10139 = vunpack.c.h.b16 %v10001
        %v10140 = vunpack.c.l.b16 %v10002
        %v10141 = vunpack.c.h.b16 %v10002
        %v10142 = vunpack.c.l.b16 %v10003
        %v10143 = vunpack.c.h.b16 %v10003
        %v10144 = vunpack.c.l.b16 %v10004
        %v10145 = vunpack.c.h.b16 %v10004
        %v10146 = vunpack.c.l.b16 %v10005
        %v10147 = vunpack.c.h.b16 %v10005
        %v10148 = vunpack.c.l.b16 %v10006
        %v10149 = vunpack.c.h.b16 %v10006
        %v10150 = vunpack.c.l.b16 %v10007
        %v10151 = vunpack.c.h.b16 %v10007
        %v10152 = vunpack.c.l.b16 %v10008
        %v10153 = vunpack.c.h.b16 %v10008
        %v10154 = vunpack.c.l.b16 %v10009
        %v10155 = vunpack.c.h.b16 %v10009
        %v10156 = vunpack.c.l.b16 %v10010
        %v10157 = vunpack.c.h.b16 %v10010
        %v10158 = vunpack.c.l.b16 %v10011
        %v10159 = vunpack.c.h.b16 %v10011
        %v10160 = vunpack.c.l.b16 %v10012
        %v10161 = vunpack.c.h.b16 %v10012
        %v10162 = vunpack.c.l.b16 %v10013
        %v10163 = vunpack.c.h.b16 %v10013
        %v10164 = vunpack.c.l.b16 %v10014
        %v10165 = vunpack.c.h.b16 %v10014
        %v10166 = vunpack.c.l.b16 %v10015
        %v10167 = vunpack.c.h.b16 %v10015
        %v10168 = vunpack.c.l.b16 %v10016
        %v10169 = vunpack.c.h.b16 %v10016
        %v10170 = vunpack.c.l.b16 %v10017
        %v10171 = vunpack.c.h.b16 %v10017
        %v10172 = vunpack.c.l.b16 %v10018
        %v10173 = vunpack.c.h.b16 %v10018
        %v10174 = vunpack.c.l.b16 %v10019
        %v10175 = vunpack.c.h.b16 %v10019
        %v10176 = vunpack.c.l.b16 %v10020
        %v10177 = vunpack.c.h.b16 %v10020
        %v10178 = vunpack.c.l.b16 %v10021
        %v10179 = vunpack.c.h.b16 %v10021
        %v10180 = vunpack.c.l.b16 %v10022
        %v10181 = vunpack.c.h.b16 %v10022
        %v10182 = vunpack.c.l.b16 %v10023
        %v10183 = vunpack.c.h.b16 %v10023
        %v10184 = vunpack.c.l.b16 %v10024
        %v10185 = vunpack.c.h.b16 %v10024
        %v10186 = vunpack.c.l.b16 %v10025
        %v10187 = vunpack.c.h.b16 %v10025
        %v10188 = vunpack.c.l.b16 %v10026
        %v10189 = vunpack.c.h.b16 %v10026
        %v10190 = vunpack.c.l.b16 %v10027
        %v10191 = vunpack.c.h.b16 %v10027
        %v10192 = vunpack.c.l.b16 %v10028
        %v10193 = vunpack.c.h.b16 %v10028
        %v10194 = vunpack.c.l.b16 %v10029
        %v10195 = vunpack.c.h.b16 %v10029
        %v10196 = vunpack.c.l.b16 %v10030
        %v10197 = vunpack.c.h.b16 %v10030
        %v10198 = vunpack.c.l.b16 %v10031
        %v10199 = vunpack.c.h.b16 %v10031
        %v10200 = vunpack.c.l.b16 %v10032
        %v10201 = vunpack.c.h.b16 %v10032
        %v10202 = vunpack.c.l.b16 %v10033
        %v10203 = vunpack.c.h.b16 %v10033
        %v10204 = vunpack.c.l.b16 %v10034
        %v10205 = vunpack.c.h.b16 %v10034
        %v10206 = vunpack.c.l.b16 %v10035
        %v10207 = vunpack.c.h.b16 %v10035
        %v10208 = vunpack.c.l.b16 %v10036
        %v10209 = vunpack.c.h.b16 %v10036
        %v10210 = vunpack.c.l.b16 %v10037
        %v10211 = vunpack.c.h.b16 %v10037
        %v10212 = vunpack.c.l.b16 %v10038
        %v10213 = vunpack.c.h.b16 %v10038
        %v10214 = vunpack.c.l.b16 %v10039
        %v10215 = vunpack.c.h.b16 %v10039
        %v10216 = vunpack.c.l.b16 %v10040
        %v10217 = vunpack.c.h.b16 %v10040
        %v10218 = vunpack.c.l.b16 %v10041
        %v10219 = vunpack.c.h.b16 %v10041
        %v10220 = vunpack.c.l.b16 %v10042
        %v10221 = vunpack.c.h.b16 %v10042
        %v10222 = vunpack.c.l.b16 %v10043
        %v10223 = vunpack.c.h.b16 %v10043
        %v10224 = vunpack.c.l.b16 %v10044
        %v10225 = vunpack.c.h.b16 %v10044
        %v10226 = vunpack.c.l.b16 %v10045
        %v10227 = vunpack.c.h.b16 %v10045
        %v10228 = vunpack.c.l.b16 %v10046
        %v10229 = vunpack.c.h.b16 %v10046
        %v10230 = vunpack.c.l.b16 %v10047
        %v10231 = vunpack.c.h.b16 %v10047
        %v10232 = vunpack.c.l.b16 %v10048
        %v10233 = vunpack.c.h.b16 %v10048
        %v10234 = vunpack.c.l.b16 %v10049
        %v10235 = vunpack.c.h.b16 %v10049
        %v10236 = vunpack.c.l.b16 %v10050
        %v10237 = vunpack.c.h.b16 %v10050
        %v10238 = vunpack.c.l.b16 %v10051
        %v10239 = vunpack.c.h.b16 %v10051
        %v10240 = vunpack.c.l.b16 %v10052
        %v10241 = vunpack.c.h.b16 %v10052
        %v10242 = vunpack.c.l.b16 %v10053
        %v10243 = vunpack.c.h.b16 %v10053
        %v10244 = vunpack.c.l.b16 %v10054
        %v10245 = vunpack.c.h.b16 %v10054
        %v10246 = vunpack.c.l.b16 %v10055
        %v10247 = vunpack.c.h.b16 %v10055
        %v10248 = vpack.c.b16 %v10124, %v10120
        %v10249 = vpack.c.b16 %v10125, %v10121
        %v10250 = vpack.c.b16 %v10126, %v10122
        %v10251 = vpack.c.b16 %v10127, %v10123
        %v10252 = vpack.c.b16 %v10132, %v10128
        %v10253 = vpack.c.b16 %v10133, %v10129
        %v10254 = vpack.c.b16 %v10134, %v10130
        %v10255 = vpack.c.b16 %v10135, %v10131
        %v10256 = vpack.c.b16 %v10140, %v10136
        %v10257 = vpack.c.b16 %v10141, %v10137
        %v10258 = vpack.c.b16 %v10142, %v10138
        %v10259 = vpack.c.b16 %v10143, %v10139
        %v10260 = vpack.c.b16 %v10148, %v10144
        %v10261 = vpack.c.b16 %v10149, %v10145
        %v10262 = vpack.c.b16 %v10150, %v10146
        %v10263 = vpack.c.b16 %v10151, %v10147
        %v10264 = vpack.c.b16 %v10156, %v10152
        %v10265 = vpack.c.b16 %v10157, %v10153
        %v10266 = vpack.c.b16 %v10158, %v10154
        %v10267 = vpack.c.b16 %v10159, %v10155
        %v10268 = vpack.c.b16 %v10164, %v10160
        %v10269 = vpack.c.b16 %v10165, %v10161
        %v10270 = vpack.c.b16 %v10166, %v10162
        %v10271 = vpack.c.b16 %v10167, %v10163
        %v10272 = vpack.c.b16 %v10172, %v10168
        %v10273 = vpack.c.b16 %v10173, %v10169
        %v10274 = vpack.c.b16 %v10174, %v10170
        %v10275 = vpack.c.b16 %v10175, %v10171
        %v10276 = vpack.c.b16 %v10180, %v10176
        %v10277 = vpack.c.b16 %v10181, %v10177
        %v10278 = vpack.c.b16 %v10182, %v10178
        %v10279 = vpack.c.b16 %v10183, %v10179
        %v10280 = vpack.c.b16 %v10188, %v10184
        %v10281 = vpack.c.b16 %v10189, %v10185
        %v10282 = vpack.c.b16 %v10190, %v10186
        %v10283 = vpack.c.b16 %v10191, %v10187
        %v10284 = vpack.c.b16 %v10196, %v10192
        %v10285 = vpack.c.b16 %v10197, %v10193
        %v10286 = vpack.c.b16 %v10198, %v10194
        %v10287 = vpack.c.b16 %v10199, %v10195
        %v10288 = vpack.c.b16 %v10204, %v10200
        %v10289 = vpack.c.b16 %v10205, %v10201
        %v10290 = vpack.c.b16 %v10206, %v10202
        %v10291 = vpack.c.b16 %v10207, %v10203
        %v10292 = vpack.c.b16 %v10212, %v10208
        %v10293 = vpack.c.b16 %v10213, %v10209
        %v10294 = vpack.c.b16 %v10214, %v10210
        %v10295 = vpack.c.b16 %v10215, %v10211
        %v10296 = vpack.c.b16 %v10220, %v10216
        %v10297 = vpack.c.b16 %v10221, %v10217
        %v10298 = vpack.c.b16 %v10222, %v10218
        %v10299 = vpack.c.b16 %v10223, %v10219
        %v10300 = vpack.c.b16 %v10228, %v10224
        %v10301 = vpack.c.b16 %v10229, %v10225
        %v10302 = vpack.c.b16 %v10230, %v10226
        %v10303 = vpack.c.b16 %v10231, %v10227
        %v10304 = vpack.c.b16 %v10236, %v10232
        %v10305 = vpack.c.b16 %v10237, %v10233
        %v10306 = vpack.c.b16 %v10238, %v10234
        %v10307 = vpack.c.b16 %v10239, %v10235
        %v10308 = vpack.c.b16 %v10244, %v10240
        %v10309 = vpack.c.b16 %v10245, %v10241
        %v10310 = vpack.c.b16 %v10246, %v10242
        %v10311 = vpack.c.b16 %v10247, %v10243
        %10376 = vmatprep.subr.bf16.mxu0 %v10277
        %10377 = vmatpush1.bf16.msra.mxu0 %v10276
        %10378 = vmatprep.subr.bf16.mxu0 %v10273
        %10379 = vmatpush1.bf16.msra.mxu0 %v10272
        %10380 = vmatprep.subr.bf16.mxu0 %v10269
        %10381 = vmatpush1.bf16.msra.mxu0 %v10268
        %10382 = vmatprep.subr.bf16.mxu0 %v10265
        %10383 = vmatpush1.bf16.msra.mxu0 %v10264
        %10384 = vmatprep.subr.bf16.mxu0 %v10261
        %10385 = vmatpush1.bf16.msra.mxu0 %v10260
        %10386 = vmatprep.subr.bf16.mxu0 %v10257
        %10387 = vmatpush1.bf16.msra.mxu0 %v10256
        %10388 = vmatprep.subr.bf16.mxu0 %v10253
        %10389 = vmatpush1.bf16.msra.mxu0 %v10252
        %10390 = vmatprep.subr.bf16.mxu0 %v10249
        %10391 = vmatpush1.bf16.msra.mxu0 %v10248
        %10392 = vmatprep.subr.bf16.mxu0 %v10309
        %10393 = vmatpush2.bf16.msra.mxu0 %v10308
        %10394 = vmatprep.subr.bf16.mxu0 %v10305
        %10395 = vmatpush2.bf16.msra.mxu0 %v10304
        %10396 = vmatprep.subr.bf16.mxu0 %v10301
        %10397 = vmatpush2.bf16.msra.mxu0 %v10300
        %10398 = vmatprep.subr.bf16.mxu0 %v10297
        %10399 = vmatpush2.bf16.msra.mxu0 %v10296
        %10400 = vmatprep.subr.bf16.mxu0 %v10293
        %10401 = vmatpush2.bf16.msra.mxu0 %v10292
        %10402 = vmatprep.subr.bf16.mxu0 %v10289
        %10403 = vmatpush2.bf16.msra.mxu0 %v10288
        %10404 = vmatprep.subr.bf16.mxu0 %v10285
        %10405 = vmatpush2.bf16.msra.mxu0 %v10284
        %10406 = vmatprep.subr.bf16.mxu0 %v10281
        %10407 = vmatpush2.bf16.msra.mxu0 %v10280
        %10408 = vmatprep.mubr.bf16.mxu0 %v9990
        %10409 = vmatmul.mubr.bf16.gmra.mxu0 %v9989
        %v10410 = vpop.f32.mrf.mxu0
        %v10411 = vadd.f32 0.0, %v10410
        %v10412 = vpop.f32.mrf.mxu0
        %v10413 = vadd.f32 0.0, %v10412
        %v10414 = vpop.f32.mrf.mxu0
        %v10415 = vpop.f32.mrf.mxu0
        %10416 = vdwg.mxu0
        %10417 = vmatprep.subr.bf16.mxu0 %v10279
        %10418 = vmatpush1.bf16.msra.mxu0 %v10278
        %10419 = vmatprep.subr.bf16.mxu0 %v10275
        %10420 = vmatpush1.bf16.msra.mxu0 %v10274
        %10421 = vmatprep.subr.bf16.mxu0 %v10271
        %10422 = vmatpush1.bf16.msra.mxu0 %v10270
        %10423 = vmatprep.subr.bf16.mxu0 %v10267
        %10424 = vmatpush1.bf16.msra.mxu0 %v10266
        %10425 = vmatprep.subr.bf16.mxu0 %v10263
        %10426 = vmatpush1.bf16.msra.mxu0 %v10262
        %10427 = vmatprep.subr.bf16.mxu0 %v10259
        %10428 = vmatpush1.bf16.msra.mxu0 %v10258
        %10429 = vmatprep.subr.bf16.mxu0 %v10255
        %10430 = vmatpush1.bf16.msra.mxu0 %v10254
        %10431 = vmatprep.subr.bf16.mxu0 %v10251
        %10432 = vmatpush1.bf16.msra.mxu0 %v10250
        %10433 = vmatprep.subr.bf16.mxu0 %v10311
        %10434 = vmatpush2.bf16.msra.mxu0 %v10310
        %10435 = vmatprep.subr.bf16.mxu0 %v10307
        %10436 = vmatpush2.bf16.msra.mxu0 %v10306
        %10437 = vmatprep.subr.bf16.mxu0 %v10303
        %10438 = vmatpush2.bf16.msra.mxu0 %v10302
        %10439 = vmatprep.subr.bf16.mxu0 %v10299
        %10440 = vmatpush2.bf16.msra.mxu0 %v10298
        %10441 = vmatprep.subr.bf16.mxu0 %v10295
        %10442 = vmatpush2.bf16.msra.mxu0 %v10294
        %10443 = vmatprep.subr.bf16.mxu0 %v10291
        %10444 = vmatpush2.bf16.msra.mxu0 %v10290
        %10445 = vmatprep.subr.bf16.mxu0 %v10287
        %10446 = vmatpush2.bf16.msra.mxu0 %v10286
        %10447 = vmatprep.subr.bf16.mxu0 %v10283
        %10448 = vmatpush2.bf16.msra.mxu0 %v10282
        %10449 = vmatprep.mubr.bf16.mxu0 %v9990
        %10450 = vmatmul.mubr.bf16.gmra.mxu0 %v9989
        %v10451 = vpop.f32.mrf.mxu0
        %v10452 = vadd.f32 0.0, %v10451
        %v10453 = vpop.f32.mrf.mxu0
        %v10454 = vadd.f32 0.0, %v10453
        %v10455 = vpop.f32.mrf.mxu0
        %v10456 = vpop.f32.mrf.mxu0
        %10457 = vdwg.mxu0
        %v10458 = vadd.f32 %v9939, %v10411
        %v10459 = vadd.f32 %v9940, %v10413
        %v10460 = vadd.f32 %v9941, %v10452
        %v10461 = vadd.f32 %v9942, %v10454
        %v10462 = vld [vmem:[#allocation21] sm:$0xf]
        %v10464 = vlaneseq
        %v10465 = vshrl.u32 %v10464, 7
        %v10466 = vsub.s32 0, %v10465
        %v10467 = vrot.slane %v10462, %v10466
        %v10468 = vlaneseq
        %v10469 = vshrl.u32 %v10468, 7
        %v10470 = vsub.s32 1, %v10469
        %v10471 = vrot.slane %v10462, %v10470
        %v10472 = vlaneseq
        %v10473 = vshrl.u32 %v10472, 7
        %v10474 = vsub.s32 2, %v10473
        %v10475 = vrot.slane %v10462, %v10474
        %v10476 = vlaneseq
        %v10477 = vshrl.u32 %v10476, 7
        %v10478 = vsub.s32 3, %v10477
        %v10479 = vrot.slane %v10462, %v10478
        %v10484 = vadd.f32 %v10458, %v10467
        %v10485 = vadd.f32 %v10459, %v10471
        %v10486 = vadd.f32 %v10460, %v10475
        %v10487 = vadd.f32 %v10461, %v10479
        %v10488 = vmax.f32 %v10484, 0.0
        %v10489 = vmax.f32 %v10485, 0.0
        %v10490 = vmax.f32 %v10486, 0.0
        %v10491 = vmax.f32 %v10487, 0.0
        %v10492 = vpack.c.bf16 %v10488, %v10488
        %v10493 = vpack.c.bf16 %v10489, %v10489
        %v10494 = vpack.c.bf16 %v10490, %v10490
        %v10495 = vpack.c.bf16 %v10491, %v10491
        %v10496 = vld [vmem:[#allocation22] sm:$0xff]
        %v10497 = vld [vmem:[#allocation22 + $0x8] sm:$0xff]
        %v10498 = vld [vmem:[#allocation22 + $0x10] sm:$0xff]
        %v10499 = vld [vmem:[#allocation22 + $0x18] sm:$0xff]
        %v10500 = vld [vmem:[#allocation22 + $0x20] sm:$0xff]
        %v10501 = vld [vmem:[#allocation22 + $0x28] sm:$0xff]
        %v10502 = vld [vmem:[#allocation22 + $0x30] sm:$0xff]
        %v10503 = vld [vmem:[#allocation22 + $0x38] sm:$0xff]
        %v10504 = vld [vmem:[#allocation22 + $0x40] sm:$0xff]
        %v10505 = vld [vmem:[#allocation22 + $0x48] sm:$0xff]
        %v10506 = vld [vmem:[#allocation22 + $0x50] sm:$0xff]
        %v10507 = vld [vmem:[#allocation22 + $0x58] sm:$0xff]
        %v10508 = vld [vmem:[#allocation22 + $0x60] sm:$0xff]
        %v10509 = vld [vmem:[#allocation22 + $0x68] sm:$0xff]
        %v10510 = vld [vmem:[#allocation22 + $0x70] sm:$0xff]
        %v10511 = vld [vmem:[#allocation22 + $0x78] sm:$0xff]
        %v10512 = vld [vmem:[#allocation22 + $0x80] sm:$0xff]
        %v10513 = vld [vmem:[#allocation22 + $0x88] sm:$0xff]
        %v10514 = vld [vmem:[#allocation22 + $0x90] sm:$0xff]
        %v10515 = vld [vmem:[#allocation22 + $0x98] sm:$0xff]
        %v10516 = vld [vmem:[#allocation22 + $0xa0] sm:$0xff]
        %v10517 = vld [vmem:[#allocation22 + $0xa8] sm:$0xff]
        %v10518 = vld [vmem:[#allocation22 + $0xb0] sm:$0xff]
        %v10519 = vld [vmem:[#allocation22 + $0xb8] sm:$0xff]
        %v10520 = vld [vmem:[#allocation22 + $0xc0] sm:$0xff]
        %v10521 = vld [vmem:[#allocation22 + $0xc8] sm:$0xff]
        %v10522 = vld [vmem:[#allocation22 + $0xd0] sm:$0xff]
        %v10523 = vld [vmem:[#allocation22 + $0xd8] sm:$0xff]
        %v10524 = vld [vmem:[#allocation22 + $0xe0] sm:$0xff]
        %v10525 = vld [vmem:[#allocation22 + $0xe8] sm:$0xff]
        %v10526 = vld [vmem:[#allocation22 + $0xf0] sm:$0xff]
        %v10527 = vld [vmem:[#allocation22 + $0xf8] sm:$0xff]
        %v10528 = vld [vmem:[#allocation22 + $0x100] sm:$0xff]
        %v10529 = vld [vmem:[#allocation22 + $0x108] sm:$0xff]
        %v10530 = vld [vmem:[#allocation22 + $0x110] sm:$0xff]
        %v10531 = vld [vmem:[#allocation22 + $0x118] sm:$0xff]
        %v10532 = vld [vmem:[#allocation22 + $0x120] sm:$0xff]
        %v10533 = vld [vmem:[#allocation22 + $0x128] sm:$0xff]
        %v10534 = vld [vmem:[#allocation22 + $0x130] sm:$0xff]
        %v10535 = vld [vmem:[#allocation22 + $0x138] sm:$0xff]
        %v10536 = vld [vmem:[#allocation22 + $0x140] sm:$0xff]
        %v10537 = vld [vmem:[#allocation22 + $0x148] sm:$0xff]
        %v10538 = vld [vmem:[#allocation22 + $0x150] sm:$0xff]
        %v10539 = vld [vmem:[#allocation22 + $0x158] sm:$0xff]
        %v10540 = vld [vmem:[#allocation22 + $0x160] sm:$0xff]
        %v10541 = vld [vmem:[#allocation22 + $0x168] sm:$0xff]
        %v10542 = vld [vmem:[#allocation22 + $0x170] sm:$0xff]
        %v10543 = vld [vmem:[#allocation22 + $0x178] sm:$0xff]
        %v10544 = vld [vmem:[#allocation22 + $0x180] sm:$0xff]
        %v10545 = vld [vmem:[#allocation22 + $0x188] sm:$0xff]
        %v10546 = vld [vmem:[#allocation22 + $0x190] sm:$0xff]
        %v10547 = vld [vmem:[#allocation22 + $0x198] sm:$0xff]
        %v10548 = vld [vmem:[#allocation22 + $0x1a0] sm:$0xff]
        %v10549 = vld [vmem:[#allocation22 + $0x1a8] sm:$0xff]
        %v10550 = vld [vmem:[#allocation22 + $0x1b0] sm:$0xff]
        %v10551 = vld [vmem:[#allocation22 + $0x1b8] sm:$0xff]
        %v10552 = vld [vmem:[#allocation22 + $0x1c0] sm:$0xff]
        %v10553 = vld [vmem:[#allocation22 + $0x1c8] sm:$0xff]
        %v10554 = vld [vmem:[#allocation22 + $0x1d0] sm:$0xff]
        %v10555 = vld [vmem:[#allocation22 + $0x1d8] sm:$0xff]
        %v10556 = vld [vmem:[#allocation22 + $0x1e0] sm:$0xff]
        %v10557 = vld [vmem:[#allocation22 + $0x1e8] sm:$0xff]
        %v10558 = vld [vmem:[#allocation22 + $0x1f0] sm:$0xff]
        %v10559 = vld [vmem:[#allocation22 + $0x1f8] sm:$0xff]
        %v10560 = vld [vmem:[#allocation24] sm:$0x3]
        %v10625 = vunpack.c.l.b16 %v10496
        %v10626 = vunpack.c.h.b16 %v10496
        %v10627 = vunpack.c.l.b16 %v10497
        %v10628 = vunpack.c.h.b16 %v10497
        %v10629 = vunpack.c.l.b16 %v10498
        %v10630 = vunpack.c.h.b16 %v10498
        %v10631 = vunpack.c.l.b16 %v10499
        %v10632 = vunpack.c.h.b16 %v10499
        %v10633 = vunpack.c.l.b16 %v10500
        %v10634 = vunpack.c.h.b16 %v10500
        %v10635 = vunpack.c.l.b16 %v10501
        %v10636 = vunpack.c.h.b16 %v10501
        %v10637 = vunpack.c.l.b16 %v10502
        %v10638 = vunpack.c.h.b16 %v10502
        %v10639 = vunpack.c.l.b16 %v10503
        %v10640 = vunpack.c.h.b16 %v10503
        %v10641 = vunpack.c.l.b16 %v10504
        %v10642 = vunpack.c.h.b16 %v10504
        %v10643 = vunpack.c.l.b16 %v10505
        %v10644 = vunpack.c.h.b16 %v10505
        %v10645 = vunpack.c.l.b16 %v10506
        %v10646 = vunpack.c.h.b16 %v10506
        %v10647 = vunpack.c.l.b16 %v10507
        %v10648 = vunpack.c.h.b16 %v10507
        %v10649 = vunpack.c.l.b16 %v10508
        %v10650 = vunpack.c.h.b16 %v10508
        %v10651 = vunpack.c.l.b16 %v10509
        %v10652 = vunpack.c.h.b16 %v10509
        %v10653 = vunpack.c.l.b16 %v10510
        %v10654 = vunpack.c.h.b16 %v10510
        %v10655 = vunpack.c.l.b16 %v10511
        %v10656 = vunpack.c.h.b16 %v10511
        %v10657 = vunpack.c.l.b16 %v10512
        %v10658 = vunpack.c.h.b16 %v10512
        %v10659 = vunpack.c.l.b16 %v10513
        %v10660 = vunpack.c.h.b16 %v10513
        %v10661 = vunpack.c.l.b16 %v10514
        %v10662 = vunpack.c.h.b16 %v10514
        %v10663 = vunpack.c.l.b16 %v10515
        %v10664 = vunpack.c.h.b16 %v10515
        %v10665 = vunpack.c.l.b16 %v10516
        %v10666 = vunpack.c.h.b16 %v10516
        %v10667 = vunpack.c.l.b16 %v10517
        %v10668 = vunpack.c.h.b16 %v10517
        %v10669 = vunpack.c.l.b16 %v10518
        %v10670 = vunpack.c.h.b16 %v10518
        %v10671 = vunpack.c.l.b16 %v10519
        %v10672 = vunpack.c.h.b16 %v10519
        %v10673 = vunpack.c.l.b16 %v10520
        %v10674 = vunpack.c.h.b16 %v10520
        %v10675 = vunpack.c.l.b16 %v10521
        %v10676 = vunpack.c.h.b16 %v10521
        %v10677 = vunpack.c.l.b16 %v10522
        %v10678 = vunpack.c.h.b16 %v10522
        %v10679 = vunpack.c.l.b16 %v10523
        %v10680 = vunpack.c.h.b16 %v10523
        %v10681 = vunpack.c.l.b16 %v10524
        %v10682 = vunpack.c.h.b16 %v10524
        %v10683 = vunpack.c.l.b16 %v10525
        %v10684 = vunpack.c.h.b16 %v10525
        %v10685 = vunpack.c.l.b16 %v10526
        %v10686 = vunpack.c.h.b16 %v10526
        %v10687 = vunpack.c.l.b16 %v10527
        %v10688 = vunpack.c.h.b16 %v10527
        %v10689 = vunpack.c.l.b16 %v10528
        %v10690 = vunpack.c.h.b16 %v10528
        %v10691 = vunpack.c.l.b16 %v10529
        %v10692 = vunpack.c.h.b16 %v10529
        %v10693 = vunpack.c.l.b16 %v10530
        %v10694 = vunpack.c.h.b16 %v10530
        %v10695 = vunpack.c.l.b16 %v10531
        %v10696 = vunpack.c.h.b16 %v10531
        %v10697 = vunpack.c.l.b16 %v10532
        %v10698 = vunpack.c.h.b16 %v10532
        %v10699 = vunpack.c.l.b16 %v10533
        %v10700 = vunpack.c.h.b16 %v10533
        %v10701 = vunpack.c.l.b16 %v10534
        %v10702 = vunpack.c.h.b16 %v10534
        %v10703 = vunpack.c.l.b16 %v10535
        %v10704 = vunpack.c.h.b16 %v10535
        %v10705 = vunpack.c.l.b16 %v10536
        %v10706 = vunpack.c.h.b16 %v10536
        %v10707 = vunpack.c.l.b16 %v10537
        %v10708 = vunpack.c.h.b16 %v10537
        %v10709 = vunpack.c.l.b16 %v10538
        %v10710 = vunpack.c.h.b16 %v10538
        %v10711 = vunpack.c.l.b16 %v10539
        %v10712 = vunpack.c.h.b16 %v10539
        %v10713 = vunpack.c.l.b16 %v10540
        %v10714 = vunpack.c.h.b16 %v10540
        %v10715 = vunpack.c.l.b16 %v10541
        %v10716 = vunpack.c.h.b16 %v10541
        %v10717 = vunpack.c.l.b16 %v10542
        %v10718 = vunpack.c.h.b16 %v10542
        %v10719 = vunpack.c.l.b16 %v10543
        %v10720 = vunpack.c.h.b16 %v10543
        %v10721 = vunpack.c.l.b16 %v10544
        %v10722 = vunpack.c.h.b16 %v10544
        %v10723 = vunpack.c.l.b16 %v10545
        %v10724 = vunpack.c.h.b16 %v10545
        %v10725 = vunpack.c.l.b16 %v10546
        %v10726 = vunpack.c.h.b16 %v10546
        %v10727 = vunpack.c.l.b16 %v10547
        %v10728 = vunpack.c.h.b16 %v10547
        %v10729 = vunpack.c.l.b16 %v10548
        %v10730 = vunpack.c.h.b16 %v10548
        %v10731 = vunpack.c.l.b16 %v10549
        %v10732 = vunpack.c.h.b16 %v10549
        %v10733 = vunpack.c.l.b16 %v10550
        %v10734 = vunpack.c.h.b16 %v10550
        %v10735 = vunpack.c.l.b16 %v10551
        %v10736 = vunpack.c.h.b16 %v10551
        %v10737 = vunpack.c.l.b16 %v10552
        %v10738 = vunpack.c.h.b16 %v10552
        %v10739 = vunpack.c.l.b16 %v10553
        %v10740 = vunpack.c.h.b16 %v10553
        %v10741 = vunpack.c.l.b16 %v10554
        %v10742 = vunpack.c.h.b16 %v10554
        %v10743 = vunpack.c.l.b16 %v10555
        %v10744 = vunpack.c.h.b16 %v10555
        %v10745 = vunpack.c.l.b16 %v10556
        %v10746 = vunpack.c.h.b16 %v10556
        %v10747 = vunpack.c.l.b16 %v10557
        %v10748 = vunpack.c.h.b16 %v10557
        %v10749 = vunpack.c.l.b16 %v10558
        %v10750 = vunpack.c.h.b16 %v10558
        %v10751 = vunpack.c.l.b16 %v10559
        %v10752 = vunpack.c.h.b16 %v10559
        %v10753 = vpack.c.b16 %v10627, %v10625
        %v10754 = vpack.c.b16 %v10628, %v10626
        %v10755 = vpack.c.b16 %v10631, %v10629
        %v10756 = vpack.c.b16 %v10632, %v10630
        %v10757 = vpack.c.b16 %v10635, %v10633
        %v10758 = vpack.c.b16 %v10636, %v10634
        %v10759 = vpack.c.b16 %v10639, %v10637
        %v10760 = vpack.c.b16 %v10640, %v10638
        %v10761 = vpack.c.b16 %v10643, %v10641
        %v10762 = vpack.c.b16 %v10644, %v10642
        %v10763 = vpack.c.b16 %v10647, %v10645
        %v10764 = vpack.c.b16 %v10648, %v10646
        %v10765 = vpack.c.b16 %v10651, %v10649
        %v10766 = vpack.c.b16 %v10652, %v10650
        %v10767 = vpack.c.b16 %v10655, %v10653
        %v10768 = vpack.c.b16 %v10656, %v10654
        %v10769 = vpack.c.b16 %v10659, %v10657
        %v10770 = vpack.c.b16 %v10660, %v10658
        %v10771 = vpack.c.b16 %v10663, %v10661
        %v10772 = vpack.c.b16 %v10664, %v10662
        %v10773 = vpack.c.b16 %v10667, %v10665
        %v10774 = vpack.c.b16 %v10668, %v10666
        %v10775 = vpack.c.b16 %v10671, %v10669
        %v10776 = vpack.c.b16 %v10672, %v10670
        %v10777 = vpack.c.b16 %v10675, %v10673
        %v10778 = vpack.c.b16 %v10676, %v10674
        %v10779 = vpack.c.b16 %v10679, %v10677
        %v10780 = vpack.c.b16 %v10680, %v10678
        %v10781 = vpack.c.b16 %v10683, %v10681
        %v10782 = vpack.c.b16 %v10684, %v10682
        %v10783 = vpack.c.b16 %v10687, %v10685
        %v10784 = vpack.c.b16 %v10688, %v10686
        %v10785 = vpack.c.b16 %v10691, %v10689
        %v10786 = vpack.c.b16 %v10692, %v10690
        %v10787 = vpack.c.b16 %v10695, %v10693
        %v10788 = vpack.c.b16 %v10696, %v10694
        %v10789 = vpack.c.b16 %v10699, %v10697
        %v10790 = vpack.c.b16 %v10700, %v10698
        %v10791 = vpack.c.b16 %v10703, %v10701
        %v10792 = vpack.c.b16 %v10704, %v10702
        %v10793 = vpack.c.b16 %v10707, %v10705
        %v10794 = vpack.c.b16 %v10708, %v10706
        %v10795 = vpack.c.b16 %v10711, %v10709
        %v10796 = vpack.c.b16 %v10712, %v10710
        %v10797 = vpack.c.b16 %v10715, %v10713
        %v10798 = vpack.c.b16 %v10716, %v10714
        %v10799 = vpack.c.b16 %v10719, %v10717
        %v10800 = vpack.c.b16 %v10720, %v10718
        %v10801 = vpack.c.b16 %v10723, %v10721
        %v10802 = vpack.c.b16 %v10724, %v10722
        %v10803 = vpack.c.b16 %v10727, %v10725
        %v10804 = vpack.c.b16 %v10728, %v10726
        %v10805 = vpack.c.b16 %v10731, %v10729
        %v10806 = vpack.c.b16 %v10732, %v10730
        %v10807 = vpack.c.b16 %v10735, %v10733
        %v10808 = vpack.c.b16 %v10736, %v10734
        %v10809 = vpack.c.b16 %v10739, %v10737
        %v10810 = vpack.c.b16 %v10740, %v10738
        %v10811 = vpack.c.b16 %v10743, %v10741
        %v10812 = vpack.c.b16 %v10744, %v10742
        %v10813 = vpack.c.b16 %v10747, %v10745
        %v10814 = vpack.c.b16 %v10748, %v10746
        %v10815 = vpack.c.b16 %v10751, %v10749
        %v10816 = vpack.c.b16 %v10752, %v10750
        %v10882 = vlaneseq
        %v10883 = vshrl.u32 %v10882, 7
        %v10884 = vsub.s32 0, %v10883
        %v10885 = vrot.slane %v10560, %v10884
        %v10886 = vlaneseq
        %v10887 = vshrl.u32 %v10886, 7
        %v10888 = vsub.s32 1, %v10887
        %v10889 = vrot.slane %v10560, %v10888
        %10892 = vmatprep.subr.bf16.mxu0 %v10768
        %10893 = vmatpush1.bf16.msra.mxu0 %v10767
        %10894 = vmatprep.subr.bf16.mxu0 %v10766
        %10895 = vmatpush1.bf16.msra.mxu0 %v10765
        %10896 = vmatprep.subr.bf16.mxu0 %v10764
        %10897 = vmatpush1.bf16.msra.mxu0 %v10763
        %10898 = vmatprep.subr.bf16.mxu0 %v10762
        %10899 = vmatpush1.bf16.msra.mxu0 %v10761
        %10900 = vmatprep.subr.bf16.mxu0 %v10760
        %10901 = vmatpush1.bf16.msra.mxu0 %v10759
        %10902 = vmatprep.subr.bf16.mxu0 %v10758
        %10903 = vmatpush1.bf16.msra.mxu0 %v10757
        %10904 = vmatprep.subr.bf16.mxu0 %v10756
        %10905 = vmatpush1.bf16.msra.mxu0 %v10755
        %10906 = vmatprep.subr.bf16.mxu0 %v10754
        %10907 = vmatpush1.bf16.msra.mxu0 %v10753
        %10908 = vmatprep.subr.bf16.mxu0 %v10784
        %10909 = vmatpush2.bf16.msra.mxu0 %v10783
        %10910 = vmatprep.subr.bf16.mxu0 %v10782
        %10911 = vmatpush2.bf16.msra.mxu0 %v10781
        %10912 = vmatprep.subr.bf16.mxu0 %v10780
        %10913 = vmatpush2.bf16.msra.mxu0 %v10779
        %10914 = vmatprep.subr.bf16.mxu0 %v10778
        %10915 = vmatpush2.bf16.msra.mxu0 %v10777
        %10916 = vmatprep.subr.bf16.mxu0 %v10776
        %10917 = vmatpush2.bf16.msra.mxu0 %v10775
        %10918 = vmatprep.subr.bf16.mxu0 %v10774
        %10919 = vmatpush2.bf16.msra.mxu0 %v10773
        %10920 = vmatprep.subr.bf16.mxu0 %v10772
        %10921 = vmatpush2.bf16.msra.mxu0 %v10771
        %10922 = vmatprep.subr.bf16.mxu0 %v10770
        %10923 = vmatpush2.bf16.msra.mxu0 %v10769
        %10924 = vmatprep.mubr.bf16.mxu0 %v10493
        %10925 = vmatmul.mubr.bf16.gmra.mxu0 %v10492
        %v10926 = vpop.f32.mrf.mxu0
        %v10927 = vadd.f32 %v10885, %v10926
        %v10928 = vpop.f32.mrf.mxu0
        %v10929 = vadd.f32 %v10889, %v10928
        %v10930 = vpop.f32.mrf.mxu0
        %v10931 = vpop.f32.mrf.mxu0
        %10932 = vdwg.mxu0
        %10933 = vmatprep.subr.bf16.mxu0 %v10800
        %10934 = vmatpush1.bf16.msra.mxu0 %v10799
        %10935 = vmatprep.subr.bf16.mxu0 %v10798
        %10936 = vmatpush1.bf16.msra.mxu0 %v10797
        %10937 = vmatprep.subr.bf16.mxu0 %v10796
        %10938 = vmatpush1.bf16.msra.mxu0 %v10795
        %10939 = vmatprep.subr.bf16.mxu0 %v10794
        %10940 = vmatpush1.bf16.msra.mxu0 %v10793
        %10941 = vmatprep.subr.bf16.mxu0 %v10792
        %10942 = vmatpush1.bf16.msra.mxu0 %v10791
        %10943 = vmatprep.subr.bf16.mxu0 %v10790
        %10944 = vmatpush1.bf16.msra.mxu0 %v10789
        %10945 = vmatprep.subr.bf16.mxu0 %v10788
        %10946 = vmatpush1.bf16.msra.mxu0 %v10787
        %10947 = vmatprep.subr.bf16.mxu0 %v10786
        %10948 = vmatpush1.bf16.msra.mxu0 %v10785
        %10949 = vmatprep.subr.bf16.mxu0 %v10816
        %10950 = vmatpush2.bf16.msra.mxu0 %v10815
        %10951 = vmatprep.subr.bf16.mxu0 %v10814
        %10952 = vmatpush2.bf16.msra.mxu0 %v10813
        %10953 = vmatprep.subr.bf16.mxu0 %v10812
        %10954 = vmatpush2.bf16.msra.mxu0 %v10811
        %10955 = vmatprep.subr.bf16.mxu0 %v10810
        %10956 = vmatpush2.bf16.msra.mxu0 %v10809
        %10957 = vmatprep.subr.bf16.mxu0 %v10808
        %10958 = vmatpush2.bf16.msra.mxu0 %v10807
        %10959 = vmatprep.subr.bf16.mxu0 %v10806
        %10960 = vmatpush2.bf16.msra.mxu0 %v10805
        %10961 = vmatprep.subr.bf16.mxu0 %v10804
        %10962 = vmatpush2.bf16.msra.mxu0 %v10803
        %10963 = vmatprep.subr.bf16.mxu0 %v10802
        %10964 = vmatpush2.bf16.msra.mxu0 %v10801
        %10965 = vmatprep.mubr.bf16.mxu0 %v10495
        %10966 = vmatmul.mubr.bf16.gmra.mxu0 %v10494
        %v10967 = vpop.f32.mrf.mxu0
        %v10968 = vadd.f32 %v10927, %v10967
        %v10969 = vpop.f32.mrf.mxu0
        %v10970 = vadd.f32 %v10929, %v10969
        %v10971 = vpop.f32.mrf.mxu0
        %v10972 = vpop.f32.mrf.mxu0
        %10973 = vdwg.mxu0
        %v10976 = vcombine.low %v10968, %v10970
        %v10978 = vunpack.c.l.s4 1966171168
        %v10979 = vunpack.c.0.s8 %v10978
        %v10980 = vlaneseq
        %v10981 = vshrl.u32 %v10980, 7
        %v10982 = vsub.s32 %v10979, %v10981
        %v10983 = vrot.slane %v10976, %v10982
        %v10985 = vunpack.c.l.s4 1966171168
        %v10986 = vunpack.c.0.s8 %v10985
        %v10987 = vlaneseq
        %v10988 = vshrl.u32 %v10987, 7
        %v10989 = vsub.s32 %v10986, %v10988
        %v10990 = vrot.slane %v10983, %v10989
        %v10992 = vlaneseq
        %vm10993 = vcmp.ge.s32.totalorder %v10992, 0
        %vm10994 = vcmp.lt.s32.totalorder %v10992, 256
        %vm10995 = vmand %vm10993, %vm10994
        %10996 = vst.msk [vmem:[%s862] sm:$0x3] %vm10995, %v10990
        %p10997 = scmp.lt.s32.totalorder %s40, 1
        %s10998 = scalar_select %p10997, %s40, 1
        %s10999 = smul.addr %s10998, 2
        %s11000 = scalar_lea.vmem %s21, %s10999
        // Predicated region
        $region165: #{net_forward.1} parent=103 // pred_check
          %p11001 = pneg %p504
        $region166: #{net_forward.1} parent=103 // pred_check_branch
          %11003 = sbr.rel (%p11001) target = $region168
        $region167: #{net_forward.1} parent=103 // pred_region
          _
        $region168: #{net_forward.1} parent=103 // pred_fallthru
          _
      $region104: #{net_forward.1} parent=5 // pred_fallthru
        _
      %p11004 = scmp.le.s32.totalorder 2, %s35
      // Predicated region
      $region169: #{net_forward.1} parent=5 // pred_check
        %p11005 = pneg %p11004
      $region170: #{net_forward.1} parent=5 // pred_check_branch
        %11007 = sbr.rel (%p11005) target = $region172
      $region171: #{net_forward.1} parent=5 // pred_region
        %s11008 = ssub.s32 %s35, 2
        // Predicated region
        $region173: #{net_forward.1} parent=171 // pred_check
          %p11009 = pneg %p510
        $region174: #{net_forward.1} parent=171 // pred_check_branch
          %11011 = sbr.rel (%p11009) target = $region176
        $region175: #{net_forward.1} parent=171 // pred_region
          %p11012 = scmp.lt.s32.totalorder %s41, 1
          %s11013 = scalar_select %p11012, %s41, 1
          %s11014 = smul.addr %s11013, 2
          %s11015 = scalar_lea.vmem %s21, %s11014
        $region176: #{net_forward.1} parent=171 // pred_fallthru
          _
      $region172: #{net_forward.1} parent=5 // pred_fallthru
        _
    $region6: #{net_forward.1} parent=1 // loop_footer
      %s39 = sadd.s32 1, %s35
    $region7: #{net_forward.1} parent=1 // loop_footer_branch
      %34 = sbr.rel target = $region3
    $region8: #{net_forward.1} parent=1 // loop_exit
      _
    %11016 = vsyncpa [#allocation3], 1
    %s11017 = scalar_lea.sflag [#allocation3], 1
    %11018 = vsyncpa %s11017, 1
    %11019 = vsyncpa [#allocation5], 1
    %11020 = vsyncpa [#allocation8], 1
    %11021 = vsyncpa [#allocation11], 1
    %11022 = vsyncpa [#allocation14], 1
    %11023 = vsyncpa [#allocation17], 1
    %11024 = vsyncpa [#allocation20], 1
    %11025 = vsyncpa [#allocation23], 1

</llo_original>
